<compile_context>
chip_gen: v7x
topology: tpu7x:2x2x1
jax: 0.10.0
libtpu: 0.0.40
codegen_flags: <defaults>
</compile_context>

<pallas_src>
from functools import partial

import jax
import jax.numpy as jnp
from jax.experimental import pallas as pl
from jax.experimental.pallas import tpu as pltpu


# ----------------------------------------------------------------------------
# Forgetful-selection median network (pure min/max compare-exchanges).
# ----------------------------------------------------------------------------
def _compare_exchange(a, b):
    return jnp.minimum(a, b), jnp.maximum(a, b)


def _drop_min_and_max(vals):
    """Remove one min-instance and one max-instance from `vals`.

    Uses a permutation-preserving compare-exchange network, so the multiset of
    the returned values is exactly the input multiset minus one occurrence of
    its minimum and one of its maximum.
    """
    s = len(vals)
    half = s // 2

    # Pairwise split: mins go to `lows`, maxes to `highs`.
    lows, highs = [], []
    for i in range(half):
        lo, hi = _compare_exchange(vals[2 * i], vals[2 * i + 1])
        lows.append(lo)
        highs.append(hi)
    extra = [vals[-1]] if (s % 2 == 1) else []

    # Global min lives in lows + extra: bubble it into slot 0.
    min_pool = lows + extra
    for i in range(1, len(min_pool)):
        lo, hi = _compare_exchange(min_pool[0], min_pool[i])
        min_pool[0], min_pool[i] = lo, hi

    # Global max lives in highs + (extra slot's current value): bubble to slot 0.
    max_pool = highs + min_pool[len(lows):]
    for i in range(1, len(max_pool)):
        lo, hi = _compare_exchange(max_pool[0], max_pool[i])
        max_pool[0], max_pool[i] = hi, lo

    # Drop the min slot (min_pool[0]) and the max slot (max_pool[0]).
    remaining = min_pool[1:len(lows)]        # surviving "low" slots
    remaining += max_pool[1:len(highs)]      # surviving "high" slots
    remaining += max_pool[len(highs):]       # the odd/extra slot, if any
    return remaining


def _forgetful_median(load_fn, n):
    """Lower median of n (odd) values, loading values lazily via load_fn(i)."""
    if n % 2 == 0:
        raise NotImplementedError("even kernel_size not supported")
    start = (n + 3) // 2                      # 14 for a 5x5 window
    work = [load_fn(i) for i in range(start)]
    nxt = start
    while True:
        work = _drop_min_and_max(work)
        if nxt >= n:
            break
        work.append(load_fn(nxt))
        nxt += 1
    assert len(work) == 1
    return work[0]


# ----------------------------------------------------------------------------
# Pallas kernel
# ----------------------------------------------------------------------------
def _median_filter_kernel(xp_ref, out_ref, *, ksize, tile_h, W):
    # xp_ref : (H + 2p, W + 2p, lane_block) padded, channels-last
    # out_ref: (tile_h,  W,     lane_block)
    h = pl.program_id(1)
    row0 = pl.multiple_of(h * tile_h, tile_h)

    def load_window(idx):
        dy, dx = divmod(idx, ksize)
        return xp_ref[pl.ds(row0 + dy, tile_h), pl.ds(dx, W), :]

    out_ref[...] = _forgetful_median(load_window, ksize * ksize)


def _pick_tile_h(H, max_tile=128):
    if H <= max_tile:
        return H
    for cand in range(max_tile, 7, -1):
        if H % cand == 0:
            return cand
    return H  # awkward H (e.g. large prime): fall back to full rows


@partial(jax.jit, static_argnames=("kernel_size",))
def learnable_median_filter(img, kernel_size=5):
    """img: (B, C, H, W) -> (B, C, H, W) median-filtered (reflect padding)."""
    if kernel_size % 2 == 0:
        raise NotImplementedError("even kernel_size not supported")
    B, C, H, W = img.shape
    p = kernel_size // 2
    Hp, Wp = H + 2 * p, W + 2 * p
    BC = B * C

    # F.pad(..., mode='reflect')  ==  jnp.pad(..., mode='reflect')
    xp = jnp.pad(img, ((0, 0), (0, 0), (p, p), (p, p)), mode="reflect")
    # Channels-last: plane axis -> lanes.
    xcl = jnp.transpose(xp.reshape(BC, Hp, Wp), (1, 2, 0))  # (Hp, Wp, BC)

    # Lane blocking: 128-wide blocks when possible, else the full plane axis
    # (a block equal to the full array dim is always legal).
    lane_block = 128 if (BC % 128 == 0) else BC
    num_lane = BC // lane_block

    # H tiling bounds the size of the window temporaries.
    tile_h = _pick_tile_h(H)
    num_h = H // tile_h

    kern = partial(_median_filter_kernel, ksize=kernel_size, tile_h=tile_h, W=W)
    out_cl = pl.pallas_call(
        kern,
        out_shape=jax.ShapeDtypeStruct((H, W, BC), img.dtype),
        grid=(num_lane, num_h),
        in_specs=[
            # Full padded plane per lane block; constant over the h axis, so it
            # is not re-DMA'd between consecutive h steps.
            pl.BlockSpec((Hp, Wp, lane_block), lambda l, h: (0, 0, l)),
        ],
        out_specs=pl.BlockSpec((tile_h, W, lane_block), lambda l, h: (h, 0, l)),
        compiler_params=pltpu.CompilerParams(
            dimension_semantics=("parallel", "arbitrary"),
        ),
    )(xcl)

    # Back to NCHW.
    return jnp.transpose(out_cl, (2, 0, 1)).reshape(B, C, H, W)


if __name__ == "__main__":
    # LearnableMedianFilter has no learnable parameters; kernel_size=5 as in __init__.
    B, C, H, W = 2, 4, 16, 16
    ksize = 5

    key = jax.random.PRNGKey(0)
    x = jax.random.normal(key, (B, C, H, W), dtype=jnp.float32)

    out = learnable_median_filter(x, kernel_size=ksize)
    out = jax.block_until_ready(out)

    # Plain-JAX reference: lower median of each 5x5 window (== torch unfold+median).
    p = ksize // 2
    xp_ref = jnp.pad(x, ((0, 0), (0, 0), (p, p), (p, p)), mode="reflect")
    patches = jnp.stack(
        [xp_ref[:, :, dy:dy + H, dx:dx + W] for dy in range(ksize) for dx in range(ksize)],
        axis=2,
    )
    ref = jnp.sort(patches, axis=2)[:, :, (ksize * ksize - 1) // 2]
    assert out.shape == (B, C, H, W)
    assert jnp.array_equal(out, ref), "median filter mismatch vs reference"

    print("KERNEL_OK")
</pallas_src>

<mosaic_0001>
module attributes {stable_mosaic.version = 11 : i64} {
  func.func @_median_filter_kernel(%arg0: i32, %arg1: i32, %arg2: memref<20x20x8xf32, #tpu.memory_space<vmem>>, %arg3: memref<16x16x8xf32, #tpu.memory_space<vmem>>) attributes {dimension_semantics = [#tpu.dimension_semantics<parallel>, #tpu.dimension_semantics<arbitrary>], iteration_bounds = array<i64: 1, 1>, scalar_prefetch = 0 : i64, scratch_operands = 0 : i64, tpu.core_type = #tpu.core_type<tc>, window_params = [{transform_indices = @transform_0, window_bounds = array<i64: 20, 20, 8>}, {transform_indices = @transform_1, window_bounds = array<i64: 16, 16, 8>}]} {
    %c16_i32 = arith.constant 16 : i32
    %0 = arith.muli %arg1, %c16_i32 : i32
    %1 = tpu.assume_multiple %0, 16 : i32
    %c0_i32 = arith.constant 0 : i32
    %2 = arith.addi %1, %c0_i32 : i32
    %3 = arith.index_cast %2 : i32 to index
    %c0 = arith.constant 0 : index
    %c0_0 = arith.constant 0 : index
    %4 = vector.load %arg2[%3, %c0, %c0_0] : memref<20x20x8xf32, #tpu.memory_space<vmem>>, vector<16x16x8xf32>
    %c0_i32_1 = arith.constant 0 : i32
    %5 = arith.addi %1, %c0_i32_1 : i32
    %6 = arith.index_cast %5 : i32 to index
    %c1 = arith.constant 1 : index
    %c0_2 = arith.constant 0 : index
    %7 = vector.load %arg2[%6, %c1, %c0_2] : memref<20x20x8xf32, #tpu.memory_space<vmem>>, vector<16x16x8xf32>
    %c0_i32_3 = arith.constant 0 : i32
    %8 = arith.addi %1, %c0_i32_3 : i32
    %9 = arith.index_cast %8 : i32 to index
    %c2 = arith.constant 2 : index
    %c0_4 = arith.constant 0 : index
    %10 = vector.load %arg2[%9, %c2, %c0_4] : memref<20x20x8xf32, #tpu.memory_space<vmem>>, vector<16x16x8xf32>
    %c0_i32_5 = arith.constant 0 : i32
    %11 = arith.addi %1, %c0_i32_5 : i32
    %12 = arith.index_cast %11 : i32 to index
    %c3 = arith.constant 3 : index
    %c0_6 = arith.constant 0 : index
    %13 = vector.load %arg2[%12, %c3, %c0_6] : memref<20x20x8xf32, #tpu.memory_space<vmem>>, vector<16x16x8xf32>
    %c0_i32_7 = arith.constant 0 : i32
    %14 = arith.addi %1, %c0_i32_7 : i32
    %15 = arith.index_cast %14 : i32 to index
    %c4 = arith.constant 4 : index
    %c0_8 = arith.constant 0 : index
    %16 = vector.load %arg2[%15, %c4, %c0_8] : memref<20x20x8xf32, #tpu.memory_space<vmem>>, vector<16x16x8xf32>
    %c1_i32 = arith.constant 1 : i32
    %17 = arith.addi %1, %c1_i32 : i32
    %18 = arith.index_cast %17 : i32 to index
    %c0_9 = arith.constant 0 : index
    %c0_10 = arith.constant 0 : index
    %19 = vector.load %arg2[%18, %c0_9, %c0_10] : memref<20x20x8xf32, #tpu.memory_space<vmem>>, vector<16x16x8xf32>
    %c1_i32_11 = arith.constant 1 : i32
    %20 = arith.addi %1, %c1_i32_11 : i32
    %21 = arith.index_cast %20 : i32 to index
    %c1_12 = arith.constant 1 : index
    %c0_13 = arith.constant 0 : index
    %22 = vector.load %arg2[%21, %c1_12, %c0_13] : memref<20x20x8xf32, #tpu.memory_space<vmem>>, vector<16x16x8xf32>
    %c1_i32_14 = arith.constant 1 : i32
    %23 = arith.addi %1, %c1_i32_14 : i32
    %24 = arith.index_cast %23 : i32 to index
    %c2_15 = arith.constant 2 : index
    %c0_16 = arith.constant 0 : index
    %25 = vector.load %arg2[%24, %c2_15, %c0_16] : memref<20x20x8xf32, #tpu.memory_space<vmem>>, vector<16x16x8xf32>
    %c1_i32_17 = arith.constant 1 : i32
    %26 = arith.addi %1, %c1_i32_17 : i32
    %27 = arith.index_cast %26 : i32 to index
    %c3_18 = arith.constant 3 : index
    %c0_19 = arith.constant 0 : index
    %28 = vector.load %arg2[%27, %c3_18, %c0_19] : memref<20x20x8xf32, #tpu.memory_space<vmem>>, vector<16x16x8xf32>
    %c1_i32_20 = arith.constant 1 : i32
    %29 = arith.addi %1, %c1_i32_20 : i32
    %30 = arith.index_cast %29 : i32 to index
    %c4_21 = arith.constant 4 : index
    %c0_22 = arith.constant 0 : index
    %31 = vector.load %arg2[%30, %c4_21, %c0_22] : memref<20x20x8xf32, #tpu.memory_space<vmem>>, vector<16x16x8xf32>
    %c2_i32 = arith.constant 2 : i32
    %32 = arith.addi %1, %c2_i32 : i32
    %33 = arith.index_cast %32 : i32 to index
    %c0_23 = arith.constant 0 : index
    %c0_24 = arith.constant 0 : index
    %34 = vector.load %arg2[%33, %c0_23, %c0_24] : memref<20x20x8xf32, #tpu.memory_space<vmem>>, vector<16x16x8xf32>
    %c2_i32_25 = arith.constant 2 : i32
    %35 = arith.addi %1, %c2_i32_25 : i32
    %36 = arith.index_cast %35 : i32 to index
    %c1_26 = arith.constant 1 : index
    %c0_27 = arith.constant 0 : index
    %37 = vector.load %arg2[%36, %c1_26, %c0_27] : memref<20x20x8xf32, #tpu.memory_space<vmem>>, vector<16x16x8xf32>
    %c2_i32_28 = arith.constant 2 : i32
    %38 = arith.addi %1, %c2_i32_28 : i32
    %39 = arith.index_cast %38 : i32 to index
    %c2_29 = arith.constant 2 : index
    %c0_30 = arith.constant 0 : index
    %40 = vector.load %arg2[%39, %c2_29, %c0_30] : memref<20x20x8xf32, #tpu.memory_space<vmem>>, vector<16x16x8xf32>
    %c2_i32_31 = arith.constant 2 : i32
    %41 = arith.addi %1, %c2_i32_31 : i32
    %42 = arith.index_cast %41 : i32 to index
    %c3_32 = arith.constant 3 : index
    %c0_33 = arith.constant 0 : index
    %43 = vector.load %arg2[%42, %c3_32, %c0_33] : memref<20x20x8xf32, #tpu.memory_space<vmem>>, vector<16x16x8xf32>
    %44 = arith.minimumf %4, %7 : vector<16x16x8xf32>
    %45 = arith.maximumf %4, %7 : vector<16x16x8xf32>
    %46 = arith.minimumf %10, %13 : vector<16x16x8xf32>
    %47 = arith.maximumf %10, %13 : vector<16x16x8xf32>
    %48 = arith.minimumf %16, %19 : vector<16x16x8xf32>
    %49 = arith.maximumf %16, %19 : vector<16x16x8xf32>
    %50 = arith.minimumf %22, %25 : vector<16x16x8xf32>
    %51 = arith.maximumf %22, %25 : vector<16x16x8xf32>
    %52 = arith.minimumf %28, %31 : vector<16x16x8xf32>
    %53 = arith.maximumf %28, %31 : vector<16x16x8xf32>
    %54 = arith.minimumf %34, %37 : vector<16x16x8xf32>
    %55 = arith.maximumf %34, %37 : vector<16x16x8xf32>
    %56 = arith.minimumf %40, %43 : vector<16x16x8xf32>
    %57 = arith.maximumf %40, %43 : vector<16x16x8xf32>
    %58 = arith.minimumf %44, %46 : vector<16x16x8xf32>
    %59 = arith.maximumf %44, %46 : vector<16x16x8xf32>
    %60 = arith.minimumf %58, %48 : vector<16x16x8xf32>
    %61 = arith.maximumf %58, %48 : vector<16x16x8xf32>
    %62 = arith.minimumf %60, %50 : vector<16x16x8xf32>
    %63 = arith.maximumf %60, %50 : vector<16x16x8xf32>
    %64 = arith.minimumf %62, %52 : vector<16x16x8xf32>
    %65 = arith.maximumf %62, %52 : vector<16x16x8xf32>
    %66 = arith.minimumf %64, %54 : vector<16x16x8xf32>
    %67 = arith.maximumf %64, %54 : vector<16x16x8xf32>
    %68 = arith.maximumf %66, %56 : vector<16x16x8xf32>
    %69 = arith.minimumf %45, %47 : vector<16x16x8xf32>
    %70 = arith.maximumf %45, %47 : vector<16x16x8xf32>
    %71 = arith.minimumf %70, %49 : vector<16x16x8xf32>
    %72 = arith.maximumf %70, %49 : vector<16x16x8xf32>
    %73 = arith.minimumf %72, %51 : vector<16x16x8xf32>
    %74 = arith.maximumf %72, %51 : vector<16x16x8xf32>
    %75 = arith.minimumf %74, %53 : vector<16x16x8xf32>
    %76 = arith.maximumf %74, %53 : vector<16x16x8xf32>
    %77 = arith.minimumf %76, %55 : vector<16x16x8xf32>
    %78 = arith.maximumf %76, %55 : vector<16x16x8xf32>
    %79 = arith.minimumf %78, %57 : vector<16x16x8xf32>
    %c2_i32_34 = arith.constant 2 : i32
    %80 = arith.addi %1, %c2_i32_34 : i32
    %81 = arith.index_cast %80 : i32 to index
    %c4_35 = arith.constant 4 : index
    %c0_36 = arith.constant 0 : index
    %82 = vector.load %arg2[%81, %c4_35, %c0_36] : memref<20x20x8xf32, #tpu.memory_space<vmem>>, vector<16x16x8xf32>
    %83 = arith.minimumf %59, %61 : vector<16x16x8xf32>
    %84 = arith.maximumf %59, %61 : vector<16x16x8xf32>
    %85 = arith.minimumf %63, %65 : vector<16x16x8xf32>
    %86 = arith.maximumf %63, %65 : vector<16x16x8xf32>
    %87 = arith.minimumf %67, %68 : vector<16x16x8xf32>
    %88 = arith.maximumf %67, %68 : vector<16x16x8xf32>
    %89 = arith.minimumf %69, %71 : vector<16x16x8xf32>
    %90 = arith.maximumf %69, %71 : vector<16x16x8xf32>
    %91 = arith.minimumf %73, %75 : vector<16x16x8xf32>
    %92 = arith.maximumf %73, %75 : vector<16x16x8xf32>
    %93 = arith.minimumf %77, %79 : vector<16x16x8xf32>
    %94 = arith.maximumf %77, %79 : vector<16x16x8xf32>
    %95 = arith.minimumf %83, %85 : vector<16x16x8xf32>
    %96 = arith.maximumf %83, %85 : vector<16x16x8xf32>
    %97 = arith.minimumf %95, %87 : vector<16x16x8xf32>
    %98 = arith.maximumf %95, %87 : vector<16x16x8xf32>
    %99 = arith.minimumf %97, %89 : vector<16x16x8xf32>
    %100 = arith.maximumf %97, %89 : vector<16x16x8xf32>
    %101 = arith.minimumf %99, %91 : vector<16x16x8xf32>
    %102 = arith.maximumf %99, %91 : vector<16x16x8xf32>
    %103 = arith.minimumf %101, %93 : vector<16x16x8xf32>
    %104 = arith.maximumf %101, %93 : vector<16x16x8xf32>
    %105 = arith.maximumf %103, %82 : vector<16x16x8xf32>
    %106 = arith.minimumf %84, %86 : vector<16x16x8xf32>
    %107 = arith.maximumf %84, %86 : vector<16x16x8xf32>
    %108 = arith.minimumf %107, %88 : vector<16x16x8xf32>
    %109 = arith.maximumf %107, %88 : vector<16x16x8xf32>
    %110 = arith.minimumf %109, %90 : vector<16x16x8xf32>
    %111 = arith.maximumf %109, %90 : vector<16x16x8xf32>
    %112 = arith.minimumf %111, %92 : vector<16x16x8xf32>
    %113 = arith.maximumf %111, %92 : vector<16x16x8xf32>
    %114 = arith.minimumf %113, %94 : vector<16x16x8xf32>
    %115 = arith.maximumf %113, %94 : vector<16x16x8xf32>
    %116 = arith.minimumf %115, %105 : vector<16x16x8xf32>
    %c3_i32 = arith.constant 3 : i32
    %117 = arith.addi %1, %c3_i32 : i32
    %118 = arith.index_cast %117 : i32 to index
    %c0_37 = arith.constant 0 : index
    %c0_38 = arith.constant 0 : index
    %119 = vector.load %arg2[%118, %c0_37, %c0_38] : memref<20x20x8xf32, #tpu.memory_space<vmem>>, vector<16x16x8xf32>
    %120 = arith.minimumf %96, %98 : vector<16x16x8xf32>
    %121 = arith.maximumf %96, %98 : vector<16x16x8xf32>
    %122 = arith.minimumf %100, %102 : vector<16x16x8xf32>
    %123 = arith.maximumf %100, %102 : vector<16x16x8xf32>
    %124 = arith.minimumf %104, %106 : vector<16x16x8xf32>
    %125 = arith.maximumf %104, %106 : vector<16x16x8xf32>
    %126 = arith.minimumf %108, %110 : vector<16x16x8xf32>
    %127 = arith.maximumf %108, %110 : vector<16x16x8xf32>
    %128 = arith.minimumf %112, %114 : vector<16x16x8xf32>
    %129 = arith.maximumf %112, %114 : vector<16x16x8xf32>
    %130 = arith.minimumf %116, %119 : vector<16x16x8xf32>
    %131 = arith.maximumf %116, %119 : vector<16x16x8xf32>
    %132 = arith.minimumf %120, %122 : vector<16x16x8xf32>
    %133 = arith.maximumf %120, %122 : vector<16x16x8xf32>
    %134 = arith.minimumf %132, %124 : vector<16x16x8xf32>
    %135 = arith.maximumf %132, %124 : vector<16x16x8xf32>
    %136 = arith.minimumf %134, %126 : vector<16x16x8xf32>
    %137 = arith.maximumf %134, %126 : vector<16x16x8xf32>
    %138 = arith.minimumf %136, %128 : vector<16x16x8xf32>
    %139 = arith.maximumf %136, %128 : vector<16x16x8xf32>
    %140 = arith.maximumf %138, %130 : vector<16x16x8xf32>
    %141 = arith.minimumf %121, %123 : vector<16x16x8xf32>
    %142 = arith.maximumf %121, %123 : vector<16x16x8xf32>
    %143 = arith.minimumf %142, %125 : vector<16x16x8xf32>
    %144 = arith.maximumf %142, %125 : vector<16x16x8xf32>
    %145 = arith.minimumf %144, %127 : vector<16x16x8xf32>
    %146 = arith.maximumf %144, %127 : vector<16x16x8xf32>
    %147 = arith.minimumf %146, %129 : vector<16x16x8xf32>
    %148 = arith.maximumf %146, %129 : vector<16x16x8xf32>
    %149 = arith.minimumf %148, %131 : vector<16x16x8xf32>
    %c3_i32_39 = arith.constant 3 : i32
    %150 = arith.addi %1, %c3_i32_39 : i32
    %151 = arith.index_cast %150 : i32 to index
    %c1_40 = arith.constant 1 : index
    %c0_41 = arith.constant 0 : index
    %152 = vector.load %arg2[%151, %c1_40, %c0_41] : memref<20x20x8xf32, #tpu.memory_space<vmem>>, vector<16x16x8xf32>
    %153 = arith.minimumf %133, %135 : vector<16x16x8xf32>
    %154 = arith.maximumf %133, %135 : vector<16x16x8xf32>
    %155 = arith.minimumf %137, %139 : vector<16x16x8xf32>
    %156 = arith.maximumf %137, %139 : vector<16x16x8xf32>
    %157 = arith.minimumf %140, %141 : vector<16x16x8xf32>
    %158 = arith.maximumf %140, %141 : vector<16x16x8xf32>
    %159 = arith.minimumf %143, %145 : vector<16x16x8xf32>
    %160 = arith.maximumf %143, %145 : vector<16x16x8xf32>
    %161 = arith.minimumf %147, %149 : vector<16x16x8xf32>
    %162 = arith.maximumf %147, %149 : vector<16x16x8xf32>
    %163 = arith.minimumf %153, %155 : vector<16x16x8xf32>
    %164 = arith.maximumf %153, %155 : vector<16x16x8xf32>
    %165 = arith.minimumf %163, %157 : vector<16x16x8xf32>
    %166 = arith.maximumf %163, %157 : vector<16x16x8xf32>
    %167 = arith.minimumf %165, %159 : vector<16x16x8xf32>
    %168 = arith.maximumf %165, %159 : vector<16x16x8xf32>
    %169 = arith.minimumf %167, %161 : vector<16x16x8xf32>
    %170 = arith.maximumf %167, %161 : vector<16x16x8xf32>
    %171 = arith.maximumf %169, %152 : vector<16x16x8xf32>
    %172 = arith.minimumf %154, %156 : vector<16x16x8xf32>
    %173 = arith.maximumf %154, %156 : vector<16x16x8xf32>
    %174 = arith.minimumf %173, %158 : vector<16x16x8xf32>
    %175 = arith.maximumf %173, %158 : vector<16x16x8xf32>
    %176 = arith.minimumf %175, %160 : vector<16x16x8xf32>
    %177 = arith.maximumf %175, %160 : vector<16x16x8xf32>
    %178 = arith.minimumf %177, %162 : vector<16x16x8xf32>
    %179 = arith.maximumf %177, %162 : vector<16x16x8xf32>
    %180 = arith.minimumf %179, %171 : vector<16x16x8xf32>
    %c3_i32_42 = arith.constant 3 : i32
    %181 = arith.addi %1, %c3_i32_42 : i32
    %182 = arith.index_cast %181 : i32 to index
    %c2_43 = arith.constant 2 : index
    %c0_44 = arith.constant 0 : index
    %183 = vector.load %arg2[%182, %c2_43, %c0_44] : memref<20x20x8xf32, #tpu.memory_space<vmem>>, vector<16x16x8xf32>
    %184 = arith.minimumf %164, %166 : vector<16x16x8xf32>
    %185 = arith.maximumf %164, %166 : vector<16x16x8xf32>
    %186 = arith.minimumf %168, %170 : vector<16x16x8xf32>
    %187 = arith.maximumf %168, %170 : vector<16x16x8xf32>
    %188 = arith.minimumf %172, %174 : vector<16x16x8xf32>
    %189 = arith.maximumf %172, %174 : vector<16x16x8xf32>
    %190 = arith.minimumf %176, %178 : vector<16x16x8xf32>
    %191 = arith.maximumf %176, %178 : vector<16x16x8xf32>
    %192 = arith.minimumf %180, %183 : vector<16x16x8xf32>
    %193 = arith.maximumf %180, %183 : vector<16x16x8xf32>
    %194 = arith.minimumf %184, %186 : vector<16x16x8xf32>
    %195 = arith.maximumf %184, %186 : vector<16x16x8xf32>
    %196 = arith.minimumf %194, %188 : vector<16x16x8xf32>
    %197 = arith.maximumf %194, %188 : vector<16x16x8xf32>
    %198 = arith.minimumf %196, %190 : vector<16x16x8xf32>
    %199 = arith.maximumf %196, %190 : vector<16x16x8xf32>
    %200 = arith.maximumf %198, %192 : vector<16x16x8xf32>
    %201 = arith.minimumf %185, %187 : vector<16x16x8xf32>
    %202 = arith.maximumf %185, %187 : vector<16x16x8xf32>
    %203 = arith.minimumf %202, %189 : vector<16x16x8xf32>
    %204 = arith.maximumf %202, %189 : vector<16x16x8xf32>
    %205 = arith.minimumf %204, %191 : vector<16x16x8xf32>
    %206 = arith.maximumf %204, %191 : vector<16x16x8xf32>
    %207 = arith.minimumf %206, %193 : vector<16x16x8xf32>
    %c3_i32_45 = arith.constant 3 : i32
    %208 = arith.addi %1, %c3_i32_45 : i32
    %209 = arith.index_cast %208 : i32 to index
    %c3_46 = arith.constant 3 : index
    %c0_47 = arith.constant 0 : index
    %210 = vector.load %arg2[%209, %c3_46, %c0_47] : memref<20x20x8xf32, #tpu.memory_space<vmem>>, vector<16x16x8xf32>
    %211 = arith.minimumf %195, %197 : vector<16x16x8xf32>
    %212 = arith.maximumf %195, %197 : vector<16x16x8xf32>
    %213 = arith.minimumf %199, %200 : vector<16x16x8xf32>
    %214 = arith.maximumf %199, %200 : vector<16x16x8xf32>
    %215 = arith.minimumf %201, %203 : vector<16x16x8xf32>
    %216 = arith.maximumf %201, %203 : vector<16x16x8xf32>
    %217 = arith.minimumf %205, %207 : vector<16x16x8xf32>
    %218 = arith.maximumf %205, %207 : vector<16x16x8xf32>
    %219 = arith.minimumf %211, %213 : vector<16x16x8xf32>
    %220 = arith.maximumf %211, %213 : vector<16x16x8xf32>
    %221 = arith.minimumf %219, %215 : vector<16x16x8xf32>
    %222 = arith.maximumf %219, %215 : vector<16x16x8xf32>
    %223 = arith.minimumf %221, %217 : vector<16x16x8xf32>
    %224 = arith.maximumf %221, %217 : vector<16x16x8xf32>
    %225 = arith.maximumf %223, %210 : vector<16x16x8xf32>
    %226 = arith.minimumf %212, %214 : vector<16x16x8xf32>
    %227 = arith.maximumf %212, %214 : vector<16x16x8xf32>
    %228 = arith.minimumf %227, %216 : vector<16x16x8xf32>
    %229 = arith.maximumf %227, %216 : vector<16x16x8xf32>
    %230 = arith.minimumf %229, %218 : vector<16x16x8xf32>
    %231 = arith.maximumf %229, %218 : vector<16x16x8xf32>
    %232 = arith.minimumf %231, %225 : vector<16x16x8xf32>
    %c3_i32_48 = arith.constant 3 : i32
    %233 = arith.addi %1, %c3_i32_48 : i32
    %234 = arith.index_cast %233 : i32 to index
    %c4_49 = arith.constant 4 : index
    %c0_50 = arith.constant 0 : index
    %235 = vector.load %arg2[%234, %c4_49, %c0_50] : memref<20x20x8xf32, #tpu.memory_space<vmem>>, vector<16x16x8xf32>
    %236 = arith.minimumf %220, %222 : vector<16x16x8xf32>
    %237 = arith.maximumf %220, %222 : vector<16x16x8xf32>
    %238 = arith.minimumf %224, %226 : vector<16x16x8xf32>
    %239 = arith.maximumf %224, %226 : vector<16x16x8xf32>
    %240 = arith.minimumf %228, %230 : vector<16x16x8xf32>
    %241 = arith.maximumf %228, %230 : vector<16x16x8xf32>
    %242 = arith.minimumf %232, %235 : vector<16x16x8xf32>
    %243 = arith.maximumf %232, %235 : vector<16x16x8xf32>
    %244 = arith.minimumf %236, %238 : vector<16x16x8xf32>
    %245 = arith.maximumf %236, %238 : vector<16x16x8xf32>
    %246 = arith.minimumf %244, %240 : vector<16x16x8xf32>
    %247 = arith.maximumf %244, %240 : vector<16x16x8xf32>
    %248 = arith.maximumf %246, %242 : vector<16x16x8xf32>
    %249 = arith.minimumf %237, %239 : vector<16x16x8xf32>
    %250 = arith.maximumf %237, %239 : vector<16x16x8xf32>
    %251 = arith.minimumf %250, %241 : vector<16x16x8xf32>
    %252 = arith.maximumf %250, %241 : vector<16x16x8xf32>
    %253 = arith.minimumf %252, %243 : vector<16x16x8xf32>
    %c4_i32 = arith.constant 4 : i32
    %254 = arith.addi %1, %c4_i32 : i32
    %255 = arith.index_cast %254 : i32 to index
    %c0_51 = arith.constant 0 : index
    %c0_52 = arith.constant 0 : index
    %256 = vector.load %arg2[%255, %c0_51, %c0_52] : memref<20x20x8xf32, #tpu.memory_space<vmem>>, vector<16x16x8xf32>
    %257 = arith.minimumf %245, %247 : vector<16x16x8xf32>
    %258 = arith.maximumf %245, %247 : vector<16x16x8xf32>
    %259 = arith.minimumf %248, %249 : vector<16x16x8xf32>
    %260 = arith.maximumf %248, %249 : vector<16x16x8xf32>
    %261 = arith.minimumf %251, %253 : vector<16x16x8xf32>
    %262 = arith.maximumf %251, %253 : vector<16x16x8xf32>
    %263 = arith.minimumf %257, %259 : vector<16x16x8xf32>
    %264 = arith.maximumf %257, %259 : vector<16x16x8xf32>
    %265 = arith.minimumf %263, %261 : vector<16x16x8xf32>
    %266 = arith.maximumf %263, %261 : vector<16x16x8xf32>
    %267 = arith.maximumf %265, %256 : vector<16x16x8xf32>
    %268 = arith.minimumf %258, %260 : vector<16x16x8xf32>
    %269 = arith.maximumf %258, %260 : vector<16x16x8xf32>
    %270 = arith.minimumf %269, %262 : vector<16x16x8xf32>
    %271 = arith.maximumf %269, %262 : vector<16x16x8xf32>
    %272 = arith.minimumf %271, %267 : vector<16x16x8xf32>
    %c4_i32_53 = arith.constant 4 : i32
    %273 = arith.addi %1, %c4_i32_53 : i32
    %274 = arith.index_cast %273 : i32 to index
    %c1_54 = arith.constant 1 : index
    %c0_55 = arith.constant 0 : index
    %275 = vector.load %arg2[%274, %c1_54, %c0_55] : memref<20x20x8xf32, #tpu.memory_space<vmem>>, vector<16x16x8xf32>
    %276 = arith.minimumf %264, %266 : vector<16x16x8xf32>
    %277 = arith.maximumf %264, %266 : vector<16x16x8xf32>
    %278 = arith.minimumf %268, %270 : vector<16x16x8xf32>
    %279 = arith.maximumf %268, %270 : vector<16x16x8xf32>
    %280 = arith.minimumf %272, %275 : vector<16x16x8xf32>
    %281 = arith.maximumf %272, %275 : vector<16x16x8xf32>
    %282 = arith.minimumf %276, %278 : vector<16x16x8xf32>
    %283 = arith.maximumf %276, %278 : vector<16x16x8xf32>
    %284 = arith.maximumf %282, %280 : vector<16x16x8xf32>
    %285 = arith.minimumf %277, %279 : vector<16x16x8xf32>
    %286 = arith.maximumf %277, %279 : vector<16x16x8xf32>
    %287 = arith.minimumf %286, %281 : vector<16x16x8xf32>
    %c4_i32_56 = arith.constant 4 : i32
    %288 = arith.addi %1, %c4_i32_56 : i32
    %289 = arith.index_cast %288 : i32 to index
    %c2_57 = arith.constant 2 : index
    %c0_58 = arith.constant 0 : index
    %290 = vector.load %arg2[%289, %c2_57, %c0_58] : memref<20x20x8xf32, #tpu.memory_space<vmem>>, vector<16x16x8xf32>
    %291 = arith.minimumf %283, %284 : vector<16x16x8xf32>
    %292 = arith.maximumf %283, %284 : vector<16x16x8xf32>
    %293 = arith.minimumf %285, %287 : vector<16x16x8xf32>
    %294 = arith.maximumf %285, %287 : vector<16x16x8xf32>
    %295 = arith.minimumf %291, %293 : vector<16x16x8xf32>
    %296 = arith.maximumf %291, %293 : vector<16x16x8xf32>
    %297 = arith.maximumf %295, %290 : vector<16x16x8xf32>
    %298 = arith.minimumf %292, %294 : vector<16x16x8xf32>
    %299 = arith.maximumf %292, %294 : vector<16x16x8xf32>
    %300 = arith.minimumf %299, %297 : vector<16x16x8xf32>
    %c4_i32_59 = arith.constant 4 : i32
    %301 = arith.addi %1, %c4_i32_59 : i32
    %302 = arith.index_cast %301 : i32 to index
    %c3_60 = arith.constant 3 : index
    %c0_61 = arith.constant 0 : index
    %303 = vector.load %arg2[%302, %c3_60, %c0_61] : memref<20x20x8xf32, #tpu.memory_space<vmem>>, vector<16x16x8xf32>
    %304 = arith.minimumf %296, %298 : vector<16x16x8xf32>
    %305 = arith.maximumf %296, %298 : vector<16x16x8xf32>
    %306 = arith.minimumf %300, %303 : vector<16x16x8xf32>
    %307 = arith.maximumf %300, %303 : vector<16x16x8xf32>
    %308 = arith.maximumf %304, %306 : vector<16x16x8xf32>
    %309 = arith.minimumf %305, %307 : vector<16x16x8xf32>
    %c4_i32_62 = arith.constant 4 : i32
    %310 = arith.addi %1, %c4_i32_62 : i32
    %311 = arith.index_cast %310 : i32 to index
    %c4_63 = arith.constant 4 : index
    %c0_64 = arith.constant 0 : index
    %312 = vector.load %arg2[%311, %c4_63, %c0_64] : memref<20x20x8xf32, #tpu.memory_space<vmem>>, vector<16x16x8xf32>
    %313 = arith.minimumf %308, %309 : vector<16x16x8xf32>
    %314 = arith.maximumf %308, %309 : vector<16x16x8xf32>
    %315 = arith.maximumf %313, %312 : vector<16x16x8xf32>
    %316 = arith.minimumf %314, %315 : vector<16x16x8xf32>
    %c0_65 = arith.constant 0 : index
    %c0_66 = arith.constant 0 : index
    %c0_67 = arith.constant 0 : index
    %317 = vector.load %arg3[%c0_65, %c0_66, %c0_67] : memref<16x16x8xf32, #tpu.memory_space<vmem>>, vector<16x16x8xf32>
    tpu.vector_store %arg3[%c0_65, %c0_66, %c0_67], %316 {strides = array<i32>} : memref<16x16x8xf32, #tpu.memory_space<vmem>>, vector<16x16x8xf32>,
    return
  }
  func.func @transform_0(%arg0: i32, %arg1: i32) -> (i32, i32, i32) {
    %c0_i32 = arith.constant 0 : i32
    %c0_i32_0 = arith.constant 0 : i32
    %c0_i32_1 = arith.constant 0 : i32
    return %c0_i32, %c0_i32_0, %arg0 : i32, i32, i32
  }
  func.func @transform_1(%arg0: i32, %arg1: i32) -> (i32, i32, i32) {
    %c0_i32 = arith.constant 0 : i32
    %c0_i32_0 = arith.constant 0 : i32
    return %arg1, %c0_i32, %arg0 : i32, i32, i32
  }
}

</mosaic_0001>

<llo_original>
// kernel: learnable_median_filter.1
$region0: #{learnable_median_filter.1}
  #allocation0 [shape = 'u32[]', space=smem, size = 0x4, offset = 0x4, fixed_abs, tag = 'smem constant byte address 0x4 - core index']
  #allocation1 [shape = 'u32[144,128]{1,0:T(1,128)}', space=vmem, size = 0x12000, scoped, tag = 'internal scratch']
  %s0 = inlined_call_operand.vmem [shape: f32[20,20,8], index: 0, kind: input, shape index: {}]
  %s1 = inlined_call_operand.vmem [shape: f32[16,16,8], index: 1, kind: output, shape index: {}]
  %s2 = sld [smem:[#allocation0]]
  $region14: #{learnable_median_filter.1} parent=0
    _
  %s4 = ssub.s32 1, %s2
  %s5 = scalar_select 0, %s4, %s2
  // Predicated region
  $region2: #{learnable_median_filter.1} parent=0 // pred_check
    _
  $region3: #{learnable_median_filter.1} parent=0 // pred_check_branch
    %7 = sbr.rel (0) target = $region5
  $region4: #{learnable_median_filter.1} parent=0 // pred_region
    _
  $region5: #{learnable_median_filter.1} parent=0 // pred_fallthru
    _
  %s8 = smul.u32 0, 16
  %s9 = smul.u32 %s8, 24
  %s10 = scalar_lea.vmem %s0, %s9
  %v11 = vld [vmem:[%s10] sm:$0xff]
  %v12 = vld [vmem:[%s10 + $0x8] sm:$0xff]
  %v13 = vld [vmem:[%s10 + $0x18] sm:$0xff]
  %v14 = vld [vmem:[%s10 + $0x20] sm:$0xff]
  %v15 = vld [vmem:[%s10 + $0x30] sm:$0xff]
  %v16 = vld [vmem:[%s10 + $0x38] sm:$0xff]
  %v17 = vld [vmem:[%s10 + $0x48] sm:$0xff]
  %v18 = vld [vmem:[%s10 + $0x50] sm:$0xff]
  %v19 = vld [vmem:[%s10 + $0x60] sm:$0xff]
  %v20 = vld [vmem:[%s10 + $0x68] sm:$0xff]
  %v21 = vld [vmem:[%s10 + $0x78] sm:$0xff]
  %v22 = vld [vmem:[%s10 + $0x80] sm:$0xff]
  %v23 = vld [vmem:[%s10 + $0x90] sm:$0xff]
  %v24 = vld [vmem:[%s10 + $0x98] sm:$0xff]
  %v25 = vld [vmem:[%s10 + $0xa8] sm:$0xff]
  %v26 = vld [vmem:[%s10 + $0xb0] sm:$0xff]
  %v27 = vld [vmem:[%s10 + $0xc0] sm:$0xff]
  %v28 = vld [vmem:[%s10 + $0xc8] sm:$0xff]
  %v29 = vld [vmem:[%s10 + $0xd8] sm:$0xff]
  %v30 = vld [vmem:[%s10 + $0xe0] sm:$0xff]
  %v31 = vld [vmem:[%s10 + $0xf0] sm:$0xff]
  %v32 = vld [vmem:[%s10 + $0xf8] sm:$0xff]
  %v33 = vld [vmem:[%s10 + $0x108] sm:$0xff]
  %v34 = vld [vmem:[%s10 + $0x110] sm:$0xff]
  %v35 = vld [vmem:[%s10 + $0x120] sm:$0xff]
  %v36 = vld [vmem:[%s10 + $0x128] sm:$0xff]
  %v37 = vld [vmem:[%s10 + $0x138] sm:$0xff]
  %v38 = vld [vmem:[%s10 + $0x140] sm:$0xff]
  %v39 = vld [vmem:[%s10 + $0x150] sm:$0xff]
  %v40 = vld [vmem:[%s10 + $0x158] sm:$0xff]
  %v41 = vld [vmem:[%s10 + $0x168] sm:$0xff]
  %v42 = vld [vmem:[%s10 + $0x170] sm:$0xff]
  %v43 = vld [vmem:[%s10 + $0x1] sm:$0xff]
  %v44 = vld [vmem:[%s10 + $0x9] sm:$0xff]
  %v45 = vld [vmem:[%s10 + $0x19] sm:$0xff]
  %v46 = vld [vmem:[%s10 + $0x21] sm:$0xff]
  %v47 = vld [vmem:[%s10 + $0x31] sm:$0xff]
  %v48 = vld [vmem:[%s10 + $0x39] sm:$0xff]
  %v49 = vld [vmem:[%s10 + $0x49] sm:$0xff]
  %v50 = vld [vmem:[%s10 + $0x51] sm:$0xff]
  %v51 = vld [vmem:[%s10 + $0x61] sm:$0xff]
  %v52 = vld [vmem:[%s10 + $0x69] sm:$0xff]
  %v53 = vld [vmem:[%s10 + $0x79] sm:$0xff]
  %v54 = vld [vmem:[%s10 + $0x81] sm:$0xff]
  %v55 = vld [vmem:[%s10 + $0x91] sm:$0xff]
  %v56 = vld [vmem:[%s10 + $0x99] sm:$0xff]
  %v57 = vld [vmem:[%s10 + $0xa9] sm:$0xff]
  %v58 = vld [vmem:[%s10 + $0xb1] sm:$0xff]
  %v59 = vld [vmem:[%s10 + $0xc1] sm:$0xff]
  %v60 = vld [vmem:[%s10 + $0xc9] sm:$0xff]
  %v61 = vld [vmem:[%s10 + $0xd9] sm:$0xff]
  %v62 = vld [vmem:[%s10 + $0xe1] sm:$0xff]
  %v63 = vld [vmem:[%s10 + $0xf1] sm:$0xff]
  %v64 = vld [vmem:[%s10 + $0xf9] sm:$0xff]
  %v65 = vld [vmem:[%s10 + $0x109] sm:$0xff]
  %v66 = vld [vmem:[%s10 + $0x111] sm:$0xff]
  %v67 = vld [vmem:[%s10 + $0x121] sm:$0xff]
  %v68 = vld [vmem:[%s10 + $0x129] sm:$0xff]
  %v69 = vld [vmem:[%s10 + $0x139] sm:$0xff]
  %v70 = vld [vmem:[%s10 + $0x141] sm:$0xff]
  %v71 = vld [vmem:[%s10 + $0x151] sm:$0xff]
  %v72 = vld [vmem:[%s10 + $0x159] sm:$0xff]
  %v73 = vld [vmem:[%s10 + $0x169] sm:$0xff]
  %v74 = vld [vmem:[%s10 + $0x171] sm:$0xff]
  %v75 = vld [vmem:[%s10 + $0x2] sm:$0xff]
  %v76 = vld [vmem:[%s10 + $0xa] sm:$0xff]
  %v77 = vld [vmem:[%s10 + $0x1a] sm:$0xff]
  %v78 = vld [vmem:[%s10 + $0x22] sm:$0xff]
  %v79 = vld [vmem:[%s10 + $0x32] sm:$0xff]
  %v80 = vld [vmem:[%s10 + $0x3a] sm:$0xff]
  %v81 = vld [vmem:[%s10 + $0x4a] sm:$0xff]
  %v82 = vld [vmem:[%s10 + $0x52] sm:$0xff]
  %v83 = vld [vmem:[%s10 + $0x62] sm:$0xff]
  %v84 = vld [vmem:[%s10 + $0x6a] sm:$0xff]
  %v85 = vld [vmem:[%s10 + $0x7a] sm:$0xff]
  %v86 = vld [vmem:[%s10 + $0x82] sm:$0xff]
  %v87 = vld [vmem:[%s10 + $0x92] sm:$0xff]
  %v88 = vld [vmem:[%s10 + $0x9a] sm:$0xff]
  %v89 = vld [vmem:[%s10 + $0xaa] sm:$0xff]
  %v90 = vld [vmem:[%s10 + $0xb2] sm:$0xff]
  %v91 = vld [vmem:[%s10 + $0xc2] sm:$0xff]
  %v92 = vld [vmem:[%s10 + $0xca] sm:$0xff]
  %v93 = vld [vmem:[%s10 + $0xda] sm:$0xff]
  %v94 = vld [vmem:[%s10 + $0xe2] sm:$0xff]
  %v95 = vld [vmem:[%s10 + $0xf2] sm:$0xff]
  %v96 = vld [vmem:[%s10 + $0xfa] sm:$0xff]
  %v97 = vld [vmem:[%s10 + $0x10a] sm:$0xff]
  %v98 = vld [vmem:[%s10 + $0x112] sm:$0xff]
  %v99 = vld [vmem:[%s10 + $0x122] sm:$0xff]
  %v100 = vld [vmem:[%s10 + $0x12a] sm:$0xff]
  %v101 = vld [vmem:[%s10 + $0x13a] sm:$0xff]
  %v102 = vld [vmem:[%s10 + $0x142] sm:$0xff]
  %v103 = vld [vmem:[%s10 + $0x152] sm:$0xff]
  %v104 = vld [vmem:[%s10 + $0x15a] sm:$0xff]
  %v105 = vld [vmem:[%s10 + $0x16a] sm:$0xff]
  %v106 = vld [vmem:[%s10 + $0x172] sm:$0xff]
  %v107 = vld [vmem:[%s10 + $0x3] sm:$0xff]
  %v108 = vld [vmem:[%s10 + $0xb] sm:$0xff]
  %v109 = vld [vmem:[%s10 + $0x1b] sm:$0xff]
  %v110 = vld [vmem:[%s10 + $0x23] sm:$0xff]
  %v111 = vld [vmem:[%s10 + $0x33] sm:$0xff]
  %v112 = vld [vmem:[%s10 + $0x3b] sm:$0xff]
  %v113 = vld [vmem:[%s10 + $0x4b] sm:$0xff]
  %v114 = vld [vmem:[%s10 + $0x53] sm:$0xff]
  %v115 = vld [vmem:[%s10 + $0x63] sm:$0xff]
  %v116 = vld [vmem:[%s10 + $0x6b] sm:$0xff]
  %v117 = vld [vmem:[%s10 + $0x7b] sm:$0xff]
  %v118 = vld [vmem:[%s10 + $0x83] sm:$0xff]
  %v119 = vld [vmem:[%s10 + $0x93] sm:$0xff]
  %v120 = vld [vmem:[%s10 + $0x9b] sm:$0xff]
  %v121 = vld [vmem:[%s10 + $0xab] sm:$0xff]
  %v122 = vld [vmem:[%s10 + $0xb3] sm:$0xff]
  %v123 = vld [vmem:[%s10 + $0xc3] sm:$0xff]
  %v124 = vld [vmem:[%s10 + $0xcb] sm:$0xff]
  %v125 = vld [vmem:[%s10 + $0xdb] sm:$0xff]
  %v126 = vld [vmem:[%s10 + $0xe3] sm:$0xff]
  %v127 = vld [vmem:[%s10 + $0xf3] sm:$0xff]
  %v128 = vld [vmem:[%s10 + $0xfb] sm:$0xff]
  %v129 = vld [vmem:[%s10 + $0x10b] sm:$0xff]
  %v130 = vld [vmem:[%s10 + $0x113] sm:$0xff]
  %v131 = vld [vmem:[%s10 + $0x123] sm:$0xff]
  %v132 = vld [vmem:[%s10 + $0x12b] sm:$0xff]
  %v133 = vld [vmem:[%s10 + $0x13b] sm:$0xff]
  %v134 = vld [vmem:[%s10 + $0x143] sm:$0xff]
  %v135 = vld [vmem:[%s10 + $0x153] sm:$0xff]
  %v136 = vld [vmem:[%s10 + $0x15b] sm:$0xff]
  %v137 = vld [vmem:[%s10 + $0x16b] sm:$0xff]
  %v138 = vld [vmem:[%s10 + $0x173] sm:$0xff]
  %v139 = vld [vmem:[%s10 + $0x4] sm:$0xff]
  %v140 = vld [vmem:[%s10 + $0xc] sm:$0xff]
  %v141 = vld [vmem:[%s10 + $0x1c] sm:$0xff]
  %v142 = vld [vmem:[%s10 + $0x24] sm:$0xff]
  %v143 = vld [vmem:[%s10 + $0x34] sm:$0xff]
  %v144 = vld [vmem:[%s10 + $0x3c] sm:$0xff]
  %v145 = vld [vmem:[%s10 + $0x4c] sm:$0xff]
  %v146 = vld [vmem:[%s10 + $0x54] sm:$0xff]
  %v147 = vld [vmem:[%s10 + $0x64] sm:$0xff]
  %v148 = vld [vmem:[%s10 + $0x6c] sm:$0xff]
  %v149 = vld [vmem:[%s10 + $0x7c] sm:$0xff]
  %v150 = vld [vmem:[%s10 + $0x84] sm:$0xff]
  %v151 = vld [vmem:[%s10 + $0x94] sm:$0xff]
  %v152 = vld [vmem:[%s10 + $0x9c] sm:$0xff]
  %v153 = vld [vmem:[%s10 + $0xac] sm:$0xff]
  %v154 = vld [vmem:[%s10 + $0xb4] sm:$0xff]
  %v155 = vld [vmem:[%s10 + $0xc4] sm:$0xff]
  %v156 = vld [vmem:[%s10 + $0xcc] sm:$0xff]
  %v157 = vld [vmem:[%s10 + $0xdc] sm:$0xff]
  %v158 = vld [vmem:[%s10 + $0xe4] sm:$0xff]
  %v159 = vld [vmem:[%s10 + $0xf4] sm:$0xff]
  %v160 = vld [vmem:[%s10 + $0xfc] sm:$0xff]
  %v161 = vld [vmem:[%s10 + $0x10c] sm:$0xff]
  %v162 = vld [vmem:[%s10 + $0x114] sm:$0xff]
  %v163 = vld [vmem:[%s10 + $0x124] sm:$0xff]
  %v164 = vld [vmem:[%s10 + $0x12c] sm:$0xff]
  %v165 = vld [vmem:[%s10 + $0x13c] sm:$0xff]
  %v166 = vld [vmem:[%s10 + $0x144] sm:$0xff]
  %v167 = vld [vmem:[%s10 + $0x154] sm:$0xff]
  %v168 = vld [vmem:[%s10 + $0x15c] sm:$0xff]
  %v169 = vld [vmem:[%s10 + $0x16c] sm:$0xff]
  %v170 = vld [vmem:[%s10 + $0x174] sm:$0xff]
  %s171 = sadd.s32 %s8, 1
  %s172 = smul.u32 %s171, 24
  %s173 = scalar_lea.vmem %s0, %s172
  %v174 = vld [vmem:[%s173] sm:$0xff]
  %v175 = vld [vmem:[%s173 + $0x8] sm:$0xff]
  %v176 = vld [vmem:[%s173 + $0x18] sm:$0xff]
  %v177 = vld [vmem:[%s173 + $0x20] sm:$0xff]
  %v178 = vld [vmem:[%s173 + $0x30] sm:$0xff]
  %v179 = vld [vmem:[%s173 + $0x38] sm:$0xff]
  %v180 = vld [vmem:[%s173 + $0x48] sm:$0xff]
  %v181 = vld [vmem:[%s173 + $0x50] sm:$0xff]
  %v182 = vld [vmem:[%s173 + $0x60] sm:$0xff]
  %v183 = vld [vmem:[%s173 + $0x68] sm:$0xff]
  %v184 = vld [vmem:[%s173 + $0x78] sm:$0xff]
  %v185 = vld [vmem:[%s173 + $0x80] sm:$0xff]
  %v186 = vld [vmem:[%s173 + $0x90] sm:$0xff]
  %v187 = vld [vmem:[%s173 + $0x98] sm:$0xff]
  %v188 = vld [vmem:[%s173 + $0xa8] sm:$0xff]
  %v189 = vld [vmem:[%s173 + $0xb0] sm:$0xff]
  %v190 = vld [vmem:[%s173 + $0xc0] sm:$0xff]
  %v191 = vld [vmem:[%s173 + $0xc8] sm:$0xff]
  %v192 = vld [vmem:[%s173 + $0xd8] sm:$0xff]
  %v193 = vld [vmem:[%s173 + $0xe0] sm:$0xff]
  %v194 = vld [vmem:[%s173 + $0xf0] sm:$0xff]
  %v195 = vld [vmem:[%s173 + $0xf8] sm:$0xff]
  %v196 = vld [vmem:[%s173 + $0x108] sm:$0xff]
  %v197 = vld [vmem:[%s173 + $0x110] sm:$0xff]
  %v198 = vld [vmem:[%s173 + $0x120] sm:$0xff]
  %v199 = vld [vmem:[%s173 + $0x128] sm:$0xff]
  %v200 = vld [vmem:[%s173 + $0x138] sm:$0xff]
  %v201 = vld [vmem:[%s173 + $0x140] sm:$0xff]
  %v202 = vld [vmem:[%s173 + $0x150] sm:$0xff]
  %v203 = vld [vmem:[%s173 + $0x158] sm:$0xff]
  %v204 = vld [vmem:[%s173 + $0x168] sm:$0xff]
  %v205 = vld [vmem:[%s173 + $0x170] sm:$0xff]
  %v206 = vld [vmem:[%s173 + $0x1] sm:$0xff]
  %v207 = vld [vmem:[%s173 + $0x9] sm:$0xff]
  %v208 = vld [vmem:[%s173 + $0x19] sm:$0xff]
  %v209 = vld [vmem:[%s173 + $0x21] sm:$0xff]
  %v210 = vld [vmem:[%s173 + $0x31] sm:$0xff]
  %v211 = vld [vmem:[%s173 + $0x39] sm:$0xff]
  %v212 = vld [vmem:[%s173 + $0x49] sm:$0xff]
  %v213 = vld [vmem:[%s173 + $0x51] sm:$0xff]
  %v214 = vld [vmem:[%s173 + $0x61] sm:$0xff]
  %v215 = vld [vmem:[%s173 + $0x69] sm:$0xff]
  %v216 = vld [vmem:[%s173 + $0x79] sm:$0xff]
  %v217 = vld [vmem:[%s173 + $0x81] sm:$0xff]
  %v218 = vld [vmem:[%s173 + $0x91] sm:$0xff]
  %v219 = vld [vmem:[%s173 + $0x99] sm:$0xff]
  %v220 = vld [vmem:[%s173 + $0xa9] sm:$0xff]
  %v221 = vld [vmem:[%s173 + $0xb1] sm:$0xff]
  %v222 = vld [vmem:[%s173 + $0xc1] sm:$0xff]
  %v223 = vld [vmem:[%s173 + $0xc9] sm:$0xff]
  %v224 = vld [vmem:[%s173 + $0xd9] sm:$0xff]
  %v225 = vld [vmem:[%s173 + $0xe1] sm:$0xff]
  %v226 = vld [vmem:[%s173 + $0xf1] sm:$0xff]
  %v227 = vld [vmem:[%s173 + $0xf9] sm:$0xff]
  %v228 = vld [vmem:[%s173 + $0x109] sm:$0xff]
  %v229 = vld [vmem:[%s173 + $0x111] sm:$0xff]
  %v230 = vld [vmem:[%s173 + $0x121] sm:$0xff]
  %v231 = vld [vmem:[%s173 + $0x129] sm:$0xff]
  %v232 = vld [vmem:[%s173 + $0x139] sm:$0xff]
  %v233 = vld [vmem:[%s173 + $0x141] sm:$0xff]
  %v234 = vld [vmem:[%s173 + $0x151] sm:$0xff]
  %v235 = vld [vmem:[%s173 + $0x159] sm:$0xff]
  %v236 = vld [vmem:[%s173 + $0x169] sm:$0xff]
  %v237 = vld [vmem:[%s173 + $0x171] sm:$0xff]
  %v238 = vld [vmem:[%s173 + $0x2] sm:$0xff]
  %v239 = vld [vmem:[%s173 + $0xa] sm:$0xff]
  %v240 = vld [vmem:[%s173 + $0x1a] sm:$0xff]
  %v241 = vld [vmem:[%s173 + $0x22] sm:$0xff]
  %v242 = vld [vmem:[%s173 + $0x32] sm:$0xff]
  %v243 = vld [vmem:[%s173 + $0x3a] sm:$0xff]
  %v244 = vld [vmem:[%s173 + $0x4a] sm:$0xff]
  %v245 = vld [vmem:[%s173 + $0x52] sm:$0xff]
  %v246 = vld [vmem:[%s173 + $0x62] sm:$0xff]
  %v247 = vld [vmem:[%s173 + $0x6a] sm:$0xff]
  %v248 = vld [vmem:[%s173 + $0x7a] sm:$0xff]
  %v249 = vld [vmem:[%s173 + $0x82] sm:$0xff]
  %v250 = vld [vmem:[%s173 + $0x92] sm:$0xff]
  %v251 = vld [vmem:[%s173 + $0x9a] sm:$0xff]
  %v252 = vld [vmem:[%s173 + $0xaa] sm:$0xff]
  %v253 = vld [vmem:[%s173 + $0xb2] sm:$0xff]
  %v254 = vld [vmem:[%s173 + $0xc2] sm:$0xff]
  %v255 = vld [vmem:[%s173 + $0xca] sm:$0xff]
  %v256 = vld [vmem:[%s173 + $0xda] sm:$0xff]
  %v257 = vld [vmem:[%s173 + $0xe2] sm:$0xff]
  %v258 = vld [vmem:[%s173 + $0xf2] sm:$0xff]
  %v259 = vld [vmem:[%s173 + $0xfa] sm:$0xff]
  %v260 = vld [vmem:[%s173 + $0x10a] sm:$0xff]
  %v261 = vld [vmem:[%s173 + $0x112] sm:$0xff]
  %v262 = vld [vmem:[%s173 + $0x122] sm:$0xff]
  %v263 = vld [vmem:[%s173 + $0x12a] sm:$0xff]
  %v264 = vld [vmem:[%s173 + $0x13a] sm:$0xff]
  %v265 = vld [vmem:[%s173 + $0x142] sm:$0xff]
  %v266 = vld [vmem:[%s173 + $0x152] sm:$0xff]
  %v267 = vld [vmem:[%s173 + $0x15a] sm:$0xff]
  %v268 = vld [vmem:[%s173 + $0x16a] sm:$0xff]
  %v269 = vld [vmem:[%s173 + $0x172] sm:$0xff]
  %v270 = vld [vmem:[%s173 + $0x3] sm:$0xff]
  %v271 = vld [vmem:[%s173 + $0xb] sm:$0xff]
  %v272 = vld [vmem:[%s173 + $0x1b] sm:$0xff]
  %v273 = vld [vmem:[%s173 + $0x23] sm:$0xff]
  %v274 = vld [vmem:[%s173 + $0x33] sm:$0xff]
  %v275 = vld [vmem:[%s173 + $0x3b] sm:$0xff]
  %v276 = vld [vmem:[%s173 + $0x4b] sm:$0xff]
  %v277 = vld [vmem:[%s173 + $0x53] sm:$0xff]
  %v278 = vld [vmem:[%s173 + $0x63] sm:$0xff]
  %v279 = vld [vmem:[%s173 + $0x6b] sm:$0xff]
  %v280 = vld [vmem:[%s173 + $0x7b] sm:$0xff]
  %v281 = vld [vmem:[%s173 + $0x83] sm:$0xff]
  %v282 = vld [vmem:[%s173 + $0x93] sm:$0xff]
  %v283 = vld [vmem:[%s173 + $0x9b] sm:$0xff]
  %v284 = vld [vmem:[%s173 + $0xab] sm:$0xff]
  %v285 = vld [vmem:[%s173 + $0xb3] sm:$0xff]
  %v286 = vld [vmem:[%s173 + $0xc3] sm:$0xff]
  %v287 = vld [vmem:[%s173 + $0xcb] sm:$0xff]
  %v288 = vld [vmem:[%s173 + $0xdb] sm:$0xff]
  %v289 = vld [vmem:[%s173 + $0xe3] sm:$0xff]
  %v290 = vld [vmem:[%s173 + $0xf3] sm:$0xff]
  %v291 = vld [vmem:[%s173 + $0xfb] sm:$0xff]
  %v292 = vld [vmem:[%s173 + $0x10b] sm:$0xff]
  %v293 = vld [vmem:[%s173 + $0x113] sm:$0xff]
  %v294 = vld [vmem:[%s173 + $0x123] sm:$0xff]
  %v295 = vld [vmem:[%s173 + $0x12b] sm:$0xff]
  %v296 = vld [vmem:[%s173 + $0x13b] sm:$0xff]
  %v297 = vld [vmem:[%s173 + $0x143] sm:$0xff]
  %v298 = vld [vmem:[%s173 + $0x153] sm:$0xff]
  %v299 = vld [vmem:[%s173 + $0x15b] sm:$0xff]
  %v300 = vld [vmem:[%s173 + $0x16b] sm:$0xff]
  %v301 = vld [vmem:[%s173 + $0x173] sm:$0xff]
  %v302 = vld [vmem:[%s173 + $0x4] sm:$0xff]
  %v303 = vld [vmem:[%s173 + $0xc] sm:$0xff]
  %v304 = vld [vmem:[%s173 + $0x1c] sm:$0xff]
  %v305 = vld [vmem:[%s173 + $0x24] sm:$0xff]
  %v306 = vld [vmem:[%s173 + $0x34] sm:$0xff]
  %v307 = vld [vmem:[%s173 + $0x3c] sm:$0xff]
  %v308 = vld [vmem:[%s173 + $0x4c] sm:$0xff]
  %v309 = vld [vmem:[%s173 + $0x54] sm:$0xff]
  %v310 = vld [vmem:[%s173 + $0x64] sm:$0xff]
  %v311 = vld [vmem:[%s173 + $0x6c] sm:$0xff]
  %v312 = vld [vmem:[%s173 + $0x7c] sm:$0xff]
  %v313 = vld [vmem:[%s173 + $0x84] sm:$0xff]
  %v314 = vld [vmem:[%s173 + $0x94] sm:$0xff]
  %v315 = vld [vmem:[%s173 + $0x9c] sm:$0xff]
  %v316 = vld [vmem:[%s173 + $0xac] sm:$0xff]
  %v317 = vld [vmem:[%s173 + $0xb4] sm:$0xff]
  %v318 = vld [vmem:[%s173 + $0xc4] sm:$0xff]
  %v319 = vld [vmem:[%s173 + $0xcc] sm:$0xff]
  %v320 = vld [vmem:[%s173 + $0xdc] sm:$0xff]
  %v321 = vld [vmem:[%s173 + $0xe4] sm:$0xff]
  %v322 = vld [vmem:[%s173 + $0xf4] sm:$0xff]
  %v323 = vld [vmem:[%s173 + $0xfc] sm:$0xff]
  %v324 = vld [vmem:[%s173 + $0x10c] sm:$0xff]
  %v325 = vld [vmem:[%s173 + $0x114] sm:$0xff]
  %v326 = vld [vmem:[%s173 + $0x124] sm:$0xff]
  %v327 = vld [vmem:[%s173 + $0x12c] sm:$0xff]
  %v328 = vld [vmem:[%s173 + $0x13c] sm:$0xff]
  %v329 = vld [vmem:[%s173 + $0x144] sm:$0xff]
  %v330 = vld [vmem:[%s173 + $0x154] sm:$0xff]
  %v331 = vld [vmem:[%s173 + $0x15c] sm:$0xff]
  %v332 = vld [vmem:[%s173 + $0x16c] sm:$0xff]
  %v333 = vld [vmem:[%s173 + $0x174] sm:$0xff]
  %s334 = sadd.s32 %s8, 2
  %s335 = smul.u32 %s334, 24
  %s336 = scalar_lea.vmem %s0, %s335
  %v337 = vld [vmem:[%s336] sm:$0xff]
  %v338 = vld [vmem:[%s336 + $0x8] sm:$0xff]
  %v339 = vld [vmem:[%s336 + $0x18] sm:$0xff]
  %v340 = vld [vmem:[%s336 + $0x20] sm:$0xff]
  %v341 = vld [vmem:[%s336 + $0x30] sm:$0xff]
  %v342 = vld [vmem:[%s336 + $0x38] sm:$0xff]
  %v343 = vld [vmem:[%s336 + $0x48] sm:$0xff]
  %v344 = vld [vmem:[%s336 + $0x50] sm:$0xff]
  %v345 = vld [vmem:[%s336 + $0x60] sm:$0xff]
  %v346 = vld [vmem:[%s336 + $0x68] sm:$0xff]
  %v347 = vld [vmem:[%s336 + $0x78] sm:$0xff]
  %v348 = vld [vmem:[%s336 + $0x80] sm:$0xff]
  %v349 = vld [vmem:[%s336 + $0x90] sm:$0xff]
  %v350 = vld [vmem:[%s336 + $0x98] sm:$0xff]
  %v351 = vld [vmem:[%s336 + $0xa8] sm:$0xff]
  %v352 = vld [vmem:[%s336 + $0xb0] sm:$0xff]
  %v353 = vld [vmem:[%s336 + $0xc0] sm:$0xff]
  %v354 = vld [vmem:[%s336 + $0xc8] sm:$0xff]
  %v355 = vld [vmem:[%s336 + $0xd8] sm:$0xff]
  %v356 = vld [vmem:[%s336 + $0xe0] sm:$0xff]
  %v357 = vld [vmem:[%s336 + $0xf0] sm:$0xff]
  %v358 = vld [vmem:[%s336 + $0xf8] sm:$0xff]
  %v359 = vld [vmem:[%s336 + $0x108] sm:$0xff]
  %v360 = vld [vmem:[%s336 + $0x110] sm:$0xff]
  %v361 = vld [vmem:[%s336 + $0x120] sm:$0xff]
  %v362 = vld [vmem:[%s336 + $0x128] sm:$0xff]
  %v363 = vld [vmem:[%s336 + $0x138] sm:$0xff]
  %v364 = vld [vmem:[%s336 + $0x140] sm:$0xff]
  %v365 = vld [vmem:[%s336 + $0x150] sm:$0xff]
  %v366 = vld [vmem:[%s336 + $0x158] sm:$0xff]
  %v367 = vld [vmem:[%s336 + $0x168] sm:$0xff]
  %v368 = vld [vmem:[%s336 + $0x170] sm:$0xff]
  %v369 = vld [vmem:[%s336 + $0x1] sm:$0xff]
  %v370 = vld [vmem:[%s336 + $0x9] sm:$0xff]
  %v371 = vld [vmem:[%s336 + $0x19] sm:$0xff]
  %v372 = vld [vmem:[%s336 + $0x21] sm:$0xff]
  %v373 = vld [vmem:[%s336 + $0x31] sm:$0xff]
  %v374 = vld [vmem:[%s336 + $0x39] sm:$0xff]
  %v375 = vld [vmem:[%s336 + $0x49] sm:$0xff]
  %v376 = vld [vmem:[%s336 + $0x51] sm:$0xff]
  %v377 = vld [vmem:[%s336 + $0x61] sm:$0xff]
  %v378 = vld [vmem:[%s336 + $0x69] sm:$0xff]
  %v379 = vld [vmem:[%s336 + $0x79] sm:$0xff]
  %v380 = vld [vmem:[%s336 + $0x81] sm:$0xff]
  %v381 = vld [vmem:[%s336 + $0x91] sm:$0xff]
  %v382 = vld [vmem:[%s336 + $0x99] sm:$0xff]
  %v383 = vld [vmem:[%s336 + $0xa9] sm:$0xff]
  %v384 = vld [vmem:[%s336 + $0xb1] sm:$0xff]
  %v385 = vld [vmem:[%s336 + $0xc1] sm:$0xff]
  %v386 = vld [vmem:[%s336 + $0xc9] sm:$0xff]
  %v387 = vld [vmem:[%s336 + $0xd9] sm:$0xff]
  %v388 = vld [vmem:[%s336 + $0xe1] sm:$0xff]
  %v389 = vld [vmem:[%s336 + $0xf1] sm:$0xff]
  %v390 = vld [vmem:[%s336 + $0xf9] sm:$0xff]
  %v391 = vld [vmem:[%s336 + $0x109] sm:$0xff]
  %v392 = vld [vmem:[%s336 + $0x111] sm:$0xff]
  %v393 = vld [vmem:[%s336 + $0x121] sm:$0xff]
  %v394 = vld [vmem:[%s336 + $0x129] sm:$0xff]
  %v395 = vld [vmem:[%s336 + $0x139] sm:$0xff]
  %v396 = vld [vmem:[%s336 + $0x141] sm:$0xff]
  %v397 = vld [vmem:[%s336 + $0x151] sm:$0xff]
  %v398 = vld [vmem:[%s336 + $0x159] sm:$0xff]
  %v399 = vld [vmem:[%s336 + $0x169] sm:$0xff]
  %v400 = vld [vmem:[%s336 + $0x171] sm:$0xff]
  %v401 = vld [vmem:[%s336 + $0x2] sm:$0xff]
  %v402 = vld [vmem:[%s336 + $0xa] sm:$0xff]
  %v403 = vld [vmem:[%s336 + $0x1a] sm:$0xff]
  %v404 = vld [vmem:[%s336 + $0x22] sm:$0xff]
  %v405 = vld [vmem:[%s336 + $0x32] sm:$0xff]
  %v406 = vld [vmem:[%s336 + $0x3a] sm:$0xff]
  %v407 = vld [vmem:[%s336 + $0x4a] sm:$0xff]
  %v408 = vld [vmem:[%s336 + $0x52] sm:$0xff]
  %v409 = vld [vmem:[%s336 + $0x62] sm:$0xff]
  %v410 = vld [vmem:[%s336 + $0x6a] sm:$0xff]
  %v411 = vld [vmem:[%s336 + $0x7a] sm:$0xff]
  %v412 = vld [vmem:[%s336 + $0x82] sm:$0xff]
  %v413 = vld [vmem:[%s336 + $0x92] sm:$0xff]
  %v414 = vld [vmem:[%s336 + $0x9a] sm:$0xff]
  %v415 = vld [vmem:[%s336 + $0xaa] sm:$0xff]
  %v416 = vld [vmem:[%s336 + $0xb2] sm:$0xff]
  %v417 = vld [vmem:[%s336 + $0xc2] sm:$0xff]
  %v418 = vld [vmem:[%s336 + $0xca] sm:$0xff]
  %v419 = vld [vmem:[%s336 + $0xda] sm:$0xff]
  %v420 = vld [vmem:[%s336 + $0xe2] sm:$0xff]
  %v421 = vld [vmem:[%s336 + $0xf2] sm:$0xff]
  %v422 = vld [vmem:[%s336 + $0xfa] sm:$0xff]
  %v423 = vld [vmem:[%s336 + $0x10a] sm:$0xff]
  %v424 = vld [vmem:[%s336 + $0x112] sm:$0xff]
  %v425 = vld [vmem:[%s336 + $0x122] sm:$0xff]
  %v426 = vld [vmem:[%s336 + $0x12a] sm:$0xff]
  %v427 = vld [vmem:[%s336 + $0x13a] sm:$0xff]
  %v428 = vld [vmem:[%s336 + $0x142] sm:$0xff]
  %v429 = vld [vmem:[%s336 + $0x152] sm:$0xff]
  %v430 = vld [vmem:[%s336 + $0x15a] sm:$0xff]
  %v431 = vld [vmem:[%s336 + $0x16a] sm:$0xff]
  %v432 = vld [vmem:[%s336 + $0x172] sm:$0xff]
  %v433 = vld [vmem:[%s336 + $0x3] sm:$0xff]
  %v434 = vld [vmem:[%s336 + $0xb] sm:$0xff]
  %v435 = vld [vmem:[%s336 + $0x1b] sm:$0xff]
  %v436 = vld [vmem:[%s336 + $0x23] sm:$0xff]
  %v437 = vld [vmem:[%s336 + $0x33] sm:$0xff]
  %v438 = vld [vmem:[%s336 + $0x3b] sm:$0xff]
  %v439 = vld [vmem:[%s336 + $0x4b] sm:$0xff]
  %v440 = vld [vmem:[%s336 + $0x53] sm:$0xff]
  %v441 = vld [vmem:[%s336 + $0x63] sm:$0xff]
  %v442 = vld [vmem:[%s336 + $0x6b] sm:$0xff]
  %v443 = vld [vmem:[%s336 + $0x7b] sm:$0xff]
  %v444 = vld [vmem:[%s336 + $0x83] sm:$0xff]
  %v445 = vld [vmem:[%s336 + $0x93] sm:$0xff]
  %v446 = vld [vmem:[%s336 + $0x9b] sm:$0xff]
  %v447 = vld [vmem:[%s336 + $0xab] sm:$0xff]
  %v448 = vld [vmem:[%s336 + $0xb3] sm:$0xff]
  %v449 = vld [vmem:[%s336 + $0xc3] sm:$0xff]
  %v450 = vld [vmem:[%s336 + $0xcb] sm:$0xff]
  %v451 = vld [vmem:[%s336 + $0xdb] sm:$0xff]
  %v452 = vld [vmem:[%s336 + $0xe3] sm:$0xff]
  %v453 = vld [vmem:[%s336 + $0xf3] sm:$0xff]
  %v454 = vld [vmem:[%s336 + $0xfb] sm:$0xff]
  %v455 = vld [vmem:[%s336 + $0x10b] sm:$0xff]
  %v456 = vld [vmem:[%s336 + $0x113] sm:$0xff]
  %v457 = vld [vmem:[%s336 + $0x123] sm:$0xff]
  %v458 = vld [vmem:[%s336 + $0x12b] sm:$0xff]
  %v459 = vld [vmem:[%s336 + $0x13b] sm:$0xff]
  %v460 = vld [vmem:[%s336 + $0x143] sm:$0xff]
  %v461 = vld [vmem:[%s336 + $0x153] sm:$0xff]
  %v462 = vld [vmem:[%s336 + $0x15b] sm:$0xff]
  %v463 = vld [vmem:[%s336 + $0x16b] sm:$0xff]
  %v464 = vld [vmem:[%s336 + $0x173] sm:$0xff]
  %v465 = vmin.f32 %v11, %v43
  %v466 = vmin.f32 %v12, %v44
  %v467 = vmin.f32 %v13, %v45
  %v468 = vmin.f32 %v14, %v46
  %v469 = vmin.f32 %v15, %v47
  %v470 = vmin.f32 %v16, %v48
  %v471 = vmin.f32 %v17, %v49
  %v472 = vmin.f32 %v18, %v50
  %v473 = vmin.f32 %v19, %v51
  %v474 = vmin.f32 %v20, %v52
  %v475 = vmin.f32 %v21, %v53
  %v476 = vmin.f32 %v22, %v54
  %v477 = vmin.f32 %v23, %v55
  %v478 = vmin.f32 %v24, %v56
  %v479 = vmin.f32 %v25, %v57
  %v480 = vmin.f32 %v26, %v58
  %v481 = vmin.f32 %v27, %v59
  %v482 = vmin.f32 %v28, %v60
  %v483 = vmin.f32 %v29, %v61
  %v484 = vmin.f32 %v30, %v62
  %v485 = vmin.f32 %v31, %v63
  %v486 = vmin.f32 %v32, %v64
  %v487 = vmin.f32 %v33, %v65
  %v488 = vmin.f32 %v34, %v66
  %v489 = vmin.f32 %v35, %v67
  %v490 = vmin.f32 %v36, %v68
  %v491 = vmin.f32 %v37, %v69
  %v492 = vmin.f32 %v38, %v70
  %v493 = vmin.f32 %v39, %v71
  %v494 = vmin.f32 %v40, %v72
  %v495 = vmin.f32 %v41, %v73
  %v496 = vmin.f32 %v42, %v74
  %v497 = vmax.f32 %v11, %v43
  %v498 = vmax.f32 %v12, %v44
  %v499 = vmax.f32 %v13, %v45
  %v500 = vmax.f32 %v14, %v46
  %v501 = vmax.f32 %v15, %v47
  %v502 = vmax.f32 %v16, %v48
  %v503 = vmax.f32 %v17, %v49
  %v504 = vmax.f32 %v18, %v50
  %v505 = vmax.f32 %v19, %v51
  %v506 = vmax.f32 %v20, %v52
  %v507 = vmax.f32 %v21, %v53
  %v508 = vmax.f32 %v22, %v54
  %v509 = vmax.f32 %v23, %v55
  %v510 = vmax.f32 %v24, %v56
  %v511 = vmax.f32 %v25, %v57
  %v512 = vmax.f32 %v26, %v58
  %v513 = vmax.f32 %v27, %v59
  %v514 = vmax.f32 %v28, %v60
  %v515 = vmax.f32 %v29, %v61
  %v516 = vmax.f32 %v30, %v62
  %v517 = vmax.f32 %v31, %v63
  %v518 = vmax.f32 %v32, %v64
  %v519 = vmax.f32 %v33, %v65
  %v520 = vmax.f32 %v34, %v66
  %v521 = vmax.f32 %v35, %v67
  %v522 = vmax.f32 %v36, %v68
  %v523 = vmax.f32 %v37, %v69
  %v524 = vmax.f32 %v38, %v70
  %v525 = vmax.f32 %v39, %v71
  %v526 = vmax.f32 %v40, %v72
  %v527 = vmax.f32 %v41, %v73
  %v528 = vmax.f32 %v42, %v74
  %v529 = vmin.f32 %v75, %v107
  %v530 = vmin.f32 %v76, %v108
  %v531 = vmin.f32 %v77, %v109
  %v532 = vmin.f32 %v78, %v110
  %v533 = vmin.f32 %v79, %v111
  %v534 = vmin.f32 %v80, %v112
  %v535 = vmin.f32 %v81, %v113
  %v536 = vmin.f32 %v82, %v114
  %v537 = vmin.f32 %v83, %v115
  %v538 = vmin.f32 %v84, %v116
  %v539 = vmin.f32 %v85, %v117
  %v540 = vmin.f32 %v86, %v118
  %v541 = vmin.f32 %v87, %v119
  %v542 = vmin.f32 %v88, %v120
  %v543 = vmin.f32 %v89, %v121
  %v544 = vmin.f32 %v90, %v122
  %v545 = vmin.f32 %v91, %v123
  %v546 = vmin.f32 %v92, %v124
  %v547 = vmin.f32 %v93, %v125
  %v548 = vmin.f32 %v94, %v126
  %v549 = vmin.f32 %v95, %v127
  %v550 = vmin.f32 %v96, %v128
  %v551 = vmin.f32 %v97, %v129
  %v552 = vmin.f32 %v98, %v130
  %v553 = vmin.f32 %v99, %v131
  %v554 = vmin.f32 %v100, %v132
  %v555 = vmin.f32 %v101, %v133
  %v556 = vmin.f32 %v102, %v134
  %v557 = vmin.f32 %v103, %v135
  %v558 = vmin.f32 %v104, %v136
  %v559 = vmin.f32 %v105, %v137
  %v560 = vmin.f32 %v106, %v138
  %v561 = vmax.f32 %v75, %v107
  %v562 = vmax.f32 %v76, %v108
  %v563 = vmax.f32 %v77, %v109
  %v564 = vmax.f32 %v78, %v110
  %v565 = vmax.f32 %v79, %v111
  %v566 = vmax.f32 %v80, %v112
  %v567 = vmax.f32 %v81, %v113
  %v568 = vmax.f32 %v82, %v114
  %v569 = vmax.f32 %v83, %v115
  %v570 = vmax.f32 %v84, %v116
  %v571 = vmax.f32 %v85, %v117
  %v572 = vmax.f32 %v86, %v118
  %v573 = vmax.f32 %v87, %v119
  %v574 = vmax.f32 %v88, %v120
  %v575 = vmax.f32 %v89, %v121
  %v576 = vmax.f32 %v90, %v122
  %v577 = vmax.f32 %v91, %v123
  %v578 = vmax.f32 %v92, %v124
  %v579 = vmax.f32 %v93, %v125
  %v580 = vmax.f32 %v94, %v126
  %v581 = vmax.f32 %v95, %v127
  %v582 = vmax.f32 %v96, %v128
  %v583 = vmax.f32 %v97, %v129
  %v584 = vmax.f32 %v98, %v130
  %v585 = vmax.f32 %v99, %v131
  %v586 = vmax.f32 %v100, %v132
  %v587 = vmax.f32 %v101, %v133
  %v588 = vmax.f32 %v102, %v134
  %v589 = vmax.f32 %v103, %v135
  %v590 = vmax.f32 %v104, %v136
  %v591 = vmax.f32 %v105, %v137
  %v592 = vmax.f32 %v106, %v138
  %v593 = vmin.f32 %v139, %v174
  %v594 = vmin.f32 %v140, %v175
  %v595 = vmin.f32 %v141, %v176
  %v596 = vmin.f32 %v142, %v177
  %v597 = vmin.f32 %v143, %v178
  %v598 = vmin.f32 %v144, %v179
  %v599 = vmin.f32 %v145, %v180
  %v600 = vmin.f32 %v146, %v181
  %v601 = vmin.f32 %v147, %v182
  %v602 = vmin.f32 %v148, %v183
  %v603 = vmin.f32 %v149, %v184
  %v604 = vmin.f32 %v150, %v185
  %v605 = vmin.f32 %v151, %v186
  %v606 = vmin.f32 %v152, %v187
  %v607 = vmin.f32 %v153, %v188
  %v608 = vmin.f32 %v154, %v189
  %v609 = vmin.f32 %v155, %v190
  %v610 = vmin.f32 %v156, %v191
  %v611 = vmin.f32 %v157, %v192
  %v612 = vmin.f32 %v158, %v193
  %v613 = vmin.f32 %v159, %v194
  %v614 = vmin.f32 %v160, %v195
  %v615 = vmin.f32 %v161, %v196
  %v616 = vmin.f32 %v162, %v197
  %v617 = vmin.f32 %v163, %v198
  %v618 = vmin.f32 %v164, %v199
  %v619 = vmin.f32 %v165, %v200
  %v620 = vmin.f32 %v166, %v201
  %v621 = vmin.f32 %v167, %v202
  %v622 = vmin.f32 %v168, %v203
  %v623 = vmin.f32 %v169, %v204
  %v624 = vmin.f32 %v170, %v205
  %v625 = vmax.f32 %v139, %v174
  %v626 = vmax.f32 %v140, %v175
  %v627 = vmax.f32 %v141, %v176
  %v628 = vmax.f32 %v142, %v177
  %v629 = vmax.f32 %v143, %v178
  %v630 = vmax.f32 %v144, %v179
  %v631 = vmax.f32 %v145, %v180
  %v632 = vmax.f32 %v146, %v181
  %v633 = vmax.f32 %v147, %v182
  %v634 = vmax.f32 %v148, %v183
  %v635 = vmax.f32 %v149, %v184
  %v636 = vmax.f32 %v150, %v185
  %v637 = vmax.f32 %v151, %v186
  %v638 = vmax.f32 %v152, %v187
  %v639 = vmax.f32 %v153, %v188
  %v640 = vmax.f32 %v154, %v189
  %v641 = vmax.f32 %v155, %v190
  %v642 = vmax.f32 %v156, %v191
  %v643 = vmax.f32 %v157, %v192
  %v644 = vmax.f32 %v158, %v193
  %v645 = vmax.f32 %v159, %v194
  %v646 = vmax.f32 %v160, %v195
  %v647 = vmax.f32 %v161, %v196
  %v648 = vmax.f32 %v162, %v197
  %v649 = vmax.f32 %v163, %v198
  %v650 = vmax.f32 %v164, %v199
  %v651 = vmax.f32 %v165, %v200
  %v652 = vmax.f32 %v166, %v201
  %v653 = vmax.f32 %v167, %v202
  %v654 = vmax.f32 %v168, %v203
  %v655 = vmax.f32 %v169, %v204
  %v656 = vmax.f32 %v170, %v205
  %v657 = vmin.f32 %v206, %v238
  %v658 = vmin.f32 %v207, %v239
  %v659 = vmin.f32 %v208, %v240
  %v660 = vmin.f32 %v209, %v241
  %v661 = vmin.f32 %v210, %v242
  %v662 = vmin.f32 %v211, %v243
  %v663 = vmin.f32 %v212, %v244
  %v664 = vmin.f32 %v213, %v245
  %v665 = vmin.f32 %v214, %v246
  %v666 = vmin.f32 %v215, %v247
  %v667 = vmin.f32 %v216, %v248
  %v668 = vmin.f32 %v217, %v249
  %v669 = vmin.f32 %v218, %v250
  %v670 = vmin.f32 %v219, %v251
  %v671 = vmin.f32 %v220, %v252
  %v672 = vmin.f32 %v221, %v253
  %v673 = vmin.f32 %v222, %v254
  %v674 = vmin.f32 %v223, %v255
  %v675 = vmin.f32 %v224, %v256
  %v676 = vmin.f32 %v225, %v257
  %v677 = vmin.f32 %v226, %v258
  %v678 = vmin.f32 %v227, %v259
  %v679 = vmin.f32 %v228, %v260
  %v680 = vmin.f32 %v229, %v261
  %v681 = vmin.f32 %v230, %v262
  %v682 = vmin.f32 %v231, %v263
  %v683 = vmin.f32 %v232, %v264
  %v684 = vmin.f32 %v233, %v265
  %v685 = vmin.f32 %v234, %v266
  %v686 = vmin.f32 %v235, %v267
  %v687 = vmin.f32 %v236, %v268
  %v688 = vmin.f32 %v237, %v269
  %v689 = vmax.f32 %v206, %v238
  %v690 = vmax.f32 %v207, %v239
  %v691 = vmax.f32 %v208, %v240
  %v692 = vmax.f32 %v209, %v241
  %v693 = vmax.f32 %v210, %v242
  %v694 = vmax.f32 %v211, %v243
  %v695 = vmax.f32 %v212, %v244
  %v696 = vmax.f32 %v213, %v245
  %v697 = vmax.f32 %v214, %v246
  %v698 = vmax.f32 %v215, %v247
  %v699 = vmax.f32 %v216, %v248
  %v700 = vmax.f32 %v217, %v249
  %v701 = vmax.f32 %v218, %v250
  %v702 = vmax.f32 %v219, %v251
  %v703 = vmax.f32 %v220, %v252
  %v704 = vmax.f32 %v221, %v253
  %v705 = vmax.f32 %v222, %v254
  %v706 = vmax.f32 %v223, %v255
  %v707 = vmax.f32 %v224, %v256
  %v708 = vmax.f32 %v225, %v257
  %v709 = vmax.f32 %v226, %v258
  %v710 = vmax.f32 %v227, %v259
  %v711 = vmax.f32 %v228, %v260
  %v712 = vmax.f32 %v229, %v261
  %v713 = vmax.f32 %v230, %v262
  %v714 = vmax.f32 %v231, %v263
  %v715 = vmax.f32 %v232, %v264
  %v716 = vmax.f32 %v233, %v265
  %v717 = vmax.f32 %v234, %v266
  %v718 = vmax.f32 %v235, %v267
  %v719 = vmax.f32 %v236, %v268
  %v720 = vmax.f32 %v237, %v269
  %v721 = vmin.f32 %v270, %v302
  %v722 = vmin.f32 %v271, %v303
  %v723 = vmin.f32 %v272, %v304
  %v724 = vmin.f32 %v273, %v305
  %v725 = vmin.f32 %v274, %v306
  %v726 = vmin.f32 %v275, %v307
  %v727 = vmin.f32 %v276, %v308
  %v728 = vmin.f32 %v277, %v309
  %v729 = vmin.f32 %v278, %v310
  %v730 = vmin.f32 %v279, %v311
  %v731 = vmin.f32 %v280, %v312
  %v732 = vmin.f32 %v281, %v313
  %v733 = vmin.f32 %v282, %v314
  %v734 = vmin.f32 %v283, %v315
  %v735 = vmin.f32 %v284, %v316
  %v736 = vmin.f32 %v285, %v317
  %v737 = vmin.f32 %v286, %v318
  %v738 = vmin.f32 %v287, %v319
  %v739 = vmin.f32 %v288, %v320
  %v740 = vmin.f32 %v289, %v321
  %v741 = vmin.f32 %v290, %v322
  %v742 = vmin.f32 %v291, %v323
  %v743 = vmin.f32 %v292, %v324
  %v744 = vmin.f32 %v293, %v325
  %v745 = vmin.f32 %v294, %v326
  %v746 = vmin.f32 %v295, %v327
  %v747 = vmin.f32 %v296, %v328
  %v748 = vmin.f32 %v297, %v329
  %v749 = vmin.f32 %v298, %v330
  %v750 = vmin.f32 %v299, %v331
  %v751 = vmin.f32 %v300, %v332
  %v752 = vmin.f32 %v301, %v333
  %v753 = vmax.f32 %v270, %v302
  %v754 = vmax.f32 %v271, %v303
  %v755 = vmax.f32 %v272, %v304
  %v756 = vmax.f32 %v273, %v305
  %v757 = vmax.f32 %v274, %v306
  %v758 = vmax.f32 %v275, %v307
  %v759 = vmax.f32 %v276, %v308
  %v760 = vmax.f32 %v277, %v309
  %v761 = vmax.f32 %v278, %v310
  %v762 = vmax.f32 %v279, %v311
  %v763 = vmax.f32 %v280, %v312
  %v764 = vmax.f32 %v281, %v313
  %v765 = vmax.f32 %v282, %v314
  %v766 = vmax.f32 %v283, %v315
  %v767 = vmax.f32 %v284, %v316
  %v768 = vmax.f32 %v285, %v317
  %v769 = vmax.f32 %v286, %v318
  %v770 = vmax.f32 %v287, %v319
  %v771 = vmax.f32 %v288, %v320
  %v772 = vmax.f32 %v289, %v321
  %v773 = vmax.f32 %v290, %v322
  %v774 = vmax.f32 %v291, %v323
  %v775 = vmax.f32 %v292, %v324
  %v776 = vmax.f32 %v293, %v325
  %v777 = vmax.f32 %v294, %v326
  %v778 = vmax.f32 %v295, %v327
  %v779 = vmax.f32 %v296, %v328
  %v780 = vmax.f32 %v297, %v329
  %v781 = vmax.f32 %v298, %v330
  %v782 = vmax.f32 %v299, %v331
  %v783 = vmax.f32 %v300, %v332
  %v784 = vmax.f32 %v301, %v333
  %v785 = vmin.f32 %v337, %v369
  %v786 = vmin.f32 %v338, %v370
  %v787 = vmin.f32 %v339, %v371
  %v788 = vmin.f32 %v340, %v372
  %v789 = vmin.f32 %v341, %v373
  %v790 = vmin.f32 %v342, %v374
  %v791 = vmin.f32 %v343, %v375
  %v792 = vmin.f32 %v344, %v376
  %v793 = vmin.f32 %v345, %v377
  %v794 = vmin.f32 %v346, %v378
  %v795 = vmin.f32 %v347, %v379
  %v796 = vmin.f32 %v348, %v380
  %v797 = vmin.f32 %v349, %v381
  %v798 = vmin.f32 %v350, %v382
  %v799 = vmin.f32 %v351, %v383
  %v800 = vmin.f32 %v352, %v384
  %v801 = vmin.f32 %v353, %v385
  %v802 = vmin.f32 %v354, %v386
  %v803 = vmin.f32 %v355, %v387
  %v804 = vmin.f32 %v356, %v388
  %v805 = vmin.f32 %v357, %v389
  %v806 = vmin.f32 %v358, %v390
  %v807 = vmin.f32 %v359, %v391
  %v808 = vmin.f32 %v360, %v392
  %v809 = vmin.f32 %v361, %v393
  %v810 = vmin.f32 %v362, %v394
  %v811 = vmin.f32 %v363, %v395
  %v812 = vmin.f32 %v364, %v396
  %v813 = vmin.f32 %v365, %v397
  %v814 = vmin.f32 %v366, %v398
  %v815 = vmin.f32 %v367, %v399
  %v816 = vmin.f32 %v368, %v400
  %v817 = vmax.f32 %v337, %v369
  %v818 = vmax.f32 %v338, %v370
  %v819 = vmax.f32 %v339, %v371
  %v820 = vmax.f32 %v340, %v372
  %v821 = vmax.f32 %v341, %v373
  %v822 = vmax.f32 %v342, %v374
  %v823 = vmax.f32 %v343, %v375
  %v824 = vmax.f32 %v344, %v376
  %v825 = vmax.f32 %v345, %v377
  %v826 = vmax.f32 %v346, %v378
  %v827 = vmax.f32 %v347, %v379
  %v828 = vmax.f32 %v348, %v380
  %v829 = vmax.f32 %v349, %v381
  %v830 = vmax.f32 %v350, %v382
  %v831 = vmax.f32 %v351, %v383
  %v832 = vmax.f32 %v352, %v384
  %v833 = vmax.f32 %v353, %v385
  %v834 = vmax.f32 %v354, %v386
  %v835 = vmax.f32 %v355, %v387
  %v836 = vmax.f32 %v356, %v388
  %v837 = vmax.f32 %v357, %v389
  %v838 = vmax.f32 %v358, %v390
  %v839 = vmax.f32 %v359, %v391
  %v840 = vmax.f32 %v360, %v392
  %v841 = vmax.f32 %v361, %v393
  %v842 = vmax.f32 %v362, %v394
  %v843 = vmax.f32 %v363, %v395
  %v844 = vmax.f32 %v364, %v396
  %v845 = vmax.f32 %v365, %v397
  %v846 = vmax.f32 %v366, %v398
  %v847 = vmax.f32 %v367, %v399
  %v848 = vmax.f32 %v368, %v400
  %v849 = vmin.f32 %v401, %v433
  %v850 = vmin.f32 %v402, %v434
  %v851 = vmin.f32 %v403, %v435
  %v852 = vmin.f32 %v404, %v436
  %v853 = vmin.f32 %v405, %v437
  %v854 = vmin.f32 %v406, %v438
  %v855 = vmin.f32 %v407, %v439
  %v856 = vmin.f32 %v408, %v440
  %v857 = vmin.f32 %v409, %v441
  %v858 = vmin.f32 %v410, %v442
  %v859 = vmin.f32 %v411, %v443
  %v860 = vmin.f32 %v412, %v444
  %v861 = vmin.f32 %v413, %v445
  %v862 = vmin.f32 %v414, %v446
  %v863 = vmin.f32 %v415, %v447
  %v864 = vmin.f32 %v416, %v448
  %v865 = vmin.f32 %v417, %v449
  %v866 = vmin.f32 %v418, %v450
  %v867 = vmin.f32 %v419, %v451
  %v868 = vmin.f32 %v420, %v452
  %v869 = vmin.f32 %v421, %v453
  %v870 = vmin.f32 %v422, %v454
  %v871 = vmin.f32 %v423, %v455
  %v872 = vmin.f32 %v424, %v456
  %v873 = vmin.f32 %v425, %v457
  %v874 = vmin.f32 %v426, %v458
  %v875 = vmin.f32 %v427, %v459
  %v876 = vmin.f32 %v428, %v460
  %v877 = vmin.f32 %v429, %v461
  %v878 = vmin.f32 %v430, %v462
  %v879 = vmin.f32 %v431, %v463
  %v880 = vmin.f32 %v432, %v464
  %v881 = vmax.f32 %v401, %v433
  %v882 = vmax.f32 %v402, %v434
  %v883 = vmax.f32 %v403, %v435
  %v884 = vmax.f32 %v404, %v436
  %v885 = vmax.f32 %v405, %v437
  %v886 = vmax.f32 %v406, %v438
  %v887 = vmax.f32 %v407, %v439
  %v888 = vmax.f32 %v408, %v440
  %v889 = vmax.f32 %v409, %v441
  %v890 = vmax.f32 %v410, %v442
  %v891 = vmax.f32 %v411, %v443
  %v892 = vmax.f32 %v412, %v444
  %v893 = vmax.f32 %v413, %v445
  %v894 = vmax.f32 %v414, %v446
  %v895 = vmax.f32 %v415, %v447
  %v896 = vmax.f32 %v416, %v448
  %v897 = vmax.f32 %v417, %v449
  %v898 = vmax.f32 %v418, %v450
  %v899 = vmax.f32 %v419, %v451
  %v900 = vmax.f32 %v420, %v452
  %v901 = vmax.f32 %v421, %v453
  %v902 = vmax.f32 %v422, %v454
  %v903 = vmax.f32 %v423, %v455
  %v904 = vmax.f32 %v424, %v456
  %v905 = vmax.f32 %v425, %v457
  %v906 = vmax.f32 %v426, %v458
  %v907 = vmax.f32 %v427, %v459
  %v908 = vmax.f32 %v428, %v460
  %v909 = vmax.f32 %v429, %v461
  %v910 = vmax.f32 %v430, %v462
  %v911 = vmax.f32 %v431, %v463
  %v912 = vmax.f32 %v432, %v464
  %v913 = vmin.f32 %v465, %v529
  %v914 = vmin.f32 %v466, %v530
  %v915 = vmin.f32 %v467, %v531
  %v916 = vmin.f32 %v468, %v532
  %v917 = vmin.f32 %v469, %v533
  %v918 = vmin.f32 %v470, %v534
  %v919 = vmin.f32 %v471, %v535
  %v920 = vmin.f32 %v472, %v536
  %v921 = vmin.f32 %v473, %v537
  %v922 = vmin.f32 %v474, %v538
  %v923 = vmin.f32 %v475, %v539
  %v924 = vmin.f32 %v476, %v540
  %v925 = vmin.f32 %v477, %v541
  %v926 = vmin.f32 %v478, %v542
  %v927 = vmin.f32 %v479, %v543
  %v928 = vmin.f32 %v480, %v544
  %v929 = vmin.f32 %v481, %v545
  %v930 = vmin.f32 %v482, %v546
  %v931 = vmin.f32 %v483, %v547
  %v932 = vmin.f32 %v484, %v548
  %v933 = vmin.f32 %v485, %v549
  %v934 = vmin.f32 %v486, %v550
  %v935 = vmin.f32 %v487, %v551
  %v936 = vmin.f32 %v488, %v552
  %v937 = vmin.f32 %v489, %v553
  %v938 = vmin.f32 %v490, %v554
  %v939 = vmin.f32 %v491, %v555
  %v940 = vmin.f32 %v492, %v556
  %v941 = vmin.f32 %v493, %v557
  %v942 = vmin.f32 %v494, %v558
  %v943 = vmin.f32 %v495, %v559
  %v944 = vmin.f32 %v496, %v560
  %v945 = vmax.f32 %v465, %v529
  %v946 = vmax.f32 %v466, %v530
  %v947 = vmax.f32 %v467, %v531
  %v948 = vmax.f32 %v468, %v532
  %v949 = vmax.f32 %v469, %v533
  %v950 = vmax.f32 %v470, %v534
  %v951 = vmax.f32 %v471, %v535
  %v952 = vmax.f32 %v472, %v536
  %v953 = vmax.f32 %v473, %v537
  %v954 = vmax.f32 %v474, %v538
  %v955 = vmax.f32 %v475, %v539
  %v956 = vmax.f32 %v476, %v540
  %v957 = vmax.f32 %v477, %v541
  %v958 = vmax.f32 %v478, %v542
  %v959 = vmax.f32 %v479, %v543
  %v960 = vmax.f32 %v480, %v544
  %v961 = vmax.f32 %v481, %v545
  %v962 = vmax.f32 %v482, %v546
  %v963 = vmax.f32 %v483, %v547
  %v964 = vmax.f32 %v484, %v548
  %v965 = vmax.f32 %v485, %v549
  %v966 = vmax.f32 %v486, %v550
  %v967 = vmax.f32 %v487, %v551
  %v968 = vmax.f32 %v488, %v552
  %v969 = vmax.f32 %v489, %v553
  %v970 = vmax.f32 %v490, %v554
  %v971 = vmax.f32 %v491, %v555
  %v972 = vmax.f32 %v492, %v556
  %v973 = vmax.f32 %v493, %v557
  %v974 = vmax.f32 %v494, %v558
  %v975 = vmax.f32 %v495, %v559
  %v976 = vmax.f32 %v496, %v560
  %v977 = vmin.f32 %v913, %v593
  %v978 = vmin.f32 %v914, %v594
  %v979 = vmin.f32 %v915, %v595
  %v980 = vmin.f32 %v916, %v596
  %v981 = vmin.f32 %v917, %v597
  %v982 = vmin.f32 %v918, %v598
  %v983 = vmin.f32 %v919, %v599
  %v984 = vmin.f32 %v920, %v600
  %v985 = vmin.f32 %v921, %v601
  %v986 = vmin.f32 %v922, %v602
  %v987 = vmin.f32 %v923, %v603
  %v988 = vmin.f32 %v924, %v604
  %v989 = vmin.f32 %v925, %v605
  %v990 = vmin.f32 %v926, %v606
  %v991 = vmin.f32 %v927, %v607
  %v992 = vmin.f32 %v928, %v608
  %v993 = vmin.f32 %v929, %v609
  %v994 = vmin.f32 %v930, %v610
  %v995 = vmin.f32 %v931, %v611
  %v996 = vmin.f32 %v932, %v612
  %v997 = vmin.f32 %v933, %v613
  %v998 = vmin.f32 %v934, %v614
  %v999 = vmin.f32 %v935, %v615
  %v1000 = vmin.f32 %v936, %v616
  %v1001 = vmin.f32 %v937, %v617
  %v1002 = vmin.f32 %v938, %v618
  %v1003 = vmin.f32 %v939, %v619
  %v1004 = vmin.f32 %v940, %v620
  %v1005 = vmin.f32 %v941, %v621
  %v1006 = vmin.f32 %v942, %v622
  %v1007 = vmin.f32 %v943, %v623
  %v1008 = vmin.f32 %v944, %v624
  %v1009 = vmax.f32 %v913, %v593
  %v1010 = vmax.f32 %v914, %v594
  %v1011 = vmax.f32 %v915, %v595
  %v1012 = vmax.f32 %v916, %v596
  %v1013 = vmax.f32 %v917, %v597
  %v1014 = vmax.f32 %v918, %v598
  %v1015 = vmax.f32 %v919, %v599
  %v1016 = vmax.f32 %v920, %v600
  %v1017 = vmax.f32 %v921, %v601
  %v1018 = vmax.f32 %v922, %v602
  %v1019 = vmax.f32 %v923, %v603
  %v1020 = vmax.f32 %v924, %v604
  %v1021 = vmax.f32 %v925, %v605
  %v1022 = vmax.f32 %v926, %v606
  %v1023 = vmax.f32 %v927, %v607
  %v1024 = vmax.f32 %v928, %v608
  %v1025 = vmax.f32 %v929, %v609
  %v1026 = vmax.f32 %v930, %v610
  %v1027 = vmax.f32 %v931, %v611
  %v1028 = vmax.f32 %v932, %v612
  %v1029 = vmax.f32 %v933, %v613
  %v1030 = vmax.f32 %v934, %v614
  %v1031 = vmax.f32 %v935, %v615
  %v1032 = vmax.f32 %v936, %v616
  %v1033 = vmax.f32 %v937, %v617
  %v1034 = vmax.f32 %v938, %v618
  %v1035 = vmax.f32 %v939, %v619
  %v1036 = vmax.f32 %v940, %v620
  %v1037 = vmax.f32 %v941, %v621
  %v1038 = vmax.f32 %v942, %v622
  %v1039 = vmax.f32 %v943, %v623
  %v1040 = vmax.f32 %v944, %v624
  %v1041 = vmin.f32 %v977, %v657
  %v1042 = vmin.f32 %v978, %v658
  %v1043 = vmin.f32 %v979, %v659
  %v1044 = vmin.f32 %v980, %v660
  %v1045 = vmin.f32 %v981, %v661
  %v1046 = vmin.f32 %v982, %v662
  %v1047 = vmin.f32 %v983, %v663
  %v1048 = vmin.f32 %v984, %v664
  %v1049 = vmin.f32 %v985, %v665
  %v1050 = vmin.f32 %v986, %v666
  %v1051 = vmin.f32 %v987, %v667
  %v1052 = vmin.f32 %v988, %v668
  %v1053 = vmin.f32 %v989, %v669
  %v1054 = vmin.f32 %v990, %v670
  %v1055 = vmin.f32 %v991, %v671
  %v1056 = vmin.f32 %v992, %v672
  %v1057 = vmin.f32 %v993, %v673
  %v1058 = vmin.f32 %v994, %v674
  %v1059 = vmin.f32 %v995, %v675
  %v1060 = vmin.f32 %v996, %v676
  %v1061 = vmin.f32 %v997, %v677
  %v1062 = vmin.f32 %v998, %v678
  %v1063 = vmin.f32 %v999, %v679
  %v1064 = vmin.f32 %v1000, %v680
  %v1065 = vmin.f32 %v1001, %v681
  %v1066 = vmin.f32 %v1002, %v682
  %v1067 = vmin.f32 %v1003, %v683
  %v1068 = vmin.f32 %v1004, %v684
  %v1069 = vmin.f32 %v1005, %v685
  %v1070 = vmin.f32 %v1006, %v686
  %v1071 = vmin.f32 %v1007, %v687
  %v1072 = vmin.f32 %v1008, %v688
  %v1073 = vmax.f32 %v977, %v657
  %v1074 = vmax.f32 %v978, %v658
  %v1075 = vmax.f32 %v979, %v659
  %v1076 = vmax.f32 %v980, %v660
  %v1077 = vmax.f32 %v981, %v661
  %v1078 = vmax.f32 %v982, %v662
  %v1079 = vmax.f32 %v983, %v663
  %v1080 = vmax.f32 %v984, %v664
  %v1081 = vmax.f32 %v985, %v665
  %v1082 = vmax.f32 %v986, %v666
  %v1083 = vmax.f32 %v987, %v667
  %v1084 = vmax.f32 %v988, %v668
  %v1085 = vmax.f32 %v989, %v669
  %v1086 = vmax.f32 %v990, %v670
  %v1087 = vmax.f32 %v991, %v671
  %v1088 = vmax.f32 %v992, %v672
  %v1089 = vmax.f32 %v993, %v673
  %v1090 = vmax.f32 %v994, %v674
  %v1091 = vmax.f32 %v995, %v675
  %v1092 = vmax.f32 %v996, %v676
  %v1093 = vmax.f32 %v997, %v677
  %v1094 = vmax.f32 %v998, %v678
  %v1095 = vmax.f32 %v999, %v679
  %v1096 = vmax.f32 %v1000, %v680
  %v1097 = vmax.f32 %v1001, %v681
  %v1098 = vmax.f32 %v1002, %v682
  %v1099 = vmax.f32 %v1003, %v683
  %v1100 = vmax.f32 %v1004, %v684
  %v1101 = vmax.f32 %v1005, %v685
  %v1102 = vmax.f32 %v1006, %v686
  %v1103 = vmax.f32 %v1007, %v687
  %v1104 = vmax.f32 %v1008, %v688
  %v1105 = vmin.f32 %v1041, %v721
  %v1106 = vmin.f32 %v1042, %v722
  %v1107 = vmin.f32 %v1043, %v723
  %v1108 = vmin.f32 %v1044, %v724
  %v1109 = vmin.f32 %v1045, %v725
  %v1110 = vmin.f32 %v1046, %v726
  %v1111 = vmin.f32 %v1047, %v727
  %v1112 = vmin.f32 %v1048, %v728
  %v1113 = vmin.f32 %v1049, %v729
  %v1114 = vmin.f32 %v1050, %v730
  %v1115 = vmin.f32 %v1051, %v731
  %v1116 = vmin.f32 %v1052, %v732
  %v1117 = vmin.f32 %v1053, %v733
  %v1118 = vmin.f32 %v1054, %v734
  %v1119 = vmin.f32 %v1055, %v735
  %v1120 = vmin.f32 %v1056, %v736
  %v1121 = vmin.f32 %v1057, %v737
  %v1122 = vmin.f32 %v1058, %v738
  %v1123 = vmin.f32 %v1059, %v739
  %v1124 = vmin.f32 %v1060, %v740
  %v1125 = vmin.f32 %v1061, %v741
  %v1126 = vmin.f32 %v1062, %v742
  %v1127 = vmin.f32 %v1063, %v743
  %v1128 = vmin.f32 %v1064, %v744
  %v1129 = vmin.f32 %v1065, %v745
  %v1130 = vmin.f32 %v1066, %v746
  %v1131 = vmin.f32 %v1067, %v747
  %v1132 = vmin.f32 %v1068, %v748
  %v1133 = vmin.f32 %v1069, %v749
  %v1134 = vmin.f32 %v1070, %v750
  %v1135 = vmin.f32 %v1071, %v751
  %v1136 = vmin.f32 %v1072, %v752
  %v1137 = vmax.f32 %v1041, %v721
  %v1138 = vmax.f32 %v1042, %v722
  %v1139 = vmax.f32 %v1043, %v723
  %v1140 = vmax.f32 %v1044, %v724
  %v1141 = vmax.f32 %v1045, %v725
  %v1142 = vmax.f32 %v1046, %v726
  %v1143 = vmax.f32 %v1047, %v727
  %v1144 = vmax.f32 %v1048, %v728
  %v1145 = vmax.f32 %v1049, %v729
  %v1146 = vmax.f32 %v1050, %v730
  %v1147 = vmax.f32 %v1051, %v731
  %v1148 = vmax.f32 %v1052, %v732
  %v1149 = vmax.f32 %v1053, %v733
  %v1150 = vmax.f32 %v1054, %v734
  %v1151 = vmax.f32 %v1055, %v735
  %v1152 = vmax.f32 %v1056, %v736
  %v1153 = vmax.f32 %v1057, %v737
  %v1154 = vmax.f32 %v1058, %v738
  %v1155 = vmax.f32 %v1059, %v739
  %v1156 = vmax.f32 %v1060, %v740
  %v1157 = vmax.f32 %v1061, %v741
  %v1158 = vmax.f32 %v1062, %v742
  %v1159 = vmax.f32 %v1063, %v743
  %v1160 = vmax.f32 %v1064, %v744
  %v1161 = vmax.f32 %v1065, %v745
  %v1162 = vmax.f32 %v1066, %v746
  %v1163 = vmax.f32 %v1067, %v747
  %v1164 = vmax.f32 %v1068, %v748
  %v1165 = vmax.f32 %v1069, %v749
  %v1166 = vmax.f32 %v1070, %v750
  %v1167 = vmax.f32 %v1071, %v751
  %v1168 = vmax.f32 %v1072, %v752
  %v1169 = vmin.f32 %v1105, %v785
  %v1170 = vmin.f32 %v1106, %v786
  %v1171 = vmin.f32 %v1107, %v787
  %v1172 = vmin.f32 %v1108, %v788
  %v1173 = vmin.f32 %v1109, %v789
  %v1174 = vmin.f32 %v1110, %v790
  %v1175 = vmin.f32 %v1111, %v791
  %v1176 = vmin.f32 %v1112, %v792
  %v1177 = vmin.f32 %v1113, %v793
  %v1178 = vmin.f32 %v1114, %v794
  %v1179 = vmin.f32 %v1115, %v795
  %v1180 = vmin.f32 %v1116, %v796
  %v1181 = vmin.f32 %v1117, %v797
  %v1182 = vmin.f32 %v1118, %v798
  %v1183 = vmin.f32 %v1119, %v799
  %v1184 = vmin.f32 %v1120, %v800
  %v1185 = vmin.f32 %v1121, %v801
  %v1186 = vmin.f32 %v1122, %v802
  %v1187 = vmin.f32 %v1123, %v803
  %v1188 = vmin.f32 %v1124, %v804
  %v1189 = vmin.f32 %v1125, %v805
  %v1190 = vmin.f32 %v1126, %v806
  %v1191 = vmin.f32 %v1127, %v807
  %v1192 = vmin.f32 %v1128, %v808
  %v1193 = vmin.f32 %v1129, %v809
  %v1194 = vmin.f32 %v1130, %v810
  %v1195 = vmin.f32 %v1131, %v811
  %v1196 = vmin.f32 %v1132, %v812
  %v1197 = vmin.f32 %v1133, %v813
  %v1198 = vmin.f32 %v1134, %v814
  %v1199 = vmin.f32 %v1135, %v815
  %v1200 = vmin.f32 %v1136, %v816
  %v1201 = vmax.f32 %v1105, %v785
  %v1202 = vmax.f32 %v1106, %v786
  %v1203 = vmax.f32 %v1107, %v787
  %v1204 = vmax.f32 %v1108, %v788
  %v1205 = vmax.f32 %v1109, %v789
  %v1206 = vmax.f32 %v1110, %v790
  %v1207 = vmax.f32 %v1111, %v791
  %v1208 = vmax.f32 %v1112, %v792
  %v1209 = vmax.f32 %v1113, %v793
  %v1210 = vmax.f32 %v1114, %v794
  %v1211 = vmax.f32 %v1115, %v795
  %v1212 = vmax.f32 %v1116, %v796
  %v1213 = vmax.f32 %v1117, %v797
  %v1214 = vmax.f32 %v1118, %v798
  %v1215 = vmax.f32 %v1119, %v799
  %v1216 = vmax.f32 %v1120, %v800
  %v1217 = vmax.f32 %v1121, %v801
  %v1218 = vmax.f32 %v1122, %v802
  %v1219 = vmax.f32 %v1123, %v803
  %v1220 = vmax.f32 %v1124, %v804
  %v1221 = vmax.f32 %v1125, %v805
  %v1222 = vmax.f32 %v1126, %v806
  %v1223 = vmax.f32 %v1127, %v807
  %v1224 = vmax.f32 %v1128, %v808
  %v1225 = vmax.f32 %v1129, %v809
  %v1226 = vmax.f32 %v1130, %v810
  %v1227 = vmax.f32 %v1131, %v811
  %v1228 = vmax.f32 %v1132, %v812
  %v1229 = vmax.f32 %v1133, %v813
  %v1230 = vmax.f32 %v1134, %v814
  %v1231 = vmax.f32 %v1135, %v815
  %v1232 = vmax.f32 %v1136, %v816
  %v1233 = vmax.f32 %v1169, %v849
  %v1234 = vmax.f32 %v1170, %v850
  %v1235 = vmax.f32 %v1171, %v851
  %v1236 = vmax.f32 %v1172, %v852
  %v1237 = vmax.f32 %v1173, %v853
  %v1238 = vmax.f32 %v1174, %v854
  %v1239 = vmax.f32 %v1175, %v855
  %v1240 = vmax.f32 %v1176, %v856
  %v1241 = vmax.f32 %v1177, %v857
  %v1242 = vmax.f32 %v1178, %v858
  %v1243 = vmax.f32 %v1179, %v859
  %v1244 = vmax.f32 %v1180, %v860
  %v1245 = vmax.f32 %v1181, %v861
  %v1246 = vmax.f32 %v1182, %v862
  %v1247 = vmax.f32 %v1183, %v863
  %v1248 = vmax.f32 %v1184, %v864
  %v1249 = vmax.f32 %v1185, %v865
  %v1250 = vmax.f32 %v1186, %v866
  %v1251 = vmax.f32 %v1187, %v867
  %v1252 = vmax.f32 %v1188, %v868
  %v1253 = vmax.f32 %v1189, %v869
  %v1254 = vmax.f32 %v1190, %v870
  %v1255 = vmax.f32 %v1191, %v871
  %v1256 = vmax.f32 %v1192, %v872
  %v1257 = vmax.f32 %v1193, %v873
  %v1258 = vmax.f32 %v1194, %v874
  %v1259 = vmax.f32 %v1195, %v875
  %v1260 = vmax.f32 %v1196, %v876
  %v1261 = vmax.f32 %v1197, %v877
  %v1262 = vmax.f32 %v1198, %v878
  %v1263 = vmax.f32 %v1199, %v879
  %v1264 = vmax.f32 %v1200, %v880
  %v1265 = vmin.f32 %v497, %v561
  %v1266 = vmin.f32 %v498, %v562
  %v1267 = vmin.f32 %v499, %v563
  %v1268 = vmin.f32 %v500, %v564
  %v1269 = vmin.f32 %v501, %v565
  %v1270 = vmin.f32 %v502, %v566
  %v1271 = vmin.f32 %v503, %v567
  %v1272 = vmin.f32 %v504, %v568
  %v1273 = vmin.f32 %v505, %v569
  %v1274 = vmin.f32 %v506, %v570
  %v1275 = vmin.f32 %v507, %v571
  %v1276 = vmin.f32 %v508, %v572
  %v1277 = vmin.f32 %v509, %v573
  %v1278 = vmin.f32 %v510, %v574
  %v1279 = vmin.f32 %v511, %v575
  %v1280 = vmin.f32 %v512, %v576
  %v1281 = vmin.f32 %v513, %v577
  %v1282 = vmin.f32 %v514, %v578
  %v1283 = vmin.f32 %v515, %v579
  %v1284 = vmin.f32 %v516, %v580
  %v1285 = vmin.f32 %v517, %v581
  %v1286 = vmin.f32 %v518, %v582
  %v1287 = vmin.f32 %v519, %v583
  %v1288 = vmin.f32 %v520, %v584
  %v1289 = vmin.f32 %v521, %v585
  %v1290 = vmin.f32 %v522, %v586
  %v1291 = vmin.f32 %v523, %v587
  %v1292 = vmin.f32 %v524, %v588
  %v1293 = vmin.f32 %v525, %v589
  %v1294 = vmin.f32 %v526, %v590
  %v1295 = vmin.f32 %v527, %v591
  %v1296 = vmin.f32 %v528, %v592
  %v1297 = vmax.f32 %v497, %v561
  %v1298 = vmax.f32 %v498, %v562
  %v1299 = vmax.f32 %v499, %v563
  %v1300 = vmax.f32 %v500, %v564
  %v1301 = vmax.f32 %v501, %v565
  %v1302 = vmax.f32 %v502, %v566
  %v1303 = vmax.f32 %v503, %v567
  %v1304 = vmax.f32 %v504, %v568
  %v1305 = vmax.f32 %v505, %v569
  %v1306 = vmax.f32 %v506, %v570
  %v1307 = vmax.f32 %v507, %v571
  %v1308 = vmax.f32 %v508, %v572
  %v1309 = vmax.f32 %v509, %v573
  %v1310 = vmax.f32 %v510, %v574
  %v1311 = vmax.f32 %v511, %v575
  %v1312 = vmax.f32 %v512, %v576
  %v1313 = vmax.f32 %v513, %v577
  %v1314 = vmax.f32 %v514, %v578
  %v1315 = vmax.f32 %v515, %v579
  %v1316 = vmax.f32 %v516, %v580
  %v1317 = vmax.f32 %v517, %v581
  %v1318 = vmax.f32 %v518, %v582
  %v1319 = vmax.f32 %v519, %v583
  %v1320 = vmax.f32 %v520, %v584
  %v1321 = vmax.f32 %v521, %v585
  %v1322 = vmax.f32 %v522, %v586
  %v1323 = vmax.f32 %v523, %v587
  %v1324 = vmax.f32 %v524, %v588
  %v1325 = vmax.f32 %v525, %v589
  %v1326 = vmax.f32 %v526, %v590
  %v1327 = vmax.f32 %v527, %v591
  %v1328 = vmax.f32 %v528, %v592
  %v1329 = vmin.f32 %v1297, %v625
  %v1330 = vmin.f32 %v1298, %v626
  %v1331 = vmin.f32 %v1299, %v627
  %v1332 = vmin.f32 %v1300, %v628
  %v1333 = vmin.f32 %v1301, %v629
  %v1334 = vmin.f32 %v1302, %v630
  %v1335 = vmin.f32 %v1303, %v631
  %v1336 = vmin.f32 %v1304, %v632
  %v1337 = vmin.f32 %v1305, %v633
  %v1338 = vmin.f32 %v1306, %v634
  %v1339 = vmin.f32 %v1307, %v635
  %v1340 = vmin.f32 %v1308, %v636
  %v1341 = vmin.f32 %v1309, %v637
  %v1342 = vmin.f32 %v1310, %v638
  %v1343 = vmin.f32 %v1311, %v639
  %v1344 = vmin.f32 %v1312, %v640
  %v1345 = vmin.f32 %v1313, %v641
  %v1346 = vmin.f32 %v1314, %v642
  %v1347 = vmin.f32 %v1315, %v643
  %v1348 = vmin.f32 %v1316, %v644
  %v1349 = vmin.f32 %v1317, %v645
  %v1350 = vmin.f32 %v1318, %v646
  %v1351 = vmin.f32 %v1319, %v647
  %v1352 = vmin.f32 %v1320, %v648
  %v1353 = vmin.f32 %v1321, %v649
  %v1354 = vmin.f32 %v1322, %v650
  %v1355 = vmin.f32 %v1323, %v651
  %v1356 = vmin.f32 %v1324, %v652
  %v1357 = vmin.f32 %v1325, %v653
  %v1358 = vmin.f32 %v1326, %v654
  %v1359 = vmin.f32 %v1327, %v655
  %v1360 = vmin.f32 %v1328, %v656
  %v1361 = vmax.f32 %v1297, %v625
  %v1362 = vmax.f32 %v1298, %v626
  %v1363 = vmax.f32 %v1299, %v627
  %v1364 = vmax.f32 %v1300, %v628
  %v1365 = vmax.f32 %v1301, %v629
  %v1366 = vmax.f32 %v1302, %v630
  %v1367 = vmax.f32 %v1303, %v631
  %v1368 = vmax.f32 %v1304, %v632
  %v1369 = vmax.f32 %v1305, %v633
  %v1370 = vmax.f32 %v1306, %v634
  %v1371 = vmax.f32 %v1307, %v635
  %v1372 = vmax.f32 %v1308, %v636
  %v1373 = vmax.f32 %v1309, %v637
  %v1374 = vmax.f32 %v1310, %v638
  %v1375 = vmax.f32 %v1311, %v639
  %v1376 = vmax.f32 %v1312, %v640
  %v1377 = vmax.f32 %v1313, %v641
  %v1378 = vmax.f32 %v1314, %v642
  %v1379 = vmax.f32 %v1315, %v643
  %v1380 = vmax.f32 %v1316, %v644
  %v1381 = vmax.f32 %v1317, %v645
  %v1382 = vmax.f32 %v1318, %v646
  %v1383 = vmax.f32 %v1319, %v647
  %v1384 = vmax.f32 %v1320, %v648
  %v1385 = vmax.f32 %v1321, %v649
  %v1386 = vmax.f32 %v1322, %v650
  %v1387 = vmax.f32 %v1323, %v651
  %v1388 = vmax.f32 %v1324, %v652
  %v1389 = vmax.f32 %v1325, %v653
  %v1390 = vmax.f32 %v1326, %v654
  %v1391 = vmax.f32 %v1327, %v655
  %v1392 = vmax.f32 %v1328, %v656
  %v1393 = vmin.f32 %v1361, %v689
  %v1394 = vmin.f32 %v1362, %v690
  %v1395 = vmin.f32 %v1363, %v691
  %v1396 = vmin.f32 %v1364, %v692
  %v1397 = vmin.f32 %v1365, %v693
  %v1398 = vmin.f32 %v1366, %v694
  %v1399 = vmin.f32 %v1367, %v695
  %v1400 = vmin.f32 %v1368, %v696
  %v1401 = vmin.f32 %v1369, %v697
  %v1402 = vmin.f32 %v1370, %v698
  %v1403 = vmin.f32 %v1371, %v699
  %v1404 = vmin.f32 %v1372, %v700
  %v1405 = vmin.f32 %v1373, %v701
  %v1406 = vmin.f32 %v1374, %v702
  %v1407 = vmin.f32 %v1375, %v703
  %v1408 = vmin.f32 %v1376, %v704
  %v1409 = vmin.f32 %v1377, %v705
  %v1410 = vmin.f32 %v1378, %v706
  %v1411 = vmin.f32 %v1379, %v707
  %v1412 = vmin.f32 %v1380, %v708
  %v1413 = vmin.f32 %v1381, %v709
  %v1414 = vmin.f32 %v1382, %v710
  %v1415 = vmin.f32 %v1383, %v711
  %v1416 = vmin.f32 %v1384, %v712
  %v1417 = vmin.f32 %v1385, %v713
  %v1418 = vmin.f32 %v1386, %v714
  %v1419 = vmin.f32 %v1387, %v715
  %v1420 = vmin.f32 %v1388, %v716
  %v1421 = vmin.f32 %v1389, %v717
  %v1422 = vmin.f32 %v1390, %v718
  %v1423 = vmin.f32 %v1391, %v719
  %v1424 = vmin.f32 %v1392, %v720
  %v1425 = vmax.f32 %v1361, %v689
  %v1426 = vmax.f32 %v1362, %v690
  %v1427 = vmax.f32 %v1363, %v691
  %v1428 = vmax.f32 %v1364, %v692
  %v1429 = vmax.f32 %v1365, %v693
  %v1430 = vmax.f32 %v1366, %v694
  %v1431 = vmax.f32 %v1367, %v695
  %v1432 = vmax.f32 %v1368, %v696
  %v1433 = vmax.f32 %v1369, %v697
  %v1434 = vmax.f32 %v1370, %v698
  %v1435 = vmax.f32 %v1371, %v699
  %v1436 = vmax.f32 %v1372, %v700
  %v1437 = vmax.f32 %v1373, %v701
  %v1438 = vmax.f32 %v1374, %v702
  %v1439 = vmax.f32 %v1375, %v703
  %v1440 = vmax.f32 %v1376, %v704
  %v1441 = vmax.f32 %v1377, %v705
  %v1442 = vmax.f32 %v1378, %v706
  %v1443 = vmax.f32 %v1379, %v707
  %v1444 = vmax.f32 %v1380, %v708
  %v1445 = vmax.f32 %v1381, %v709
  %v1446 = vmax.f32 %v1382, %v710
  %v1447 = vmax.f32 %v1383, %v711
  %v1448 = vmax.f32 %v1384, %v712
  %v1449 = vmax.f32 %v1385, %v713
  %v1450 = vmax.f32 %v1386, %v714
  %v1451 = vmax.f32 %v1387, %v715
  %v1452 = vmax.f32 %v1388, %v716
  %v1453 = vmax.f32 %v1389, %v717
  %v1454 = vmax.f32 %v1390, %v718
  %v1455 = vmax.f32 %v1391, %v719
  %v1456 = vmax.f32 %v1392, %v720
  %v1457 = vmin.f32 %v1425, %v753
  %v1458 = vmin.f32 %v1426, %v754
  %v1459 = vmin.f32 %v1427, %v755
  %v1460 = vmin.f32 %v1428, %v756
  %v1461 = vmin.f32 %v1429, %v757
  %v1462 = vmin.f32 %v1430, %v758
  %v1463 = vmin.f32 %v1431, %v759
  %v1464 = vmin.f32 %v1432, %v760
  %v1465 = vmin.f32 %v1433, %v761
  %v1466 = vmin.f32 %v1434, %v762
  %v1467 = vmin.f32 %v1435, %v763
  %v1468 = vmin.f32 %v1436, %v764
  %v1469 = vmin.f32 %v1437, %v765
  %v1470 = vmin.f32 %v1438, %v766
  %v1471 = vmin.f32 %v1439, %v767
  %v1472 = vmin.f32 %v1440, %v768
  %v1473 = vmin.f32 %v1441, %v769
  %v1474 = vmin.f32 %v1442, %v770
  %v1475 = vmin.f32 %v1443, %v771
  %v1476 = vmin.f32 %v1444, %v772
  %v1477 = vmin.f32 %v1445, %v773
  %v1478 = vmin.f32 %v1446, %v774
  %v1479 = vmin.f32 %v1447, %v775
  %v1480 = vmin.f32 %v1448, %v776
  %v1481 = vmin.f32 %v1449, %v777
  %v1482 = vmin.f32 %v1450, %v778
  %v1483 = vmin.f32 %v1451, %v779
  %v1484 = vmin.f32 %v1452, %v780
  %v1485 = vmin.f32 %v1453, %v781
  %v1486 = vmin.f32 %v1454, %v782
  %v1487 = vmin.f32 %v1455, %v783
  %v1488 = vmin.f32 %v1456, %v784
  %v1489 = vmax.f32 %v1425, %v753
  %v1490 = vmax.f32 %v1426, %v754
  %v1491 = vmax.f32 %v1427, %v755
  %v1492 = vmax.f32 %v1428, %v756
  %v1493 = vmax.f32 %v1429, %v757
  %v1494 = vmax.f32 %v1430, %v758
  %v1495 = vmax.f32 %v1431, %v759
  %v1496 = vmax.f32 %v1432, %v760
  %v1497 = vmax.f32 %v1433, %v761
  %v1498 = vmax.f32 %v1434, %v762
  %v1499 = vmax.f32 %v1435, %v763
  %v1500 = vmax.f32 %v1436, %v764
  %v1501 = vmax.f32 %v1437, %v765
  %v1502 = vmax.f32 %v1438, %v766
  %v1503 = vmax.f32 %v1439, %v767
  %v1504 = vmax.f32 %v1440, %v768
  %v1505 = vmax.f32 %v1441, %v769
  %v1506 = vmax.f32 %v1442, %v770
  %v1507 = vmax.f32 %v1443, %v771
  %v1508 = vmax.f32 %v1444, %v772
  %v1509 = vmax.f32 %v1445, %v773
  %v1510 = vmax.f32 %v1446, %v774
  %v1511 = vmax.f32 %v1447, %v775
  %v1512 = vmax.f32 %v1448, %v776
  %v1513 = vmax.f32 %v1449, %v777
  %v1514 = vmax.f32 %v1450, %v778
  %v1515 = vmax.f32 %v1451, %v779
  %v1516 = vmax.f32 %v1452, %v780
  %v1517 = vmax.f32 %v1453, %v781
  %v1518 = vmax.f32 %v1454, %v782
  %v1519 = vmax.f32 %v1455, %v783
  %v1520 = vmax.f32 %v1456, %v784
  %v1521 = vmin.f32 %v1489, %v817
  %v1522 = vmin.f32 %v1490, %v818
  %v1523 = vmin.f32 %v1491, %v819
  %v1524 = vmin.f32 %v1492, %v820
  %v1525 = vmin.f32 %v1493, %v821
  %v1526 = vmin.f32 %v1494, %v822
  %v1527 = vmin.f32 %v1495, %v823
  %v1528 = vmin.f32 %v1496, %v824
  %v1529 = vmin.f32 %v1497, %v825
  %v1530 = vmin.f32 %v1498, %v826
  %v1531 = vmin.f32 %v1499, %v827
  %v1532 = vmin.f32 %v1500, %v828
  %v1533 = vmin.f32 %v1501, %v829
  %v1534 = vmin.f32 %v1502, %v830
  %v1535 = vmin.f32 %v1503, %v831
  %v1536 = vmin.f32 %v1504, %v832
  %v1537 = vmin.f32 %v1505, %v833
  %v1538 = vmin.f32 %v1506, %v834
  %v1539 = vmin.f32 %v1507, %v835
  %v1540 = vmin.f32 %v1508, %v836
  %v1541 = vmin.f32 %v1509, %v837
  %v1542 = vmin.f32 %v1510, %v838
  %v1543 = vmin.f32 %v1511, %v839
  %v1544 = vmin.f32 %v1512, %v840
  %v1545 = vmin.f32 %v1513, %v841
  %v1546 = vmin.f32 %v1514, %v842
  %v1547 = vmin.f32 %v1515, %v843
  %v1548 = vmin.f32 %v1516, %v844
  %v1549 = vmin.f32 %v1517, %v845
  %v1550 = vmin.f32 %v1518, %v846
  %v1551 = vmin.f32 %v1519, %v847
  %v1552 = vmin.f32 %v1520, %v848
  %v1553 = vmax.f32 %v1489, %v817
  %v1554 = vmax.f32 %v1490, %v818
  %v1555 = vmax.f32 %v1491, %v819
  %v1556 = vmax.f32 %v1492, %v820
  %v1557 = vmax.f32 %v1493, %v821
  %v1558 = vmax.f32 %v1494, %v822
  %v1559 = vmax.f32 %v1495, %v823
  %v1560 = vmax.f32 %v1496, %v824
  %v1561 = vmax.f32 %v1497, %v825
  %v1562 = vmax.f32 %v1498, %v826
  %v1563 = vmax.f32 %v1499, %v827
  %v1564 = vmax.f32 %v1500, %v828
  %v1565 = vmax.f32 %v1501, %v829
  %v1566 = vmax.f32 %v1502, %v830
  %v1567 = vmax.f32 %v1503, %v831
  %v1568 = vmax.f32 %v1504, %v832
  %v1569 = vmax.f32 %v1505, %v833
  %v1570 = vmax.f32 %v1506, %v834
  %v1571 = vmax.f32 %v1507, %v835
  %v1572 = vmax.f32 %v1508, %v836
  %v1573 = vmax.f32 %v1509, %v837
  %v1574 = vmax.f32 %v1510, %v838
  %v1575 = vmax.f32 %v1511, %v839
  %v1576 = vmax.f32 %v1512, %v840
  %v1577 = vmax.f32 %v1513, %v841
  %v1578 = vmax.f32 %v1514, %v842
  %v1579 = vmax.f32 %v1515, %v843
  %v1580 = vmax.f32 %v1516, %v844
  %v1581 = vmax.f32 %v1517, %v845
  %v1582 = vmax.f32 %v1518, %v846
  %v1583 = vmax.f32 %v1519, %v847
  %v1584 = vmax.f32 %v1520, %v848
  %v1585 = vmin.f32 %v1553, %v881
  %v1586 = vmin.f32 %v1554, %v882
  %v1587 = vmin.f32 %v1555, %v883
  %v1588 = vmin.f32 %v1556, %v884
  %v1589 = vmin.f32 %v1557, %v885
  %v1590 = vmin.f32 %v1558, %v886
  %v1591 = vmin.f32 %v1559, %v887
  %v1592 = vmin.f32 %v1560, %v888
  %v1593 = vmin.f32 %v1561, %v889
  %v1594 = vmin.f32 %v1562, %v890
  %v1595 = vmin.f32 %v1563, %v891
  %v1596 = vmin.f32 %v1564, %v892
  %v1597 = vmin.f32 %v1565, %v893
  %v1598 = vmin.f32 %v1566, %v894
  %v1599 = vmin.f32 %v1567, %v895
  %v1600 = vmin.f32 %v1568, %v896
  %v1601 = vmin.f32 %v1569, %v897
  %v1602 = vmin.f32 %v1570, %v898
  %v1603 = vmin.f32 %v1571, %v899
  %v1604 = vmin.f32 %v1572, %v900
  %v1605 = vmin.f32 %v1573, %v901
  %v1606 = vmin.f32 %v1574, %v902
  %v1607 = vmin.f32 %v1575, %v903
  %v1608 = vmin.f32 %v1576, %v904
  %v1609 = vmin.f32 %v1577, %v905
  %v1610 = vmin.f32 %v1578, %v906
  %v1611 = vmin.f32 %v1579, %v907
  %v1612 = vmin.f32 %v1580, %v908
  %v1613 = vmin.f32 %v1581, %v909
  %v1614 = vmin.f32 %v1582, %v910
  %v1615 = vmin.f32 %v1583, %v911
  %v1616 = vmin.f32 %v1584, %v912
  %v1617 = vld [vmem:[%s336 + $0x4] sm:$0xff]
  %v1618 = vld [vmem:[%s336 + $0xc] sm:$0xff]
  %v1619 = vld [vmem:[%s336 + $0x1c] sm:$0xff]
  %v1620 = vld [vmem:[%s336 + $0x24] sm:$0xff]
  %v1621 = vld [vmem:[%s336 + $0x34] sm:$0xff]
  %v1622 = vld [vmem:[%s336 + $0x3c] sm:$0xff]
  %v1623 = vld [vmem:[%s336 + $0x4c] sm:$0xff]
  %v1624 = vld [vmem:[%s336 + $0x54] sm:$0xff]
  %v1625 = vld [vmem:[%s336 + $0x64] sm:$0xff]
  %v1626 = vld [vmem:[%s336 + $0x6c] sm:$0xff]
  %v1627 = vld [vmem:[%s336 + $0x7c] sm:$0xff]
  %v1628 = vld [vmem:[%s336 + $0x84] sm:$0xff]
  %v1629 = vld [vmem:[%s336 + $0x94] sm:$0xff]
  %v1630 = vld [vmem:[%s336 + $0x9c] sm:$0xff]
  %v1631 = vld [vmem:[%s336 + $0xac] sm:$0xff]
  %v1632 = vld [vmem:[%s336 + $0xb4] sm:$0xff]
  %v1633 = vld [vmem:[%s336 + $0xc4] sm:$0xff]
  %v1634 = vld [vmem:[%s336 + $0xcc] sm:$0xff]
  %v1635 = vld [vmem:[%s336 + $0xdc] sm:$0xff]
  %v1636 = vld [vmem:[%s336 + $0xe4] sm:$0xff]
  %v1637 = vld [vmem:[%s336 + $0xf4] sm:$0xff]
  %v1638 = vld [vmem:[%s336 + $0xfc] sm:$0xff]
  %v1639 = vld [vmem:[%s336 + $0x10c] sm:$0xff]
  %v1640 = vld [vmem:[%s336 + $0x114] sm:$0xff]
  %v1641 = vld [vmem:[%s336 + $0x124] sm:$0xff]
  %v1642 = vld [vmem:[%s336 + $0x12c] sm:$0xff]
  %v1643 = vld [vmem:[%s336 + $0x13c] sm:$0xff]
  %v1644 = vld [vmem:[%s336 + $0x144] sm:$0xff]
  %v1645 = vld [vmem:[%s336 + $0x154] sm:$0xff]
  %v1646 = vld [vmem:[%s336 + $0x15c] sm:$0xff]
  %v1647 = vld [vmem:[%s336 + $0x16c] sm:$0xff]
  %v1648 = vld [vmem:[%s336 + $0x174] sm:$0xff]
  %v1649 = vmin.f32 %v945, %v1009
  %v1650 = vmin.f32 %v946, %v1010
  %v1651 = vmin.f32 %v947, %v1011
  %v1652 = vmin.f32 %v948, %v1012
  %v1653 = vmin.f32 %v949, %v1013
  %v1654 = vmin.f32 %v950, %v1014
  %v1655 = vmin.f32 %v951, %v1015
  %v1656 = vmin.f32 %v952, %v1016
  %v1657 = vmin.f32 %v953, %v1017
  %v1658 = vmin.f32 %v954, %v1018
  %v1659 = vmin.f32 %v955, %v1019
  %v1660 = vmin.f32 %v956, %v1020
  %v1661 = vmin.f32 %v957, %v1021
  %v1662 = vmin.f32 %v958, %v1022
  %v1663 = vmin.f32 %v959, %v1023
  %v1664 = vmin.f32 %v960, %v1024
  %v1665 = vmin.f32 %v961, %v1025
  %v1666 = vmin.f32 %v962, %v1026
  %v1667 = vmin.f32 %v963, %v1027
  %v1668 = vmin.f32 %v964, %v1028
  %v1669 = vmin.f32 %v965, %v1029
  %v1670 = vmin.f32 %v966, %v1030
  %v1671 = vmin.f32 %v967, %v1031
  %v1672 = vmin.f32 %v968, %v1032
  %v1673 = vmin.f32 %v969, %v1033
  %v1674 = vmin.f32 %v970, %v1034
  %v1675 = vmin.f32 %v971, %v1035
  %v1676 = vmin.f32 %v972, %v1036
  %v1677 = vmin.f32 %v973, %v1037
  %v1678 = vmin.f32 %v974, %v1038
  %v1679 = vmin.f32 %v975, %v1039
  %v1680 = vmin.f32 %v976, %v1040
  %v1681 = vmax.f32 %v945, %v1009
  %v1682 = vmax.f32 %v946, %v1010
  %v1683 = vmax.f32 %v947, %v1011
  %v1684 = vmax.f32 %v948, %v1012
  %v1685 = vmax.f32 %v949, %v1013
  %v1686 = vmax.f32 %v950, %v1014
  %v1687 = vmax.f32 %v951, %v1015
  %v1688 = vmax.f32 %v952, %v1016
  %v1689 = vmax.f32 %v953, %v1017
  %v1690 = vmax.f32 %v954, %v1018
  %v1691 = vmax.f32 %v955, %v1019
  %v1692 = vmax.f32 %v956, %v1020
  %v1693 = vmax.f32 %v957, %v1021
  %v1694 = vmax.f32 %v958, %v1022
  %v1695 = vmax.f32 %v959, %v1023
  %v1696 = vmax.f32 %v960, %v1024
  %v1697 = vmax.f32 %v961, %v1025
  %v1698 = vmax.f32 %v962, %v1026
  %v1699 = vmax.f32 %v963, %v1027
  %v1700 = vmax.f32 %v964, %v1028
  %v1701 = vmax.f32 %v965, %v1029
  %v1702 = vmax.f32 %v966, %v1030
  %v1703 = vmax.f32 %v967, %v1031
  %v1704 = vmax.f32 %v968, %v1032
  %v1705 = vmax.f32 %v969, %v1033
  %v1706 = vmax.f32 %v970, %v1034
  %v1707 = vmax.f32 %v971, %v1035
  %v1708 = vmax.f32 %v972, %v1036
  %v1709 = vmax.f32 %v973, %v1037
  %v1710 = vmax.f32 %v974, %v1038
  %v1711 = vmax.f32 %v975, %v1039
  %v1712 = vmax.f32 %v976, %v1040
  %v1713 = vmin.f32 %v1073, %v1137
  %v1714 = vmin.f32 %v1074, %v1138
  %v1715 = vmin.f32 %v1075, %v1139
  %v1716 = vmin.f32 %v1076, %v1140
  %v1717 = vmin.f32 %v1077, %v1141
  %v1718 = vmin.f32 %v1078, %v1142
  %v1719 = vmin.f32 %v1079, %v1143
  %v1720 = vmin.f32 %v1080, %v1144
  %v1721 = vmin.f32 %v1081, %v1145
  %v1722 = vmin.f32 %v1082, %v1146
  %v1723 = vmin.f32 %v1083, %v1147
  %v1724 = vmin.f32 %v1084, %v1148
  %v1725 = vmin.f32 %v1085, %v1149
  %v1726 = vmin.f32 %v1086, %v1150
  %v1727 = vmin.f32 %v1087, %v1151
  %v1728 = vmin.f32 %v1088, %v1152
  %v1729 = vmin.f32 %v1089, %v1153
  %v1730 = vmin.f32 %v1090, %v1154
  %v1731 = vmin.f32 %v1091, %v1155
  %v1732 = vmin.f32 %v1092, %v1156
  %v1733 = vmin.f32 %v1093, %v1157
  %v1734 = vmin.f32 %v1094, %v1158
  %v1735 = vmin.f32 %v1095, %v1159
  %v1736 = vmin.f32 %v1096, %v1160
  %v1737 = vmin.f32 %v1097, %v1161
  %v1738 = vmin.f32 %v1098, %v1162
  %v1739 = vmin.f32 %v1099, %v1163
  %v1740 = vmin.f32 %v1100, %v1164
  %v1741 = vmin.f32 %v1101, %v1165
  %v1742 = vmin.f32 %v1102, %v1166
  %v1743 = vmin.f32 %v1103, %v1167
  %v1744 = vmin.f32 %v1104, %v1168
  %v1745 = vmax.f32 %v1073, %v1137
  %v1746 = vmax.f32 %v1074, %v1138
  %v1747 = vmax.f32 %v1075, %v1139
  %v1748 = vmax.f32 %v1076, %v1140
  %v1749 = vmax.f32 %v1077, %v1141
  %v1750 = vmax.f32 %v1078, %v1142
  %v1751 = vmax.f32 %v1079, %v1143
  %v1752 = vmax.f32 %v1080, %v1144
  %v1753 = vmax.f32 %v1081, %v1145
  %v1754 = vmax.f32 %v1082, %v1146
  %v1755 = vmax.f32 %v1083, %v1147
  %v1756 = vmax.f32 %v1084, %v1148
  %v1757 = vmax.f32 %v1085, %v1149
  %v1758 = vmax.f32 %v1086, %v1150
  %v1759 = vmax.f32 %v1087, %v1151
  %v1760 = vmax.f32 %v1088, %v1152
  %v1761 = vmax.f32 %v1089, %v1153
  %v1762 = vmax.f32 %v1090, %v1154
  %v1763 = vmax.f32 %v1091, %v1155
  %v1764 = vmax.f32 %v1092, %v1156
  %v1765 = vmax.f32 %v1093, %v1157
  %v1766 = vmax.f32 %v1094, %v1158
  %v1767 = vmax.f32 %v1095, %v1159
  %v1768 = vmax.f32 %v1096, %v1160
  %v1769 = vmax.f32 %v1097, %v1161
  %v1770 = vmax.f32 %v1098, %v1162
  %v1771 = vmax.f32 %v1099, %v1163
  %v1772 = vmax.f32 %v1100, %v1164
  %v1773 = vmax.f32 %v1101, %v1165
  %v1774 = vmax.f32 %v1102, %v1166
  %v1775 = vmax.f32 %v1103, %v1167
  %v1776 = vmax.f32 %v1104, %v1168
  %v1777 = vmin.f32 %v1201, %v1233
  %v1778 = vmin.f32 %v1202, %v1234
  %v1779 = vmin.f32 %v1203, %v1235
  %v1780 = vmin.f32 %v1204, %v1236
  %v1781 = vmin.f32 %v1205, %v1237
  %v1782 = vmin.f32 %v1206, %v1238
  %v1783 = vmin.f32 %v1207, %v1239
  %v1784 = vmin.f32 %v1208, %v1240
  %v1785 = vmin.f32 %v1209, %v1241
  %v1786 = vmin.f32 %v1210, %v1242
  %v1787 = vmin.f32 %v1211, %v1243
  %v1788 = vmin.f32 %v1212, %v1244
  %v1789 = vmin.f32 %v1213, %v1245
  %v1790 = vmin.f32 %v1214, %v1246
  %v1791 = vmin.f32 %v1215, %v1247
  %v1792 = vmin.f32 %v1216, %v1248
  %v1793 = vmin.f32 %v1217, %v1249
  %v1794 = vmin.f32 %v1218, %v1250
  %v1795 = vmin.f32 %v1219, %v1251
  %v1796 = vmin.f32 %v1220, %v1252
  %v1797 = vmin.f32 %v1221, %v1253
  %v1798 = vmin.f32 %v1222, %v1254
  %v1799 = vmin.f32 %v1223, %v1255
  %v1800 = vmin.f32 %v1224, %v1256
  %v1801 = vmin.f32 %v1225, %v1257
  %v1802 = vmin.f32 %v1226, %v1258
  %v1803 = vmin.f32 %v1227, %v1259
  %v1804 = vmin.f32 %v1228, %v1260
  %v1805 = vmin.f32 %v1229, %v1261
  %v1806 = vmin.f32 %v1230, %v1262
  %v1807 = vmin.f32 %v1231, %v1263
  %v1808 = vmin.f32 %v1232, %v1264
  %v1809 = vmax.f32 %v1201, %v1233
  %v1810 = vmax.f32 %v1202, %v1234
  %v1811 = vmax.f32 %v1203, %v1235
  %v1812 = vmax.f32 %v1204, %v1236
  %v1813 = vmax.f32 %v1205, %v1237
  %v1814 = vmax.f32 %v1206, %v1238
  %v1815 = vmax.f32 %v1207, %v1239
  %v1816 = vmax.f32 %v1208, %v1240
  %v1817 = vmax.f32 %v1209, %v1241
  %v1818 = vmax.f32 %v1210, %v1242
  %v1819 = vmax.f32 %v1211, %v1243
  %v1820 = vmax.f32 %v1212, %v1244
  %v1821 = vmax.f32 %v1213, %v1245
  %v1822 = vmax.f32 %v1214, %v1246
  %v1823 = vmax.f32 %v1215, %v1247
  %v1824 = vmax.f32 %v1216, %v1248
  %v1825 = vmax.f32 %v1217, %v1249
  %v1826 = vmax.f32 %v1218, %v1250
  %v1827 = vmax.f32 %v1219, %v1251
  %v1828 = vmax.f32 %v1220, %v1252
  %v1829 = vmax.f32 %v1221, %v1253
  %v1830 = vmax.f32 %v1222, %v1254
  %v1831 = vmax.f32 %v1223, %v1255
  %v1832 = vmax.f32 %v1224, %v1256
  %v1833 = vmax.f32 %v1225, %v1257
  %v1834 = vmax.f32 %v1226, %v1258
  %v1835 = vmax.f32 %v1227, %v1259
  %v1836 = vmax.f32 %v1228, %v1260
  %v1837 = vmax.f32 %v1229, %v1261
  %v1838 = vmax.f32 %v1230, %v1262
  %v1839 = vmax.f32 %v1231, %v1263
  %v1840 = vmax.f32 %v1232, %v1264
  %v1841 = vmin.f32 %v1265, %v1329
  %v1842 = vmin.f32 %v1266, %v1330
  %v1843 = vmin.f32 %v1267, %v1331
  %v1844 = vmin.f32 %v1268, %v1332
  %v1845 = vmin.f32 %v1269, %v1333
  %v1846 = vmin.f32 %v1270, %v1334
  %v1847 = vmin.f32 %v1271, %v1335
  %v1848 = vmin.f32 %v1272, %v1336
  %v1849 = vmin.f32 %v1273, %v1337
  %v1850 = vmin.f32 %v1274, %v1338
  %v1851 = vmin.f32 %v1275, %v1339
  %v1852 = vmin.f32 %v1276, %v1340
  %v1853 = vmin.f32 %v1277, %v1341
  %v1854 = vmin.f32 %v1278, %v1342
  %v1855 = vmin.f32 %v1279, %v1343
  %v1856 = vmin.f32 %v1280, %v1344
  %v1857 = vmin.f32 %v1281, %v1345
  %v1858 = vmin.f32 %v1282, %v1346
  %v1859 = vmin.f32 %v1283, %v1347
  %v1860 = vmin.f32 %v1284, %v1348
  %v1861 = vmin.f32 %v1285, %v1349
  %v1862 = vmin.f32 %v1286, %v1350
  %v1863 = vmin.f32 %v1287, %v1351
  %v1864 = vmin.f32 %v1288, %v1352
  %v1865 = vmin.f32 %v1289, %v1353
  %v1866 = vmin.f32 %v1290, %v1354
  %v1867 = vmin.f32 %v1291, %v1355
  %v1868 = vmin.f32 %v1292, %v1356
  %v1869 = vmin.f32 %v1293, %v1357
  %v1870 = vmin.f32 %v1294, %v1358
  %v1871 = vmin.f32 %v1295, %v1359
  %v1872 = vmin.f32 %v1296, %v1360
  %v1873 = vmax.f32 %v1265, %v1329
  %v1874 = vmax.f32 %v1266, %v1330
  %v1875 = vmax.f32 %v1267, %v1331
  %v1876 = vmax.f32 %v1268, %v1332
  %v1877 = vmax.f32 %v1269, %v1333
  %v1878 = vmax.f32 %v1270, %v1334
  %v1879 = vmax.f32 %v1271, %v1335
  %v1880 = vmax.f32 %v1272, %v1336
  %v1881 = vmax.f32 %v1273, %v1337
  %v1882 = vmax.f32 %v1274, %v1338
  %v1883 = vmax.f32 %v1275, %v1339
  %v1884 = vmax.f32 %v1276, %v1340
  %v1885 = vmax.f32 %v1277, %v1341
  %v1886 = vmax.f32 %v1278, %v1342
  %v1887 = vmax.f32 %v1279, %v1343
  %v1888 = vmax.f32 %v1280, %v1344
  %v1889 = vmax.f32 %v1281, %v1345
  %v1890 = vmax.f32 %v1282, %v1346
  %v1891 = vmax.f32 %v1283, %v1347
  %v1892 = vmax.f32 %v1284, %v1348
  %v1893 = vmax.f32 %v1285, %v1349
  %v1894 = vmax.f32 %v1286, %v1350
  %v1895 = vmax.f32 %v1287, %v1351
  %v1896 = vmax.f32 %v1288, %v1352
  %v1897 = vmax.f32 %v1289, %v1353
  %v1898 = vmax.f32 %v1290, %v1354
  %v1899 = vmax.f32 %v1291, %v1355
  %v1900 = vmax.f32 %v1292, %v1356
  %v1901 = vmax.f32 %v1293, %v1357
  %v1902 = vmax.f32 %v1294, %v1358
  %v1903 = vmax.f32 %v1295, %v1359
  %v1904 = vmax.f32 %v1296, %v1360
  %v1905 = vmin.f32 %v1393, %v1457
  %v1906 = vmin.f32 %v1394, %v1458
  %v1907 = vmin.f32 %v1395, %v1459
  %v1908 = vmin.f32 %v1396, %v1460
  %v1909 = vmin.f32 %v1397, %v1461
  %v1910 = vmin.f32 %v1398, %v1462
  %v1911 = vmin.f32 %v1399, %v1463
  %v1912 = vmin.f32 %v1400, %v1464
  %v1913 = vmin.f32 %v1401, %v1465
  %v1914 = vmin.f32 %v1402, %v1466
  %v1915 = vmin.f32 %v1403, %v1467
  %v1916 = vmin.f32 %v1404, %v1468
  %v1917 = vmin.f32 %v1405, %v1469
  %v1918 = vmin.f32 %v1406, %v1470
  %v1919 = vmin.f32 %v1407, %v1471
  %v1920 = vmin.f32 %v1408, %v1472
  %v1921 = vmin.f32 %v1409, %v1473
  %v1922 = vmin.f32 %v1410, %v1474
  %v1923 = vmin.f32 %v1411, %v1475
  %v1924 = vmin.f32 %v1412, %v1476
  %v1925 = vmin.f32 %v1413, %v1477
  %v1926 = vmin.f32 %v1414, %v1478
  %v1927 = vmin.f32 %v1415, %v1479
  %v1928 = vmin.f32 %v1416, %v1480
  %v1929 = vmin.f32 %v1417, %v1481
  %v1930 = vmin.f32 %v1418, %v1482
  %v1931 = vmin.f32 %v1419, %v1483
  %v1932 = vmin.f32 %v1420, %v1484
  %v1933 = vmin.f32 %v1421, %v1485
  %v1934 = vmin.f32 %v1422, %v1486
  %v1935 = vmin.f32 %v1423, %v1487
  %v1936 = vmin.f32 %v1424, %v1488
  %v1937 = vmax.f32 %v1393, %v1457
  %v1938 = vmax.f32 %v1394, %v1458
  %v1939 = vmax.f32 %v1395, %v1459
  %v1940 = vmax.f32 %v1396, %v1460
  %v1941 = vmax.f32 %v1397, %v1461
  %v1942 = vmax.f32 %v1398, %v1462
  %v1943 = vmax.f32 %v1399, %v1463
  %v1944 = vmax.f32 %v1400, %v1464
  %v1945 = vmax.f32 %v1401, %v1465
  %v1946 = vmax.f32 %v1402, %v1466
  %v1947 = vmax.f32 %v1403, %v1467
  %v1948 = vmax.f32 %v1404, %v1468
  %v1949 = vmax.f32 %v1405, %v1469
  %v1950 = vmax.f32 %v1406, %v1470
  %v1951 = vmax.f32 %v1407, %v1471
  %v1952 = vmax.f32 %v1408, %v1472
  %v1953 = vmax.f32 %v1409, %v1473
  %v1954 = vmax.f32 %v1410, %v1474
  %v1955 = vmax.f32 %v1411, %v1475
  %v1956 = vmax.f32 %v1412, %v1476
  %v1957 = vmax.f32 %v1413, %v1477
  %v1958 = vmax.f32 %v1414, %v1478
  %v1959 = vmax.f32 %v1415, %v1479
  %v1960 = vmax.f32 %v1416, %v1480
  %v1961 = vmax.f32 %v1417, %v1481
  %v1962 = vmax.f32 %v1418, %v1482
  %v1963 = vmax.f32 %v1419, %v1483
  %v1964 = vmax.f32 %v1420, %v1484
  %v1965 = vmax.f32 %v1421, %v1485
  %v1966 = vmax.f32 %v1422, %v1486
  %v1967 = vmax.f32 %v1423, %v1487
  %v1968 = vmax.f32 %v1424, %v1488
  %v1969 = vmin.f32 %v1521, %v1585
  %v1970 = vmin.f32 %v1522, %v1586
  %v1971 = vmin.f32 %v1523, %v1587
  %v1972 = vmin.f32 %v1524, %v1588
  %v1973 = vmin.f32 %v1525, %v1589
  %v1974 = vmin.f32 %v1526, %v1590
  %v1975 = vmin.f32 %v1527, %v1591
  %v1976 = vmin.f32 %v1528, %v1592
  %v1977 = vmin.f32 %v1529, %v1593
  %v1978 = vmin.f32 %v1530, %v1594
  %v1979 = vmin.f32 %v1531, %v1595
  %v1980 = vmin.f32 %v1532, %v1596
  %v1981 = vmin.f32 %v1533, %v1597
  %v1982 = vmin.f32 %v1534, %v1598
  %v1983 = vmin.f32 %v1535, %v1599
  %v1984 = vmin.f32 %v1536, %v1600
  %v1985 = vmin.f32 %v1537, %v1601
  %v1986 = vmin.f32 %v1538, %v1602
  %v1987 = vmin.f32 %v1539, %v1603
  %v1988 = vmin.f32 %v1540, %v1604
  %v1989 = vmin.f32 %v1541, %v1605
  %v1990 = vmin.f32 %v1542, %v1606
  %v1991 = vmin.f32 %v1543, %v1607
  %v1992 = vmin.f32 %v1544, %v1608
  %v1993 = vmin.f32 %v1545, %v1609
  %v1994 = vmin.f32 %v1546, %v1610
  %v1995 = vmin.f32 %v1547, %v1611
  %v1996 = vmin.f32 %v1548, %v1612
  %v1997 = vmin.f32 %v1549, %v1613
  %v1998 = vmin.f32 %v1550, %v1614
  %v1999 = vmin.f32 %v1551, %v1615
  %v2000 = vmin.f32 %v1552, %v1616
  %v2001 = vmax.f32 %v1521, %v1585
  %v2002 = vmax.f32 %v1522, %v1586
  %v2003 = vmax.f32 %v1523, %v1587
  %v2004 = vmax.f32 %v1524, %v1588
  %v2005 = vmax.f32 %v1525, %v1589
  %v2006 = vmax.f32 %v1526, %v1590
  %v2007 = vmax.f32 %v1527, %v1591
  %v2008 = vmax.f32 %v1528, %v1592
  %v2009 = vmax.f32 %v1529, %v1593
  %v2010 = vmax.f32 %v1530, %v1594
  %v2011 = vmax.f32 %v1531, %v1595
  %v2012 = vmax.f32 %v1532, %v1596
  %v2013 = vmax.f32 %v1533, %v1597
  %v2014 = vmax.f32 %v1534, %v1598
  %v2015 = vmax.f32 %v1535, %v1599
  %v2016 = vmax.f32 %v1536, %v1600
  %v2017 = vmax.f32 %v1537, %v1601
  %v2018 = vmax.f32 %v1538, %v1602
  %v2019 = vmax.f32 %v1539, %v1603
  %v2020 = vmax.f32 %v1540, %v1604
  %v2021 = vmax.f32 %v1541, %v1605
  %v2022 = vmax.f32 %v1542, %v1606
  %v2023 = vmax.f32 %v1543, %v1607
  %v2024 = vmax.f32 %v1544, %v1608
  %v2025 = vmax.f32 %v1545, %v1609
  %v2026 = vmax.f32 %v1546, %v1610
  %v2027 = vmax.f32 %v1547, %v1611
  %v2028 = vmax.f32 %v1548, %v1612
  %v2029 = vmax.f32 %v1549, %v1613
  %v2030 = vmax.f32 %v1550, %v1614
  %v2031 = vmax.f32 %v1551, %v1615
  %v2032 = vmax.f32 %v1552, %v1616
  %v2033 = vmin.f32 %v1649, %v1713
  %v2034 = vmin.f32 %v1650, %v1714
  %v2035 = vmin.f32 %v1651, %v1715
  %v2036 = vmin.f32 %v1652, %v1716
  %v2037 = vmin.f32 %v1653, %v1717
  %v2038 = vmin.f32 %v1654, %v1718
  %v2039 = vmin.f32 %v1655, %v1719
  %v2040 = vmin.f32 %v1656, %v1720
  %v2041 = vmin.f32 %v1657, %v1721
  %v2042 = vmin.f32 %v1658, %v1722
  %v2043 = vmin.f32 %v1659, %v1723
  %v2044 = vmin.f32 %v1660, %v1724
  %v2045 = vmin.f32 %v1661, %v1725
  %v2046 = vmin.f32 %v1662, %v1726
  %v2047 = vmin.f32 %v1663, %v1727
  %v2048 = vmin.f32 %v1664, %v1728
  %v2049 = vmin.f32 %v1665, %v1729
  %v2050 = vmin.f32 %v1666, %v1730
  %v2051 = vmin.f32 %v1667, %v1731
  %v2052 = vmin.f32 %v1668, %v1732
  %v2053 = vmin.f32 %v1669, %v1733
  %v2054 = vmin.f32 %v1670, %v1734
  %v2055 = vmin.f32 %v1671, %v1735
  %v2056 = vmin.f32 %v1672, %v1736
  %v2057 = vmin.f32 %v1673, %v1737
  %v2058 = vmin.f32 %v1674, %v1738
  %v2059 = vmin.f32 %v1675, %v1739
  %v2060 = vmin.f32 %v1676, %v1740
  %v2061 = vmin.f32 %v1677, %v1741
  %v2062 = vmin.f32 %v1678, %v1742
  %v2063 = vmin.f32 %v1679, %v1743
  %v2064 = vmin.f32 %v1680, %v1744
  %v2065 = vmax.f32 %v1649, %v1713
  %v2066 = vmax.f32 %v1650, %v1714
  %v2067 = vmax.f32 %v1651, %v1715
  %v2068 = vmax.f32 %v1652, %v1716
  %v2069 = vmax.f32 %v1653, %v1717
  %v2070 = vmax.f32 %v1654, %v1718
  %v2071 = vmax.f32 %v1655, %v1719
  %v2072 = vmax.f32 %v1656, %v1720
  %v2073 = vmax.f32 %v1657, %v1721
  %v2074 = vmax.f32 %v1658, %v1722
  %v2075 = vmax.f32 %v1659, %v1723
  %v2076 = vmax.f32 %v1660, %v1724
  %v2077 = vmax.f32 %v1661, %v1725
  %v2078 = vmax.f32 %v1662, %v1726
  %v2079 = vmax.f32 %v1663, %v1727
  %v2080 = vmax.f32 %v1664, %v1728
  %v2081 = vmax.f32 %v1665, %v1729
  %v2082 = vmax.f32 %v1666, %v1730
  %v2083 = vmax.f32 %v1667, %v1731
  %v2084 = vmax.f32 %v1668, %v1732
  %v2085 = vmax.f32 %v1669, %v1733
  %v2086 = vmax.f32 %v1670, %v1734
  %v2087 = vmax.f32 %v1671, %v1735
  %v2088 = vmax.f32 %v1672, %v1736
  %v2089 = vmax.f32 %v1673, %v1737
  %v2090 = vmax.f32 %v1674, %v1738
  %v2091 = vmax.f32 %v1675, %v1739
  %v2092 = vmax.f32 %v1676, %v1740
  %v2093 = vmax.f32 %v1677, %v1741
  %v2094 = vmax.f32 %v1678, %v1742
  %v2095 = vmax.f32 %v1679, %v1743
  %v2096 = vmax.f32 %v1680, %v1744
  %v2097 = vmin.f32 %v2033, %v1777
  %v2098 = vmin.f32 %v2034, %v1778
  %v2099 = vmin.f32 %v2035, %v1779
  %v2100 = vmin.f32 %v2036, %v1780
  %v2101 = vmin.f32 %v2037, %v1781
  %v2102 = vmin.f32 %v2038, %v1782
  %v2103 = vmin.f32 %v2039, %v1783
  %v2104 = vmin.f32 %v2040, %v1784
  %v2105 = vmin.f32 %v2041, %v1785
  %v2106 = vmin.f32 %v2042, %v1786
  %v2107 = vmin.f32 %v2043, %v1787
  %v2108 = vmin.f32 %v2044, %v1788
  %v2109 = vmin.f32 %v2045, %v1789
  %v2110 = vmin.f32 %v2046, %v1790
  %v2111 = vmin.f32 %v2047, %v1791
  %v2112 = vmin.f32 %v2048, %v1792
  %v2113 = vmin.f32 %v2049, %v1793
  %v2114 = vmin.f32 %v2050, %v1794
  %v2115 = vmin.f32 %v2051, %v1795
  %v2116 = vmin.f32 %v2052, %v1796
  %v2117 = vmin.f32 %v2053, %v1797
  %v2118 = vmin.f32 %v2054, %v1798
  %v2119 = vmin.f32 %v2055, %v1799
  %v2120 = vmin.f32 %v2056, %v1800
  %v2121 = vmin.f32 %v2057, %v1801
  %v2122 = vmin.f32 %v2058, %v1802
  %v2123 = vmin.f32 %v2059, %v1803
  %v2124 = vmin.f32 %v2060, %v1804
  %v2125 = vmin.f32 %v2061, %v1805
  %v2126 = vmin.f32 %v2062, %v1806
  %v2127 = vmin.f32 %v2063, %v1807
  %v2128 = vmin.f32 %v2064, %v1808
  %v2129 = vmax.f32 %v2033, %v1777
  %v2130 = vmax.f32 %v2034, %v1778
  %v2131 = vmax.f32 %v2035, %v1779
  %v2132 = vmax.f32 %v2036, %v1780
  %v2133 = vmax.f32 %v2037, %v1781
  %v2134 = vmax.f32 %v2038, %v1782
  %v2135 = vmax.f32 %v2039, %v1783
  %v2136 = vmax.f32 %v2040, %v1784
  %v2137 = vmax.f32 %v2041, %v1785
  %v2138 = vmax.f32 %v2042, %v1786
  %v2139 = vmax.f32 %v2043, %v1787
  %v2140 = vmax.f32 %v2044, %v1788
  %v2141 = vmax.f32 %v2045, %v1789
  %v2142 = vmax.f32 %v2046, %v1790
  %v2143 = vmax.f32 %v2047, %v1791
  %v2144 = vmax.f32 %v2048, %v1792
  %v2145 = vmax.f32 %v2049, %v1793
  %v2146 = vmax.f32 %v2050, %v1794
  %v2147 = vmax.f32 %v2051, %v1795
  %v2148 = vmax.f32 %v2052, %v1796
  %v2149 = vmax.f32 %v2053, %v1797
  %v2150 = vmax.f32 %v2054, %v1798
  %v2151 = vmax.f32 %v2055, %v1799
  %v2152 = vmax.f32 %v2056, %v1800
  %v2153 = vmax.f32 %v2057, %v1801
  %v2154 = vmax.f32 %v2058, %v1802
  %v2155 = vmax.f32 %v2059, %v1803
  %v2156 = vmax.f32 %v2060, %v1804
  %v2157 = vmax.f32 %v2061, %v1805
  %v2158 = vmax.f32 %v2062, %v1806
  %v2159 = vmax.f32 %v2063, %v1807
  %v2160 = vmax.f32 %v2064, %v1808
  %v2161 = vmin.f32 %v2097, %v1841
  %v2162 = vmin.f32 %v2098, %v1842
  %v2163 = vmin.f32 %v2099, %v1843
  %v2164 = vmin.f32 %v2100, %v1844
  %v2165 = vmin.f32 %v2101, %v1845
  %v2166 = vmin.f32 %v2102, %v1846
  %v2167 = vmin.f32 %v2103, %v1847
  %v2168 = vmin.f32 %v2104, %v1848
  %v2169 = vmin.f32 %v2105, %v1849
  %v2170 = vmin.f32 %v2106, %v1850
  %v2171 = vmin.f32 %v2107, %v1851
  %v2172 = vmin.f32 %v2108, %v1852
  %v2173 = vmin.f32 %v2109, %v1853
  %v2174 = vmin.f32 %v2110, %v1854
  %v2175 = vmin.f32 %v2111, %v1855
  %v2176 = vmin.f32 %v2112, %v1856
  %v2177 = vmin.f32 %v2113, %v1857
  %v2178 = vmin.f32 %v2114, %v1858
  %v2179 = vmin.f32 %v2115, %v1859
  %v2180 = vmin.f32 %v2116, %v1860
  %v2181 = vmin.f32 %v2117, %v1861
  %v2182 = vmin.f32 %v2118, %v1862
  %v2183 = vmin.f32 %v2119, %v1863
  %v2184 = vmin.f32 %v2120, %v1864
  %v2185 = vmin.f32 %v2121, %v1865
  %v2186 = vmin.f32 %v2122, %v1866
  %v2187 = vmin.f32 %v2123, %v1867
  %v2188 = vmin.f32 %v2124, %v1868
  %v2189 = vmin.f32 %v2125, %v1869
  %v2190 = vmin.f32 %v2126, %v1870
  %v2191 = vmin.f32 %v2127, %v1871
  %v2192 = vmin.f32 %v2128, %v1872
  %v2193 = vmax.f32 %v2097, %v1841
  %v2194 = vmax.f32 %v2098, %v1842
  %v2195 = vmax.f32 %v2099, %v1843
  %v2196 = vmax.f32 %v2100, %v1844
  %v2197 = vmax.f32 %v2101, %v1845
  %v2198 = vmax.f32 %v2102, %v1846
  %v2199 = vmax.f32 %v2103, %v1847
  %v2200 = vmax.f32 %v2104, %v1848
  %v2201 = vmax.f32 %v2105, %v1849
  %v2202 = vmax.f32 %v2106, %v1850
  %v2203 = vmax.f32 %v2107, %v1851
  %v2204 = vmax.f32 %v2108, %v1852
  %v2205 = vmax.f32 %v2109, %v1853
  %v2206 = vmax.f32 %v2110, %v1854
  %v2207 = vmax.f32 %v2111, %v1855
  %v2208 = vmax.f32 %v2112, %v1856
  %v2209 = vmax.f32 %v2113, %v1857
  %v2210 = vmax.f32 %v2114, %v1858
  %v2211 = vmax.f32 %v2115, %v1859
  %v2212 = vmax.f32 %v2116, %v1860
  %v2213 = vmax.f32 %v2117, %v1861
  %v2214 = vmax.f32 %v2118, %v1862
  %v2215 = vmax.f32 %v2119, %v1863
  %v2216 = vmax.f32 %v2120, %v1864
  %v2217 = vmax.f32 %v2121, %v1865
  %v2218 = vmax.f32 %v2122, %v1866
  %v2219 = vmax.f32 %v2123, %v1867
  %v2220 = vmax.f32 %v2124, %v1868
  %v2221 = vmax.f32 %v2125, %v1869
  %v2222 = vmax.f32 %v2126, %v1870
  %v2223 = vmax.f32 %v2127, %v1871
  %v2224 = vmax.f32 %v2128, %v1872
  %v2225 = vmin.f32 %v2161, %v1905
  %v2226 = vmin.f32 %v2162, %v1906
  %v2227 = vmin.f32 %v2163, %v1907
  %v2228 = vmin.f32 %v2164, %v1908
  %v2229 = vmin.f32 %v2165, %v1909
  %v2230 = vmin.f32 %v2166, %v1910
  %v2231 = vmin.f32 %v2167, %v1911
  %v2232 = vmin.f32 %v2168, %v1912
  %v2233 = vmin.f32 %v2169, %v1913
  %v2234 = vmin.f32 %v2170, %v1914
  %v2235 = vmin.f32 %v2171, %v1915
  %v2236 = vmin.f32 %v2172, %v1916
  %v2237 = vmin.f32 %v2173, %v1917
  %v2238 = vmin.f32 %v2174, %v1918
  %v2239 = vmin.f32 %v2175, %v1919
  %v2240 = vmin.f32 %v2176, %v1920
  %v2241 = vmin.f32 %v2177, %v1921
  %v2242 = vmin.f32 %v2178, %v1922
  %v2243 = vmin.f32 %v2179, %v1923
  %v2244 = vmin.f32 %v2180, %v1924
  %v2245 = vmin.f32 %v2181, %v1925
  %v2246 = vmin.f32 %v2182, %v1926
  %v2247 = vmin.f32 %v2183, %v1927
  %v2248 = vmin.f32 %v2184, %v1928
  %v2249 = vmin.f32 %v2185, %v1929
  %v2250 = vmin.f32 %v2186, %v1930
  %v2251 = vmin.f32 %v2187, %v1931
  %v2252 = vmin.f32 %v2188, %v1932
  %v2253 = vmin.f32 %v2189, %v1933
  %v2254 = vmin.f32 %v2190, %v1934
  %v2255 = vmin.f32 %v2191, %v1935
  %v2256 = vmin.f32 %v2192, %v1936
  %v2257 = vmax.f32 %v2161, %v1905
  %v2258 = vmax.f32 %v2162, %v1906
  %v2259 = vmax.f32 %v2163, %v1907
  %v2260 = vmax.f32 %v2164, %v1908
  %v2261 = vmax.f32 %v2165, %v1909
  %v2262 = vmax.f32 %v2166, %v1910
  %v2263 = vmax.f32 %v2167, %v1911
  %v2264 = vmax.f32 %v2168, %v1912
  %v2265 = vmax.f32 %v2169, %v1913
  %v2266 = vmax.f32 %v2170, %v1914
  %v2267 = vmax.f32 %v2171, %v1915
  %v2268 = vmax.f32 %v2172, %v1916
  %v2269 = vmax.f32 %v2173, %v1917
  %v2270 = vmax.f32 %v2174, %v1918
  %v2271 = vmax.f32 %v2175, %v1919
  %v2272 = vmax.f32 %v2176, %v1920
  %v2273 = vmax.f32 %v2177, %v1921
  %v2274 = vmax.f32 %v2178, %v1922
  %v2275 = vmax.f32 %v2179, %v1923
  %v2276 = vmax.f32 %v2180, %v1924
  %v2277 = vmax.f32 %v2181, %v1925
  %v2278 = vmax.f32 %v2182, %v1926
  %v2279 = vmax.f32 %v2183, %v1927
  %v2280 = vmax.f32 %v2184, %v1928
  %v2281 = vmax.f32 %v2185, %v1929
  %v2282 = vmax.f32 %v2186, %v1930
  %v2283 = vmax.f32 %v2187, %v1931
  %v2284 = vmax.f32 %v2188, %v1932
  %v2285 = vmax.f32 %v2189, %v1933
  %v2286 = vmax.f32 %v2190, %v1934
  %v2287 = vmax.f32 %v2191, %v1935
  %v2288 = vmax.f32 %v2192, %v1936
  %v2289 = vmin.f32 %v2225, %v1969
  %v2290 = vmin.f32 %v2226, %v1970
  %v2291 = vmin.f32 %v2227, %v1971
  %v2292 = vmin.f32 %v2228, %v1972
  %v2293 = vmin.f32 %v2229, %v1973
  %v2294 = vmin.f32 %v2230, %v1974
  %v2295 = vmin.f32 %v2231, %v1975
  %v2296 = vmin.f32 %v2232, %v1976
  %v2297 = vmin.f32 %v2233, %v1977
  %v2298 = vmin.f32 %v2234, %v1978
  %v2299 = vmin.f32 %v2235, %v1979
  %v2300 = vmin.f32 %v2236, %v1980
  %v2301 = vmin.f32 %v2237, %v1981
  %v2302 = vmin.f32 %v2238, %v1982
  %v2303 = vmin.f32 %v2239, %v1983
  %v2304 = vmin.f32 %v2240, %v1984
  %v2305 = vmin.f32 %v2241, %v1985
  %v2306 = vmin.f32 %v2242, %v1986
  %v2307 = vmin.f32 %v2243, %v1987
  %v2308 = vmin.f32 %v2244, %v1988
  %v2309 = vmin.f32 %v2245, %v1989
  %v2310 = vmin.f32 %v2246, %v1990
  %v2311 = vmin.f32 %v2247, %v1991
  %v2312 = vmin.f32 %v2248, %v1992
  %v2313 = vmin.f32 %v2249, %v1993
  %v2314 = vmin.f32 %v2250, %v1994
  %v2315 = vmin.f32 %v2251, %v1995
  %v2316 = vmin.f32 %v2252, %v1996
  %v2317 = vmin.f32 %v2253, %v1997
  %v2318 = vmin.f32 %v2254, %v1998
  %v2319 = vmin.f32 %v2255, %v1999
  %v2320 = vmin.f32 %v2256, %v2000
  %v2321 = vmax.f32 %v2225, %v1969
  %v2322 = vmax.f32 %v2226, %v1970
  %v2323 = vmax.f32 %v2227, %v1971
  %v2324 = vmax.f32 %v2228, %v1972
  %v2325 = vmax.f32 %v2229, %v1973
  %v2326 = vmax.f32 %v2230, %v1974
  %v2327 = vmax.f32 %v2231, %v1975
  %v2328 = vmax.f32 %v2232, %v1976
  %v2329 = vmax.f32 %v2233, %v1977
  %v2330 = vmax.f32 %v2234, %v1978
  %v2331 = vmax.f32 %v2235, %v1979
  %v2332 = vmax.f32 %v2236, %v1980
  %v2333 = vmax.f32 %v2237, %v1981
  %v2334 = vmax.f32 %v2238, %v1982
  %v2335 = vmax.f32 %v2239, %v1983
  %v2336 = vmax.f32 %v2240, %v1984
  %v2337 = vmax.f32 %v2241, %v1985
  %v2338 = vmax.f32 %v2242, %v1986
  %v2339 = vmax.f32 %v2243, %v1987
  %v2340 = vmax.f32 %v2244, %v1988
  %v2341 = vmax.f32 %v2245, %v1989
  %v2342 = vmax.f32 %v2246, %v1990
  %v2343 = vmax.f32 %v2247, %v1991
  %v2344 = vmax.f32 %v2248, %v1992
  %v2345 = vmax.f32 %v2249, %v1993
  %v2346 = vmax.f32 %v2250, %v1994
  %v2347 = vmax.f32 %v2251, %v1995
  %v2348 = vmax.f32 %v2252, %v1996
  %v2349 = vmax.f32 %v2253, %v1997
  %v2350 = vmax.f32 %v2254, %v1998
  %v2351 = vmax.f32 %v2255, %v1999
  %v2352 = vmax.f32 %v2256, %v2000
  %v2353 = vmax.f32 %v2289, %v1617
  %v2354 = vmax.f32 %v2290, %v1618
  %v2355 = vmax.f32 %v2291, %v1619
  %v2356 = vmax.f32 %v2292, %v1620
  %v2357 = vmax.f32 %v2293, %v1621
  %v2358 = vmax.f32 %v2294, %v1622
  %v2359 = vmax.f32 %v2295, %v1623
  %v2360 = vmax.f32 %v2296, %v1624
  %v2361 = vmax.f32 %v2297, %v1625
  %v2362 = vmax.f32 %v2298, %v1626
  %v2363 = vmax.f32 %v2299, %v1627
  %v2364 = vmax.f32 %v2300, %v1628
  %v2365 = vmax.f32 %v2301, %v1629
  %v2366 = vmax.f32 %v2302, %v1630
  %v2367 = vmax.f32 %v2303, %v1631
  %v2368 = vmax.f32 %v2304, %v1632
  %v2369 = vmax.f32 %v2305, %v1633
  %v2370 = vmax.f32 %v2306, %v1634
  %v2371 = vmax.f32 %v2307, %v1635
  %v2372 = vmax.f32 %v2308, %v1636
  %v2373 = vmax.f32 %v2309, %v1637
  %v2374 = vmax.f32 %v2310, %v1638
  %v2375 = vmax.f32 %v2311, %v1639
  %v2376 = vmax.f32 %v2312, %v1640
  %v2377 = vmax.f32 %v2313, %v1641
  %v2378 = vmax.f32 %v2314, %v1642
  %v2379 = vmax.f32 %v2315, %v1643
  %v2380 = vmax.f32 %v2316, %v1644
  %v2381 = vmax.f32 %v2317, %v1645
  %v2382 = vmax.f32 %v2318, %v1646
  %v2383 = vmax.f32 %v2319, %v1647
  %v2384 = vmax.f32 %v2320, %v1648
  %v2385 = vmin.f32 %v1681, %v1745
  %v2386 = vmin.f32 %v1682, %v1746
  %v2387 = vmin.f32 %v1683, %v1747
  %v2388 = vmin.f32 %v1684, %v1748
  %v2389 = vmin.f32 %v1685, %v1749
  %v2390 = vmin.f32 %v1686, %v1750
  %v2391 = vmin.f32 %v1687, %v1751
  %v2392 = vmin.f32 %v1688, %v1752
  %v2393 = vmin.f32 %v1689, %v1753
  %v2394 = vmin.f32 %v1690, %v1754
  %v2395 = vmin.f32 %v1691, %v1755
  %v2396 = vmin.f32 %v1692, %v1756
  %v2397 = vmin.f32 %v1693, %v1757
  %v2398 = vmin.f32 %v1694, %v1758
  %v2399 = vmin.f32 %v1695, %v1759
  %v2400 = vmin.f32 %v1696, %v1760
  %v2401 = vmin.f32 %v1697, %v1761
  %v2402 = vmin.f32 %v1698, %v1762
  %v2403 = vmin.f32 %v1699, %v1763
  %v2404 = vmin.f32 %v1700, %v1764
  %v2405 = vmin.f32 %v1701, %v1765
  %v2406 = vmin.f32 %v1702, %v1766
  %v2407 = vmin.f32 %v1703, %v1767
  %v2408 = vmin.f32 %v1704, %v1768
  %v2409 = vmin.f32 %v1705, %v1769
  %v2410 = vmin.f32 %v1706, %v1770
  %v2411 = vmin.f32 %v1707, %v1771
  %v2412 = vmin.f32 %v1708, %v1772
  %v2413 = vmin.f32 %v1709, %v1773
  %v2414 = vmin.f32 %v1710, %v1774
  %v2415 = vmin.f32 %v1711, %v1775
  %v2416 = vmin.f32 %v1712, %v1776
  %v2417 = vmax.f32 %v1681, %v1745
  %v2418 = vmax.f32 %v1682, %v1746
  %v2419 = vmax.f32 %v1683, %v1747
  %v2420 = vmax.f32 %v1684, %v1748
  %v2421 = vmax.f32 %v1685, %v1749
  %v2422 = vmax.f32 %v1686, %v1750
  %v2423 = vmax.f32 %v1687, %v1751
  %v2424 = vmax.f32 %v1688, %v1752
  %v2425 = vmax.f32 %v1689, %v1753
  %v2426 = vmax.f32 %v1690, %v1754
  %v2427 = vmax.f32 %v1691, %v1755
  %v2428 = vmax.f32 %v1692, %v1756
  %v2429 = vmax.f32 %v1693, %v1757
  %v2430 = vmax.f32 %v1694, %v1758
  %v2431 = vmax.f32 %v1695, %v1759
  %v2432 = vmax.f32 %v1696, %v1760
  %v2433 = vmax.f32 %v1697, %v1761
  %v2434 = vmax.f32 %v1698, %v1762
  %v2435 = vmax.f32 %v1699, %v1763
  %v2436 = vmax.f32 %v1700, %v1764
  %v2437 = vmax.f32 %v1701, %v1765
  %v2438 = vmax.f32 %v1702, %v1766
  %v2439 = vmax.f32 %v1703, %v1767
  %v2440 = vmax.f32 %v1704, %v1768
  %v2441 = vmax.f32 %v1705, %v1769
  %v2442 = vmax.f32 %v1706, %v1770
  %v2443 = vmax.f32 %v1707, %v1771
  %v2444 = vmax.f32 %v1708, %v1772
  %v2445 = vmax.f32 %v1709, %v1773
  %v2446 = vmax.f32 %v1710, %v1774
  %v2447 = vmax.f32 %v1711, %v1775
  %v2448 = vmax.f32 %v1712, %v1776
  %v2449 = vmin.f32 %v2417, %v1809
  %v2450 = vmin.f32 %v2418, %v1810
  %v2451 = vmin.f32 %v2419, %v1811
  %v2452 = vmin.f32 %v2420, %v1812
  %v2453 = vmin.f32 %v2421, %v1813
  %v2454 = vmin.f32 %v2422, %v1814
  %v2455 = vmin.f32 %v2423, %v1815
  %v2456 = vmin.f32 %v2424, %v1816
  %v2457 = vmin.f32 %v2425, %v1817
  %v2458 = vmin.f32 %v2426, %v1818
  %v2459 = vmin.f32 %v2427, %v1819
  %v2460 = vmin.f32 %v2428, %v1820
  %v2461 = vmin.f32 %v2429, %v1821
  %v2462 = vmin.f32 %v2430, %v1822
  %v2463 = vmin.f32 %v2431, %v1823
  %v2464 = vmin.f32 %v2432, %v1824
  %v2465 = vmin.f32 %v2433, %v1825
  %v2466 = vmin.f32 %v2434, %v1826
  %v2467 = vmin.f32 %v2435, %v1827
  %v2468 = vmin.f32 %v2436, %v1828
  %v2469 = vmin.f32 %v2437, %v1829
  %v2470 = vmin.f32 %v2438, %v1830
  %v2471 = vmin.f32 %v2439, %v1831
  %v2472 = vmin.f32 %v2440, %v1832
  %v2473 = vmin.f32 %v2441, %v1833
  %v2474 = vmin.f32 %v2442, %v1834
  %v2475 = vmin.f32 %v2443, %v1835
  %v2476 = vmin.f32 %v2444, %v1836
  %v2477 = vmin.f32 %v2445, %v1837
  %v2478 = vmin.f32 %v2446, %v1838
  %v2479 = vmin.f32 %v2447, %v1839
  %v2480 = vmin.f32 %v2448, %v1840
  %v2481 = vmax.f32 %v2417, %v1809
  %v2482 = vmax.f32 %v2418, %v1810
  %v2483 = vmax.f32 %v2419, %v1811
  %v2484 = vmax.f32 %v2420, %v1812
  %v2485 = vmax.f32 %v2421, %v1813
  %v2486 = vmax.f32 %v2422, %v1814
  %v2487 = vmax.f32 %v2423, %v1815
  %v2488 = vmax.f32 %v2424, %v1816
  %v2489 = vmax.f32 %v2425, %v1817
  %v2490 = vmax.f32 %v2426, %v1818
  %v2491 = vmax.f32 %v2427, %v1819
  %v2492 = vmax.f32 %v2428, %v1820
  %v2493 = vmax.f32 %v2429, %v1821
  %v2494 = vmax.f32 %v2430, %v1822
  %v2495 = vmax.f32 %v2431, %v1823
  %v2496 = vmax.f32 %v2432, %v1824
  %v2497 = vmax.f32 %v2433, %v1825
  %v2498 = vmax.f32 %v2434, %v1826
  %v2499 = vmax.f32 %v2435, %v1827
  %v2500 = vmax.f32 %v2436, %v1828
  %v2501 = vmax.f32 %v2437, %v1829
  %v2502 = vmax.f32 %v2438, %v1830
  %v2503 = vmax.f32 %v2439, %v1831
  %v2504 = vmax.f32 %v2440, %v1832
  %v2505 = vmax.f32 %v2441, %v1833
  %v2506 = vmax.f32 %v2442, %v1834
  %v2507 = vmax.f32 %v2443, %v1835
  %v2508 = vmax.f32 %v2444, %v1836
  %v2509 = vmax.f32 %v2445, %v1837
  %v2510 = vmax.f32 %v2446, %v1838
  %v2511 = vmax.f32 %v2447, %v1839
  %v2512 = vmax.f32 %v2448, %v1840
  %v2513 = vmin.f32 %v2481, %v1873
  %v2514 = vmin.f32 %v2482, %v1874
  %v2515 = vmin.f32 %v2483, %v1875
  %v2516 = vmin.f32 %v2484, %v1876
  %v2517 = vmin.f32 %v2485, %v1877
  %v2518 = vmin.f32 %v2486, %v1878
  %v2519 = vmin.f32 %v2487, %v1879
  %v2520 = vmin.f32 %v2488, %v1880
  %v2521 = vmin.f32 %v2489, %v1881
  %v2522 = vmin.f32 %v2490, %v1882
  %v2523 = vmin.f32 %v2491, %v1883
  %v2524 = vmin.f32 %v2492, %v1884
  %v2525 = vmin.f32 %v2493, %v1885
  %v2526 = vmin.f32 %v2494, %v1886
  %v2527 = vmin.f32 %v2495, %v1887
  %v2528 = vmin.f32 %v2496, %v1888
  %v2529 = vmin.f32 %v2497, %v1889
  %v2530 = vmin.f32 %v2498, %v1890
  %v2531 = vmin.f32 %v2499, %v1891
  %v2532 = vmin.f32 %v2500, %v1892
  %v2533 = vmin.f32 %v2501, %v1893
  %v2534 = vmin.f32 %v2502, %v1894
  %v2535 = vmin.f32 %v2503, %v1895
  %v2536 = vmin.f32 %v2504, %v1896
  %v2537 = vmin.f32 %v2505, %v1897
  %v2538 = vmin.f32 %v2506, %v1898
  %v2539 = vmin.f32 %v2507, %v1899
  %v2540 = vmin.f32 %v2508, %v1900
  %v2541 = vmin.f32 %v2509, %v1901
  %v2542 = vmin.f32 %v2510, %v1902
  %v2543 = vmin.f32 %v2511, %v1903
  %v2544 = vmin.f32 %v2512, %v1904
  %v2545 = vmax.f32 %v2481, %v1873
  %v2546 = vmax.f32 %v2482, %v1874
  %v2547 = vmax.f32 %v2483, %v1875
  %v2548 = vmax.f32 %v2484, %v1876
  %v2549 = vmax.f32 %v2485, %v1877
  %v2550 = vmax.f32 %v2486, %v1878
  %v2551 = vmax.f32 %v2487, %v1879
  %v2552 = vmax.f32 %v2488, %v1880
  %v2553 = vmax.f32 %v2489, %v1881
  %v2554 = vmax.f32 %v2490, %v1882
  %v2555 = vmax.f32 %v2491, %v1883
  %v2556 = vmax.f32 %v2492, %v1884
  %v2557 = vmax.f32 %v2493, %v1885
  %v2558 = vmax.f32 %v2494, %v1886
  %v2559 = vmax.f32 %v2495, %v1887
  %v2560 = vmax.f32 %v2496, %v1888
  %v2561 = vmax.f32 %v2497, %v1889
  %v2562 = vmax.f32 %v2498, %v1890
  %v2563 = vmax.f32 %v2499, %v1891
  %v2564 = vmax.f32 %v2500, %v1892
  %v2565 = vmax.f32 %v2501, %v1893
  %v2566 = vmax.f32 %v2502, %v1894
  %v2567 = vmax.f32 %v2503, %v1895
  %v2568 = vmax.f32 %v2504, %v1896
  %v2569 = vmax.f32 %v2505, %v1897
  %v2570 = vmax.f32 %v2506, %v1898
  %v2571 = vmax.f32 %v2507, %v1899
  %v2572 = vmax.f32 %v2508, %v1900
  %v2573 = vmax.f32 %v2509, %v1901
  %v2574 = vmax.f32 %v2510, %v1902
  %v2575 = vmax.f32 %v2511, %v1903
  %v2576 = vmax.f32 %v2512, %v1904
  %v2577 = vmin.f32 %v2545, %v1937
  %v2578 = vmin.f32 %v2546, %v1938
  %v2579 = vmin.f32 %v2547, %v1939
  %v2580 = vmin.f32 %v2548, %v1940
  %v2581 = vmin.f32 %v2549, %v1941
  %v2582 = vmin.f32 %v2550, %v1942
  %v2583 = vmin.f32 %v2551, %v1943
  %v2584 = vmin.f32 %v2552, %v1944
  %v2585 = vmin.f32 %v2553, %v1945
  %v2586 = vmin.f32 %v2554, %v1946
  %v2587 = vmin.f32 %v2555, %v1947
  %v2588 = vmin.f32 %v2556, %v1948
  %v2589 = vmin.f32 %v2557, %v1949
  %v2590 = vmin.f32 %v2558, %v1950
  %v2591 = vmin.f32 %v2559, %v1951
  %v2592 = vmin.f32 %v2560, %v1952
  %v2593 = vmin.f32 %v2561, %v1953
  %v2594 = vmin.f32 %v2562, %v1954
  %v2595 = vmin.f32 %v2563, %v1955
  %v2596 = vmin.f32 %v2564, %v1956
  %v2597 = vmin.f32 %v2565, %v1957
  %v2598 = vmin.f32 %v2566, %v1958
  %v2599 = vmin.f32 %v2567, %v1959
  %v2600 = vmin.f32 %v2568, %v1960
  %v2601 = vmin.f32 %v2569, %v1961
  %v2602 = vmin.f32 %v2570, %v1962
  %v2603 = vmin.f32 %v2571, %v1963
  %v2604 = vmin.f32 %v2572, %v1964
  %v2605 = vmin.f32 %v2573, %v1965
  %v2606 = vmin.f32 %v2574, %v1966
  %v2607 = vmin.f32 %v2575, %v1967
  %v2608 = vmin.f32 %v2576, %v1968
  %v2609 = vmax.f32 %v2545, %v1937
  %v2610 = vmax.f32 %v2546, %v1938
  %v2611 = vmax.f32 %v2547, %v1939
  %v2612 = vmax.f32 %v2548, %v1940
  %v2613 = vmax.f32 %v2549, %v1941
  %v2614 = vmax.f32 %v2550, %v1942
  %v2615 = vmax.f32 %v2551, %v1943
  %v2616 = vmax.f32 %v2552, %v1944
  %v2617 = vmax.f32 %v2553, %v1945
  %v2618 = vmax.f32 %v2554, %v1946
  %v2619 = vmax.f32 %v2555, %v1947
  %v2620 = vmax.f32 %v2556, %v1948
  %v2621 = vmax.f32 %v2557, %v1949
  %v2622 = vmax.f32 %v2558, %v1950
  %v2623 = vmax.f32 %v2559, %v1951
  %v2624 = vmax.f32 %v2560, %v1952
  %v2625 = vmax.f32 %v2561, %v1953
  %v2626 = vmax.f32 %v2562, %v1954
  %v2627 = vmax.f32 %v2563, %v1955
  %v2628 = vmax.f32 %v2564, %v1956
  %v2629 = vmax.f32 %v2565, %v1957
  %v2630 = vmax.f32 %v2566, %v1958
  %v2631 = vmax.f32 %v2567, %v1959
  %v2632 = vmax.f32 %v2568, %v1960
  %v2633 = vmax.f32 %v2569, %v1961
  %v2634 = vmax.f32 %v2570, %v1962
  %v2635 = vmax.f32 %v2571, %v1963
  %v2636 = vmax.f32 %v2572, %v1964
  %v2637 = vmax.f32 %v2573, %v1965
  %v2638 = vmax.f32 %v2574, %v1966
  %v2639 = vmax.f32 %v2575, %v1967
  %v2640 = vmax.f32 %v2576, %v1968
  %v2641 = vmin.f32 %v2609, %v2001
  %v2642 = vmin.f32 %v2610, %v2002
  %v2643 = vmin.f32 %v2611, %v2003
  %v2644 = vmin.f32 %v2612, %v2004
  %v2645 = vmin.f32 %v2613, %v2005
  %v2646 = vmin.f32 %v2614, %v2006
  %v2647 = vmin.f32 %v2615, %v2007
  %v2648 = vmin.f32 %v2616, %v2008
  %v2649 = vmin.f32 %v2617, %v2009
  %v2650 = vmin.f32 %v2618, %v2010
  %v2651 = vmin.f32 %v2619, %v2011
  %v2652 = vmin.f32 %v2620, %v2012
  %v2653 = vmin.f32 %v2621, %v2013
  %v2654 = vmin.f32 %v2622, %v2014
  %v2655 = vmin.f32 %v2623, %v2015
  %v2656 = vmin.f32 %v2624, %v2016
  %v2657 = vmin.f32 %v2625, %v2017
  %v2658 = vmin.f32 %v2626, %v2018
  %v2659 = vmin.f32 %v2627, %v2019
  %v2660 = vmin.f32 %v2628, %v2020
  %v2661 = vmin.f32 %v2629, %v2021
  %v2662 = vmin.f32 %v2630, %v2022
  %v2663 = vmin.f32 %v2631, %v2023
  %v2664 = vmin.f32 %v2632, %v2024
  %v2665 = vmin.f32 %v2633, %v2025
  %v2666 = vmin.f32 %v2634, %v2026
  %v2667 = vmin.f32 %v2635, %v2027
  %v2668 = vmin.f32 %v2636, %v2028
  %v2669 = vmin.f32 %v2637, %v2029
  %v2670 = vmin.f32 %v2638, %v2030
  %v2671 = vmin.f32 %v2639, %v2031
  %v2672 = vmin.f32 %v2640, %v2032
  %v2673 = vmax.f32 %v2609, %v2001
  %v2674 = vmax.f32 %v2610, %v2002
  %v2675 = vmax.f32 %v2611, %v2003
  %v2676 = vmax.f32 %v2612, %v2004
  %v2677 = vmax.f32 %v2613, %v2005
  %v2678 = vmax.f32 %v2614, %v2006
  %v2679 = vmax.f32 %v2615, %v2007
  %v2680 = vmax.f32 %v2616, %v2008
  %v2681 = vmax.f32 %v2617, %v2009
  %v2682 = vmax.f32 %v2618, %v2010
  %v2683 = vmax.f32 %v2619, %v2011
  %v2684 = vmax.f32 %v2620, %v2012
  %v2685 = vmax.f32 %v2621, %v2013
  %v2686 = vmax.f32 %v2622, %v2014
  %v2687 = vmax.f32 %v2623, %v2015
  %v2688 = vmax.f32 %v2624, %v2016
  %v2689 = vmax.f32 %v2625, %v2017
  %v2690 = vmax.f32 %v2626, %v2018
  %v2691 = vmax.f32 %v2627, %v2019
  %v2692 = vmax.f32 %v2628, %v2020
  %v2693 = vmax.f32 %v2629, %v2021
  %v2694 = vmax.f32 %v2630, %v2022
  %v2695 = vmax.f32 %v2631, %v2023
  %v2696 = vmax.f32 %v2632, %v2024
  %v2697 = vmax.f32 %v2633, %v2025
  %v2698 = vmax.f32 %v2634, %v2026
  %v2699 = vmax.f32 %v2635, %v2027
  %v2700 = vmax.f32 %v2636, %v2028
  %v2701 = vmax.f32 %v2637, %v2029
  %v2702 = vmax.f32 %v2638, %v2030
  %v2703 = vmax.f32 %v2639, %v2031
  %v2704 = vmax.f32 %v2640, %v2032
  %v2705 = vmin.f32 %v2673, %v2353
  %v2706 = vmin.f32 %v2674, %v2354
  %v2707 = vmin.f32 %v2675, %v2355
  %v2708 = vmin.f32 %v2676, %v2356
  %v2709 = vmin.f32 %v2677, %v2357
  %v2710 = vmin.f32 %v2678, %v2358
  %v2711 = vmin.f32 %v2679, %v2359
  %v2712 = vmin.f32 %v2680, %v2360
  %v2713 = vmin.f32 %v2681, %v2361
  %v2714 = vmin.f32 %v2682, %v2362
  %v2715 = vmin.f32 %v2683, %v2363
  %v2716 = vmin.f32 %v2684, %v2364
  %v2717 = vmin.f32 %v2685, %v2365
  %v2718 = vmin.f32 %v2686, %v2366
  %v2719 = vmin.f32 %v2687, %v2367
  %v2720 = vmin.f32 %v2688, %v2368
  %v2721 = vmin.f32 %v2689, %v2369
  %v2722 = vmin.f32 %v2690, %v2370
  %v2723 = vmin.f32 %v2691, %v2371
  %v2724 = vmin.f32 %v2692, %v2372
  %v2725 = vmin.f32 %v2693, %v2373
  %v2726 = vmin.f32 %v2694, %v2374
  %v2727 = vmin.f32 %v2695, %v2375
  %v2728 = vmin.f32 %v2696, %v2376
  %v2729 = vmin.f32 %v2697, %v2377
  %v2730 = vmin.f32 %v2698, %v2378
  %v2731 = vmin.f32 %v2699, %v2379
  %v2732 = vmin.f32 %v2700, %v2380
  %v2733 = vmin.f32 %v2701, %v2381
  %v2734 = vmin.f32 %v2702, %v2382
  %v2735 = vmin.f32 %v2703, %v2383
  %v2736 = vmin.f32 %v2704, %v2384
  %s2737 = sadd.s32 %s8, 3
  %s2738 = smul.u32 %s2737, 24
  %s2739 = scalar_lea.vmem %s0, %s2738
  %v2740 = vld [vmem:[%s2739] sm:$0xff]
  %v2741 = vld [vmem:[%s2739 + $0x8] sm:$0xff]
  %v2742 = vld [vmem:[%s2739 + $0x18] sm:$0xff]
  %v2743 = vld [vmem:[%s2739 + $0x20] sm:$0xff]
  %v2744 = vld [vmem:[%s2739 + $0x30] sm:$0xff]
  %v2745 = vld [vmem:[%s2739 + $0x38] sm:$0xff]
  %v2746 = vld [vmem:[%s2739 + $0x48] sm:$0xff]
  %v2747 = vld [vmem:[%s2739 + $0x50] sm:$0xff]
  %v2748 = vld [vmem:[%s2739 + $0x60] sm:$0xff]
  %v2749 = vld [vmem:[%s2739 + $0x68] sm:$0xff]
  %v2750 = vld [vmem:[%s2739 + $0x78] sm:$0xff]
  %v2751 = vld [vmem:[%s2739 + $0x80] sm:$0xff]
  %v2752 = vld [vmem:[%s2739 + $0x90] sm:$0xff]
  %v2753 = vld [vmem:[%s2739 + $0x98] sm:$0xff]
  %v2754 = vld [vmem:[%s2739 + $0xa8] sm:$0xff]
  %v2755 = vld [vmem:[%s2739 + $0xb0] sm:$0xff]
  %v2756 = vld [vmem:[%s2739 + $0xc0] sm:$0xff]
  %v2757 = vld [vmem:[%s2739 + $0xc8] sm:$0xff]
  %v2758 = vld [vmem:[%s2739 + $0xd8] sm:$0xff]
  %v2759 = vld [vmem:[%s2739 + $0xe0] sm:$0xff]
  %v2760 = vld [vmem:[%s2739 + $0xf0] sm:$0xff]
  %v2761 = vld [vmem:[%s2739 + $0xf8] sm:$0xff]
  %v2762 = vld [vmem:[%s2739 + $0x108] sm:$0xff]
  %v2763 = vld [vmem:[%s2739 + $0x110] sm:$0xff]
  %v2764 = vld [vmem:[%s2739 + $0x120] sm:$0xff]
  %v2765 = vld [vmem:[%s2739 + $0x128] sm:$0xff]
  %v2766 = vld [vmem:[%s2739 + $0x138] sm:$0xff]
  %v2767 = vld [vmem:[%s2739 + $0x140] sm:$0xff]
  %v2768 = vld [vmem:[%s2739 + $0x150] sm:$0xff]
  %v2769 = vld [vmem:[%s2739 + $0x158] sm:$0xff]
  %v2770 = vld [vmem:[%s2739 + $0x168] sm:$0xff]
  %v2771 = vld [vmem:[%s2739 + $0x170] sm:$0xff]
  %v2772 = vmin.f32 %v2065, %v2129
  %v2773 = vmin.f32 %v2066, %v2130
  %v2774 = vmin.f32 %v2067, %v2131
  %v2775 = vmin.f32 %v2068, %v2132
  %v2776 = vmin.f32 %v2069, %v2133
  %v2777 = vmin.f32 %v2070, %v2134
  %v2778 = vmin.f32 %v2071, %v2135
  %v2779 = vmin.f32 %v2072, %v2136
  %v2780 = vmin.f32 %v2073, %v2137
  %v2781 = vmin.f32 %v2074, %v2138
  %v2782 = vmin.f32 %v2075, %v2139
  %v2783 = vmin.f32 %v2076, %v2140
  %v2784 = vmin.f32 %v2077, %v2141
  %v2785 = vmin.f32 %v2078, %v2142
  %v2786 = vmin.f32 %v2079, %v2143
  %v2787 = vmin.f32 %v2080, %v2144
  %v2788 = vmin.f32 %v2081, %v2145
  %v2789 = vmin.f32 %v2082, %v2146
  %v2790 = vmin.f32 %v2083, %v2147
  %v2791 = vmin.f32 %v2084, %v2148
  %v2792 = vmin.f32 %v2085, %v2149
  %v2793 = vmin.f32 %v2086, %v2150
  %v2794 = vmin.f32 %v2087, %v2151
  %v2795 = vmin.f32 %v2088, %v2152
  %v2796 = vmin.f32 %v2089, %v2153
  %v2797 = vmin.f32 %v2090, %v2154
  %v2798 = vmin.f32 %v2091, %v2155
  %v2799 = vmin.f32 %v2092, %v2156
  %v2800 = vmin.f32 %v2093, %v2157
  %v2801 = vmin.f32 %v2094, %v2158
  %v2802 = vmin.f32 %v2095, %v2159
  %v2803 = vmin.f32 %v2096, %v2160
  %v2804 = vmax.f32 %v2065, %v2129
  %v2805 = vmax.f32 %v2066, %v2130
  %v2806 = vmax.f32 %v2067, %v2131
  %v2807 = vmax.f32 %v2068, %v2132
  %v2808 = vmax.f32 %v2069, %v2133
  %v2809 = vmax.f32 %v2070, %v2134
  %v2810 = vmax.f32 %v2071, %v2135
  %v2811 = vmax.f32 %v2072, %v2136
  %v2812 = vmax.f32 %v2073, %v2137
  %v2813 = vmax.f32 %v2074, %v2138
  %v2814 = vmax.f32 %v2075, %v2139
  %v2815 = vmax.f32 %v2076, %v2140
  %v2816 = vmax.f32 %v2077, %v2141
  %v2817 = vmax.f32 %v2078, %v2142
  %v2818 = vmax.f32 %v2079, %v2143
  %v2819 = vmax.f32 %v2080, %v2144
  %v2820 = vmax.f32 %v2081, %v2145
  %v2821 = vmax.f32 %v2082, %v2146
  %v2822 = vmax.f32 %v2083, %v2147
  %v2823 = vmax.f32 %v2084, %v2148
  %v2824 = vmax.f32 %v2085, %v2149
  %v2825 = vmax.f32 %v2086, %v2150
  %v2826 = vmax.f32 %v2087, %v2151
  %v2827 = vmax.f32 %v2088, %v2152
  %v2828 = vmax.f32 %v2089, %v2153
  %v2829 = vmax.f32 %v2090, %v2154
  %v2830 = vmax.f32 %v2091, %v2155
  %v2831 = vmax.f32 %v2092, %v2156
  %v2832 = vmax.f32 %v2093, %v2157
  %v2833 = vmax.f32 %v2094, %v2158
  %v2834 = vmax.f32 %v2095, %v2159
  %v2835 = vmax.f32 %v2096, %v2160
  %v2836 = vmin.f32 %v2193, %v2257
  %v2837 = vmin.f32 %v2194, %v2258
  %v2838 = vmin.f32 %v2195, %v2259
  %v2839 = vmin.f32 %v2196, %v2260
  %v2840 = vmin.f32 %v2197, %v2261
  %v2841 = vmin.f32 %v2198, %v2262
  %v2842 = vmin.f32 %v2199, %v2263
  %v2843 = vmin.f32 %v2200, %v2264
  %v2844 = vmin.f32 %v2201, %v2265
  %v2845 = vmin.f32 %v2202, %v2266
  %v2846 = vmin.f32 %v2203, %v2267
  %v2847 = vmin.f32 %v2204, %v2268
  %v2848 = vmin.f32 %v2205, %v2269
  %v2849 = vmin.f32 %v2206, %v2270
  %v2850 = vmin.f32 %v2207, %v2271
  %v2851 = vmin.f32 %v2208, %v2272
  %v2852 = vmin.f32 %v2209, %v2273
  %v2853 = vmin.f32 %v2210, %v2274
  %v2854 = vmin.f32 %v2211, %v2275
  %v2855 = vmin.f32 %v2212, %v2276
  %v2856 = vmin.f32 %v2213, %v2277
  %v2857 = vmin.f32 %v2214, %v2278
  %v2858 = vmin.f32 %v2215, %v2279
  %v2859 = vmin.f32 %v2216, %v2280
  %v2860 = vmin.f32 %v2217, %v2281
  %v2861 = vmin.f32 %v2218, %v2282
  %v2862 = vmin.f32 %v2219, %v2283
  %v2863 = vmin.f32 %v2220, %v2284
  %v2864 = vmin.f32 %v2221, %v2285
  %v2865 = vmin.f32 %v2222, %v2286
  %v2866 = vmin.f32 %v2223, %v2287
  %v2867 = vmin.f32 %v2224, %v2288
  %v2868 = vmax.f32 %v2193, %v2257
  %v2869 = vmax.f32 %v2194, %v2258
  %v2870 = vmax.f32 %v2195, %v2259
  %v2871 = vmax.f32 %v2196, %v2260
  %v2872 = vmax.f32 %v2197, %v2261
  %v2873 = vmax.f32 %v2198, %v2262
  %v2874 = vmax.f32 %v2199, %v2263
  %v2875 = vmax.f32 %v2200, %v2264
  %v2876 = vmax.f32 %v2201, %v2265
  %v2877 = vmax.f32 %v2202, %v2266
  %v2878 = vmax.f32 %v2203, %v2267
  %v2879 = vmax.f32 %v2204, %v2268
  %v2880 = vmax.f32 %v2205, %v2269
  %v2881 = vmax.f32 %v2206, %v2270
  %v2882 = vmax.f32 %v2207, %v2271
  %v2883 = vmax.f32 %v2208, %v2272
  %v2884 = vmax.f32 %v2209, %v2273
  %v2885 = vmax.f32 %v2210, %v2274
  %v2886 = vmax.f32 %v2211, %v2275
  %v2887 = vmax.f32 %v2212, %v2276
  %v2888 = vmax.f32 %v2213, %v2277
  %v2889 = vmax.f32 %v2214, %v2278
  %v2890 = vmax.f32 %v2215, %v2279
  %v2891 = vmax.f32 %v2216, %v2280
  %v2892 = vmax.f32 %v2217, %v2281
  %v2893 = vmax.f32 %v2218, %v2282
  %v2894 = vmax.f32 %v2219, %v2283
  %v2895 = vmax.f32 %v2220, %v2284
  %v2896 = vmax.f32 %v2221, %v2285
  %v2897 = vmax.f32 %v2222, %v2286
  %v2898 = vmax.f32 %v2223, %v2287
  %v2899 = vmax.f32 %v2224, %v2288
  %v2900 = vmin.f32 %v2321, %v2385
  %v2901 = vmin.f32 %v2322, %v2386
  %v2902 = vmin.f32 %v2323, %v2387
  %v2903 = vmin.f32 %v2324, %v2388
  %v2904 = vmin.f32 %v2325, %v2389
  %v2905 = vmin.f32 %v2326, %v2390
  %v2906 = vmin.f32 %v2327, %v2391
  %v2907 = vmin.f32 %v2328, %v2392
  %v2908 = vmin.f32 %v2329, %v2393
  %v2909 = vmin.f32 %v2330, %v2394
  %v2910 = vmin.f32 %v2331, %v2395
  %v2911 = vmin.f32 %v2332, %v2396
  %v2912 = vmin.f32 %v2333, %v2397
  %v2913 = vmin.f32 %v2334, %v2398
  %v2914 = vmin.f32 %v2335, %v2399
  %v2915 = vmin.f32 %v2336, %v2400
  %v2916 = vmin.f32 %v2337, %v2401
  %v2917 = vmin.f32 %v2338, %v2402
  %v2918 = vmin.f32 %v2339, %v2403
  %v2919 = vmin.f32 %v2340, %v2404
  %v2920 = vmin.f32 %v2341, %v2405
  %v2921 = vmin.f32 %v2342, %v2406
  %v2922 = vmin.f32 %v2343, %v2407
  %v2923 = vmin.f32 %v2344, %v2408
  %v2924 = vmin.f32 %v2345, %v2409
  %v2925 = vmin.f32 %v2346, %v2410
  %v2926 = vmin.f32 %v2347, %v2411
  %v2927 = vmin.f32 %v2348, %v2412
  %v2928 = vmin.f32 %v2349, %v2413
  %v2929 = vmin.f32 %v2350, %v2414
  %v2930 = vmin.f32 %v2351, %v2415
  %v2931 = vmin.f32 %v2352, %v2416
  %v2932 = vmax.f32 %v2321, %v2385
  %v2933 = vmax.f32 %v2322, %v2386
  %v2934 = vmax.f32 %v2323, %v2387
  %v2935 = vmax.f32 %v2324, %v2388
  %v2936 = vmax.f32 %v2325, %v2389
  %v2937 = vmax.f32 %v2326, %v2390
  %v2938 = vmax.f32 %v2327, %v2391
  %v2939 = vmax.f32 %v2328, %v2392
  %v2940 = vmax.f32 %v2329, %v2393
  %v2941 = vmax.f32 %v2330, %v2394
  %v2942 = vmax.f32 %v2331, %v2395
  %v2943 = vmax.f32 %v2332, %v2396
  %v2944 = vmax.f32 %v2333, %v2397
  %v2945 = vmax.f32 %v2334, %v2398
  %v2946 = vmax.f32 %v2335, %v2399
  %v2947 = vmax.f32 %v2336, %v2400
  %v2948 = vmax.f32 %v2337, %v2401
  %v2949 = vmax.f32 %v2338, %v2402
  %v2950 = vmax.f32 %v2339, %v2403
  %v2951 = vmax.f32 %v2340, %v2404
  %v2952 = vmax.f32 %v2341, %v2405
  %v2953 = vmax.f32 %v2342, %v2406
  %v2954 = vmax.f32 %v2343, %v2407
  %v2955 = vmax.f32 %v2344, %v2408
  %v2956 = vmax.f32 %v2345, %v2409
  %v2957 = vmax.f32 %v2346, %v2410
  %v2958 = vmax.f32 %v2347, %v2411
  %v2959 = vmax.f32 %v2348, %v2412
  %v2960 = vmax.f32 %v2349, %v2413
  %v2961 = vmax.f32 %v2350, %v2414
  %v2962 = vmax.f32 %v2351, %v2415
  %v2963 = vmax.f32 %v2352, %v2416
  %v2964 = vmin.f32 %v2449, %v2513
  %v2965 = vmin.f32 %v2450, %v2514
  %v2966 = vmin.f32 %v2451, %v2515
  %v2967 = vmin.f32 %v2452, %v2516
  %v2968 = vmin.f32 %v2453, %v2517
  %v2969 = vmin.f32 %v2454, %v2518
  %v2970 = vmin.f32 %v2455, %v2519
  %v2971 = vmin.f32 %v2456, %v2520
  %v2972 = vmin.f32 %v2457, %v2521
  %v2973 = vmin.f32 %v2458, %v2522
  %v2974 = vmin.f32 %v2459, %v2523
  %v2975 = vmin.f32 %v2460, %v2524
  %v2976 = vmin.f32 %v2461, %v2525
  %v2977 = vmin.f32 %v2462, %v2526
  %v2978 = vmin.f32 %v2463, %v2527
  %v2979 = vmin.f32 %v2464, %v2528
  %v2980 = vmin.f32 %v2465, %v2529
  %v2981 = vmin.f32 %v2466, %v2530
  %v2982 = vmin.f32 %v2467, %v2531
  %v2983 = vmin.f32 %v2468, %v2532
  %v2984 = vmin.f32 %v2469, %v2533
  %v2985 = vmin.f32 %v2470, %v2534
  %v2986 = vmin.f32 %v2471, %v2535
  %v2987 = vmin.f32 %v2472, %v2536
  %v2988 = vmin.f32 %v2473, %v2537
  %v2989 = vmin.f32 %v2474, %v2538
  %v2990 = vmin.f32 %v2475, %v2539
  %v2991 = vmin.f32 %v2476, %v2540
  %v2992 = vmin.f32 %v2477, %v2541
  %v2993 = vmin.f32 %v2478, %v2542
  %v2994 = vmin.f32 %v2479, %v2543
  %v2995 = vmin.f32 %v2480, %v2544
  %v2996 = vmax.f32 %v2449, %v2513
  %v2997 = vmax.f32 %v2450, %v2514
  %v2998 = vmax.f32 %v2451, %v2515
  %v2999 = vmax.f32 %v2452, %v2516
  %v3000 = vmax.f32 %v2453, %v2517
  %v3001 = vmax.f32 %v2454, %v2518
  %v3002 = vmax.f32 %v2455, %v2519
  %v3003 = vmax.f32 %v2456, %v2520
  %v3004 = vmax.f32 %v2457, %v2521
  %v3005 = vmax.f32 %v2458, %v2522
  %v3006 = vmax.f32 %v2459, %v2523
  %v3007 = vmax.f32 %v2460, %v2524
  %v3008 = vmax.f32 %v2461, %v2525
  %v3009 = vmax.f32 %v2462, %v2526
  %v3010 = vmax.f32 %v2463, %v2527
  %v3011 = vmax.f32 %v2464, %v2528
  %v3012 = vmax.f32 %v2465, %v2529
  %v3013 = vmax.f32 %v2466, %v2530
  %v3014 = vmax.f32 %v2467, %v2531
  %v3015 = vmax.f32 %v2468, %v2532
  %v3016 = vmax.f32 %v2469, %v2533
  %v3017 = vmax.f32 %v2470, %v2534
  %v3018 = vmax.f32 %v2471, %v2535
  %v3019 = vmax.f32 %v2472, %v2536
  %v3020 = vmax.f32 %v2473, %v2537
  %v3021 = vmax.f32 %v2474, %v2538
  %v3022 = vmax.f32 %v2475, %v2539
  %v3023 = vmax.f32 %v2476, %v2540
  %v3024 = vmax.f32 %v2477, %v2541
  %v3025 = vmax.f32 %v2478, %v2542
  %v3026 = vmax.f32 %v2479, %v2543
  %v3027 = vmax.f32 %v2480, %v2544
  %v3028 = vmin.f32 %v2577, %v2641
  %v3029 = vmin.f32 %v2578, %v2642
  %v3030 = vmin.f32 %v2579, %v2643
  %v3031 = vmin.f32 %v2580, %v2644
  %v3032 = vmin.f32 %v2581, %v2645
  %v3033 = vmin.f32 %v2582, %v2646
  %v3034 = vmin.f32 %v2583, %v2647
  %v3035 = vmin.f32 %v2584, %v2648
  %v3036 = vmin.f32 %v2585, %v2649
  %v3037 = vmin.f32 %v2586, %v2650
  %v3038 = vmin.f32 %v2587, %v2651
  %v3039 = vmin.f32 %v2588, %v2652
  %v3040 = vmin.f32 %v2589, %v2653
  %v3041 = vmin.f32 %v2590, %v2654
  %v3042 = vmin.f32 %v2591, %v2655
  %v3043 = vmin.f32 %v2592, %v2656
  %v3044 = vmin.f32 %v2593, %v2657
  %v3045 = vmin.f32 %v2594, %v2658
  %v3046 = vmin.f32 %v2595, %v2659
  %v3047 = vmin.f32 %v2596, %v2660
  %v3048 = vmin.f32 %v2597, %v2661
  %v3049 = vmin.f32 %v2598, %v2662
  %v3050 = vmin.f32 %v2599, %v2663
  %v3051 = vmin.f32 %v2600, %v2664
  %v3052 = vmin.f32 %v2601, %v2665
  %v3053 = vmin.f32 %v2602, %v2666
  %v3054 = vmin.f32 %v2603, %v2667
  %v3055 = vmin.f32 %v2604, %v2668
  %v3056 = vmin.f32 %v2605, %v2669
  %v3057 = vmin.f32 %v2606, %v2670
  %v3058 = vmin.f32 %v2607, %v2671
  %v3059 = vmin.f32 %v2608, %v2672
  %v3060 = vmax.f32 %v2577, %v2641
  %v3061 = vmax.f32 %v2578, %v2642
  %v3062 = vmax.f32 %v2579, %v2643
  %v3063 = vmax.f32 %v2580, %v2644
  %v3064 = vmax.f32 %v2581, %v2645
  %v3065 = vmax.f32 %v2582, %v2646
  %v3066 = vmax.f32 %v2583, %v2647
  %v3067 = vmax.f32 %v2584, %v2648
  %v3068 = vmax.f32 %v2585, %v2649
  %v3069 = vmax.f32 %v2586, %v2650
  %v3070 = vmax.f32 %v2587, %v2651
  %v3071 = vmax.f32 %v2588, %v2652
  %v3072 = vmax.f32 %v2589, %v2653
  %v3073 = vmax.f32 %v2590, %v2654
  %v3074 = vmax.f32 %v2591, %v2655
  %v3075 = vmax.f32 %v2592, %v2656
  %v3076 = vmax.f32 %v2593, %v2657
  %v3077 = vmax.f32 %v2594, %v2658
  %v3078 = vmax.f32 %v2595, %v2659
  %v3079 = vmax.f32 %v2596, %v2660
  %v3080 = vmax.f32 %v2597, %v2661
  %v3081 = vmax.f32 %v2598, %v2662
  %v3082 = vmax.f32 %v2599, %v2663
  %v3083 = vmax.f32 %v2600, %v2664
  %v3084 = vmax.f32 %v2601, %v2665
  %v3085 = vmax.f32 %v2602, %v2666
  %v3086 = vmax.f32 %v2603, %v2667
  %v3087 = vmax.f32 %v2604, %v2668
  %v3088 = vmax.f32 %v2605, %v2669
  %v3089 = vmax.f32 %v2606, %v2670
  %v3090 = vmax.f32 %v2607, %v2671
  %v3091 = vmax.f32 %v2608, %v2672
  %v3092 = vmin.f32 %v2705, %v2740
  %v3093 = vmin.f32 %v2706, %v2741
  %v3094 = vmin.f32 %v2707, %v2742
  %v3095 = vmin.f32 %v2708, %v2743
  %v3096 = vmin.f32 %v2709, %v2744
  %v3097 = vmin.f32 %v2710, %v2745
  %v3098 = vmin.f32 %v2711, %v2746
  %v3099 = vmin.f32 %v2712, %v2747
  %v3100 = vmin.f32 %v2713, %v2748
  %v3101 = vmin.f32 %v2714, %v2749
  %v3102 = vmin.f32 %v2715, %v2750
  %v3103 = vmin.f32 %v2716, %v2751
  %v3104 = vmin.f32 %v2717, %v2752
  %v3105 = vmin.f32 %v2718, %v2753
  %v3106 = vmin.f32 %v2719, %v2754
  %v3107 = vmin.f32 %v2720, %v2755
  %v3108 = vmin.f32 %v2721, %v2756
  %v3109 = vmin.f32 %v2722, %v2757
  %v3110 = vmin.f32 %v2723, %v2758
  %v3111 = vmin.f32 %v2724, %v2759
  %v3112 = vmin.f32 %v2725, %v2760
  %v3113 = vmin.f32 %v2726, %v2761
  %v3114 = vmin.f32 %v2727, %v2762
  %v3115 = vmin.f32 %v2728, %v2763
  %v3116 = vmin.f32 %v2729, %v2764
  %v3117 = vmin.f32 %v2730, %v2765
  %v3118 = vmin.f32 %v2731, %v2766
  %v3119 = vmin.f32 %v2732, %v2767
  %v3120 = vmin.f32 %v2733, %v2768
  %v3121 = vmin.f32 %v2734, %v2769
  %v3122 = vmin.f32 %v2735, %v2770
  %v3123 = vmin.f32 %v2736, %v2771
  %v3124 = vmax.f32 %v2705, %v2740
  %v3125 = vmax.f32 %v2706, %v2741
  %v3126 = vmax.f32 %v2707, %v2742
  %v3127 = vmax.f32 %v2708, %v2743
  %v3128 = vmax.f32 %v2709, %v2744
  %v3129 = vmax.f32 %v2710, %v2745
  %v3130 = vmax.f32 %v2711, %v2746
  %v3131 = vmax.f32 %v2712, %v2747
  %v3132 = vmax.f32 %v2713, %v2748
  %v3133 = vmax.f32 %v2714, %v2749
  %v3134 = vmax.f32 %v2715, %v2750
  %v3135 = vmax.f32 %v2716, %v2751
  %v3136 = vmax.f32 %v2717, %v2752
  %v3137 = vmax.f32 %v2718, %v2753
  %v3138 = vmax.f32 %v2719, %v2754
  %v3139 = vmax.f32 %v2720, %v2755
  %v3140 = vmax.f32 %v2721, %v2756
  %v3141 = vmax.f32 %v2722, %v2757
  %v3142 = vmax.f32 %v2723, %v2758
  %v3143 = vmax.f32 %v2724, %v2759
  %v3144 = vmax.f32 %v2725, %v2760
  %v3145 = vmax.f32 %v2726, %v2761
  %v3146 = vmax.f32 %v2727, %v2762
  %v3147 = vmax.f32 %v2728, %v2763
  %v3148 = vmax.f32 %v2729, %v2764
  %v3149 = vmax.f32 %v2730, %v2765
  %v3150 = vmax.f32 %v2731, %v2766
  %v3151 = vmax.f32 %v2732, %v2767
  %v3152 = vmax.f32 %v2733, %v2768
  %v3153 = vmax.f32 %v2734, %v2769
  %v3154 = vmax.f32 %v2735, %v2770
  %v3155 = vmax.f32 %v2736, %v2771
  %v3156 = vmin.f32 %v2772, %v2836
  %v3157 = vmin.f32 %v2773, %v2837
  %v3158 = vmin.f32 %v2774, %v2838
  %v3159 = vmin.f32 %v2775, %v2839
  %v3160 = vmin.f32 %v2776, %v2840
  %v3161 = vmin.f32 %v2777, %v2841
  %v3162 = vmin.f32 %v2778, %v2842
  %v3163 = vmin.f32 %v2779, %v2843
  %v3164 = vmin.f32 %v2780, %v2844
  %v3165 = vmin.f32 %v2781, %v2845
  %v3166 = vmin.f32 %v2782, %v2846
  %v3167 = vmin.f32 %v2783, %v2847
  %v3168 = vmin.f32 %v2784, %v2848
  %v3169 = vmin.f32 %v2785, %v2849
  %v3170 = vmin.f32 %v2786, %v2850
  %v3171 = vmin.f32 %v2787, %v2851
  %v3172 = vmin.f32 %v2788, %v2852
  %v3173 = vmin.f32 %v2789, %v2853
  %v3174 = vmin.f32 %v2790, %v2854
  %v3175 = vmin.f32 %v2791, %v2855
  %v3176 = vmin.f32 %v2792, %v2856
  %v3177 = vmin.f32 %v2793, %v2857
  %v3178 = vmin.f32 %v2794, %v2858
  %v3179 = vmin.f32 %v2795, %v2859
  %v3180 = vmin.f32 %v2796, %v2860
  %v3181 = vmin.f32 %v2797, %v2861
  %v3182 = vmin.f32 %v2798, %v2862
  %v3183 = vmin.f32 %v2799, %v2863
  %v3184 = vmin.f32 %v2800, %v2864
  %v3185 = vmin.f32 %v2801, %v2865
  %v3186 = vmin.f32 %v2802, %v2866
  %v3187 = vmin.f32 %v2803, %v2867
  %v3188 = vmax.f32 %v2772, %v2836
  %v3189 = vmax.f32 %v2773, %v2837
  %v3190 = vmax.f32 %v2774, %v2838
  %v3191 = vmax.f32 %v2775, %v2839
  %v3192 = vmax.f32 %v2776, %v2840
  %v3193 = vmax.f32 %v2777, %v2841
  %v3194 = vmax.f32 %v2778, %v2842
  %v3195 = vmax.f32 %v2779, %v2843
  %v3196 = vmax.f32 %v2780, %v2844
  %v3197 = vmax.f32 %v2781, %v2845
  %v3198 = vmax.f32 %v2782, %v2846
  %v3199 = vmax.f32 %v2783, %v2847
  %v3200 = vmax.f32 %v2784, %v2848
  %v3201 = vmax.f32 %v2785, %v2849
  %v3202 = vmax.f32 %v2786, %v2850
  %v3203 = vmax.f32 %v2787, %v2851
  %v3204 = vmax.f32 %v2788, %v2852
  %v3205 = vmax.f32 %v2789, %v2853
  %v3206 = vmax.f32 %v2790, %v2854
  %v3207 = vmax.f32 %v2791, %v2855
  %v3208 = vmax.f32 %v2792, %v2856
  %v3209 = vmax.f32 %v2793, %v2857
  %v3210 = vmax.f32 %v2794, %v2858
  %v3211 = vmax.f32 %v2795, %v2859
  %v3212 = vmax.f32 %v2796, %v2860
  %v3213 = vmax.f32 %v2797, %v2861
  %v3214 = vmax.f32 %v2798, %v2862
  %v3215 = vmax.f32 %v2799, %v2863
  %v3216 = vmax.f32 %v2800, %v2864
  %v3217 = vmax.f32 %v2801, %v2865
  %v3218 = vmax.f32 %v2802, %v2866
  %v3219 = vmax.f32 %v2803, %v2867
  %v3220 = vmin.f32 %v3156, %v2900
  %v3221 = vmin.f32 %v3157, %v2901
  %v3222 = vmin.f32 %v3158, %v2902
  %v3223 = vmin.f32 %v3159, %v2903
  %v3224 = vmin.f32 %v3160, %v2904
  %v3225 = vmin.f32 %v3161, %v2905
  %v3226 = vmin.f32 %v3162, %v2906
  %v3227 = vmin.f32 %v3163, %v2907
  %v3228 = vmin.f32 %v3164, %v2908
  %v3229 = vmin.f32 %v3165, %v2909
  %v3230 = vmin.f32 %v3166, %v2910
  %v3231 = vmin.f32 %v3167, %v2911
  %v3232 = vmin.f32 %v3168, %v2912
  %v3233 = vmin.f32 %v3169, %v2913
  %v3234 = vmin.f32 %v3170, %v2914
  %v3235 = vmin.f32 %v3171, %v2915
  %v3236 = vmin.f32 %v3172, %v2916
  %v3237 = vmin.f32 %v3173, %v2917
  %v3238 = vmin.f32 %v3174, %v2918
  %v3239 = vmin.f32 %v3175, %v2919
  %v3240 = vmin.f32 %v3176, %v2920
  %v3241 = vmin.f32 %v3177, %v2921
  %v3242 = vmin.f32 %v3178, %v2922
  %v3243 = vmin.f32 %v3179, %v2923
  %v3244 = vmin.f32 %v3180, %v2924
  %v3245 = vmin.f32 %v3181, %v2925
  %v3246 = vmin.f32 %v3182, %v2926
  %v3247 = vmin.f32 %v3183, %v2927
  %v3248 = vmin.f32 %v3184, %v2928
  %v3249 = vmin.f32 %v3185, %v2929
  %v3250 = vmin.f32 %v3186, %v2930
  %v3251 = vmin.f32 %v3187, %v2931
  %v3252 = vmax.f32 %v3156, %v2900
  %v3253 = vmax.f32 %v3157, %v2901
  %v3254 = vmax.f32 %v3158, %v2902
  %v3255 = vmax.f32 %v3159, %v2903
  %v3256 = vmax.f32 %v3160, %v2904
  %v3257 = vmax.f32 %v3161, %v2905
  %v3258 = vmax.f32 %v3162, %v2906
  %v3259 = vmax.f32 %v3163, %v2907
  %v3260 = vmax.f32 %v3164, %v2908
  %v3261 = vmax.f32 %v3165, %v2909
  %v3262 = vmax.f32 %v3166, %v2910
  %v3263 = vmax.f32 %v3167, %v2911
  %v3264 = vmax.f32 %v3168, %v2912
  %v3265 = vmax.f32 %v3169, %v2913
  %v3266 = vmax.f32 %v3170, %v2914
  %v3267 = vmax.f32 %v3171, %v2915
  %v3268 = vmax.f32 %v3172, %v2916
  %v3269 = vmax.f32 %v3173, %v2917
  %v3270 = vmax.f32 %v3174, %v2918
  %v3271 = vmax.f32 %v3175, %v2919
  %v3272 = vmax.f32 %v3176, %v2920
  %v3273 = vmax.f32 %v3177, %v2921
  %v3274 = vmax.f32 %v3178, %v2922
  %v3275 = vmax.f32 %v3179, %v2923
  %v3276 = vmax.f32 %v3180, %v2924
  %v3277 = vmax.f32 %v3181, %v2925
  %v3278 = vmax.f32 %v3182, %v2926
  %v3279 = vmax.f32 %v3183, %v2927
  %v3280 = vmax.f32 %v3184, %v2928
  %v3281 = vmax.f32 %v3185, %v2929
  %v3282 = vmax.f32 %v3186, %v2930
  %v3283 = vmax.f32 %v3187, %v2931
  %v3284 = vmin.f32 %v3220, %v2964
  %v3285 = vmin.f32 %v3221, %v2965
  %v3286 = vmin.f32 %v3222, %v2966
  %v3287 = vmin.f32 %v3223, %v2967
  %v3288 = vmin.f32 %v3224, %v2968
  %v3289 = vmin.f32 %v3225, %v2969
  %v3290 = vmin.f32 %v3226, %v2970
  %v3291 = vmin.f32 %v3227, %v2971
  %v3292 = vmin.f32 %v3228, %v2972
  %v3293 = vmin.f32 %v3229, %v2973
  %v3294 = vmin.f32 %v3230, %v2974
  %v3295 = vmin.f32 %v3231, %v2975
  %v3296 = vmin.f32 %v3232, %v2976
  %v3297 = vmin.f32 %v3233, %v2977
  %v3298 = vmin.f32 %v3234, %v2978
  %v3299 = vmin.f32 %v3235, %v2979
  %v3300 = vmin.f32 %v3236, %v2980
  %v3301 = vmin.f32 %v3237, %v2981
  %v3302 = vmin.f32 %v3238, %v2982
  %v3303 = vmin.f32 %v3239, %v2983
  %v3304 = vmin.f32 %v3240, %v2984
  %v3305 = vmin.f32 %v3241, %v2985
  %v3306 = vmin.f32 %v3242, %v2986
  %v3307 = vmin.f32 %v3243, %v2987
  %v3308 = vmin.f32 %v3244, %v2988
  %v3309 = vmin.f32 %v3245, %v2989
  %v3310 = vmin.f32 %v3246, %v2990
  %v3311 = vmin.f32 %v3247, %v2991
  %v3312 = vmin.f32 %v3248, %v2992
  %v3313 = vmin.f32 %v3249, %v2993
  %v3314 = vmin.f32 %v3250, %v2994
  %v3315 = vmin.f32 %v3251, %v2995
  %v3316 = vmax.f32 %v3220, %v2964
  %v3317 = vmax.f32 %v3221, %v2965
  %v3318 = vmax.f32 %v3222, %v2966
  %v3319 = vmax.f32 %v3223, %v2967
  %v3320 = vmax.f32 %v3224, %v2968
  %v3321 = vmax.f32 %v3225, %v2969
  %v3322 = vmax.f32 %v3226, %v2970
  %v3323 = vmax.f32 %v3227, %v2971
  %v3324 = vmax.f32 %v3228, %v2972
  %v3325 = vmax.f32 %v3229, %v2973
  %v3326 = vmax.f32 %v3230, %v2974
  %v3327 = vmax.f32 %v3231, %v2975
  %v3328 = vmax.f32 %v3232, %v2976
  %v3329 = vmax.f32 %v3233, %v2977
  %v3330 = vmax.f32 %v3234, %v2978
  %v3331 = vmax.f32 %v3235, %v2979
  %v3332 = vmax.f32 %v3236, %v2980
  %v3333 = vmax.f32 %v3237, %v2981
  %v3334 = vmax.f32 %v3238, %v2982
  %v3335 = vmax.f32 %v3239, %v2983
  %v3336 = vmax.f32 %v3240, %v2984
  %v3337 = vmax.f32 %v3241, %v2985
  %v3338 = vmax.f32 %v3242, %v2986
  %v3339 = vmax.f32 %v3243, %v2987
  %v3340 = vmax.f32 %v3244, %v2988
  %v3341 = vmax.f32 %v3245, %v2989
  %v3342 = vmax.f32 %v3246, %v2990
  %v3343 = vmax.f32 %v3247, %v2991
  %v3344 = vmax.f32 %v3248, %v2992
  %v3345 = vmax.f32 %v3249, %v2993
  %v3346 = vmax.f32 %v3250, %v2994
  %v3347 = vmax.f32 %v3251, %v2995
  %v3348 = vmin.f32 %v3284, %v3028
  %v3349 = vmin.f32 %v3285, %v3029
  %v3350 = vmin.f32 %v3286, %v3030
  %v3351 = vmin.f32 %v3287, %v3031
  %v3352 = vmin.f32 %v3288, %v3032
  %v3353 = vmin.f32 %v3289, %v3033
  %v3354 = vmin.f32 %v3290, %v3034
  %v3355 = vmin.f32 %v3291, %v3035
  %v3356 = vmin.f32 %v3292, %v3036
  %v3357 = vmin.f32 %v3293, %v3037
  %v3358 = vmin.f32 %v3294, %v3038
  %v3359 = vmin.f32 %v3295, %v3039
  %v3360 = vmin.f32 %v3296, %v3040
  %v3361 = vmin.f32 %v3297, %v3041
  %v3362 = vmin.f32 %v3298, %v3042
  %v3363 = vmin.f32 %v3299, %v3043
  %v3364 = vmin.f32 %v3300, %v3044
  %v3365 = vmin.f32 %v3301, %v3045
  %v3366 = vmin.f32 %v3302, %v3046
  %v3367 = vmin.f32 %v3303, %v3047
  %v3368 = vmin.f32 %v3304, %v3048
  %v3369 = vmin.f32 %v3305, %v3049
  %v3370 = vmin.f32 %v3306, %v3050
  %v3371 = vmin.f32 %v3307, %v3051
  %v3372 = vmin.f32 %v3308, %v3052
  %v3373 = vmin.f32 %v3309, %v3053
  %v3374 = vmin.f32 %v3310, %v3054
  %v3375 = vmin.f32 %v3311, %v3055
  %v3376 = vmin.f32 %v3312, %v3056
  %v3377 = vmin.f32 %v3313, %v3057
  %v3378 = vmin.f32 %v3314, %v3058
  %v3379 = vmin.f32 %v3315, %v3059
  %v3380 = vmax.f32 %v3284, %v3028
  %v3381 = vmax.f32 %v3285, %v3029
  %v3382 = vmax.f32 %v3286, %v3030
  %v3383 = vmax.f32 %v3287, %v3031
  %v3384 = vmax.f32 %v3288, %v3032
  %v3385 = vmax.f32 %v3289, %v3033
  %v3386 = vmax.f32 %v3290, %v3034
  %v3387 = vmax.f32 %v3291, %v3035
  %v3388 = vmax.f32 %v3292, %v3036
  %v3389 = vmax.f32 %v3293, %v3037
  %v3390 = vmax.f32 %v3294, %v3038
  %v3391 = vmax.f32 %v3295, %v3039
  %v3392 = vmax.f32 %v3296, %v3040
  %v3393 = vmax.f32 %v3297, %v3041
  %v3394 = vmax.f32 %v3298, %v3042
  %v3395 = vmax.f32 %v3299, %v3043
  %v3396 = vmax.f32 %v3300, %v3044
  %v3397 = vmax.f32 %v3301, %v3045
  %v3398 = vmax.f32 %v3302, %v3046
  %v3399 = vmax.f32 %v3303, %v3047
  %v3400 = vmax.f32 %v3304, %v3048
  %v3401 = vmax.f32 %v3305, %v3049
  %v3402 = vmax.f32 %v3306, %v3050
  %v3403 = vmax.f32 %v3307, %v3051
  %v3404 = vmax.f32 %v3308, %v3052
  %v3405 = vmax.f32 %v3309, %v3053
  %v3406 = vmax.f32 %v3310, %v3054
  %v3407 = vmax.f32 %v3311, %v3055
  %v3408 = vmax.f32 %v3312, %v3056
  %v3409 = vmax.f32 %v3313, %v3057
  %v3410 = vmax.f32 %v3314, %v3058
  %v3411 = vmax.f32 %v3315, %v3059
  %v3412 = vmax.f32 %v3348, %v3092
  %v3413 = vmax.f32 %v3349, %v3093
  %v3414 = vmax.f32 %v3350, %v3094
  %v3415 = vmax.f32 %v3351, %v3095
  %v3416 = vmax.f32 %v3352, %v3096
  %v3417 = vmax.f32 %v3353, %v3097
  %v3418 = vmax.f32 %v3354, %v3098
  %v3419 = vmax.f32 %v3355, %v3099
  %v3420 = vmax.f32 %v3356, %v3100
  %v3421 = vmax.f32 %v3357, %v3101
  %v3422 = vmax.f32 %v3358, %v3102
  %v3423 = vmax.f32 %v3359, %v3103
  %v3424 = vmax.f32 %v3360, %v3104
  %v3425 = vmax.f32 %v3361, %v3105
  %v3426 = vmax.f32 %v3362, %v3106
  %v3427 = vmax.f32 %v3363, %v3107
  %v3428 = vmax.f32 %v3364, %v3108
  %v3429 = vmax.f32 %v3365, %v3109
  %v3430 = vmax.f32 %v3366, %v3110
  %v3431 = vmax.f32 %v3367, %v3111
  %v3432 = vmax.f32 %v3368, %v3112
  %v3433 = vmax.f32 %v3369, %v3113
  %v3434 = vmax.f32 %v3370, %v3114
  %v3435 = vmax.f32 %v3371, %v3115
  %v3436 = vmax.f32 %v3372, %v3116
  %v3437 = vmax.f32 %v3373, %v3117
  %v3438 = vmax.f32 %v3374, %v3118
  %v3439 = vmax.f32 %v3375, %v3119
  %v3440 = vmax.f32 %v3376, %v3120
  %v3441 = vmax.f32 %v3377, %v3121
  %v3442 = vmax.f32 %v3378, %v3122
  %v3443 = vmax.f32 %v3379, %v3123
  %v3444 = vmin.f32 %v2804, %v2868
  %v3445 = vmin.f32 %v2805, %v2869
  %v3446 = vmin.f32 %v2806, %v2870
  %v3447 = vmin.f32 %v2807, %v2871
  %v3448 = vmin.f32 %v2808, %v2872
  %v3449 = vmin.f32 %v2809, %v2873
  %v3450 = vmin.f32 %v2810, %v2874
  %v3451 = vmin.f32 %v2811, %v2875
  %v3452 = vmin.f32 %v2812, %v2876
  %v3453 = vmin.f32 %v2813, %v2877
  %v3454 = vmin.f32 %v2814, %v2878
  %v3455 = vmin.f32 %v2815, %v2879
  %v3456 = vmin.f32 %v2816, %v2880
  %v3457 = vmin.f32 %v2817, %v2881
  %v3458 = vmin.f32 %v2818, %v2882
  %v3459 = vmin.f32 %v2819, %v2883
  %v3460 = vmin.f32 %v2820, %v2884
  %v3461 = vmin.f32 %v2821, %v2885
  %v3462 = vmin.f32 %v2822, %v2886
  %v3463 = vmin.f32 %v2823, %v2887
  %v3464 = vmin.f32 %v2824, %v2888
  %v3465 = vmin.f32 %v2825, %v2889
  %v3466 = vmin.f32 %v2826, %v2890
  %v3467 = vmin.f32 %v2827, %v2891
  %v3468 = vmin.f32 %v2828, %v2892
  %v3469 = vmin.f32 %v2829, %v2893
  %v3470 = vmin.f32 %v2830, %v2894
  %v3471 = vmin.f32 %v2831, %v2895
  %v3472 = vmin.f32 %v2832, %v2896
  %v3473 = vmin.f32 %v2833, %v2897
  %v3474 = vmin.f32 %v2834, %v2898
  %v3475 = vmin.f32 %v2835, %v2899
  %v3476 = vmax.f32 %v2804, %v2868
  %v3477 = vmax.f32 %v2805, %v2869
  %v3478 = vmax.f32 %v2806, %v2870
  %v3479 = vmax.f32 %v2807, %v2871
  %v3480 = vmax.f32 %v2808, %v2872
  %v3481 = vmax.f32 %v2809, %v2873
  %v3482 = vmax.f32 %v2810, %v2874
  %v3483 = vmax.f32 %v2811, %v2875
  %v3484 = vmax.f32 %v2812, %v2876
  %v3485 = vmax.f32 %v2813, %v2877
  %v3486 = vmax.f32 %v2814, %v2878
  %v3487 = vmax.f32 %v2815, %v2879
  %v3488 = vmax.f32 %v2816, %v2880
  %v3489 = vmax.f32 %v2817, %v2881
  %v3490 = vmax.f32 %v2818, %v2882
  %v3491 = vmax.f32 %v2819, %v2883
  %v3492 = vmax.f32 %v2820, %v2884
  %v3493 = vmax.f32 %v2821, %v2885
  %v3494 = vmax.f32 %v2822, %v2886
  %v3495 = vmax.f32 %v2823, %v2887
  %v3496 = vmax.f32 %v2824, %v2888
  %v3497 = vmax.f32 %v2825, %v2889
  %v3498 = vmax.f32 %v2826, %v2890
  %v3499 = vmax.f32 %v2827, %v2891
  %v3500 = vmax.f32 %v2828, %v2892
  %v3501 = vmax.f32 %v2829, %v2893
  %v3502 = vmax.f32 %v2830, %v2894
  %v3503 = vmax.f32 %v2831, %v2895
  %v3504 = vmax.f32 %v2832, %v2896
  %v3505 = vmax.f32 %v2833, %v2897
  %v3506 = vmax.f32 %v2834, %v2898
  %v3507 = vmax.f32 %v2835, %v2899
  %v3508 = vmin.f32 %v3476, %v2932
  %v3509 = vmin.f32 %v3477, %v2933
  %v3510 = vmin.f32 %v3478, %v2934
  %v3511 = vmin.f32 %v3479, %v2935
  %v3512 = vmin.f32 %v3480, %v2936
  %v3513 = vmin.f32 %v3481, %v2937
  %v3514 = vmin.f32 %v3482, %v2938
  %v3515 = vmin.f32 %v3483, %v2939
  %v3516 = vmin.f32 %v3484, %v2940
  %v3517 = vmin.f32 %v3485, %v2941
  %v3518 = vmin.f32 %v3486, %v2942
  %v3519 = vmin.f32 %v3487, %v2943
  %v3520 = vmin.f32 %v3488, %v2944
  %v3521 = vmin.f32 %v3489, %v2945
  %v3522 = vmin.f32 %v3490, %v2946
  %v3523 = vmin.f32 %v3491, %v2947
  %v3524 = vmin.f32 %v3492, %v2948
  %v3525 = vmin.f32 %v3493, %v2949
  %v3526 = vmin.f32 %v3494, %v2950
  %v3527 = vmin.f32 %v3495, %v2951
  %v3528 = vmin.f32 %v3496, %v2952
  %v3529 = vmin.f32 %v3497, %v2953
  %v3530 = vmin.f32 %v3498, %v2954
  %v3531 = vmin.f32 %v3499, %v2955
  %v3532 = vmin.f32 %v3500, %v2956
  %v3533 = vmin.f32 %v3501, %v2957
  %v3534 = vmin.f32 %v3502, %v2958
  %v3535 = vmin.f32 %v3503, %v2959
  %v3536 = vmin.f32 %v3504, %v2960
  %v3537 = vmin.f32 %v3505, %v2961
  %v3538 = vmin.f32 %v3506, %v2962
  %v3539 = vmin.f32 %v3507, %v2963
  %v3540 = vmax.f32 %v3476, %v2932
  %v3541 = vmax.f32 %v3477, %v2933
  %v3542 = vmax.f32 %v3478, %v2934
  %v3543 = vmax.f32 %v3479, %v2935
  %v3544 = vmax.f32 %v3480, %v2936
  %v3545 = vmax.f32 %v3481, %v2937
  %v3546 = vmax.f32 %v3482, %v2938
  %v3547 = vmax.f32 %v3483, %v2939
  %v3548 = vmax.f32 %v3484, %v2940
  %v3549 = vmax.f32 %v3485, %v2941
  %v3550 = vmax.f32 %v3486, %v2942
  %v3551 = vmax.f32 %v3487, %v2943
  %v3552 = vmax.f32 %v3488, %v2944
  %v3553 = vmax.f32 %v3489, %v2945
  %v3554 = vmax.f32 %v3490, %v2946
  %v3555 = vmax.f32 %v3491, %v2947
  %v3556 = vmax.f32 %v3492, %v2948
  %v3557 = vmax.f32 %v3493, %v2949
  %v3558 = vmax.f32 %v3494, %v2950
  %v3559 = vmax.f32 %v3495, %v2951
  %v3560 = vmax.f32 %v3496, %v2952
  %v3561 = vmax.f32 %v3497, %v2953
  %v3562 = vmax.f32 %v3498, %v2954
  %v3563 = vmax.f32 %v3499, %v2955
  %v3564 = vmax.f32 %v3500, %v2956
  %v3565 = vmax.f32 %v3501, %v2957
  %v3566 = vmax.f32 %v3502, %v2958
  %v3567 = vmax.f32 %v3503, %v2959
  %v3568 = vmax.f32 %v3504, %v2960
  %v3569 = vmax.f32 %v3505, %v2961
  %v3570 = vmax.f32 %v3506, %v2962
  %v3571 = vmax.f32 %v3507, %v2963
  %v3572 = vmin.f32 %v3540, %v2996
  %v3573 = vmin.f32 %v3541, %v2997
  %v3574 = vmin.f32 %v3542, %v2998
  %v3575 = vmin.f32 %v3543, %v2999
  %v3576 = vmin.f32 %v3544, %v3000
  %v3577 = vmin.f32 %v3545, %v3001
  %v3578 = vmin.f32 %v3546, %v3002
  %v3579 = vmin.f32 %v3547, %v3003
  %v3580 = vmin.f32 %v3548, %v3004
  %v3581 = vmin.f32 %v3549, %v3005
  %v3582 = vmin.f32 %v3550, %v3006
  %v3583 = vmin.f32 %v3551, %v3007
  %v3584 = vmin.f32 %v3552, %v3008
  %v3585 = vmin.f32 %v3553, %v3009
  %v3586 = vmin.f32 %v3554, %v3010
  %v3587 = vmin.f32 %v3555, %v3011
  %v3588 = vmin.f32 %v3556, %v3012
  %v3589 = vmin.f32 %v3557, %v3013
  %v3590 = vmin.f32 %v3558, %v3014
  %v3591 = vmin.f32 %v3559, %v3015
  %v3592 = vmin.f32 %v3560, %v3016
  %v3593 = vmin.f32 %v3561, %v3017
  %v3594 = vmin.f32 %v3562, %v3018
  %v3595 = vmin.f32 %v3563, %v3019
  %v3596 = vmin.f32 %v3564, %v3020
  %v3597 = vmin.f32 %v3565, %v3021
  %v3598 = vmin.f32 %v3566, %v3022
  %v3599 = vmin.f32 %v3567, %v3023
  %v3600 = vmin.f32 %v3568, %v3024
  %v3601 = vmin.f32 %v3569, %v3025
  %v3602 = vmin.f32 %v3570, %v3026
  %v3603 = vmin.f32 %v3571, %v3027
  %v3604 = vmax.f32 %v3540, %v2996
  %v3605 = vmax.f32 %v3541, %v2997
  %v3606 = vmax.f32 %v3542, %v2998
  %v3607 = vmax.f32 %v3543, %v2999
  %v3608 = vmax.f32 %v3544, %v3000
  %v3609 = vmax.f32 %v3545, %v3001
  %v3610 = vmax.f32 %v3546, %v3002
  %v3611 = vmax.f32 %v3547, %v3003
  %v3612 = vmax.f32 %v3548, %v3004
  %v3613 = vmax.f32 %v3549, %v3005
  %v3614 = vmax.f32 %v3550, %v3006
  %v3615 = vmax.f32 %v3551, %v3007
  %v3616 = vmax.f32 %v3552, %v3008
  %v3617 = vmax.f32 %v3553, %v3009
  %v3618 = vmax.f32 %v3554, %v3010
  %v3619 = vmax.f32 %v3555, %v3011
  %v3620 = vmax.f32 %v3556, %v3012
  %v3621 = vmax.f32 %v3557, %v3013
  %v3622 = vmax.f32 %v3558, %v3014
  %v3623 = vmax.f32 %v3559, %v3015
  %v3624 = vmax.f32 %v3560, %v3016
  %v3625 = vmax.f32 %v3561, %v3017
  %v3626 = vmax.f32 %v3562, %v3018
  %v3627 = vmax.f32 %v3563, %v3019
  %v3628 = vmax.f32 %v3564, %v3020
  %v3629 = vmax.f32 %v3565, %v3021
  %v3630 = vmax.f32 %v3566, %v3022
  %v3631 = vmax.f32 %v3567, %v3023
  %v3632 = vmax.f32 %v3568, %v3024
  %v3633 = vmax.f32 %v3569, %v3025
  %v3634 = vmax.f32 %v3570, %v3026
  %v3635 = vmax.f32 %v3571, %v3027
  %v3636 = vmin.f32 %v3604, %v3060
  %v3637 = vmin.f32 %v3605, %v3061
  %v3638 = vmin.f32 %v3606, %v3062
  %v3639 = vmin.f32 %v3607, %v3063
  %v3640 = vmin.f32 %v3608, %v3064
  %v3641 = vmin.f32 %v3609, %v3065
  %v3642 = vmin.f32 %v3610, %v3066
  %v3643 = vmin.f32 %v3611, %v3067
  %v3644 = vmin.f32 %v3612, %v3068
  %v3645 = vmin.f32 %v3613, %v3069
  %v3646 = vmin.f32 %v3614, %v3070
  %v3647 = vmin.f32 %v3615, %v3071
  %v3648 = vmin.f32 %v3616, %v3072
  %v3649 = vmin.f32 %v3617, %v3073
  %v3650 = vmin.f32 %v3618, %v3074
  %v3651 = vmin.f32 %v3619, %v3075
  %v3652 = vmin.f32 %v3620, %v3076
  %v3653 = vmin.f32 %v3621, %v3077
  %v3654 = vmin.f32 %v3622, %v3078
  %v3655 = vmin.f32 %v3623, %v3079
  %v3656 = vmin.f32 %v3624, %v3080
  %v3657 = vmin.f32 %v3625, %v3081
  %v3658 = vmin.f32 %v3626, %v3082
  %v3659 = vmin.f32 %v3627, %v3083
  %v3660 = vmin.f32 %v3628, %v3084
  %v3661 = vmin.f32 %v3629, %v3085
  %v3662 = vmin.f32 %v3630, %v3086
  %v3663 = vmin.f32 %v3631, %v3087
  %v3664 = vmin.f32 %v3632, %v3088
  %v3665 = vmin.f32 %v3633, %v3089
  %v3666 = vmin.f32 %v3634, %v3090
  %v3667 = vmin.f32 %v3635, %v3091
  %v3668 = vmax.f32 %v3604, %v3060
  %v3669 = vmax.f32 %v3605, %v3061
  %v3670 = vmax.f32 %v3606, %v3062
  %v3671 = vmax.f32 %v3607, %v3063
  %v3672 = vmax.f32 %v3608, %v3064
  %v3673 = vmax.f32 %v3609, %v3065
  %v3674 = vmax.f32 %v3610, %v3066
  %v3675 = vmax.f32 %v3611, %v3067
  %v3676 = vmax.f32 %v3612, %v3068
  %v3677 = vmax.f32 %v3613, %v3069
  %v3678 = vmax.f32 %v3614, %v3070
  %v3679 = vmax.f32 %v3615, %v3071
  %v3680 = vmax.f32 %v3616, %v3072
  %v3681 = vmax.f32 %v3617, %v3073
  %v3682 = vmax.f32 %v3618, %v3074
  %v3683 = vmax.f32 %v3619, %v3075
  %v3684 = vmax.f32 %v3620, %v3076
  %v3685 = vmax.f32 %v3621, %v3077
  %v3686 = vmax.f32 %v3622, %v3078
  %v3687 = vmax.f32 %v3623, %v3079
  %v3688 = vmax.f32 %v3624, %v3080
  %v3689 = vmax.f32 %v3625, %v3081
  %v3690 = vmax.f32 %v3626, %v3082
  %v3691 = vmax.f32 %v3627, %v3083
  %v3692 = vmax.f32 %v3628, %v3084
  %v3693 = vmax.f32 %v3629, %v3085
  %v3694 = vmax.f32 %v3630, %v3086
  %v3695 = vmax.f32 %v3631, %v3087
  %v3696 = vmax.f32 %v3632, %v3088
  %v3697 = vmax.f32 %v3633, %v3089
  %v3698 = vmax.f32 %v3634, %v3090
  %v3699 = vmax.f32 %v3635, %v3091
  %v3700 = vmin.f32 %v3668, %v3124
  %v3701 = vmin.f32 %v3669, %v3125
  %v3702 = vmin.f32 %v3670, %v3126
  %v3703 = vmin.f32 %v3671, %v3127
  %v3704 = vmin.f32 %v3672, %v3128
  %v3705 = vmin.f32 %v3673, %v3129
  %v3706 = vmin.f32 %v3674, %v3130
  %v3707 = vmin.f32 %v3675, %v3131
  %v3708 = vmin.f32 %v3676, %v3132
  %v3709 = vmin.f32 %v3677, %v3133
  %v3710 = vmin.f32 %v3678, %v3134
  %v3711 = vmin.f32 %v3679, %v3135
  %v3712 = vmin.f32 %v3680, %v3136
  %v3713 = vmin.f32 %v3681, %v3137
  %v3714 = vmin.f32 %v3682, %v3138
  %v3715 = vmin.f32 %v3683, %v3139
  %v3716 = vmin.f32 %v3684, %v3140
  %v3717 = vmin.f32 %v3685, %v3141
  %v3718 = vmin.f32 %v3686, %v3142
  %v3719 = vmin.f32 %v3687, %v3143
  %v3720 = vmin.f32 %v3688, %v3144
  %v3721 = vmin.f32 %v3689, %v3145
  %v3722 = vmin.f32 %v3690, %v3146
  %v3723 = vmin.f32 %v3691, %v3147
  %v3724 = vmin.f32 %v3692, %v3148
  %v3725 = vmin.f32 %v3693, %v3149
  %v3726 = vmin.f32 %v3694, %v3150
  %v3727 = vmin.f32 %v3695, %v3151
  %v3728 = vmin.f32 %v3696, %v3152
  %v3729 = vmin.f32 %v3697, %v3153
  %v3730 = vmin.f32 %v3698, %v3154
  %v3731 = vmin.f32 %v3699, %v3155
  %v3732 = vld [vmem:[%s2739 + $0x1] sm:$0xff]
  %v3733 = vld [vmem:[%s2739 + $0x9] sm:$0xff]
  %v3734 = vld [vmem:[%s2739 + $0x19] sm:$0xff]
  %v3735 = vld [vmem:[%s2739 + $0x21] sm:$0xff]
  %v3736 = vld [vmem:[%s2739 + $0x31] sm:$0xff]
  %v3737 = vld [vmem:[%s2739 + $0x39] sm:$0xff]
  %v3738 = vld [vmem:[%s2739 + $0x49] sm:$0xff]
  %v3739 = vld [vmem:[%s2739 + $0x51] sm:$0xff]
  %v3740 = vld [vmem:[%s2739 + $0x61] sm:$0xff]
  %v3741 = vld [vmem:[%s2739 + $0x69] sm:$0xff]
  %v3742 = vld [vmem:[%s2739 + $0x79] sm:$0xff]
  %v3743 = vld [vmem:[%s2739 + $0x81] sm:$0xff]
  %v3744 = vld [vmem:[%s2739 + $0x91] sm:$0xff]
  %v3745 = vld [vmem:[%s2739 + $0x99] sm:$0xff]
  %v3746 = vld [vmem:[%s2739 + $0xa9] sm:$0xff]
  %v3747 = vld [vmem:[%s2739 + $0xb1] sm:$0xff]
  %v3748 = vld [vmem:[%s2739 + $0xc1] sm:$0xff]
  %v3749 = vld [vmem:[%s2739 + $0xc9] sm:$0xff]
  %v3750 = vld [vmem:[%s2739 + $0xd9] sm:$0xff]
  %v3751 = vld [vmem:[%s2739 + $0xe1] sm:$0xff]
  %v3752 = vld [vmem:[%s2739 + $0xf1] sm:$0xff]
  %v3753 = vld [vmem:[%s2739 + $0xf9] sm:$0xff]
  %v3754 = vld [vmem:[%s2739 + $0x109] sm:$0xff]
  %v3755 = vld [vmem:[%s2739 + $0x111] sm:$0xff]
  %v3756 = vld [vmem:[%s2739 + $0x121] sm:$0xff]
  %v3757 = vld [vmem:[%s2739 + $0x129] sm:$0xff]
  %v3758 = vld [vmem:[%s2739 + $0x139] sm:$0xff]
  %v3759 = vld [vmem:[%s2739 + $0x141] sm:$0xff]
  %v3760 = vld [vmem:[%s2739 + $0x151] sm:$0xff]
  %v3761 = vld [vmem:[%s2739 + $0x159] sm:$0xff]
  %v3762 = vld [vmem:[%s2739 + $0x169] sm:$0xff]
  %v3763 = vld [vmem:[%s2739 + $0x171] sm:$0xff]
  %v3764 = vmin.f32 %v3188, %v3252
  %v3765 = vmin.f32 %v3189, %v3253
  %v3766 = vmin.f32 %v3190, %v3254
  %v3767 = vmin.f32 %v3191, %v3255
  %v3768 = vmin.f32 %v3192, %v3256
  %v3769 = vmin.f32 %v3193, %v3257
  %v3770 = vmin.f32 %v3194, %v3258
  %v3771 = vmin.f32 %v3195, %v3259
  %v3772 = vmin.f32 %v3196, %v3260
  %v3773 = vmin.f32 %v3197, %v3261
  %v3774 = vmin.f32 %v3198, %v3262
  %v3775 = vmin.f32 %v3199, %v3263
  %v3776 = vmin.f32 %v3200, %v3264
  %v3777 = vmin.f32 %v3201, %v3265
  %v3778 = vmin.f32 %v3202, %v3266
  %v3779 = vmin.f32 %v3203, %v3267
  %v3780 = vmin.f32 %v3204, %v3268
  %v3781 = vmin.f32 %v3205, %v3269
  %v3782 = vmin.f32 %v3206, %v3270
  %v3783 = vmin.f32 %v3207, %v3271
  %v3784 = vmin.f32 %v3208, %v3272
  %v3785 = vmin.f32 %v3209, %v3273
  %v3786 = vmin.f32 %v3210, %v3274
  %v3787 = vmin.f32 %v3211, %v3275
  %v3788 = vmin.f32 %v3212, %v3276
  %v3789 = vmin.f32 %v3213, %v3277
  %v3790 = vmin.f32 %v3214, %v3278
  %v3791 = vmin.f32 %v3215, %v3279
  %v3792 = vmin.f32 %v3216, %v3280
  %v3793 = vmin.f32 %v3217, %v3281
  %v3794 = vmin.f32 %v3218, %v3282
  %v3795 = vmin.f32 %v3219, %v3283
  %v3796 = vmax.f32 %v3188, %v3252
  %v3797 = vmax.f32 %v3189, %v3253
  %v3798 = vmax.f32 %v3190, %v3254
  %v3799 = vmax.f32 %v3191, %v3255
  %v3800 = vmax.f32 %v3192, %v3256
  %v3801 = vmax.f32 %v3193, %v3257
  %v3802 = vmax.f32 %v3194, %v3258
  %v3803 = vmax.f32 %v3195, %v3259
  %v3804 = vmax.f32 %v3196, %v3260
  %v3805 = vmax.f32 %v3197, %v3261
  %v3806 = vmax.f32 %v3198, %v3262
  %v3807 = vmax.f32 %v3199, %v3263
  %v3808 = vmax.f32 %v3200, %v3264
  %v3809 = vmax.f32 %v3201, %v3265
  %v3810 = vmax.f32 %v3202, %v3266
  %v3811 = vmax.f32 %v3203, %v3267
  %v3812 = vmax.f32 %v3204, %v3268
  %v3813 = vmax.f32 %v3205, %v3269
  %v3814 = vmax.f32 %v3206, %v3270
  %v3815 = vmax.f32 %v3207, %v3271
  %v3816 = vmax.f32 %v3208, %v3272
  %v3817 = vmax.f32 %v3209, %v3273
  %v3818 = vmax.f32 %v3210, %v3274
  %v3819 = vmax.f32 %v3211, %v3275
  %v3820 = vmax.f32 %v3212, %v3276
  %v3821 = vmax.f32 %v3213, %v3277
  %v3822 = vmax.f32 %v3214, %v3278
  %v3823 = vmax.f32 %v3215, %v3279
  %v3824 = vmax.f32 %v3216, %v3280
  %v3825 = vmax.f32 %v3217, %v3281
  %v3826 = vmax.f32 %v3218, %v3282
  %v3827 = vmax.f32 %v3219, %v3283
  %v3828 = vmin.f32 %v3316, %v3380
  %v3829 = vmin.f32 %v3317, %v3381
  %v3830 = vmin.f32 %v3318, %v3382
  %v3831 = vmin.f32 %v3319, %v3383
  %v3832 = vmin.f32 %v3320, %v3384
  %v3833 = vmin.f32 %v3321, %v3385
  %v3834 = vmin.f32 %v3322, %v3386
  %v3835 = vmin.f32 %v3323, %v3387
  %v3836 = vmin.f32 %v3324, %v3388
  %v3837 = vmin.f32 %v3325, %v3389
  %v3838 = vmin.f32 %v3326, %v3390
  %v3839 = vmin.f32 %v3327, %v3391
  %v3840 = vmin.f32 %v3328, %v3392
  %v3841 = vmin.f32 %v3329, %v3393
  %v3842 = vmin.f32 %v3330, %v3394
  %v3843 = vmin.f32 %v3331, %v3395
  %v3844 = vmin.f32 %v3332, %v3396
  %v3845 = vmin.f32 %v3333, %v3397
  %v3846 = vmin.f32 %v3334, %v3398
  %v3847 = vmin.f32 %v3335, %v3399
  %v3848 = vmin.f32 %v3336, %v3400
  %v3849 = vmin.f32 %v3337, %v3401
  %v3850 = vmin.f32 %v3338, %v3402
  %v3851 = vmin.f32 %v3339, %v3403
  %v3852 = vmin.f32 %v3340, %v3404
  %v3853 = vmin.f32 %v3341, %v3405
  %v3854 = vmin.f32 %v3342, %v3406
  %v3855 = vmin.f32 %v3343, %v3407
  %v3856 = vmin.f32 %v3344, %v3408
  %v3857 = vmin.f32 %v3345, %v3409
  %v3858 = vmin.f32 %v3346, %v3410
  %v3859 = vmin.f32 %v3347, %v3411
  %v3860 = vmax.f32 %v3316, %v3380
  %v3861 = vmax.f32 %v3317, %v3381
  %v3862 = vmax.f32 %v3318, %v3382
  %v3863 = vmax.f32 %v3319, %v3383
  %v3864 = vmax.f32 %v3320, %v3384
  %v3865 = vmax.f32 %v3321, %v3385
  %v3866 = vmax.f32 %v3322, %v3386
  %v3867 = vmax.f32 %v3323, %v3387
  %v3868 = vmax.f32 %v3324, %v3388
  %v3869 = vmax.f32 %v3325, %v3389
  %v3870 = vmax.f32 %v3326, %v3390
  %v3871 = vmax.f32 %v3327, %v3391
  %v3872 = vmax.f32 %v3328, %v3392
  %v3873 = vmax.f32 %v3329, %v3393
  %v3874 = vmax.f32 %v3330, %v3394
  %v3875 = vmax.f32 %v3331, %v3395
  %v3876 = vmax.f32 %v3332, %v3396
  %v3877 = vmax.f32 %v3333, %v3397
  %v3878 = vmax.f32 %v3334, %v3398
  %v3879 = vmax.f32 %v3335, %v3399
  %v3880 = vmax.f32 %v3336, %v3400
  %v3881 = vmax.f32 %v3337, %v3401
  %v3882 = vmax.f32 %v3338, %v3402
  %v3883 = vmax.f32 %v3339, %v3403
  %v3884 = vmax.f32 %v3340, %v3404
  %v3885 = vmax.f32 %v3341, %v3405
  %v3886 = vmax.f32 %v3342, %v3406
  %v3887 = vmax.f32 %v3343, %v3407
  %v3888 = vmax.f32 %v3344, %v3408
  %v3889 = vmax.f32 %v3345, %v3409
  %v3890 = vmax.f32 %v3346, %v3410
  %v3891 = vmax.f32 %v3347, %v3411
  %v3892 = vmin.f32 %v3412, %v3444
  %v3893 = vmin.f32 %v3413, %v3445
  %v3894 = vmin.f32 %v3414, %v3446
  %v3895 = vmin.f32 %v3415, %v3447
  %v3896 = vmin.f32 %v3416, %v3448
  %v3897 = vmin.f32 %v3417, %v3449
  %v3898 = vmin.f32 %v3418, %v3450
  %v3899 = vmin.f32 %v3419, %v3451
  %v3900 = vmin.f32 %v3420, %v3452
  %v3901 = vmin.f32 %v3421, %v3453
  %v3902 = vmin.f32 %v3422, %v3454
  %v3903 = vmin.f32 %v3423, %v3455
  %v3904 = vmin.f32 %v3424, %v3456
  %v3905 = vmin.f32 %v3425, %v3457
  %v3906 = vmin.f32 %v3426, %v3458
  %v3907 = vmin.f32 %v3427, %v3459
  %v3908 = vmin.f32 %v3428, %v3460
  %v3909 = vmin.f32 %v3429, %v3461
  %v3910 = vmin.f32 %v3430, %v3462
  %v3911 = vmin.f32 %v3431, %v3463
  %v3912 = vmin.f32 %v3432, %v3464
  %v3913 = vmin.f32 %v3433, %v3465
  %v3914 = vmin.f32 %v3434, %v3466
  %v3915 = vmin.f32 %v3435, %v3467
  %v3916 = vmin.f32 %v3436, %v3468
  %v3917 = vmin.f32 %v3437, %v3469
  %v3918 = vmin.f32 %v3438, %v3470
  %v3919 = vmin.f32 %v3439, %v3471
  %v3920 = vmin.f32 %v3440, %v3472
  %v3921 = vmin.f32 %v3441, %v3473
  %v3922 = vmin.f32 %v3442, %v3474
  %v3923 = vmin.f32 %v3443, %v3475
  %v3924 = vmax.f32 %v3412, %v3444
  %v3925 = vmax.f32 %v3413, %v3445
  %v3926 = vmax.f32 %v3414, %v3446
  %v3927 = vmax.f32 %v3415, %v3447
  %v3928 = vmax.f32 %v3416, %v3448
  %v3929 = vmax.f32 %v3417, %v3449
  %v3930 = vmax.f32 %v3418, %v3450
  %v3931 = vmax.f32 %v3419, %v3451
  %v3932 = vmax.f32 %v3420, %v3452
  %v3933 = vmax.f32 %v3421, %v3453
  %v3934 = vmax.f32 %v3422, %v3454
  %v3935 = vmax.f32 %v3423, %v3455
  %v3936 = vmax.f32 %v3424, %v3456
  %v3937 = vmax.f32 %v3425, %v3457
  %v3938 = vmax.f32 %v3426, %v3458
  %v3939 = vmax.f32 %v3427, %v3459
  %v3940 = vmax.f32 %v3428, %v3460
  %v3941 = vmax.f32 %v3429, %v3461
  %v3942 = vmax.f32 %v3430, %v3462
  %v3943 = vmax.f32 %v3431, %v3463
  %v3944 = vmax.f32 %v3432, %v3464
  %v3945 = vmax.f32 %v3433, %v3465
  %v3946 = vmax.f32 %v3434, %v3466
  %v3947 = vmax.f32 %v3435, %v3467
  %v3948 = vmax.f32 %v3436, %v3468
  %v3949 = vmax.f32 %v3437, %v3469
  %v3950 = vmax.f32 %v3438, %v3470
  %v3951 = vmax.f32 %v3439, %v3471
  %v3952 = vmax.f32 %v3440, %v3472
  %v3953 = vmax.f32 %v3441, %v3473
  %v3954 = vmax.f32 %v3442, %v3474
  %v3955 = vmax.f32 %v3443, %v3475
  %v3956 = vmin.f32 %v3508, %v3572
  %v3957 = vmin.f32 %v3509, %v3573
  %v3958 = vmin.f32 %v3510, %v3574
  %v3959 = vmin.f32 %v3511, %v3575
  %v3960 = vmin.f32 %v3512, %v3576
  %v3961 = vmin.f32 %v3513, %v3577
  %v3962 = vmin.f32 %v3514, %v3578
  %v3963 = vmin.f32 %v3515, %v3579
  %v3964 = vmin.f32 %v3516, %v3580
  %v3965 = vmin.f32 %v3517, %v3581
  %v3966 = vmin.f32 %v3518, %v3582
  %v3967 = vmin.f32 %v3519, %v3583
  %v3968 = vmin.f32 %v3520, %v3584
  %v3969 = vmin.f32 %v3521, %v3585
  %v3970 = vmin.f32 %v3522, %v3586
  %v3971 = vmin.f32 %v3523, %v3587
  %v3972 = vmin.f32 %v3524, %v3588
  %v3973 = vmin.f32 %v3525, %v3589
  %v3974 = vmin.f32 %v3526, %v3590
  %v3975 = vmin.f32 %v3527, %v3591
  %v3976 = vmin.f32 %v3528, %v3592
  %v3977 = vmin.f32 %v3529, %v3593
  %v3978 = vmin.f32 %v3530, %v3594
  %v3979 = vmin.f32 %v3531, %v3595
  %v3980 = vmin.f32 %v3532, %v3596
  %v3981 = vmin.f32 %v3533, %v3597
  %v3982 = vmin.f32 %v3534, %v3598
  %v3983 = vmin.f32 %v3535, %v3599
  %v3984 = vmin.f32 %v3536, %v3600
  %v3985 = vmin.f32 %v3537, %v3601
  %v3986 = vmin.f32 %v3538, %v3602
  %v3987 = vmin.f32 %v3539, %v3603
  %v3988 = vmax.f32 %v3508, %v3572
  %v3989 = vmax.f32 %v3509, %v3573
  %v3990 = vmax.f32 %v3510, %v3574
  %v3991 = vmax.f32 %v3511, %v3575
  %v3992 = vmax.f32 %v3512, %v3576
  %v3993 = vmax.f32 %v3513, %v3577
  %v3994 = vmax.f32 %v3514, %v3578
  %v3995 = vmax.f32 %v3515, %v3579
  %v3996 = vmax.f32 %v3516, %v3580
  %v3997 = vmax.f32 %v3517, %v3581
  %v3998 = vmax.f32 %v3518, %v3582
  %v3999 = vmax.f32 %v3519, %v3583
  %v4000 = vmax.f32 %v3520, %v3584
  %v4001 = vmax.f32 %v3521, %v3585
  %v4002 = vmax.f32 %v3522, %v3586
  %v4003 = vmax.f32 %v3523, %v3587
  %v4004 = vmax.f32 %v3524, %v3588
  %v4005 = vmax.f32 %v3525, %v3589
  %v4006 = vmax.f32 %v3526, %v3590
  %v4007 = vmax.f32 %v3527, %v3591
  %v4008 = vmax.f32 %v3528, %v3592
  %v4009 = vmax.f32 %v3529, %v3593
  %v4010 = vmax.f32 %v3530, %v3594
  %v4011 = vmax.f32 %v3531, %v3595
  %v4012 = vmax.f32 %v3532, %v3596
  %v4013 = vmax.f32 %v3533, %v3597
  %v4014 = vmax.f32 %v3534, %v3598
  %v4015 = vmax.f32 %v3535, %v3599
  %v4016 = vmax.f32 %v3536, %v3600
  %v4017 = vmax.f32 %v3537, %v3601
  %v4018 = vmax.f32 %v3538, %v3602
  %v4019 = vmax.f32 %v3539, %v3603
  %v4020 = vmin.f32 %v3636, %v3700
  %v4021 = vmin.f32 %v3637, %v3701
  %v4022 = vmin.f32 %v3638, %v3702
  %v4023 = vmin.f32 %v3639, %v3703
  %v4024 = vmin.f32 %v3640, %v3704
  %v4025 = vmin.f32 %v3641, %v3705
  %v4026 = vmin.f32 %v3642, %v3706
  %v4027 = vmin.f32 %v3643, %v3707
  %v4028 = vmin.f32 %v3644, %v3708
  %v4029 = vmin.f32 %v3645, %v3709
  %v4030 = vmin.f32 %v3646, %v3710
  %v4031 = vmin.f32 %v3647, %v3711
  %v4032 = vmin.f32 %v3648, %v3712
  %v4033 = vmin.f32 %v3649, %v3713
  %v4034 = vmin.f32 %v3650, %v3714
  %v4035 = vmin.f32 %v3651, %v3715
  %v4036 = vmin.f32 %v3652, %v3716
  %v4037 = vmin.f32 %v3653, %v3717
  %v4038 = vmin.f32 %v3654, %v3718
  %v4039 = vmin.f32 %v3655, %v3719
  %v4040 = vmin.f32 %v3656, %v3720
  %v4041 = vmin.f32 %v3657, %v3721
  %v4042 = vmin.f32 %v3658, %v3722
  %v4043 = vmin.f32 %v3659, %v3723
  %v4044 = vmin.f32 %v3660, %v3724
  %v4045 = vmin.f32 %v3661, %v3725
  %v4046 = vmin.f32 %v3662, %v3726
  %v4047 = vmin.f32 %v3663, %v3727
  %v4048 = vmin.f32 %v3664, %v3728
  %v4049 = vmin.f32 %v3665, %v3729
  %v4050 = vmin.f32 %v3666, %v3730
  %v4051 = vmin.f32 %v3667, %v3731
  %v4052 = vmax.f32 %v3636, %v3700
  %v4053 = vmax.f32 %v3637, %v3701
  %v4054 = vmax.f32 %v3638, %v3702
  %v4055 = vmax.f32 %v3639, %v3703
  %v4056 = vmax.f32 %v3640, %v3704
  %v4057 = vmax.f32 %v3641, %v3705
  %v4058 = vmax.f32 %v3642, %v3706
  %v4059 = vmax.f32 %v3643, %v3707
  %v4060 = vmax.f32 %v3644, %v3708
  %v4061 = vmax.f32 %v3645, %v3709
  %v4062 = vmax.f32 %v3646, %v3710
  %v4063 = vmax.f32 %v3647, %v3711
  %v4064 = vmax.f32 %v3648, %v3712
  %v4065 = vmax.f32 %v3649, %v3713
  %v4066 = vmax.f32 %v3650, %v3714
  %v4067 = vmax.f32 %v3651, %v3715
  %v4068 = vmax.f32 %v3652, %v3716
  %v4069 = vmax.f32 %v3653, %v3717
  %v4070 = vmax.f32 %v3654, %v3718
  %v4071 = vmax.f32 %v3655, %v3719
  %v4072 = vmax.f32 %v3656, %v3720
  %v4073 = vmax.f32 %v3657, %v3721
  %v4074 = vmax.f32 %v3658, %v3722
  %v4075 = vmax.f32 %v3659, %v3723
  %v4076 = vmax.f32 %v3660, %v3724
  %v4077 = vmax.f32 %v3661, %v3725
  %v4078 = vmax.f32 %v3662, %v3726
  %v4079 = vmax.f32 %v3663, %v3727
  %v4080 = vmax.f32 %v3664, %v3728
  %v4081 = vmax.f32 %v3665, %v3729
  %v4082 = vmax.f32 %v3666, %v3730
  %v4083 = vmax.f32 %v3667, %v3731
  %v4084 = vmin.f32 %v3764, %v3828
  %v4085 = vmin.f32 %v3765, %v3829
  %v4086 = vmin.f32 %v3766, %v3830
  %v4087 = vmin.f32 %v3767, %v3831
  %v4088 = vmin.f32 %v3768, %v3832
  %v4089 = vmin.f32 %v3769, %v3833
  %v4090 = vmin.f32 %v3770, %v3834
  %v4091 = vmin.f32 %v3771, %v3835
  %v4092 = vmin.f32 %v3772, %v3836
  %v4093 = vmin.f32 %v3773, %v3837
  %v4094 = vmin.f32 %v3774, %v3838
  %v4095 = vmin.f32 %v3775, %v3839
  %v4096 = vmin.f32 %v3776, %v3840
  %v4097 = vmin.f32 %v3777, %v3841
  %v4098 = vmin.f32 %v3778, %v3842
  %v4099 = vmin.f32 %v3779, %v3843
  %v4100 = vmin.f32 %v3780, %v3844
  %v4101 = vmin.f32 %v3781, %v3845
  %v4102 = vmin.f32 %v3782, %v3846
  %v4103 = vmin.f32 %v3783, %v3847
  %v4104 = vmin.f32 %v3784, %v3848
  %v4105 = vmin.f32 %v3785, %v3849
  %v4106 = vmin.f32 %v3786, %v3850
  %v4107 = vmin.f32 %v3787, %v3851
  %v4108 = vmin.f32 %v3788, %v3852
  %v4109 = vmin.f32 %v3789, %v3853
  %v4110 = vmin.f32 %v3790, %v3854
  %v4111 = vmin.f32 %v3791, %v3855
  %v4112 = vmin.f32 %v3792, %v3856
  %v4113 = vmin.f32 %v3793, %v3857
  %v4114 = vmin.f32 %v3794, %v3858
  %v4115 = vmin.f32 %v3795, %v3859
  %v4116 = vmax.f32 %v3764, %v3828
  %v4117 = vmax.f32 %v3765, %v3829
  %v4118 = vmax.f32 %v3766, %v3830
  %v4119 = vmax.f32 %v3767, %v3831
  %v4120 = vmax.f32 %v3768, %v3832
  %v4121 = vmax.f32 %v3769, %v3833
  %v4122 = vmax.f32 %v3770, %v3834
  %v4123 = vmax.f32 %v3771, %v3835
  %v4124 = vmax.f32 %v3772, %v3836
  %v4125 = vmax.f32 %v3773, %v3837
  %v4126 = vmax.f32 %v3774, %v3838
  %v4127 = vmax.f32 %v3775, %v3839
  %v4128 = vmax.f32 %v3776, %v3840
  %v4129 = vmax.f32 %v3777, %v3841
  %v4130 = vmax.f32 %v3778, %v3842
  %v4131 = vmax.f32 %v3779, %v3843
  %v4132 = vmax.f32 %v3780, %v3844
  %v4133 = vmax.f32 %v3781, %v3845
  %v4134 = vmax.f32 %v3782, %v3846
  %v4135 = vmax.f32 %v3783, %v3847
  %v4136 = vmax.f32 %v3784, %v3848
  %v4137 = vmax.f32 %v3785, %v3849
  %v4138 = vmax.f32 %v3786, %v3850
  %v4139 = vmax.f32 %v3787, %v3851
  %v4140 = vmax.f32 %v3788, %v3852
  %v4141 = vmax.f32 %v3789, %v3853
  %v4142 = vmax.f32 %v3790, %v3854
  %v4143 = vmax.f32 %v3791, %v3855
  %v4144 = vmax.f32 %v3792, %v3856
  %v4145 = vmax.f32 %v3793, %v3857
  %v4146 = vmax.f32 %v3794, %v3858
  %v4147 = vmax.f32 %v3795, %v3859
  %v4148 = vmin.f32 %v4084, %v3892
  %v4149 = vmin.f32 %v4085, %v3893
  %v4150 = vmin.f32 %v4086, %v3894
  %v4151 = vmin.f32 %v4087, %v3895
  %v4152 = vmin.f32 %v4088, %v3896
  %v4153 = vmin.f32 %v4089, %v3897
  %v4154 = vmin.f32 %v4090, %v3898
  %v4155 = vmin.f32 %v4091, %v3899
  %v4156 = vmin.f32 %v4092, %v3900
  %v4157 = vmin.f32 %v4093, %v3901
  %v4158 = vmin.f32 %v4094, %v3902
  %v4159 = vmin.f32 %v4095, %v3903
  %v4160 = vmin.f32 %v4096, %v3904
  %v4161 = vmin.f32 %v4097, %v3905
  %v4162 = vmin.f32 %v4098, %v3906
  %v4163 = vmin.f32 %v4099, %v3907
  %v4164 = vmin.f32 %v4100, %v3908
  %v4165 = vmin.f32 %v4101, %v3909
  %v4166 = vmin.f32 %v4102, %v3910
  %v4167 = vmin.f32 %v4103, %v3911
  %v4168 = vmin.f32 %v4104, %v3912
  %v4169 = vmin.f32 %v4105, %v3913
  %v4170 = vmin.f32 %v4106, %v3914
  %v4171 = vmin.f32 %v4107, %v3915
  %v4172 = vmin.f32 %v4108, %v3916
  %v4173 = vmin.f32 %v4109, %v3917
  %v4174 = vmin.f32 %v4110, %v3918
  %v4175 = vmin.f32 %v4111, %v3919
  %v4176 = vmin.f32 %v4112, %v3920
  %v4177 = vmin.f32 %v4113, %v3921
  %v4178 = vmin.f32 %v4114, %v3922
  %v4179 = vmin.f32 %v4115, %v3923
  %v4180 = vmax.f32 %v4084, %v3892
  %v4181 = vmax.f32 %v4085, %v3893
  %v4182 = vmax.f32 %v4086, %v3894
  %v4183 = vmax.f32 %v4087, %v3895
  %v4184 = vmax.f32 %v4088, %v3896
  %v4185 = vmax.f32 %v4089, %v3897
  %v4186 = vmax.f32 %v4090, %v3898
  %v4187 = vmax.f32 %v4091, %v3899
  %v4188 = vmax.f32 %v4092, %v3900
  %v4189 = vmax.f32 %v4093, %v3901
  %v4190 = vmax.f32 %v4094, %v3902
  %v4191 = vmax.f32 %v4095, %v3903
  %v4192 = vmax.f32 %v4096, %v3904
  %v4193 = vmax.f32 %v4097, %v3905
  %v4194 = vmax.f32 %v4098, %v3906
  %v4195 = vmax.f32 %v4099, %v3907
  %v4196 = vmax.f32 %v4100, %v3908
  %v4197 = vmax.f32 %v4101, %v3909
  %v4198 = vmax.f32 %v4102, %v3910
  %v4199 = vmax.f32 %v4103, %v3911
  %v4200 = vmax.f32 %v4104, %v3912
  %v4201 = vmax.f32 %v4105, %v3913
  %v4202 = vmax.f32 %v4106, %v3914
  %v4203 = vmax.f32 %v4107, %v3915
  %v4204 = vmax.f32 %v4108, %v3916
  %v4205 = vmax.f32 %v4109, %v3917
  %v4206 = vmax.f32 %v4110, %v3918
  %v4207 = vmax.f32 %v4111, %v3919
  %v4208 = vmax.f32 %v4112, %v3920
  %v4209 = vmax.f32 %v4113, %v3921
  %v4210 = vmax.f32 %v4114, %v3922
  %v4211 = vmax.f32 %v4115, %v3923
  %v4212 = vmin.f32 %v4148, %v3956
  %v4213 = vmin.f32 %v4149, %v3957
  %v4214 = vmin.f32 %v4150, %v3958
  %v4215 = vmin.f32 %v4151, %v3959
  %v4216 = vmin.f32 %v4152, %v3960
  %v4217 = vmin.f32 %v4153, %v3961
  %v4218 = vmin.f32 %v4154, %v3962
  %v4219 = vmin.f32 %v4155, %v3963
  %v4220 = vmin.f32 %v4156, %v3964
  %v4221 = vmin.f32 %v4157, %v3965
  %v4222 = vmin.f32 %v4158, %v3966
  %v4223 = vmin.f32 %v4159, %v3967
  %v4224 = vmin.f32 %v4160, %v3968
  %v4225 = vmin.f32 %v4161, %v3969
  %v4226 = vmin.f32 %v4162, %v3970
  %v4227 = vmin.f32 %v4163, %v3971
  %v4228 = vmin.f32 %v4164, %v3972
  %v4229 = vmin.f32 %v4165, %v3973
  %v4230 = vmin.f32 %v4166, %v3974
  %v4231 = vmin.f32 %v4167, %v3975
  %v4232 = vmin.f32 %v4168, %v3976
  %v4233 = vmin.f32 %v4169, %v3977
  %v4234 = vmin.f32 %v4170, %v3978
  %v4235 = vmin.f32 %v4171, %v3979
  %v4236 = vmin.f32 %v4172, %v3980
  %v4237 = vmin.f32 %v4173, %v3981
  %v4238 = vmin.f32 %v4174, %v3982
  %v4239 = vmin.f32 %v4175, %v3983
  %v4240 = vmin.f32 %v4176, %v3984
  %v4241 = vmin.f32 %v4177, %v3985
  %v4242 = vmin.f32 %v4178, %v3986
  %v4243 = vmin.f32 %v4179, %v3987
  %v4244 = vmax.f32 %v4148, %v3956
  %v4245 = vmax.f32 %v4149, %v3957
  %v4246 = vmax.f32 %v4150, %v3958
  %v4247 = vmax.f32 %v4151, %v3959
  %v4248 = vmax.f32 %v4152, %v3960
  %v4249 = vmax.f32 %v4153, %v3961
  %v4250 = vmax.f32 %v4154, %v3962
  %v4251 = vmax.f32 %v4155, %v3963
  %v4252 = vmax.f32 %v4156, %v3964
  %v4253 = vmax.f32 %v4157, %v3965
  %v4254 = vmax.f32 %v4158, %v3966
  %v4255 = vmax.f32 %v4159, %v3967
  %v4256 = vmax.f32 %v4160, %v3968
  %v4257 = vmax.f32 %v4161, %v3969
  %v4258 = vmax.f32 %v4162, %v3970
  %v4259 = vmax.f32 %v4163, %v3971
  %v4260 = vmax.f32 %v4164, %v3972
  %v4261 = vmax.f32 %v4165, %v3973
  %v4262 = vmax.f32 %v4166, %v3974
  %v4263 = vmax.f32 %v4167, %v3975
  %v4264 = vmax.f32 %v4168, %v3976
  %v4265 = vmax.f32 %v4169, %v3977
  %v4266 = vmax.f32 %v4170, %v3978
  %v4267 = vmax.f32 %v4171, %v3979
  %v4268 = vmax.f32 %v4172, %v3980
  %v4269 = vmax.f32 %v4173, %v3981
  %v4270 = vmax.f32 %v4174, %v3982
  %v4271 = vmax.f32 %v4175, %v3983
  %v4272 = vmax.f32 %v4176, %v3984
  %v4273 = vmax.f32 %v4177, %v3985
  %v4274 = vmax.f32 %v4178, %v3986
  %v4275 = vmax.f32 %v4179, %v3987
  %v4276 = vmin.f32 %v4212, %v4020
  %v4277 = vmin.f32 %v4213, %v4021
  %v4278 = vmin.f32 %v4214, %v4022
  %v4279 = vmin.f32 %v4215, %v4023
  %v4280 = vmin.f32 %v4216, %v4024
  %v4281 = vmin.f32 %v4217, %v4025
  %v4282 = vmin.f32 %v4218, %v4026
  %v4283 = vmin.f32 %v4219, %v4027
  %v4284 = vmin.f32 %v4220, %v4028
  %v4285 = vmin.f32 %v4221, %v4029
  %v4286 = vmin.f32 %v4222, %v4030
  %v4287 = vmin.f32 %v4223, %v4031
  %v4288 = vmin.f32 %v4224, %v4032
  %v4289 = vmin.f32 %v4225, %v4033
  %v4290 = vmin.f32 %v4226, %v4034
  %v4291 = vmin.f32 %v4227, %v4035
  %v4292 = vmin.f32 %v4228, %v4036
  %v4293 = vmin.f32 %v4229, %v4037
  %v4294 = vmin.f32 %v4230, %v4038
  %v4295 = vmin.f32 %v4231, %v4039
  %v4296 = vmin.f32 %v4232, %v4040
  %v4297 = vmin.f32 %v4233, %v4041
  %v4298 = vmin.f32 %v4234, %v4042
  %v4299 = vmin.f32 %v4235, %v4043
  %v4300 = vmin.f32 %v4236, %v4044
  %v4301 = vmin.f32 %v4237, %v4045
  %v4302 = vmin.f32 %v4238, %v4046
  %v4303 = vmin.f32 %v4239, %v4047
  %v4304 = vmin.f32 %v4240, %v4048
  %v4305 = vmin.f32 %v4241, %v4049
  %v4306 = vmin.f32 %v4242, %v4050
  %v4307 = vmin.f32 %v4243, %v4051
  %v4308 = vmax.f32 %v4212, %v4020
  %v4309 = vmax.f32 %v4213, %v4021
  %v4310 = vmax.f32 %v4214, %v4022
  %v4311 = vmax.f32 %v4215, %v4023
  %v4312 = vmax.f32 %v4216, %v4024
  %v4313 = vmax.f32 %v4217, %v4025
  %v4314 = vmax.f32 %v4218, %v4026
  %v4315 = vmax.f32 %v4219, %v4027
  %v4316 = vmax.f32 %v4220, %v4028
  %v4317 = vmax.f32 %v4221, %v4029
  %v4318 = vmax.f32 %v4222, %v4030
  %v4319 = vmax.f32 %v4223, %v4031
  %v4320 = vmax.f32 %v4224, %v4032
  %v4321 = vmax.f32 %v4225, %v4033
  %v4322 = vmax.f32 %v4226, %v4034
  %v4323 = vmax.f32 %v4227, %v4035
  %v4324 = vmax.f32 %v4228, %v4036
  %v4325 = vmax.f32 %v4229, %v4037
  %v4326 = vmax.f32 %v4230, %v4038
  %v4327 = vmax.f32 %v4231, %v4039
  %v4328 = vmax.f32 %v4232, %v4040
  %v4329 = vmax.f32 %v4233, %v4041
  %v4330 = vmax.f32 %v4234, %v4042
  %v4331 = vmax.f32 %v4235, %v4043
  %v4332 = vmax.f32 %v4236, %v4044
  %v4333 = vmax.f32 %v4237, %v4045
  %v4334 = vmax.f32 %v4238, %v4046
  %v4335 = vmax.f32 %v4239, %v4047
  %v4336 = vmax.f32 %v4240, %v4048
  %v4337 = vmax.f32 %v4241, %v4049
  %v4338 = vmax.f32 %v4242, %v4050
  %v4339 = vmax.f32 %v4243, %v4051
  %v4340 = vmax.f32 %v4276, %v3732
  %v4341 = vmax.f32 %v4277, %v3733
  %v4342 = vmax.f32 %v4278, %v3734
  %v4343 = vmax.f32 %v4279, %v3735
  %v4344 = vmax.f32 %v4280, %v3736
  %v4345 = vmax.f32 %v4281, %v3737
  %v4346 = vmax.f32 %v4282, %v3738
  %v4347 = vmax.f32 %v4283, %v3739
  %v4348 = vmax.f32 %v4284, %v3740
  %v4349 = vmax.f32 %v4285, %v3741
  %v4350 = vmax.f32 %v4286, %v3742
  %v4351 = vmax.f32 %v4287, %v3743
  %v4352 = vmax.f32 %v4288, %v3744
  %v4353 = vmax.f32 %v4289, %v3745
  %v4354 = vmax.f32 %v4290, %v3746
  %v4355 = vmax.f32 %v4291, %v3747
  %v4356 = vmax.f32 %v4292, %v3748
  %v4357 = vmax.f32 %v4293, %v3749
  %v4358 = vmax.f32 %v4294, %v3750
  %v4359 = vmax.f32 %v4295, %v3751
  %v4360 = vmax.f32 %v4296, %v3752
  %v4361 = vmax.f32 %v4297, %v3753
  %v4362 = vmax.f32 %v4298, %v3754
  %v4363 = vmax.f32 %v4299, %v3755
  %v4364 = vmax.f32 %v4300, %v3756
  %v4365 = vmax.f32 %v4301, %v3757
  %v4366 = vmax.f32 %v4302, %v3758
  %v4367 = vmax.f32 %v4303, %v3759
  %v4368 = vmax.f32 %v4304, %v3760
  %v4369 = vmax.f32 %v4305, %v3761
  %v4370 = vmax.f32 %v4306, %v3762
  %v4371 = vmax.f32 %v4307, %v3763
  %v4372 = vmin.f32 %v3796, %v3860
  %v4373 = vmin.f32 %v3797, %v3861
  %v4374 = vmin.f32 %v3798, %v3862
  %v4375 = vmin.f32 %v3799, %v3863
  %v4376 = vmin.f32 %v3800, %v3864
  %v4377 = vmin.f32 %v3801, %v3865
  %v4378 = vmin.f32 %v3802, %v3866
  %v4379 = vmin.f32 %v3803, %v3867
  %v4380 = vmin.f32 %v3804, %v3868
  %v4381 = vmin.f32 %v3805, %v3869
  %v4382 = vmin.f32 %v3806, %v3870
  %v4383 = vmin.f32 %v3807, %v3871
  %v4384 = vmin.f32 %v3808, %v3872
  %v4385 = vmin.f32 %v3809, %v3873
  %v4386 = vmin.f32 %v3810, %v3874
  %v4387 = vmin.f32 %v3811, %v3875
  %v4388 = vmin.f32 %v3812, %v3876
  %v4389 = vmin.f32 %v3813, %v3877
  %v4390 = vmin.f32 %v3814, %v3878
  %v4391 = vmin.f32 %v3815, %v3879
  %v4392 = vmin.f32 %v3816, %v3880
  %v4393 = vmin.f32 %v3817, %v3881
  %v4394 = vmin.f32 %v3818, %v3882
  %v4395 = vmin.f32 %v3819, %v3883
  %v4396 = vmin.f32 %v3820, %v3884
  %v4397 = vmin.f32 %v3821, %v3885
  %v4398 = vmin.f32 %v3822, %v3886
  %v4399 = vmin.f32 %v3823, %v3887
  %v4400 = vmin.f32 %v3824, %v3888
  %v4401 = vmin.f32 %v3825, %v3889
  %v4402 = vmin.f32 %v3826, %v3890
  %v4403 = vmin.f32 %v3827, %v3891
  %v4404 = vmax.f32 %v3796, %v3860
  %v4405 = vmax.f32 %v3797, %v3861
  %v4406 = vmax.f32 %v3798, %v3862
  %v4407 = vmax.f32 %v3799, %v3863
  %v4408 = vmax.f32 %v3800, %v3864
  %v4409 = vmax.f32 %v3801, %v3865
  %v4410 = vmax.f32 %v3802, %v3866
  %v4411 = vmax.f32 %v3803, %v3867
  %v4412 = vmax.f32 %v3804, %v3868
  %v4413 = vmax.f32 %v3805, %v3869
  %v4414 = vmax.f32 %v3806, %v3870
  %v4415 = vmax.f32 %v3807, %v3871
  %v4416 = vmax.f32 %v3808, %v3872
  %v4417 = vmax.f32 %v3809, %v3873
  %v4418 = vmax.f32 %v3810, %v3874
  %v4419 = vmax.f32 %v3811, %v3875
  %v4420 = vmax.f32 %v3812, %v3876
  %v4421 = vmax.f32 %v3813, %v3877
  %v4422 = vmax.f32 %v3814, %v3878
  %v4423 = vmax.f32 %v3815, %v3879
  %v4424 = vmax.f32 %v3816, %v3880
  %v4425 = vmax.f32 %v3817, %v3881
  %v4426 = vmax.f32 %v3818, %v3882
  %v4427 = vmax.f32 %v3819, %v3883
  %v4428 = vmax.f32 %v3820, %v3884
  %v4429 = vmax.f32 %v3821, %v3885
  %v4430 = vmax.f32 %v3822, %v3886
  %v4431 = vmax.f32 %v3823, %v3887
  %v4432 = vmax.f32 %v3824, %v3888
  %v4433 = vmax.f32 %v3825, %v3889
  %v4434 = vmax.f32 %v3826, %v3890
  %v4435 = vmax.f32 %v3827, %v3891
  %v4436 = vmin.f32 %v4404, %v3924
  %v4437 = vmin.f32 %v4405, %v3925
  %v4438 = vmin.f32 %v4406, %v3926
  %v4439 = vmin.f32 %v4407, %v3927
  %v4440 = vmin.f32 %v4408, %v3928
  %v4441 = vmin.f32 %v4409, %v3929
  %v4442 = vmin.f32 %v4410, %v3930
  %v4443 = vmin.f32 %v4411, %v3931
  %v4444 = vmin.f32 %v4412, %v3932
  %v4445 = vmin.f32 %v4413, %v3933
  %v4446 = vmin.f32 %v4414, %v3934
  %v4447 = vmin.f32 %v4415, %v3935
  %v4448 = vmin.f32 %v4416, %v3936
  %v4449 = vmin.f32 %v4417, %v3937
  %v4450 = vmin.f32 %v4418, %v3938
  %v4451 = vmin.f32 %v4419, %v3939
  %v4452 = vmin.f32 %v4420, %v3940
  %v4453 = vmin.f32 %v4421, %v3941
  %v4454 = vmin.f32 %v4422, %v3942
  %v4455 = vmin.f32 %v4423, %v3943
  %v4456 = vmin.f32 %v4424, %v3944
  %v4457 = vmin.f32 %v4425, %v3945
  %v4458 = vmin.f32 %v4426, %v3946
  %v4459 = vmin.f32 %v4427, %v3947
  %v4460 = vmin.f32 %v4428, %v3948
  %v4461 = vmin.f32 %v4429, %v3949
  %v4462 = vmin.f32 %v4430, %v3950
  %v4463 = vmin.f32 %v4431, %v3951
  %v4464 = vmin.f32 %v4432, %v3952
  %v4465 = vmin.f32 %v4433, %v3953
  %v4466 = vmin.f32 %v4434, %v3954
  %v4467 = vmin.f32 %v4435, %v3955
  %v4468 = vmax.f32 %v4404, %v3924
  %v4469 = vmax.f32 %v4405, %v3925
  %v4470 = vmax.f32 %v4406, %v3926
  %v4471 = vmax.f32 %v4407, %v3927
  %v4472 = vmax.f32 %v4408, %v3928
  %v4473 = vmax.f32 %v4409, %v3929
  %v4474 = vmax.f32 %v4410, %v3930
  %v4475 = vmax.f32 %v4411, %v3931
  %v4476 = vmax.f32 %v4412, %v3932
  %v4477 = vmax.f32 %v4413, %v3933
  %v4478 = vmax.f32 %v4414, %v3934
  %v4479 = vmax.f32 %v4415, %v3935
  %v4480 = vmax.f32 %v4416, %v3936
  %v4481 = vmax.f32 %v4417, %v3937
  %v4482 = vmax.f32 %v4418, %v3938
  %v4483 = vmax.f32 %v4419, %v3939
  %v4484 = vmax.f32 %v4420, %v3940
  %v4485 = vmax.f32 %v4421, %v3941
  %v4486 = vmax.f32 %v4422, %v3942
  %v4487 = vmax.f32 %v4423, %v3943
  %v4488 = vmax.f32 %v4424, %v3944
  %v4489 = vmax.f32 %v4425, %v3945
  %v4490 = vmax.f32 %v4426, %v3946
  %v4491 = vmax.f32 %v4427, %v3947
  %v4492 = vmax.f32 %v4428, %v3948
  %v4493 = vmax.f32 %v4429, %v3949
  %v4494 = vmax.f32 %v4430, %v3950
  %v4495 = vmax.f32 %v4431, %v3951
  %v4496 = vmax.f32 %v4432, %v3952
  %v4497 = vmax.f32 %v4433, %v3953
  %v4498 = vmax.f32 %v4434, %v3954
  %v4499 = vmax.f32 %v4435, %v3955
  %v4500 = vmin.f32 %v4468, %v3988
  %v4501 = vmin.f32 %v4469, %v3989
  %v4502 = vmin.f32 %v4470, %v3990
  %v4503 = vmin.f32 %v4471, %v3991
  %v4504 = vmin.f32 %v4472, %v3992
  %v4505 = vmin.f32 %v4473, %v3993
  %v4506 = vmin.f32 %v4474, %v3994
  %v4507 = vmin.f32 %v4475, %v3995
  %v4508 = vmin.f32 %v4476, %v3996
  %v4509 = vmin.f32 %v4477, %v3997
  %v4510 = vmin.f32 %v4478, %v3998
  %v4511 = vmin.f32 %v4479, %v3999
  %v4512 = vmin.f32 %v4480, %v4000
  %v4513 = vmin.f32 %v4481, %v4001
  %v4514 = vmin.f32 %v4482, %v4002
  %v4515 = vmin.f32 %v4483, %v4003
  %v4516 = vmin.f32 %v4484, %v4004
  %v4517 = vmin.f32 %v4485, %v4005
  %v4518 = vmin.f32 %v4486, %v4006
  %v4519 = vmin.f32 %v4487, %v4007
  %v4520 = vmin.f32 %v4488, %v4008
  %v4521 = vmin.f32 %v4489, %v4009
  %v4522 = vmin.f32 %v4490, %v4010
  %v4523 = vmin.f32 %v4491, %v4011
  %v4524 = vmin.f32 %v4492, %v4012
  %v4525 = vmin.f32 %v4493, %v4013
  %v4526 = vmin.f32 %v4494, %v4014
  %v4527 = vmin.f32 %v4495, %v4015
  %v4528 = vmin.f32 %v4496, %v4016
  %v4529 = vmin.f32 %v4497, %v4017
  %v4530 = vmin.f32 %v4498, %v4018
  %v4531 = vmin.f32 %v4499, %v4019
  %v4532 = vmax.f32 %v4468, %v3988
  %v4533 = vmax.f32 %v4469, %v3989
  %v4534 = vmax.f32 %v4470, %v3990
  %v4535 = vmax.f32 %v4471, %v3991
  %v4536 = vmax.f32 %v4472, %v3992
  %v4537 = vmax.f32 %v4473, %v3993
  %v4538 = vmax.f32 %v4474, %v3994
  %v4539 = vmax.f32 %v4475, %v3995
  %v4540 = vmax.f32 %v4476, %v3996
  %v4541 = vmax.f32 %v4477, %v3997
  %v4542 = vmax.f32 %v4478, %v3998
  %v4543 = vmax.f32 %v4479, %v3999
  %v4544 = vmax.f32 %v4480, %v4000
  %v4545 = vmax.f32 %v4481, %v4001
  %v4546 = vmax.f32 %v4482, %v4002
  %v4547 = vmax.f32 %v4483, %v4003
  %v4548 = vmax.f32 %v4484, %v4004
  %v4549 = vmax.f32 %v4485, %v4005
  %v4550 = vmax.f32 %v4486, %v4006
  %v4551 = vmax.f32 %v4487, %v4007
  %v4552 = vmax.f32 %v4488, %v4008
  %v4553 = vmax.f32 %v4489, %v4009
  %v4554 = vmax.f32 %v4490, %v4010
  %v4555 = vmax.f32 %v4491, %v4011
  %v4556 = vmax.f32 %v4492, %v4012
  %v4557 = vmax.f32 %v4493, %v4013
  %v4558 = vmax.f32 %v4494, %v4014
  %v4559 = vmax.f32 %v4495, %v4015
  %v4560 = vmax.f32 %v4496, %v4016
  %v4561 = vmax.f32 %v4497, %v4017
  %v4562 = vmax.f32 %v4498, %v4018
  %v4563 = vmax.f32 %v4499, %v4019
  %v4564 = vmin.f32 %v4532, %v4052
  %v4565 = vmin.f32 %v4533, %v4053
  %v4566 = vmin.f32 %v4534, %v4054
  %v4567 = vmin.f32 %v4535, %v4055
  %v4568 = vmin.f32 %v4536, %v4056
  %v4569 = vmin.f32 %v4537, %v4057
  %v4570 = vmin.f32 %v4538, %v4058
  %v4571 = vmin.f32 %v4539, %v4059
  %v4572 = vmin.f32 %v4540, %v4060
  %v4573 = vmin.f32 %v4541, %v4061
  %v4574 = vmin.f32 %v4542, %v4062
  %v4575 = vmin.f32 %v4543, %v4063
  %v4576 = vmin.f32 %v4544, %v4064
  %v4577 = vmin.f32 %v4545, %v4065
  %v4578 = vmin.f32 %v4546, %v4066
  %v4579 = vmin.f32 %v4547, %v4067
  %v4580 = vmin.f32 %v4548, %v4068
  %v4581 = vmin.f32 %v4549, %v4069
  %v4582 = vmin.f32 %v4550, %v4070
  %v4583 = vmin.f32 %v4551, %v4071
  %v4584 = vmin.f32 %v4552, %v4072
  %v4585 = vmin.f32 %v4553, %v4073
  %v4586 = vmin.f32 %v4554, %v4074
  %v4587 = vmin.f32 %v4555, %v4075
  %v4588 = vmin.f32 %v4556, %v4076
  %v4589 = vmin.f32 %v4557, %v4077
  %v4590 = vmin.f32 %v4558, %v4078
  %v4591 = vmin.f32 %v4559, %v4079
  %v4592 = vmin.f32 %v4560, %v4080
  %v4593 = vmin.f32 %v4561, %v4081
  %v4594 = vmin.f32 %v4562, %v4082
  %v4595 = vmin.f32 %v4563, %v4083
  %v4596 = vmax.f32 %v4532, %v4052
  %v4597 = vmax.f32 %v4533, %v4053
  %v4598 = vmax.f32 %v4534, %v4054
  %v4599 = vmax.f32 %v4535, %v4055
  %v4600 = vmax.f32 %v4536, %v4056
  %v4601 = vmax.f32 %v4537, %v4057
  %v4602 = vmax.f32 %v4538, %v4058
  %v4603 = vmax.f32 %v4539, %v4059
  %v4604 = vmax.f32 %v4540, %v4060
  %v4605 = vmax.f32 %v4541, %v4061
  %v4606 = vmax.f32 %v4542, %v4062
  %v4607 = vmax.f32 %v4543, %v4063
  %v4608 = vmax.f32 %v4544, %v4064
  %v4609 = vmax.f32 %v4545, %v4065
  %v4610 = vmax.f32 %v4546, %v4066
  %v4611 = vmax.f32 %v4547, %v4067
  %v4612 = vmax.f32 %v4548, %v4068
  %v4613 = vmax.f32 %v4549, %v4069
  %v4614 = vmax.f32 %v4550, %v4070
  %v4615 = vmax.f32 %v4551, %v4071
  %v4616 = vmax.f32 %v4552, %v4072
  %v4617 = vmax.f32 %v4553, %v4073
  %v4618 = vmax.f32 %v4554, %v4074
  %v4619 = vmax.f32 %v4555, %v4075
  %v4620 = vmax.f32 %v4556, %v4076
  %v4621 = vmax.f32 %v4557, %v4077
  %v4622 = vmax.f32 %v4558, %v4078
  %v4623 = vmax.f32 %v4559, %v4079
  %v4624 = vmax.f32 %v4560, %v4080
  %v4625 = vmax.f32 %v4561, %v4081
  %v4626 = vmax.f32 %v4562, %v4082
  %v4627 = vmax.f32 %v4563, %v4083
  %v4628 = vmin.f32 %v4596, %v4340
  %v4629 = vmin.f32 %v4597, %v4341
  %v4630 = vmin.f32 %v4598, %v4342
  %v4631 = vmin.f32 %v4599, %v4343
  %v4632 = vmin.f32 %v4600, %v4344
  %v4633 = vmin.f32 %v4601, %v4345
  %v4634 = vmin.f32 %v4602, %v4346
  %v4635 = vmin.f32 %v4603, %v4347
  %v4636 = vmin.f32 %v4604, %v4348
  %v4637 = vmin.f32 %v4605, %v4349
  %v4638 = vmin.f32 %v4606, %v4350
  %v4639 = vmin.f32 %v4607, %v4351
  %v4640 = vmin.f32 %v4608, %v4352
  %v4641 = vmin.f32 %v4609, %v4353
  %v4642 = vmin.f32 %v4610, %v4354
  %v4643 = vmin.f32 %v4611, %v4355
  %v4644 = vmin.f32 %v4612, %v4356
  %v4645 = vmin.f32 %v4613, %v4357
  %v4646 = vmin.f32 %v4614, %v4358
  %v4647 = vmin.f32 %v4615, %v4359
  %v4648 = vmin.f32 %v4616, %v4360
  %v4649 = vmin.f32 %v4617, %v4361
  %v4650 = vmin.f32 %v4618, %v4362
  %v4651 = vmin.f32 %v4619, %v4363
  %v4652 = vmin.f32 %v4620, %v4364
  %v4653 = vmin.f32 %v4621, %v4365
  %v4654 = vmin.f32 %v4622, %v4366
  %v4655 = vmin.f32 %v4623, %v4367
  %v4656 = vmin.f32 %v4624, %v4368
  %v4657 = vmin.f32 %v4625, %v4369
  %v4658 = vmin.f32 %v4626, %v4370
  %v4659 = vmin.f32 %v4627, %v4371
  %v4660 = vld [vmem:[%s2739 + $0x2] sm:$0xff]
  %v4661 = vld [vmem:[%s2739 + $0xa] sm:$0xff]
  %v4662 = vld [vmem:[%s2739 + $0x1a] sm:$0xff]
  %v4663 = vld [vmem:[%s2739 + $0x22] sm:$0xff]
  %v4664 = vld [vmem:[%s2739 + $0x32] sm:$0xff]
  %v4665 = vld [vmem:[%s2739 + $0x3a] sm:$0xff]
  %v4666 = vld [vmem:[%s2739 + $0x4a] sm:$0xff]
  %v4667 = vld [vmem:[%s2739 + $0x52] sm:$0xff]
  %v4668 = vld [vmem:[%s2739 + $0x62] sm:$0xff]
  %v4669 = vld [vmem:[%s2739 + $0x6a] sm:$0xff]
  %v4670 = vld [vmem:[%s2739 + $0x7a] sm:$0xff]
  %v4671 = vld [vmem:[%s2739 + $0x82] sm:$0xff]
  %v4672 = vld [vmem:[%s2739 + $0x92] sm:$0xff]
  %v4673 = vld [vmem:[%s2739 + $0x9a] sm:$0xff]
  %v4674 = vld [vmem:[%s2739 + $0xaa] sm:$0xff]
  %v4675 = vld [vmem:[%s2739 + $0xb2] sm:$0xff]
  %v4676 = vld [vmem:[%s2739 + $0xc2] sm:$0xff]
  %v4677 = vld [vmem:[%s2739 + $0xca] sm:$0xff]
  %v4678 = vld [vmem:[%s2739 + $0xda] sm:$0xff]
  %v4679 = vld [vmem:[%s2739 + $0xe2] sm:$0xff]
  %v4680 = vld [vmem:[%s2739 + $0xf2] sm:$0xff]
  %v4681 = vld [vmem:[%s2739 + $0xfa] sm:$0xff]
  %v4682 = vld [vmem:[%s2739 + $0x10a] sm:$0xff]
  %v4683 = vld [vmem:[%s2739 + $0x112] sm:$0xff]
  %v4684 = vld [vmem:[%s2739 + $0x122] sm:$0xff]
  %v4685 = vld [vmem:[%s2739 + $0x12a] sm:$0xff]
  %v4686 = vld [vmem:[%s2739 + $0x13a] sm:$0xff]
  %v4687 = vld [vmem:[%s2739 + $0x142] sm:$0xff]
  %v4688 = vld [vmem:[%s2739 + $0x152] sm:$0xff]
  %v4689 = vld [vmem:[%s2739 + $0x15a] sm:$0xff]
  %v4690 = vld [vmem:[%s2739 + $0x16a] sm:$0xff]
  %v4691 = vld [vmem:[%s2739 + $0x172] sm:$0xff]
  %v4692 = vmin.f32 %v4116, %v4180
  %v4693 = vmin.f32 %v4117, %v4181
  %v4694 = vmin.f32 %v4118, %v4182
  %v4695 = vmin.f32 %v4119, %v4183
  %v4696 = vmin.f32 %v4120, %v4184
  %v4697 = vmin.f32 %v4121, %v4185
  %v4698 = vmin.f32 %v4122, %v4186
  %v4699 = vmin.f32 %v4123, %v4187
  %v4700 = vmin.f32 %v4124, %v4188
  %v4701 = vmin.f32 %v4125, %v4189
  %v4702 = vmin.f32 %v4126, %v4190
  %v4703 = vmin.f32 %v4127, %v4191
  %v4704 = vmin.f32 %v4128, %v4192
  %v4705 = vmin.f32 %v4129, %v4193
  %v4706 = vmin.f32 %v4130, %v4194
  %v4707 = vmin.f32 %v4131, %v4195
  %v4708 = vmin.f32 %v4132, %v4196
  %v4709 = vmin.f32 %v4133, %v4197
  %v4710 = vmin.f32 %v4134, %v4198
  %v4711 = vmin.f32 %v4135, %v4199
  %v4712 = vmin.f32 %v4136, %v4200
  %v4713 = vmin.f32 %v4137, %v4201
  %v4714 = vmin.f32 %v4138, %v4202
  %v4715 = vmin.f32 %v4139, %v4203
  %v4716 = vmin.f32 %v4140, %v4204
  %v4717 = vmin.f32 %v4141, %v4205
  %v4718 = vmin.f32 %v4142, %v4206
  %v4719 = vmin.f32 %v4143, %v4207
  %v4720 = vmin.f32 %v4144, %v4208
  %v4721 = vmin.f32 %v4145, %v4209
  %v4722 = vmin.f32 %v4146, %v4210
  %v4723 = vmin.f32 %v4147, %v4211
  %v4724 = vmax.f32 %v4116, %v4180
  %v4725 = vmax.f32 %v4117, %v4181
  %v4726 = vmax.f32 %v4118, %v4182
  %v4727 = vmax.f32 %v4119, %v4183
  %v4728 = vmax.f32 %v4120, %v4184
  %v4729 = vmax.f32 %v4121, %v4185
  %v4730 = vmax.f32 %v4122, %v4186
  %v4731 = vmax.f32 %v4123, %v4187
  %v4732 = vmax.f32 %v4124, %v4188
  %v4733 = vmax.f32 %v4125, %v4189
  %v4734 = vmax.f32 %v4126, %v4190
  %v4735 = vmax.f32 %v4127, %v4191
  %v4736 = vmax.f32 %v4128, %v4192
  %v4737 = vmax.f32 %v4129, %v4193
  %v4738 = vmax.f32 %v4130, %v4194
  %v4739 = vmax.f32 %v4131, %v4195
  %v4740 = vmax.f32 %v4132, %v4196
  %v4741 = vmax.f32 %v4133, %v4197
  %v4742 = vmax.f32 %v4134, %v4198
  %v4743 = vmax.f32 %v4135, %v4199
  %v4744 = vmax.f32 %v4136, %v4200
  %v4745 = vmax.f32 %v4137, %v4201
  %v4746 = vmax.f32 %v4138, %v4202
  %v4747 = vmax.f32 %v4139, %v4203
  %v4748 = vmax.f32 %v4140, %v4204
  %v4749 = vmax.f32 %v4141, %v4205
  %v4750 = vmax.f32 %v4142, %v4206
  %v4751 = vmax.f32 %v4143, %v4207
  %v4752 = vmax.f32 %v4144, %v4208
  %v4753 = vmax.f32 %v4145, %v4209
  %v4754 = vmax.f32 %v4146, %v4210
  %v4755 = vmax.f32 %v4147, %v4211
  %v4756 = vmin.f32 %v4244, %v4308
  %v4757 = vmin.f32 %v4245, %v4309
  %v4758 = vmin.f32 %v4246, %v4310
  %v4759 = vmin.f32 %v4247, %v4311
  %v4760 = vmin.f32 %v4248, %v4312
  %v4761 = vmin.f32 %v4249, %v4313
  %v4762 = vmin.f32 %v4250, %v4314
  %v4763 = vmin.f32 %v4251, %v4315
  %v4764 = vmin.f32 %v4252, %v4316
  %v4765 = vmin.f32 %v4253, %v4317
  %v4766 = vmin.f32 %v4254, %v4318
  %v4767 = vmin.f32 %v4255, %v4319
  %v4768 = vmin.f32 %v4256, %v4320
  %v4769 = vmin.f32 %v4257, %v4321
  %v4770 = vmin.f32 %v4258, %v4322
  %v4771 = vmin.f32 %v4259, %v4323
  %v4772 = vmin.f32 %v4260, %v4324
  %v4773 = vmin.f32 %v4261, %v4325
  %v4774 = vmin.f32 %v4262, %v4326
  %v4775 = vmin.f32 %v4263, %v4327
  %v4776 = vmin.f32 %v4264, %v4328
  %v4777 = vmin.f32 %v4265, %v4329
  %v4778 = vmin.f32 %v4266, %v4330
  %v4779 = vmin.f32 %v4267, %v4331
  %v4780 = vmin.f32 %v4268, %v4332
  %v4781 = vmin.f32 %v4269, %v4333
  %v4782 = vmin.f32 %v4270, %v4334
  %v4783 = vmin.f32 %v4271, %v4335
  %v4784 = vmin.f32 %v4272, %v4336
  %v4785 = vmin.f32 %v4273, %v4337
  %v4786 = vmin.f32 %v4274, %v4338
  %v4787 = vmin.f32 %v4275, %v4339
  %v4788 = vmax.f32 %v4244, %v4308
  %v4789 = vmax.f32 %v4245, %v4309
  %v4790 = vmax.f32 %v4246, %v4310
  %v4791 = vmax.f32 %v4247, %v4311
  %v4792 = vmax.f32 %v4248, %v4312
  %v4793 = vmax.f32 %v4249, %v4313
  %v4794 = vmax.f32 %v4250, %v4314
  %v4795 = vmax.f32 %v4251, %v4315
  %v4796 = vmax.f32 %v4252, %v4316
  %v4797 = vmax.f32 %v4253, %v4317
  %v4798 = vmax.f32 %v4254, %v4318
  %v4799 = vmax.f32 %v4255, %v4319
  %v4800 = vmax.f32 %v4256, %v4320
  %v4801 = vmax.f32 %v4257, %v4321
  %v4802 = vmax.f32 %v4258, %v4322
  %v4803 = vmax.f32 %v4259, %v4323
  %v4804 = vmax.f32 %v4260, %v4324
  %v4805 = vmax.f32 %v4261, %v4325
  %v4806 = vmax.f32 %v4262, %v4326
  %v4807 = vmax.f32 %v4263, %v4327
  %v4808 = vmax.f32 %v4264, %v4328
  %v4809 = vmax.f32 %v4265, %v4329
  %v4810 = vmax.f32 %v4266, %v4330
  %v4811 = vmax.f32 %v4267, %v4331
  %v4812 = vmax.f32 %v4268, %v4332
  %v4813 = vmax.f32 %v4269, %v4333
  %v4814 = vmax.f32 %v4270, %v4334
  %v4815 = vmax.f32 %v4271, %v4335
  %v4816 = vmax.f32 %v4272, %v4336
  %v4817 = vmax.f32 %v4273, %v4337
  %v4818 = vmax.f32 %v4274, %v4338
  %v4819 = vmax.f32 %v4275, %v4339
  %v4820 = vmin.f32 %v4372, %v4436
  %v4821 = vmin.f32 %v4373, %v4437
  %v4822 = vmin.f32 %v4374, %v4438
  %v4823 = vmin.f32 %v4375, %v4439
  %v4824 = vmin.f32 %v4376, %v4440
  %v4825 = vmin.f32 %v4377, %v4441
  %v4826 = vmin.f32 %v4378, %v4442
  %v4827 = vmin.f32 %v4379, %v4443
  %v4828 = vmin.f32 %v4380, %v4444
  %v4829 = vmin.f32 %v4381, %v4445
  %v4830 = vmin.f32 %v4382, %v4446
  %v4831 = vmin.f32 %v4383, %v4447
  %v4832 = vmin.f32 %v4384, %v4448
  %v4833 = vmin.f32 %v4385, %v4449
  %v4834 = vmin.f32 %v4386, %v4450
  %v4835 = vmin.f32 %v4387, %v4451
  %v4836 = vmin.f32 %v4388, %v4452
  %v4837 = vmin.f32 %v4389, %v4453
  %v4838 = vmin.f32 %v4390, %v4454
  %v4839 = vmin.f32 %v4391, %v4455
  %v4840 = vmin.f32 %v4392, %v4456
  %v4841 = vmin.f32 %v4393, %v4457
  %v4842 = vmin.f32 %v4394, %v4458
  %v4843 = vmin.f32 %v4395, %v4459
  %v4844 = vmin.f32 %v4396, %v4460
  %v4845 = vmin.f32 %v4397, %v4461
  %v4846 = vmin.f32 %v4398, %v4462
  %v4847 = vmin.f32 %v4399, %v4463
  %v4848 = vmin.f32 %v4400, %v4464
  %v4849 = vmin.f32 %v4401, %v4465
  %v4850 = vmin.f32 %v4402, %v4466
  %v4851 = vmin.f32 %v4403, %v4467
  %v4852 = vmax.f32 %v4372, %v4436
  %v4853 = vmax.f32 %v4373, %v4437
  %v4854 = vmax.f32 %v4374, %v4438
  %v4855 = vmax.f32 %v4375, %v4439
  %v4856 = vmax.f32 %v4376, %v4440
  %v4857 = vmax.f32 %v4377, %v4441
  %v4858 = vmax.f32 %v4378, %v4442
  %v4859 = vmax.f32 %v4379, %v4443
  %v4860 = vmax.f32 %v4380, %v4444
  %v4861 = vmax.f32 %v4381, %v4445
  %v4862 = vmax.f32 %v4382, %v4446
  %v4863 = vmax.f32 %v4383, %v4447
  %v4864 = vmax.f32 %v4384, %v4448
  %v4865 = vmax.f32 %v4385, %v4449
  %v4866 = vmax.f32 %v4386, %v4450
  %v4867 = vmax.f32 %v4387, %v4451
  %v4868 = vmax.f32 %v4388, %v4452
  %v4869 = vmax.f32 %v4389, %v4453
  %v4870 = vmax.f32 %v4390, %v4454
  %v4871 = vmax.f32 %v4391, %v4455
  %v4872 = vmax.f32 %v4392, %v4456
  %v4873 = vmax.f32 %v4393, %v4457
  %v4874 = vmax.f32 %v4394, %v4458
  %v4875 = vmax.f32 %v4395, %v4459
  %v4876 = vmax.f32 %v4396, %v4460
  %v4877 = vmax.f32 %v4397, %v4461
  %v4878 = vmax.f32 %v4398, %v4462
  %v4879 = vmax.f32 %v4399, %v4463
  %v4880 = vmax.f32 %v4400, %v4464
  %v4881 = vmax.f32 %v4401, %v4465
  %v4882 = vmax.f32 %v4402, %v4466
  %v4883 = vmax.f32 %v4403, %v4467
  %v4884 = vmin.f32 %v4500, %v4564
  %v4885 = vmin.f32 %v4501, %v4565
  %v4886 = vmin.f32 %v4502, %v4566
  %v4887 = vmin.f32 %v4503, %v4567
  %v4888 = vmin.f32 %v4504, %v4568
  %v4889 = vmin.f32 %v4505, %v4569
  %v4890 = vmin.f32 %v4506, %v4570
  %v4891 = vmin.f32 %v4507, %v4571
  %v4892 = vmin.f32 %v4508, %v4572
  %v4893 = vmin.f32 %v4509, %v4573
  %v4894 = vmin.f32 %v4510, %v4574
  %v4895 = vmin.f32 %v4511, %v4575
  %v4896 = vmin.f32 %v4512, %v4576
  %v4897 = vmin.f32 %v4513, %v4577
  %v4898 = vmin.f32 %v4514, %v4578
  %v4899 = vmin.f32 %v4515, %v4579
  %v4900 = vmin.f32 %v4516, %v4580
  %v4901 = vmin.f32 %v4517, %v4581
  %v4902 = vmin.f32 %v4518, %v4582
  %v4903 = vmin.f32 %v4519, %v4583
  %v4904 = vmin.f32 %v4520, %v4584
  %v4905 = vmin.f32 %v4521, %v4585
  %v4906 = vmin.f32 %v4522, %v4586
  %v4907 = vmin.f32 %v4523, %v4587
  %v4908 = vmin.f32 %v4524, %v4588
  %v4909 = vmin.f32 %v4525, %v4589
  %v4910 = vmin.f32 %v4526, %v4590
  %v4911 = vmin.f32 %v4527, %v4591
  %v4912 = vmin.f32 %v4528, %v4592
  %v4913 = vmin.f32 %v4529, %v4593
  %v4914 = vmin.f32 %v4530, %v4594
  %v4915 = vmin.f32 %v4531, %v4595
  %v4916 = vmax.f32 %v4500, %v4564
  %v4917 = vmax.f32 %v4501, %v4565
  %v4918 = vmax.f32 %v4502, %v4566
  %v4919 = vmax.f32 %v4503, %v4567
  %v4920 = vmax.f32 %v4504, %v4568
  %v4921 = vmax.f32 %v4505, %v4569
  %v4922 = vmax.f32 %v4506, %v4570
  %v4923 = vmax.f32 %v4507, %v4571
  %v4924 = vmax.f32 %v4508, %v4572
  %v4925 = vmax.f32 %v4509, %v4573
  %v4926 = vmax.f32 %v4510, %v4574
  %v4927 = vmax.f32 %v4511, %v4575
  %v4928 = vmax.f32 %v4512, %v4576
  %v4929 = vmax.f32 %v4513, %v4577
  %v4930 = vmax.f32 %v4514, %v4578
  %v4931 = vmax.f32 %v4515, %v4579
  %v4932 = vmax.f32 %v4516, %v4580
  %v4933 = vmax.f32 %v4517, %v4581
  %v4934 = vmax.f32 %v4518, %v4582
  %v4935 = vmax.f32 %v4519, %v4583
  %v4936 = vmax.f32 %v4520, %v4584
  %v4937 = vmax.f32 %v4521, %v4585
  %v4938 = vmax.f32 %v4522, %v4586
  %v4939 = vmax.f32 %v4523, %v4587
  %v4940 = vmax.f32 %v4524, %v4588
  %v4941 = vmax.f32 %v4525, %v4589
  %v4942 = vmax.f32 %v4526, %v4590
  %v4943 = vmax.f32 %v4527, %v4591
  %v4944 = vmax.f32 %v4528, %v4592
  %v4945 = vmax.f32 %v4529, %v4593
  %v4946 = vmax.f32 %v4530, %v4594
  %v4947 = vmax.f32 %v4531, %v4595
  %v4948 = vmin.f32 %v4628, %v4660
  %v4949 = vmin.f32 %v4629, %v4661
  %v4950 = vmin.f32 %v4630, %v4662
  %v4951 = vmin.f32 %v4631, %v4663
  %v4952 = vmin.f32 %v4632, %v4664
  %v4953 = vmin.f32 %v4633, %v4665
  %v4954 = vmin.f32 %v4634, %v4666
  %v4955 = vmin.f32 %v4635, %v4667
  %v4956 = vmin.f32 %v4636, %v4668
  %v4957 = vmin.f32 %v4637, %v4669
  %v4958 = vmin.f32 %v4638, %v4670
  %v4959 = vmin.f32 %v4639, %v4671
  %v4960 = vmin.f32 %v4640, %v4672
  %v4961 = vmin.f32 %v4641, %v4673
  %v4962 = vmin.f32 %v4642, %v4674
  %v4963 = vmin.f32 %v4643, %v4675
  %v4964 = vmin.f32 %v4644, %v4676
  %v4965 = vmin.f32 %v4645, %v4677
  %v4966 = vmin.f32 %v4646, %v4678
  %v4967 = vmin.f32 %v4647, %v4679
  %v4968 = vmin.f32 %v4648, %v4680
  %v4969 = vmin.f32 %v4649, %v4681
  %v4970 = vmin.f32 %v4650, %v4682
  %v4971 = vmin.f32 %v4651, %v4683
  %v4972 = vmin.f32 %v4652, %v4684
  %v4973 = vmin.f32 %v4653, %v4685
  %v4974 = vmin.f32 %v4654, %v4686
  %v4975 = vmin.f32 %v4655, %v4687
  %v4976 = vmin.f32 %v4656, %v4688
  %v4977 = vmin.f32 %v4657, %v4689
  %v4978 = vmin.f32 %v4658, %v4690
  %v4979 = vmin.f32 %v4659, %v4691
  %v4980 = vmax.f32 %v4628, %v4660
  %v4981 = vmax.f32 %v4629, %v4661
  %v4982 = vmax.f32 %v4630, %v4662
  %v4983 = vmax.f32 %v4631, %v4663
  %v4984 = vmax.f32 %v4632, %v4664
  %v4985 = vmax.f32 %v4633, %v4665
  %v4986 = vmax.f32 %v4634, %v4666
  %v4987 = vmax.f32 %v4635, %v4667
  %v4988 = vmax.f32 %v4636, %v4668
  %v4989 = vmax.f32 %v4637, %v4669
  %v4990 = vmax.f32 %v4638, %v4670
  %v4991 = vmax.f32 %v4639, %v4671
  %v4992 = vmax.f32 %v4640, %v4672
  %v4993 = vmax.f32 %v4641, %v4673
  %v4994 = vmax.f32 %v4642, %v4674
  %v4995 = vmax.f32 %v4643, %v4675
  %v4996 = vmax.f32 %v4644, %v4676
  %v4997 = vmax.f32 %v4645, %v4677
  %v4998 = vmax.f32 %v4646, %v4678
  %v4999 = vmax.f32 %v4647, %v4679
  %v5000 = vmax.f32 %v4648, %v4680
  %v5001 = vmax.f32 %v4649, %v4681
  %v5002 = vmax.f32 %v4650, %v4682
  %v5003 = vmax.f32 %v4651, %v4683
  %v5004 = vmax.f32 %v4652, %v4684
  %v5005 = vmax.f32 %v4653, %v4685
  %v5006 = vmax.f32 %v4654, %v4686
  %v5007 = vmax.f32 %v4655, %v4687
  %v5008 = vmax.f32 %v4656, %v4688
  %v5009 = vmax.f32 %v4657, %v4689
  %v5010 = vmax.f32 %v4658, %v4690
  %v5011 = vmax.f32 %v4659, %v4691
  %v5012 = vmin.f32 %v4692, %v4756
  %v5013 = vmin.f32 %v4693, %v4757
  %v5014 = vmin.f32 %v4694, %v4758
  %v5015 = vmin.f32 %v4695, %v4759
  %v5016 = vmin.f32 %v4696, %v4760
  %v5017 = vmin.f32 %v4697, %v4761
  %v5018 = vmin.f32 %v4698, %v4762
  %v5019 = vmin.f32 %v4699, %v4763
  %v5020 = vmin.f32 %v4700, %v4764
  %v5021 = vmin.f32 %v4701, %v4765
  %v5022 = vmin.f32 %v4702, %v4766
  %v5023 = vmin.f32 %v4703, %v4767
  %v5024 = vmin.f32 %v4704, %v4768
  %v5025 = vmin.f32 %v4705, %v4769
  %v5026 = vmin.f32 %v4706, %v4770
  %v5027 = vmin.f32 %v4707, %v4771
  %v5028 = vmin.f32 %v4708, %v4772
  %v5029 = vmin.f32 %v4709, %v4773
  %v5030 = vmin.f32 %v4710, %v4774
  %v5031 = vmin.f32 %v4711, %v4775
  %v5032 = vmin.f32 %v4712, %v4776
  %v5033 = vmin.f32 %v4713, %v4777
  %v5034 = vmin.f32 %v4714, %v4778
  %v5035 = vmin.f32 %v4715, %v4779
  %v5036 = vmin.f32 %v4716, %v4780
  %v5037 = vmin.f32 %v4717, %v4781
  %v5038 = vmin.f32 %v4718, %v4782
  %v5039 = vmin.f32 %v4719, %v4783
  %v5040 = vmin.f32 %v4720, %v4784
  %v5041 = vmin.f32 %v4721, %v4785
  %v5042 = vmin.f32 %v4722, %v4786
  %v5043 = vmin.f32 %v4723, %v4787
  %v5044 = vmax.f32 %v4692, %v4756
  %v5045 = vmax.f32 %v4693, %v4757
  %v5046 = vmax.f32 %v4694, %v4758
  %v5047 = vmax.f32 %v4695, %v4759
  %v5048 = vmax.f32 %v4696, %v4760
  %v5049 = vmax.f32 %v4697, %v4761
  %v5050 = vmax.f32 %v4698, %v4762
  %v5051 = vmax.f32 %v4699, %v4763
  %v5052 = vmax.f32 %v4700, %v4764
  %v5053 = vmax.f32 %v4701, %v4765
  %v5054 = vmax.f32 %v4702, %v4766
  %v5055 = vmax.f32 %v4703, %v4767
  %v5056 = vmax.f32 %v4704, %v4768
  %v5057 = vmax.f32 %v4705, %v4769
  %v5058 = vmax.f32 %v4706, %v4770
  %v5059 = vmax.f32 %v4707, %v4771
  %v5060 = vmax.f32 %v4708, %v4772
  %v5061 = vmax.f32 %v4709, %v4773
  %v5062 = vmax.f32 %v4710, %v4774
  %v5063 = vmax.f32 %v4711, %v4775
  %v5064 = vmax.f32 %v4712, %v4776
  %v5065 = vmax.f32 %v4713, %v4777
  %v5066 = vmax.f32 %v4714, %v4778
  %v5067 = vmax.f32 %v4715, %v4779
  %v5068 = vmax.f32 %v4716, %v4780
  %v5069 = vmax.f32 %v4717, %v4781
  %v5070 = vmax.f32 %v4718, %v4782
  %v5071 = vmax.f32 %v4719, %v4783
  %v5072 = vmax.f32 %v4720, %v4784
  %v5073 = vmax.f32 %v4721, %v4785
  %v5074 = vmax.f32 %v4722, %v4786
  %v5075 = vmax.f32 %v4723, %v4787
  %v5076 = vmin.f32 %v5012, %v4820
  %v5077 = vmin.f32 %v5013, %v4821
  %v5078 = vmin.f32 %v5014, %v4822
  %v5079 = vmin.f32 %v5015, %v4823
  %v5080 = vmin.f32 %v5016, %v4824
  %v5081 = vmin.f32 %v5017, %v4825
  %v5082 = vmin.f32 %v5018, %v4826
  %v5083 = vmin.f32 %v5019, %v4827
  %v5084 = vmin.f32 %v5020, %v4828
  %v5085 = vmin.f32 %v5021, %v4829
  %v5086 = vmin.f32 %v5022, %v4830
  %v5087 = vmin.f32 %v5023, %v4831
  %v5088 = vmin.f32 %v5024, %v4832
  %v5089 = vmin.f32 %v5025, %v4833
  %v5090 = vmin.f32 %v5026, %v4834
  %v5091 = vmin.f32 %v5027, %v4835
  %v5092 = vmin.f32 %v5028, %v4836
  %v5093 = vmin.f32 %v5029, %v4837
  %v5094 = vmin.f32 %v5030, %v4838
  %v5095 = vmin.f32 %v5031, %v4839
  %v5096 = vmin.f32 %v5032, %v4840
  %v5097 = vmin.f32 %v5033, %v4841
  %v5098 = vmin.f32 %v5034, %v4842
  %v5099 = vmin.f32 %v5035, %v4843
  %v5100 = vmin.f32 %v5036, %v4844
  %v5101 = vmin.f32 %v5037, %v4845
  %v5102 = vmin.f32 %v5038, %v4846
  %v5103 = vmin.f32 %v5039, %v4847
  %v5104 = vmin.f32 %v5040, %v4848
  %v5105 = vmin.f32 %v5041, %v4849
  %v5106 = vmin.f32 %v5042, %v4850
  %v5107 = vmin.f32 %v5043, %v4851
  %v5108 = vmax.f32 %v5012, %v4820
  %v5109 = vmax.f32 %v5013, %v4821
  %v5110 = vmax.f32 %v5014, %v4822
  %v5111 = vmax.f32 %v5015, %v4823
  %v5112 = vmax.f32 %v5016, %v4824
  %v5113 = vmax.f32 %v5017, %v4825
  %v5114 = vmax.f32 %v5018, %v4826
  %v5115 = vmax.f32 %v5019, %v4827
  %v5116 = vmax.f32 %v5020, %v4828
  %v5117 = vmax.f32 %v5021, %v4829
  %v5118 = vmax.f32 %v5022, %v4830
  %v5119 = vmax.f32 %v5023, %v4831
  %v5120 = vmax.f32 %v5024, %v4832
  %v5121 = vmax.f32 %v5025, %v4833
  %v5122 = vmax.f32 %v5026, %v4834
  %v5123 = vmax.f32 %v5027, %v4835
  %v5124 = vmax.f32 %v5028, %v4836
  %v5125 = vmax.f32 %v5029, %v4837
  %v5126 = vmax.f32 %v5030, %v4838
  %v5127 = vmax.f32 %v5031, %v4839
  %v5128 = vmax.f32 %v5032, %v4840
  %v5129 = vmax.f32 %v5033, %v4841
  %v5130 = vmax.f32 %v5034, %v4842
  %v5131 = vmax.f32 %v5035, %v4843
  %v5132 = vmax.f32 %v5036, %v4844
  %v5133 = vmax.f32 %v5037, %v4845
  %v5134 = vmax.f32 %v5038, %v4846
  %v5135 = vmax.f32 %v5039, %v4847
  %v5136 = vmax.f32 %v5040, %v4848
  %v5137 = vmax.f32 %v5041, %v4849
  %v5138 = vmax.f32 %v5042, %v4850
  %v5139 = vmax.f32 %v5043, %v4851
  %v5140 = vmin.f32 %v5076, %v4884
  %v5141 = vmin.f32 %v5077, %v4885
  %v5142 = vmin.f32 %v5078, %v4886
  %v5143 = vmin.f32 %v5079, %v4887
  %v5144 = vmin.f32 %v5080, %v4888
  %v5145 = vmin.f32 %v5081, %v4889
  %v5146 = vmin.f32 %v5082, %v4890
  %v5147 = vmin.f32 %v5083, %v4891
  %v5148 = vmin.f32 %v5084, %v4892
  %v5149 = vmin.f32 %v5085, %v4893
  %v5150 = vmin.f32 %v5086, %v4894
  %v5151 = vmin.f32 %v5087, %v4895
  %v5152 = vmin.f32 %v5088, %v4896
  %v5153 = vmin.f32 %v5089, %v4897
  %v5154 = vmin.f32 %v5090, %v4898
  %v5155 = vmin.f32 %v5091, %v4899
  %v5156 = vmin.f32 %v5092, %v4900
  %v5157 = vmin.f32 %v5093, %v4901
  %v5158 = vmin.f32 %v5094, %v4902
  %v5159 = vmin.f32 %v5095, %v4903
  %v5160 = vmin.f32 %v5096, %v4904
  %v5161 = vmin.f32 %v5097, %v4905
  %v5162 = vmin.f32 %v5098, %v4906
  %v5163 = vmin.f32 %v5099, %v4907
  %v5164 = vmin.f32 %v5100, %v4908
  %v5165 = vmin.f32 %v5101, %v4909
  %v5166 = vmin.f32 %v5102, %v4910
  %v5167 = vmin.f32 %v5103, %v4911
  %v5168 = vmin.f32 %v5104, %v4912
  %v5169 = vmin.f32 %v5105, %v4913
  %v5170 = vmin.f32 %v5106, %v4914
  %v5171 = vmin.f32 %v5107, %v4915
  %v5172 = vmax.f32 %v5076, %v4884
  %v5173 = vmax.f32 %v5077, %v4885
  %v5174 = vmax.f32 %v5078, %v4886
  %v5175 = vmax.f32 %v5079, %v4887
  %v5176 = vmax.f32 %v5080, %v4888
  %v5177 = vmax.f32 %v5081, %v4889
  %v5178 = vmax.f32 %v5082, %v4890
  %v5179 = vmax.f32 %v5083, %v4891
  %v5180 = vmax.f32 %v5084, %v4892
  %v5181 = vmax.f32 %v5085, %v4893
  %v5182 = vmax.f32 %v5086, %v4894
  %v5183 = vmax.f32 %v5087, %v4895
  %v5184 = vmax.f32 %v5088, %v4896
  %v5185 = vmax.f32 %v5089, %v4897
  %v5186 = vmax.f32 %v5090, %v4898
  %v5187 = vmax.f32 %v5091, %v4899
  %v5188 = vmax.f32 %v5092, %v4900
  %v5189 = vmax.f32 %v5093, %v4901
  %v5190 = vmax.f32 %v5094, %v4902
  %v5191 = vmax.f32 %v5095, %v4903
  %v5192 = vmax.f32 %v5096, %v4904
  %v5193 = vmax.f32 %v5097, %v4905
  %v5194 = vmax.f32 %v5098, %v4906
  %v5195 = vmax.f32 %v5099, %v4907
  %v5196 = vmax.f32 %v5100, %v4908
  %v5197 = vmax.f32 %v5101, %v4909
  %v5198 = vmax.f32 %v5102, %v4910
  %v5199 = vmax.f32 %v5103, %v4911
  %v5200 = vmax.f32 %v5104, %v4912
  %v5201 = vmax.f32 %v5105, %v4913
  %v5202 = vmax.f32 %v5106, %v4914
  %v5203 = vmax.f32 %v5107, %v4915
  %v5204 = vmax.f32 %v5140, %v4948
  %v5205 = vmax.f32 %v5141, %v4949
  %v5206 = vmax.f32 %v5142, %v4950
  %v5207 = vmax.f32 %v5143, %v4951
  %v5208 = vmax.f32 %v5144, %v4952
  %v5209 = vmax.f32 %v5145, %v4953
  %v5210 = vmax.f32 %v5146, %v4954
  %v5211 = vmax.f32 %v5147, %v4955
  %v5212 = vmax.f32 %v5148, %v4956
  %v5213 = vmax.f32 %v5149, %v4957
  %v5214 = vmax.f32 %v5150, %v4958
  %v5215 = vmax.f32 %v5151, %v4959
  %v5216 = vmax.f32 %v5152, %v4960
  %v5217 = vmax.f32 %v5153, %v4961
  %v5218 = vmax.f32 %v5154, %v4962
  %v5219 = vmax.f32 %v5155, %v4963
  %v5220 = vmax.f32 %v5156, %v4964
  %v5221 = vmax.f32 %v5157, %v4965
  %v5222 = vmax.f32 %v5158, %v4966
  %v5223 = vmax.f32 %v5159, %v4967
  %v5224 = vmax.f32 %v5160, %v4968
  %v5225 = vmax.f32 %v5161, %v4969
  %v5226 = vmax.f32 %v5162, %v4970
  %v5227 = vmax.f32 %v5163, %v4971
  %v5228 = vmax.f32 %v5164, %v4972
  %v5229 = vmax.f32 %v5165, %v4973
  %v5230 = vmax.f32 %v5166, %v4974
  %v5231 = vmax.f32 %v5167, %v4975
  %v5232 = vmax.f32 %v5168, %v4976
  %v5233 = vmax.f32 %v5169, %v4977
  %v5234 = vmax.f32 %v5170, %v4978
  %v5235 = vmax.f32 %v5171, %v4979
  %v5236 = vmin.f32 %v4724, %v4788
  %v5237 = vmin.f32 %v4725, %v4789
  %v5238 = vmin.f32 %v4726, %v4790
  %v5239 = vmin.f32 %v4727, %v4791
  %v5240 = vmin.f32 %v4728, %v4792
  %v5241 = vmin.f32 %v4729, %v4793
  %v5242 = vmin.f32 %v4730, %v4794
  %v5243 = vmin.f32 %v4731, %v4795
  %v5244 = vmin.f32 %v4732, %v4796
  %v5245 = vmin.f32 %v4733, %v4797
  %v5246 = vmin.f32 %v4734, %v4798
  %v5247 = vmin.f32 %v4735, %v4799
  %v5248 = vmin.f32 %v4736, %v4800
  %v5249 = vmin.f32 %v4737, %v4801
  %v5250 = vmin.f32 %v4738, %v4802
  %v5251 = vmin.f32 %v4739, %v4803
  %v5252 = vmin.f32 %v4740, %v4804
  %v5253 = vmin.f32 %v4741, %v4805
  %v5254 = vmin.f32 %v4742, %v4806
  %v5255 = vmin.f32 %v4743, %v4807
  %v5256 = vmin.f32 %v4744, %v4808
  %v5257 = vmin.f32 %v4745, %v4809
  %v5258 = vmin.f32 %v4746, %v4810
  %v5259 = vmin.f32 %v4747, %v4811
  %v5260 = vmin.f32 %v4748, %v4812
  %v5261 = vmin.f32 %v4749, %v4813
  %v5262 = vmin.f32 %v4750, %v4814
  %v5263 = vmin.f32 %v4751, %v4815
  %v5264 = vmin.f32 %v4752, %v4816
  %v5265 = vmin.f32 %v4753, %v4817
  %v5266 = vmin.f32 %v4754, %v4818
  %v5267 = vmin.f32 %v4755, %v4819
  %v5268 = vmax.f32 %v4724, %v4788
  %v5269 = vmax.f32 %v4725, %v4789
  %v5270 = vmax.f32 %v4726, %v4790
  %v5271 = vmax.f32 %v4727, %v4791
  %v5272 = vmax.f32 %v4728, %v4792
  %v5273 = vmax.f32 %v4729, %v4793
  %v5274 = vmax.f32 %v4730, %v4794
  %v5275 = vmax.f32 %v4731, %v4795
  %v5276 = vmax.f32 %v4732, %v4796
  %v5277 = vmax.f32 %v4733, %v4797
  %v5278 = vmax.f32 %v4734, %v4798
  %v5279 = vmax.f32 %v4735, %v4799
  %v5280 = vmax.f32 %v4736, %v4800
  %v5281 = vmax.f32 %v4737, %v4801
  %v5282 = vmax.f32 %v4738, %v4802
  %v5283 = vmax.f32 %v4739, %v4803
  %v5284 = vmax.f32 %v4740, %v4804
  %v5285 = vmax.f32 %v4741, %v4805
  %v5286 = vmax.f32 %v4742, %v4806
  %v5287 = vmax.f32 %v4743, %v4807
  %v5288 = vmax.f32 %v4744, %v4808
  %v5289 = vmax.f32 %v4745, %v4809
  %v5290 = vmax.f32 %v4746, %v4810
  %v5291 = vmax.f32 %v4747, %v4811
  %v5292 = vmax.f32 %v4748, %v4812
  %v5293 = vmax.f32 %v4749, %v4813
  %v5294 = vmax.f32 %v4750, %v4814
  %v5295 = vmax.f32 %v4751, %v4815
  %v5296 = vmax.f32 %v4752, %v4816
  %v5297 = vmax.f32 %v4753, %v4817
  %v5298 = vmax.f32 %v4754, %v4818
  %v5299 = vmax.f32 %v4755, %v4819
  %v5300 = vmin.f32 %v5268, %v4852
  %v5301 = vmin.f32 %v5269, %v4853
  %v5302 = vmin.f32 %v5270, %v4854
  %v5303 = vmin.f32 %v5271, %v4855
  %v5304 = vmin.f32 %v5272, %v4856
  %v5305 = vmin.f32 %v5273, %v4857
  %v5306 = vmin.f32 %v5274, %v4858
  %v5307 = vmin.f32 %v5275, %v4859
  %v5308 = vmin.f32 %v5276, %v4860
  %v5309 = vmin.f32 %v5277, %v4861
  %v5310 = vmin.f32 %v5278, %v4862
  %v5311 = vmin.f32 %v5279, %v4863
  %v5312 = vmin.f32 %v5280, %v4864
  %v5313 = vmin.f32 %v5281, %v4865
  %v5314 = vmin.f32 %v5282, %v4866
  %v5315 = vmin.f32 %v5283, %v4867
  %v5316 = vmin.f32 %v5284, %v4868
  %v5317 = vmin.f32 %v5285, %v4869
  %v5318 = vmin.f32 %v5286, %v4870
  %v5319 = vmin.f32 %v5287, %v4871
  %v5320 = vmin.f32 %v5288, %v4872
  %v5321 = vmin.f32 %v5289, %v4873
  %v5322 = vmin.f32 %v5290, %v4874
  %v5323 = vmin.f32 %v5291, %v4875
  %v5324 = vmin.f32 %v5292, %v4876
  %v5325 = vmin.f32 %v5293, %v4877
  %v5326 = vmin.f32 %v5294, %v4878
  %v5327 = vmin.f32 %v5295, %v4879
  %v5328 = vmin.f32 %v5296, %v4880
  %v5329 = vmin.f32 %v5297, %v4881
  %v5330 = vmin.f32 %v5298, %v4882
  %v5331 = vmin.f32 %v5299, %v4883
  %v5332 = vmax.f32 %v5268, %v4852
  %v5333 = vmax.f32 %v5269, %v4853
  %v5334 = vmax.f32 %v5270, %v4854
  %v5335 = vmax.f32 %v5271, %v4855
  %v5336 = vmax.f32 %v5272, %v4856
  %v5337 = vmax.f32 %v5273, %v4857
  %v5338 = vmax.f32 %v5274, %v4858
  %v5339 = vmax.f32 %v5275, %v4859
  %v5340 = vmax.f32 %v5276, %v4860
  %v5341 = vmax.f32 %v5277, %v4861
  %v5342 = vmax.f32 %v5278, %v4862
  %v5343 = vmax.f32 %v5279, %v4863
  %v5344 = vmax.f32 %v5280, %v4864
  %v5345 = vmax.f32 %v5281, %v4865
  %v5346 = vmax.f32 %v5282, %v4866
  %v5347 = vmax.f32 %v5283, %v4867
  %v5348 = vmax.f32 %v5284, %v4868
  %v5349 = vmax.f32 %v5285, %v4869
  %v5350 = vmax.f32 %v5286, %v4870
  %v5351 = vmax.f32 %v5287, %v4871
  %v5352 = vmax.f32 %v5288, %v4872
  %v5353 = vmax.f32 %v5289, %v4873
  %v5354 = vmax.f32 %v5290, %v4874
  %v5355 = vmax.f32 %v5291, %v4875
  %v5356 = vmax.f32 %v5292, %v4876
  %v5357 = vmax.f32 %v5293, %v4877
  %v5358 = vmax.f32 %v5294, %v4878
  %v5359 = vmax.f32 %v5295, %v4879
  %v5360 = vmax.f32 %v5296, %v4880
  %v5361 = vmax.f32 %v5297, %v4881
  %v5362 = vmax.f32 %v5298, %v4882
  %v5363 = vmax.f32 %v5299, %v4883
  %v5364 = vmin.f32 %v5332, %v4916
  %v5365 = vmin.f32 %v5333, %v4917
  %v5366 = vmin.f32 %v5334, %v4918
  %v5367 = vmin.f32 %v5335, %v4919
  %v5368 = vmin.f32 %v5336, %v4920
  %v5369 = vmin.f32 %v5337, %v4921
  %v5370 = vmin.f32 %v5338, %v4922
  %v5371 = vmin.f32 %v5339, %v4923
  %v5372 = vmin.f32 %v5340, %v4924
  %v5373 = vmin.f32 %v5341, %v4925
  %v5374 = vmin.f32 %v5342, %v4926
  %v5375 = vmin.f32 %v5343, %v4927
  %v5376 = vmin.f32 %v5344, %v4928
  %v5377 = vmin.f32 %v5345, %v4929
  %v5378 = vmin.f32 %v5346, %v4930
  %v5379 = vmin.f32 %v5347, %v4931
  %v5380 = vmin.f32 %v5348, %v4932
  %v5381 = vmin.f32 %v5349, %v4933
  %v5382 = vmin.f32 %v5350, %v4934
  %v5383 = vmin.f32 %v5351, %v4935
  %v5384 = vmin.f32 %v5352, %v4936
  %v5385 = vmin.f32 %v5353, %v4937
  %v5386 = vmin.f32 %v5354, %v4938
  %v5387 = vmin.f32 %v5355, %v4939
  %v5388 = vmin.f32 %v5356, %v4940
  %v5389 = vmin.f32 %v5357, %v4941
  %v5390 = vmin.f32 %v5358, %v4942
  %v5391 = vmin.f32 %v5359, %v4943
  %v5392 = vmin.f32 %v5360, %v4944
  %v5393 = vmin.f32 %v5361, %v4945
  %v5394 = vmin.f32 %v5362, %v4946
  %v5395 = vmin.f32 %v5363, %v4947
  %v5396 = vmax.f32 %v5332, %v4916
  %v5397 = vmax.f32 %v5333, %v4917
  %v5398 = vmax.f32 %v5334, %v4918
  %v5399 = vmax.f32 %v5335, %v4919
  %v5400 = vmax.f32 %v5336, %v4920
  %v5401 = vmax.f32 %v5337, %v4921
  %v5402 = vmax.f32 %v5338, %v4922
  %v5403 = vmax.f32 %v5339, %v4923
  %v5404 = vmax.f32 %v5340, %v4924
  %v5405 = vmax.f32 %v5341, %v4925
  %v5406 = vmax.f32 %v5342, %v4926
  %v5407 = vmax.f32 %v5343, %v4927
  %v5408 = vmax.f32 %v5344, %v4928
  %v5409 = vmax.f32 %v5345, %v4929
  %v5410 = vmax.f32 %v5346, %v4930
  %v5411 = vmax.f32 %v5347, %v4931
  %v5412 = vmax.f32 %v5348, %v4932
  %v5413 = vmax.f32 %v5349, %v4933
  %v5414 = vmax.f32 %v5350, %v4934
  %v5415 = vmax.f32 %v5351, %v4935
  %v5416 = vmax.f32 %v5352, %v4936
  %v5417 = vmax.f32 %v5353, %v4937
  %v5418 = vmax.f32 %v5354, %v4938
  %v5419 = vmax.f32 %v5355, %v4939
  %v5420 = vmax.f32 %v5356, %v4940
  %v5421 = vmax.f32 %v5357, %v4941
  %v5422 = vmax.f32 %v5358, %v4942
  %v5423 = vmax.f32 %v5359, %v4943
  %v5424 = vmax.f32 %v5360, %v4944
  %v5425 = vmax.f32 %v5361, %v4945
  %v5426 = vmax.f32 %v5362, %v4946
  %v5427 = vmax.f32 %v5363, %v4947
  %v5428 = vmin.f32 %v5396, %v4980
  %v5429 = vmin.f32 %v5397, %v4981
  %v5430 = vmin.f32 %v5398, %v4982
  %v5431 = vmin.f32 %v5399, %v4983
  %v5432 = vmin.f32 %v5400, %v4984
  %v5433 = vmin.f32 %v5401, %v4985
  %v5434 = vmin.f32 %v5402, %v4986
  %v5435 = vmin.f32 %v5403, %v4987
  %v5436 = vmin.f32 %v5404, %v4988
  %v5437 = vmin.f32 %v5405, %v4989
  %v5438 = vmin.f32 %v5406, %v4990
  %v5439 = vmin.f32 %v5407, %v4991
  %v5440 = vmin.f32 %v5408, %v4992
  %v5441 = vmin.f32 %v5409, %v4993
  %v5442 = vmin.f32 %v5410, %v4994
  %v5443 = vmin.f32 %v5411, %v4995
  %v5444 = vmin.f32 %v5412, %v4996
  %v5445 = vmin.f32 %v5413, %v4997
  %v5446 = vmin.f32 %v5414, %v4998
  %v5447 = vmin.f32 %v5415, %v4999
  %v5448 = vmin.f32 %v5416, %v5000
  %v5449 = vmin.f32 %v5417, %v5001
  %v5450 = vmin.f32 %v5418, %v5002
  %v5451 = vmin.f32 %v5419, %v5003
  %v5452 = vmin.f32 %v5420, %v5004
  %v5453 = vmin.f32 %v5421, %v5005
  %v5454 = vmin.f32 %v5422, %v5006
  %v5455 = vmin.f32 %v5423, %v5007
  %v5456 = vmin.f32 %v5424, %v5008
  %v5457 = vmin.f32 %v5425, %v5009
  %v5458 = vmin.f32 %v5426, %v5010
  %v5459 = vmin.f32 %v5427, %v5011
  %v5460 = vld [vmem:[%s2739 + $0x3] sm:$0xff]
  %v5461 = vld [vmem:[%s2739 + $0xb] sm:$0xff]
  %v5462 = vld [vmem:[%s2739 + $0x1b] sm:$0xff]
  %v5463 = vld [vmem:[%s2739 + $0x23] sm:$0xff]
  %v5464 = vld [vmem:[%s2739 + $0x33] sm:$0xff]
  %v5465 = vld [vmem:[%s2739 + $0x3b] sm:$0xff]
  %v5466 = vld [vmem:[%s2739 + $0x4b] sm:$0xff]
  %v5467 = vld [vmem:[%s2739 + $0x53] sm:$0xff]
  %v5468 = vld [vmem:[%s2739 + $0x63] sm:$0xff]
  %v5469 = vld [vmem:[%s2739 + $0x6b] sm:$0xff]
  %v5470 = vld [vmem:[%s2739 + $0x7b] sm:$0xff]
  %v5471 = vld [vmem:[%s2739 + $0x83] sm:$0xff]
  %v5472 = vld [vmem:[%s2739 + $0x93] sm:$0xff]
  %v5473 = vld [vmem:[%s2739 + $0x9b] sm:$0xff]
  %v5474 = vld [vmem:[%s2739 + $0xab] sm:$0xff]
  %v5475 = vld [vmem:[%s2739 + $0xb3] sm:$0xff]
  %v5476 = vld [vmem:[%s2739 + $0xc3] sm:$0xff]
  %v5477 = vld [vmem:[%s2739 + $0xcb] sm:$0xff]
  %v5478 = vld [vmem:[%s2739 + $0xdb] sm:$0xff]
  %v5479 = vld [vmem:[%s2739 + $0xe3] sm:$0xff]
  %v5480 = vld [vmem:[%s2739 + $0xf3] sm:$0xff]
  %v5481 = vld [vmem:[%s2739 + $0xfb] sm:$0xff]
  %v5482 = vld [vmem:[%s2739 + $0x10b] sm:$0xff]
  %v5483 = vld [vmem:[%s2739 + $0x113] sm:$0xff]
  %v5484 = vld [vmem:[%s2739 + $0x123] sm:$0xff]
  %v5485 = vld [vmem:[%s2739 + $0x12b] sm:$0xff]
  %v5486 = vld [vmem:[%s2739 + $0x13b] sm:$0xff]
  %v5487 = vld [vmem:[%s2739 + $0x143] sm:$0xff]
  %v5488 = vld [vmem:[%s2739 + $0x153] sm:$0xff]
  %v5489 = vld [vmem:[%s2739 + $0x15b] sm:$0xff]
  %v5490 = vld [vmem:[%s2739 + $0x16b] sm:$0xff]
  %v5491 = vld [vmem:[%s2739 + $0x173] sm:$0xff]
  %v5492 = vmin.f32 %v5044, %v5108
  %v5493 = vmin.f32 %v5045, %v5109
  %v5494 = vmin.f32 %v5046, %v5110
  %v5495 = vmin.f32 %v5047, %v5111
  %v5496 = vmin.f32 %v5048, %v5112
  %v5497 = vmin.f32 %v5049, %v5113
  %v5498 = vmin.f32 %v5050, %v5114
  %v5499 = vmin.f32 %v5051, %v5115
  %v5500 = vmin.f32 %v5052, %v5116
  %v5501 = vmin.f32 %v5053, %v5117
  %v5502 = vmin.f32 %v5054, %v5118
  %v5503 = vmin.f32 %v5055, %v5119
  %v5504 = vmin.f32 %v5056, %v5120
  %v5505 = vmin.f32 %v5057, %v5121
  %v5506 = vmin.f32 %v5058, %v5122
  %v5507 = vmin.f32 %v5059, %v5123
  %v5508 = vmin.f32 %v5060, %v5124
  %v5509 = vmin.f32 %v5061, %v5125
  %v5510 = vmin.f32 %v5062, %v5126
  %v5511 = vmin.f32 %v5063, %v5127
  %v5512 = vmin.f32 %v5064, %v5128
  %v5513 = vmin.f32 %v5065, %v5129
  %v5514 = vmin.f32 %v5066, %v5130
  %v5515 = vmin.f32 %v5067, %v5131
  %v5516 = vmin.f32 %v5068, %v5132
  %v5517 = vmin.f32 %v5069, %v5133
  %v5518 = vmin.f32 %v5070, %v5134
  %v5519 = vmin.f32 %v5071, %v5135
  %v5520 = vmin.f32 %v5072, %v5136
  %v5521 = vmin.f32 %v5073, %v5137
  %v5522 = vmin.f32 %v5074, %v5138
  %v5523 = vmin.f32 %v5075, %v5139
  %v5524 = vmax.f32 %v5044, %v5108
  %v5525 = vmax.f32 %v5045, %v5109
  %v5526 = vmax.f32 %v5046, %v5110
  %v5527 = vmax.f32 %v5047, %v5111
  %v5528 = vmax.f32 %v5048, %v5112
  %v5529 = vmax.f32 %v5049, %v5113
  %v5530 = vmax.f32 %v5050, %v5114
  %v5531 = vmax.f32 %v5051, %v5115
  %v5532 = vmax.f32 %v5052, %v5116
  %v5533 = vmax.f32 %v5053, %v5117
  %v5534 = vmax.f32 %v5054, %v5118
  %v5535 = vmax.f32 %v5055, %v5119
  %v5536 = vmax.f32 %v5056, %v5120
  %v5537 = vmax.f32 %v5057, %v5121
  %v5538 = vmax.f32 %v5058, %v5122
  %v5539 = vmax.f32 %v5059, %v5123
  %v5540 = vmax.f32 %v5060, %v5124
  %v5541 = vmax.f32 %v5061, %v5125
  %v5542 = vmax.f32 %v5062, %v5126
  %v5543 = vmax.f32 %v5063, %v5127
  %v5544 = vmax.f32 %v5064, %v5128
  %v5545 = vmax.f32 %v5065, %v5129
  %v5546 = vmax.f32 %v5066, %v5130
  %v5547 = vmax.f32 %v5067, %v5131
  %v5548 = vmax.f32 %v5068, %v5132
  %v5549 = vmax.f32 %v5069, %v5133
  %v5550 = vmax.f32 %v5070, %v5134
  %v5551 = vmax.f32 %v5071, %v5135
  %v5552 = vmax.f32 %v5072, %v5136
  %v5553 = vmax.f32 %v5073, %v5137
  %v5554 = vmax.f32 %v5074, %v5138
  %v5555 = vmax.f32 %v5075, %v5139
  %v5556 = vmin.f32 %v5172, %v5204
  %v5557 = vmin.f32 %v5173, %v5205
  %v5558 = vmin.f32 %v5174, %v5206
  %v5559 = vmin.f32 %v5175, %v5207
  %v5560 = vmin.f32 %v5176, %v5208
  %v5561 = vmin.f32 %v5177, %v5209
  %v5562 = vmin.f32 %v5178, %v5210
  %v5563 = vmin.f32 %v5179, %v5211
  %v5564 = vmin.f32 %v5180, %v5212
  %v5565 = vmin.f32 %v5181, %v5213
  %v5566 = vmin.f32 %v5182, %v5214
  %v5567 = vmin.f32 %v5183, %v5215
  %v5568 = vmin.f32 %v5184, %v5216
  %v5569 = vmin.f32 %v5185, %v5217
  %v5570 = vmin.f32 %v5186, %v5218
  %v5571 = vmin.f32 %v5187, %v5219
  %v5572 = vmin.f32 %v5188, %v5220
  %v5573 = vmin.f32 %v5189, %v5221
  %v5574 = vmin.f32 %v5190, %v5222
  %v5575 = vmin.f32 %v5191, %v5223
  %v5576 = vmin.f32 %v5192, %v5224
  %v5577 = vmin.f32 %v5193, %v5225
  %v5578 = vmin.f32 %v5194, %v5226
  %v5579 = vmin.f32 %v5195, %v5227
  %v5580 = vmin.f32 %v5196, %v5228
  %v5581 = vmin.f32 %v5197, %v5229
  %v5582 = vmin.f32 %v5198, %v5230
  %v5583 = vmin.f32 %v5199, %v5231
  %v5584 = vmin.f32 %v5200, %v5232
  %v5585 = vmin.f32 %v5201, %v5233
  %v5586 = vmin.f32 %v5202, %v5234
  %v5587 = vmin.f32 %v5203, %v5235
  %v5588 = vmax.f32 %v5172, %v5204
  %v5589 = vmax.f32 %v5173, %v5205
  %v5590 = vmax.f32 %v5174, %v5206
  %v5591 = vmax.f32 %v5175, %v5207
  %v5592 = vmax.f32 %v5176, %v5208
  %v5593 = vmax.f32 %v5177, %v5209
  %v5594 = vmax.f32 %v5178, %v5210
  %v5595 = vmax.f32 %v5179, %v5211
  %v5596 = vmax.f32 %v5180, %v5212
  %v5597 = vmax.f32 %v5181, %v5213
  %v5598 = vmax.f32 %v5182, %v5214
  %v5599 = vmax.f32 %v5183, %v5215
  %v5600 = vmax.f32 %v5184, %v5216
  %v5601 = vmax.f32 %v5185, %v5217
  %v5602 = vmax.f32 %v5186, %v5218
  %v5603 = vmax.f32 %v5187, %v5219
  %v5604 = vmax.f32 %v5188, %v5220
  %v5605 = vmax.f32 %v5189, %v5221
  %v5606 = vmax.f32 %v5190, %v5222
  %v5607 = vmax.f32 %v5191, %v5223
  %v5608 = vmax.f32 %v5192, %v5224
  %v5609 = vmax.f32 %v5193, %v5225
  %v5610 = vmax.f32 %v5194, %v5226
  %v5611 = vmax.f32 %v5195, %v5227
  %v5612 = vmax.f32 %v5196, %v5228
  %v5613 = vmax.f32 %v5197, %v5229
  %v5614 = vmax.f32 %v5198, %v5230
  %v5615 = vmax.f32 %v5199, %v5231
  %v5616 = vmax.f32 %v5200, %v5232
  %v5617 = vmax.f32 %v5201, %v5233
  %v5618 = vmax.f32 %v5202, %v5234
  %v5619 = vmax.f32 %v5203, %v5235
  %v5620 = vmin.f32 %v5236, %v5300
  %v5621 = vmin.f32 %v5237, %v5301
  %v5622 = vmin.f32 %v5238, %v5302
  %v5623 = vmin.f32 %v5239, %v5303
  %v5624 = vmin.f32 %v5240, %v5304
  %v5625 = vmin.f32 %v5241, %v5305
  %v5626 = vmin.f32 %v5242, %v5306
  %v5627 = vmin.f32 %v5243, %v5307
  %v5628 = vmin.f32 %v5244, %v5308
  %v5629 = vmin.f32 %v5245, %v5309
  %v5630 = vmin.f32 %v5246, %v5310
  %v5631 = vmin.f32 %v5247, %v5311
  %v5632 = vmin.f32 %v5248, %v5312
  %v5633 = vmin.f32 %v5249, %v5313
  %v5634 = vmin.f32 %v5250, %v5314
  %v5635 = vmin.f32 %v5251, %v5315
  %v5636 = vmin.f32 %v5252, %v5316
  %v5637 = vmin.f32 %v5253, %v5317
  %v5638 = vmin.f32 %v5254, %v5318
  %v5639 = vmin.f32 %v5255, %v5319
  %v5640 = vmin.f32 %v5256, %v5320
  %v5641 = vmin.f32 %v5257, %v5321
  %v5642 = vmin.f32 %v5258, %v5322
  %v5643 = vmin.f32 %v5259, %v5323
  %v5644 = vmin.f32 %v5260, %v5324
  %v5645 = vmin.f32 %v5261, %v5325
  %v5646 = vmin.f32 %v5262, %v5326
  %v5647 = vmin.f32 %v5263, %v5327
  %v5648 = vmin.f32 %v5264, %v5328
  %v5649 = vmin.f32 %v5265, %v5329
  %v5650 = vmin.f32 %v5266, %v5330
  %v5651 = vmin.f32 %v5267, %v5331
  %v5652 = vmax.f32 %v5236, %v5300
  %v5653 = vmax.f32 %v5237, %v5301
  %v5654 = vmax.f32 %v5238, %v5302
  %v5655 = vmax.f32 %v5239, %v5303
  %v5656 = vmax.f32 %v5240, %v5304
  %v5657 = vmax.f32 %v5241, %v5305
  %v5658 = vmax.f32 %v5242, %v5306
  %v5659 = vmax.f32 %v5243, %v5307
  %v5660 = vmax.f32 %v5244, %v5308
  %v5661 = vmax.f32 %v5245, %v5309
  %v5662 = vmax.f32 %v5246, %v5310
  %v5663 = vmax.f32 %v5247, %v5311
  %v5664 = vmax.f32 %v5248, %v5312
  %v5665 = vmax.f32 %v5249, %v5313
  %v5666 = vmax.f32 %v5250, %v5314
  %v5667 = vmax.f32 %v5251, %v5315
  %v5668 = vmax.f32 %v5252, %v5316
  %v5669 = vmax.f32 %v5253, %v5317
  %v5670 = vmax.f32 %v5254, %v5318
  %v5671 = vmax.f32 %v5255, %v5319
  %v5672 = vmax.f32 %v5256, %v5320
  %v5673 = vmax.f32 %v5257, %v5321
  %v5674 = vmax.f32 %v5258, %v5322
  %v5675 = vmax.f32 %v5259, %v5323
  %v5676 = vmax.f32 %v5260, %v5324
  %v5677 = vmax.f32 %v5261, %v5325
  %v5678 = vmax.f32 %v5262, %v5326
  %v5679 = vmax.f32 %v5263, %v5327
  %v5680 = vmax.f32 %v5264, %v5328
  %v5681 = vmax.f32 %v5265, %v5329
  %v5682 = vmax.f32 %v5266, %v5330
  %v5683 = vmax.f32 %v5267, %v5331
  %v5684 = vmin.f32 %v5364, %v5428
  %v5685 = vmin.f32 %v5365, %v5429
  %v5686 = vmin.f32 %v5366, %v5430
  %v5687 = vmin.f32 %v5367, %v5431
  %v5688 = vmin.f32 %v5368, %v5432
  %v5689 = vmin.f32 %v5369, %v5433
  %v5690 = vmin.f32 %v5370, %v5434
  %v5691 = vmin.f32 %v5371, %v5435
  %v5692 = vmin.f32 %v5372, %v5436
  %v5693 = vmin.f32 %v5373, %v5437
  %v5694 = vmin.f32 %v5374, %v5438
  %v5695 = vmin.f32 %v5375, %v5439
  %v5696 = vmin.f32 %v5376, %v5440
  %v5697 = vmin.f32 %v5377, %v5441
  %v5698 = vmin.f32 %v5378, %v5442
  %v5699 = vmin.f32 %v5379, %v5443
  %v5700 = vmin.f32 %v5380, %v5444
  %v5701 = vmin.f32 %v5381, %v5445
  %v5702 = vmin.f32 %v5382, %v5446
  %v5703 = vmin.f32 %v5383, %v5447
  %v5704 = vmin.f32 %v5384, %v5448
  %v5705 = vmin.f32 %v5385, %v5449
  %v5706 = vmin.f32 %v5386, %v5450
  %v5707 = vmin.f32 %v5387, %v5451
  %v5708 = vmin.f32 %v5388, %v5452
  %v5709 = vmin.f32 %v5389, %v5453
  %v5710 = vmin.f32 %v5390, %v5454
  %v5711 = vmin.f32 %v5391, %v5455
  %v5712 = vmin.f32 %v5392, %v5456
  %v5713 = vmin.f32 %v5393, %v5457
  %v5714 = vmin.f32 %v5394, %v5458
  %v5715 = vmin.f32 %v5395, %v5459
  %v5716 = vmax.f32 %v5364, %v5428
  %v5717 = vmax.f32 %v5365, %v5429
  %v5718 = vmax.f32 %v5366, %v5430
  %v5719 = vmax.f32 %v5367, %v5431
  %v5720 = vmax.f32 %v5368, %v5432
  %v5721 = vmax.f32 %v5369, %v5433
  %v5722 = vmax.f32 %v5370, %v5434
  %v5723 = vmax.f32 %v5371, %v5435
  %v5724 = vmax.f32 %v5372, %v5436
  %v5725 = vmax.f32 %v5373, %v5437
  %v5726 = vmax.f32 %v5374, %v5438
  %v5727 = vmax.f32 %v5375, %v5439
  %v5728 = vmax.f32 %v5376, %v5440
  %v5729 = vmax.f32 %v5377, %v5441
  %v5730 = vmax.f32 %v5378, %v5442
  %v5731 = vmax.f32 %v5379, %v5443
  %v5732 = vmax.f32 %v5380, %v5444
  %v5733 = vmax.f32 %v5381, %v5445
  %v5734 = vmax.f32 %v5382, %v5446
  %v5735 = vmax.f32 %v5383, %v5447
  %v5736 = vmax.f32 %v5384, %v5448
  %v5737 = vmax.f32 %v5385, %v5449
  %v5738 = vmax.f32 %v5386, %v5450
  %v5739 = vmax.f32 %v5387, %v5451
  %v5740 = vmax.f32 %v5388, %v5452
  %v5741 = vmax.f32 %v5389, %v5453
  %v5742 = vmax.f32 %v5390, %v5454
  %v5743 = vmax.f32 %v5391, %v5455
  %v5744 = vmax.f32 %v5392, %v5456
  %v5745 = vmax.f32 %v5393, %v5457
  %v5746 = vmax.f32 %v5394, %v5458
  %v5747 = vmax.f32 %v5395, %v5459
  %v5748 = vmin.f32 %v5492, %v5556
  %v5749 = vmin.f32 %v5493, %v5557
  %v5750 = vmin.f32 %v5494, %v5558
  %v5751 = vmin.f32 %v5495, %v5559
  %v5752 = vmin.f32 %v5496, %v5560
  %v5753 = vmin.f32 %v5497, %v5561
  %v5754 = vmin.f32 %v5498, %v5562
  %v5755 = vmin.f32 %v5499, %v5563
  %v5756 = vmin.f32 %v5500, %v5564
  %v5757 = vmin.f32 %v5501, %v5565
  %v5758 = vmin.f32 %v5502, %v5566
  %v5759 = vmin.f32 %v5503, %v5567
  %v5760 = vmin.f32 %v5504, %v5568
  %v5761 = vmin.f32 %v5505, %v5569
  %v5762 = vmin.f32 %v5506, %v5570
  %v5763 = vmin.f32 %v5507, %v5571
  %v5764 = vmin.f32 %v5508, %v5572
  %v5765 = vmin.f32 %v5509, %v5573
  %v5766 = vmin.f32 %v5510, %v5574
  %v5767 = vmin.f32 %v5511, %v5575
  %v5768 = vmin.f32 %v5512, %v5576
  %v5769 = vmin.f32 %v5513, %v5577
  %v5770 = vmin.f32 %v5514, %v5578
  %v5771 = vmin.f32 %v5515, %v5579
  %v5772 = vmin.f32 %v5516, %v5580
  %v5773 = vmin.f32 %v5517, %v5581
  %v5774 = vmin.f32 %v5518, %v5582
  %v5775 = vmin.f32 %v5519, %v5583
  %v5776 = vmin.f32 %v5520, %v5584
  %v5777 = vmin.f32 %v5521, %v5585
  %v5778 = vmin.f32 %v5522, %v5586
  %v5779 = vmin.f32 %v5523, %v5587
  %v5780 = vmax.f32 %v5492, %v5556
  %v5781 = vmax.f32 %v5493, %v5557
  %v5782 = vmax.f32 %v5494, %v5558
  %v5783 = vmax.f32 %v5495, %v5559
  %v5784 = vmax.f32 %v5496, %v5560
  %v5785 = vmax.f32 %v5497, %v5561
  %v5786 = vmax.f32 %v5498, %v5562
  %v5787 = vmax.f32 %v5499, %v5563
  %v5788 = vmax.f32 %v5500, %v5564
  %v5789 = vmax.f32 %v5501, %v5565
  %v5790 = vmax.f32 %v5502, %v5566
  %v5791 = vmax.f32 %v5503, %v5567
  %v5792 = vmax.f32 %v5504, %v5568
  %v5793 = vmax.f32 %v5505, %v5569
  %v5794 = vmax.f32 %v5506, %v5570
  %v5795 = vmax.f32 %v5507, %v5571
  %v5796 = vmax.f32 %v5508, %v5572
  %v5797 = vmax.f32 %v5509, %v5573
  %v5798 = vmax.f32 %v5510, %v5574
  %v5799 = vmax.f32 %v5511, %v5575
  %v5800 = vmax.f32 %v5512, %v5576
  %v5801 = vmax.f32 %v5513, %v5577
  %v5802 = vmax.f32 %v5514, %v5578
  %v5803 = vmax.f32 %v5515, %v5579
  %v5804 = vmax.f32 %v5516, %v5580
  %v5805 = vmax.f32 %v5517, %v5581
  %v5806 = vmax.f32 %v5518, %v5582
  %v5807 = vmax.f32 %v5519, %v5583
  %v5808 = vmax.f32 %v5520, %v5584
  %v5809 = vmax.f32 %v5521, %v5585
  %v5810 = vmax.f32 %v5522, %v5586
  %v5811 = vmax.f32 %v5523, %v5587
  %v5812 = vmin.f32 %v5748, %v5620
  %v5813 = vmin.f32 %v5749, %v5621
  %v5814 = vmin.f32 %v5750, %v5622
  %v5815 = vmin.f32 %v5751, %v5623
  %v5816 = vmin.f32 %v5752, %v5624
  %v5817 = vmin.f32 %v5753, %v5625
  %v5818 = vmin.f32 %v5754, %v5626
  %v5819 = vmin.f32 %v5755, %v5627
  %v5820 = vmin.f32 %v5756, %v5628
  %v5821 = vmin.f32 %v5757, %v5629
  %v5822 = vmin.f32 %v5758, %v5630
  %v5823 = vmin.f32 %v5759, %v5631
  %v5824 = vmin.f32 %v5760, %v5632
  %v5825 = vmin.f32 %v5761, %v5633
  %v5826 = vmin.f32 %v5762, %v5634
  %v5827 = vmin.f32 %v5763, %v5635
  %v5828 = vmin.f32 %v5764, %v5636
  %v5829 = vmin.f32 %v5765, %v5637
  %v5830 = vmin.f32 %v5766, %v5638
  %v5831 = vmin.f32 %v5767, %v5639
  %v5832 = vmin.f32 %v5768, %v5640
  %v5833 = vmin.f32 %v5769, %v5641
  %v5834 = vmin.f32 %v5770, %v5642
  %v5835 = vmin.f32 %v5771, %v5643
  %v5836 = vmin.f32 %v5772, %v5644
  %v5837 = vmin.f32 %v5773, %v5645
  %v5838 = vmin.f32 %v5774, %v5646
  %v5839 = vmin.f32 %v5775, %v5647
  %v5840 = vmin.f32 %v5776, %v5648
  %v5841 = vmin.f32 %v5777, %v5649
  %v5842 = vmin.f32 %v5778, %v5650
  %v5843 = vmin.f32 %v5779, %v5651
  %v5844 = vmax.f32 %v5748, %v5620
  %v5845 = vmax.f32 %v5749, %v5621
  %v5846 = vmax.f32 %v5750, %v5622
  %v5847 = vmax.f32 %v5751, %v5623
  %v5848 = vmax.f32 %v5752, %v5624
  %v5849 = vmax.f32 %v5753, %v5625
  %v5850 = vmax.f32 %v5754, %v5626
  %v5851 = vmax.f32 %v5755, %v5627
  %v5852 = vmax.f32 %v5756, %v5628
  %v5853 = vmax.f32 %v5757, %v5629
  %v5854 = vmax.f32 %v5758, %v5630
  %v5855 = vmax.f32 %v5759, %v5631
  %v5856 = vmax.f32 %v5760, %v5632
  %v5857 = vmax.f32 %v5761, %v5633
  %v5858 = vmax.f32 %v5762, %v5634
  %v5859 = vmax.f32 %v5763, %v5635
  %v5860 = vmax.f32 %v5764, %v5636
  %v5861 = vmax.f32 %v5765, %v5637
  %v5862 = vmax.f32 %v5766, %v5638
  %v5863 = vmax.f32 %v5767, %v5639
  %v5864 = vmax.f32 %v5768, %v5640
  %v5865 = vmax.f32 %v5769, %v5641
  %v5866 = vmax.f32 %v5770, %v5642
  %v5867 = vmax.f32 %v5771, %v5643
  %v5868 = vmax.f32 %v5772, %v5644
  %v5869 = vmax.f32 %v5773, %v5645
  %v5870 = vmax.f32 %v5774, %v5646
  %v5871 = vmax.f32 %v5775, %v5647
  %v5872 = vmax.f32 %v5776, %v5648
  %v5873 = vmax.f32 %v5777, %v5649
  %v5874 = vmax.f32 %v5778, %v5650
  %v5875 = vmax.f32 %v5779, %v5651
  %v5876 = vmin.f32 %v5812, %v5684
  %v5877 = vmin.f32 %v5813, %v5685
  %v5878 = vmin.f32 %v5814, %v5686
  %v5879 = vmin.f32 %v5815, %v5687
  %v5880 = vmin.f32 %v5816, %v5688
  %v5881 = vmin.f32 %v5817, %v5689
  %v5882 = vmin.f32 %v5818, %v5690
  %v5883 = vmin.f32 %v5819, %v5691
  %v5884 = vmin.f32 %v5820, %v5692
  %v5885 = vmin.f32 %v5821, %v5693
  %v5886 = vmin.f32 %v5822, %v5694
  %v5887 = vmin.f32 %v5823, %v5695
  %v5888 = vmin.f32 %v5824, %v5696
  %v5889 = vmin.f32 %v5825, %v5697
  %v5890 = vmin.f32 %v5826, %v5698
  %v5891 = vmin.f32 %v5827, %v5699
  %v5892 = vmin.f32 %v5828, %v5700
  %v5893 = vmin.f32 %v5829, %v5701
  %v5894 = vmin.f32 %v5830, %v5702
  %v5895 = vmin.f32 %v5831, %v5703
  %v5896 = vmin.f32 %v5832, %v5704
  %v5897 = vmin.f32 %v5833, %v5705
  %v5898 = vmin.f32 %v5834, %v5706
  %v5899 = vmin.f32 %v5835, %v5707
  %v5900 = vmin.f32 %v5836, %v5708
  %v5901 = vmin.f32 %v5837, %v5709
  %v5902 = vmin.f32 %v5838, %v5710
  %v5903 = vmin.f32 %v5839, %v5711
  %v5904 = vmin.f32 %v5840, %v5712
  %v5905 = vmin.f32 %v5841, %v5713
  %v5906 = vmin.f32 %v5842, %v5714
  %v5907 = vmin.f32 %v5843, %v5715
  %v5908 = vmax.f32 %v5812, %v5684
  %v5909 = vmax.f32 %v5813, %v5685
  %v5910 = vmax.f32 %v5814, %v5686
  %v5911 = vmax.f32 %v5815, %v5687
  %v5912 = vmax.f32 %v5816, %v5688
  %v5913 = vmax.f32 %v5817, %v5689
  %v5914 = vmax.f32 %v5818, %v5690
  %v5915 = vmax.f32 %v5819, %v5691
  %v5916 = vmax.f32 %v5820, %v5692
  %v5917 = vmax.f32 %v5821, %v5693
  %v5918 = vmax.f32 %v5822, %v5694
  %v5919 = vmax.f32 %v5823, %v5695
  %v5920 = vmax.f32 %v5824, %v5696
  %v5921 = vmax.f32 %v5825, %v5697
  %v5922 = vmax.f32 %v5826, %v5698
  %v5923 = vmax.f32 %v5827, %v5699
  %v5924 = vmax.f32 %v5828, %v5700
  %v5925 = vmax.f32 %v5829, %v5701
  %v5926 = vmax.f32 %v5830, %v5702
  %v5927 = vmax.f32 %v5831, %v5703
  %v5928 = vmax.f32 %v5832, %v5704
  %v5929 = vmax.f32 %v5833, %v5705
  %v5930 = vmax.f32 %v5834, %v5706
  %v5931 = vmax.f32 %v5835, %v5707
  %v5932 = vmax.f32 %v5836, %v5708
  %v5933 = vmax.f32 %v5837, %v5709
  %v5934 = vmax.f32 %v5838, %v5710
  %v5935 = vmax.f32 %v5839, %v5711
  %v5936 = vmax.f32 %v5840, %v5712
  %v5937 = vmax.f32 %v5841, %v5713
  %v5938 = vmax.f32 %v5842, %v5714
  %v5939 = vmax.f32 %v5843, %v5715
  %v5940 = vmax.f32 %v5876, %v5460
  %v5941 = vmax.f32 %v5877, %v5461
  %v5942 = vmax.f32 %v5878, %v5462
  %v5943 = vmax.f32 %v5879, %v5463
  %v5944 = vmax.f32 %v5880, %v5464
  %v5945 = vmax.f32 %v5881, %v5465
  %v5946 = vmax.f32 %v5882, %v5466
  %v5947 = vmax.f32 %v5883, %v5467
  %v5948 = vmax.f32 %v5884, %v5468
  %v5949 = vmax.f32 %v5885, %v5469
  %v5950 = vmax.f32 %v5886, %v5470
  %v5951 = vmax.f32 %v5887, %v5471
  %v5952 = vmax.f32 %v5888, %v5472
  %v5953 = vmax.f32 %v5889, %v5473
  %v5954 = vmax.f32 %v5890, %v5474
  %v5955 = vmax.f32 %v5891, %v5475
  %v5956 = vmax.f32 %v5892, %v5476
  %v5957 = vmax.f32 %v5893, %v5477
  %v5958 = vmax.f32 %v5894, %v5478
  %v5959 = vmax.f32 %v5895, %v5479
  %v5960 = vmax.f32 %v5896, %v5480
  %v5961 = vmax.f32 %v5897, %v5481
  %v5962 = vmax.f32 %v5898, %v5482
  %v5963 = vmax.f32 %v5899, %v5483
  %v5964 = vmax.f32 %v5900, %v5484
  %v5965 = vmax.f32 %v5901, %v5485
  %v5966 = vmax.f32 %v5902, %v5486
  %v5967 = vmax.f32 %v5903, %v5487
  %v5968 = vmax.f32 %v5904, %v5488
  %v5969 = vmax.f32 %v5905, %v5489
  %v5970 = vmax.f32 %v5906, %v5490
  %v5971 = vmax.f32 %v5907, %v5491
  %v5972 = vmin.f32 %v5524, %v5588
  %v5973 = vmin.f32 %v5525, %v5589
  %v5974 = vmin.f32 %v5526, %v5590
  %v5975 = vmin.f32 %v5527, %v5591
  %v5976 = vmin.f32 %v5528, %v5592
  %v5977 = vmin.f32 %v5529, %v5593
  %v5978 = vmin.f32 %v5530, %v5594
  %v5979 = vmin.f32 %v5531, %v5595
  %v5980 = vmin.f32 %v5532, %v5596
  %v5981 = vmin.f32 %v5533, %v5597
  %v5982 = vmin.f32 %v5534, %v5598
  %v5983 = vmin.f32 %v5535, %v5599
  %v5984 = vmin.f32 %v5536, %v5600
  %v5985 = vmin.f32 %v5537, %v5601
  %v5986 = vmin.f32 %v5538, %v5602
  %v5987 = vmin.f32 %v5539, %v5603
  %v5988 = vmin.f32 %v5540, %v5604
  %v5989 = vmin.f32 %v5541, %v5605
  %v5990 = vmin.f32 %v5542, %v5606
  %v5991 = vmin.f32 %v5543, %v5607
  %v5992 = vmin.f32 %v5544, %v5608
  %v5993 = vmin.f32 %v5545, %v5609
  %v5994 = vmin.f32 %v5546, %v5610
  %v5995 = vmin.f32 %v5547, %v5611
  %v5996 = vmin.f32 %v5548, %v5612
  %v5997 = vmin.f32 %v5549, %v5613
  %v5998 = vmin.f32 %v5550, %v5614
  %v5999 = vmin.f32 %v5551, %v5615
  %v6000 = vmin.f32 %v5552, %v5616
  %v6001 = vmin.f32 %v5553, %v5617
  %v6002 = vmin.f32 %v5554, %v5618
  %v6003 = vmin.f32 %v5555, %v5619
  %v6004 = vmax.f32 %v5524, %v5588
  %v6005 = vmax.f32 %v5525, %v5589
  %v6006 = vmax.f32 %v5526, %v5590
  %v6007 = vmax.f32 %v5527, %v5591
  %v6008 = vmax.f32 %v5528, %v5592
  %v6009 = vmax.f32 %v5529, %v5593
  %v6010 = vmax.f32 %v5530, %v5594
  %v6011 = vmax.f32 %v5531, %v5595
  %v6012 = vmax.f32 %v5532, %v5596
  %v6013 = vmax.f32 %v5533, %v5597
  %v6014 = vmax.f32 %v5534, %v5598
  %v6015 = vmax.f32 %v5535, %v5599
  %v6016 = vmax.f32 %v5536, %v5600
  %v6017 = vmax.f32 %v5537, %v5601
  %v6018 = vmax.f32 %v5538, %v5602
  %v6019 = vmax.f32 %v5539, %v5603
  %v6020 = vmax.f32 %v5540, %v5604
  %v6021 = vmax.f32 %v5541, %v5605
  %v6022 = vmax.f32 %v5542, %v5606
  %v6023 = vmax.f32 %v5543, %v5607
  %v6024 = vmax.f32 %v5544, %v5608
  %v6025 = vmax.f32 %v5545, %v5609
  %v6026 = vmax.f32 %v5546, %v5610
  %v6027 = vmax.f32 %v5547, %v5611
  %v6028 = vmax.f32 %v5548, %v5612
  %v6029 = vmax.f32 %v5549, %v5613
  %v6030 = vmax.f32 %v5550, %v5614
  %v6031 = vmax.f32 %v5551, %v5615
  %v6032 = vmax.f32 %v5552, %v5616
  %v6033 = vmax.f32 %v5553, %v5617
  %v6034 = vmax.f32 %v5554, %v5618
  %v6035 = vmax.f32 %v5555, %v5619
  %v6036 = vmin.f32 %v6004, %v5652
  %v6037 = vmin.f32 %v6005, %v5653
  %v6038 = vmin.f32 %v6006, %v5654
  %v6039 = vmin.f32 %v6007, %v5655
  %v6040 = vmin.f32 %v6008, %v5656
  %v6041 = vmin.f32 %v6009, %v5657
  %v6042 = vmin.f32 %v6010, %v5658
  %v6043 = vmin.f32 %v6011, %v5659
  %v6044 = vmin.f32 %v6012, %v5660
  %v6045 = vmin.f32 %v6013, %v5661
  %v6046 = vmin.f32 %v6014, %v5662
  %v6047 = vmin.f32 %v6015, %v5663
  %v6048 = vmin.f32 %v6016, %v5664
  %v6049 = vmin.f32 %v6017, %v5665
  %v6050 = vmin.f32 %v6018, %v5666
  %v6051 = vmin.f32 %v6019, %v5667
  %v6052 = vmin.f32 %v6020, %v5668
  %v6053 = vmin.f32 %v6021, %v5669
  %v6054 = vmin.f32 %v6022, %v5670
  %v6055 = vmin.f32 %v6023, %v5671
  %v6056 = vmin.f32 %v6024, %v5672
  %v6057 = vmin.f32 %v6025, %v5673
  %v6058 = vmin.f32 %v6026, %v5674
  %v6059 = vmin.f32 %v6027, %v5675
  %v6060 = vmin.f32 %v6028, %v5676
  %v6061 = vmin.f32 %v6029, %v5677
  %v6062 = vmin.f32 %v6030, %v5678
  %v6063 = vmin.f32 %v6031, %v5679
  %v6064 = vmin.f32 %v6032, %v5680
  %v6065 = vmin.f32 %v6033, %v5681
  %v6066 = vmin.f32 %v6034, %v5682
  %v6067 = vmin.f32 %v6035, %v5683
  %v6068 = vmax.f32 %v6004, %v5652
  %v6069 = vmax.f32 %v6005, %v5653
  %v6070 = vmax.f32 %v6006, %v5654
  %v6071 = vmax.f32 %v6007, %v5655
  %v6072 = vmax.f32 %v6008, %v5656
  %v6073 = vmax.f32 %v6009, %v5657
  %v6074 = vmax.f32 %v6010, %v5658
  %v6075 = vmax.f32 %v6011, %v5659
  %v6076 = vmax.f32 %v6012, %v5660
  %v6077 = vmax.f32 %v6013, %v5661
  %v6078 = vmax.f32 %v6014, %v5662
  %v6079 = vmax.f32 %v6015, %v5663
  %v6080 = vmax.f32 %v6016, %v5664
  %v6081 = vmax.f32 %v6017, %v5665
  %v6082 = vmax.f32 %v6018, %v5666
  %v6083 = vmax.f32 %v6019, %v5667
  %v6084 = vmax.f32 %v6020, %v5668
  %v6085 = vmax.f32 %v6021, %v5669
  %v6086 = vmax.f32 %v6022, %v5670
  %v6087 = vmax.f32 %v6023, %v5671
  %v6088 = vmax.f32 %v6024, %v5672
  %v6089 = vmax.f32 %v6025, %v5673
  %v6090 = vmax.f32 %v6026, %v5674
  %v6091 = vmax.f32 %v6027, %v5675
  %v6092 = vmax.f32 %v6028, %v5676
  %v6093 = vmax.f32 %v6029, %v5677
  %v6094 = vmax.f32 %v6030, %v5678
  %v6095 = vmax.f32 %v6031, %v5679
  %v6096 = vmax.f32 %v6032, %v5680
  %v6097 = vmax.f32 %v6033, %v5681
  %v6098 = vmax.f32 %v6034, %v5682
  %v6099 = vmax.f32 %v6035, %v5683
  %v6100 = vmin.f32 %v6068, %v5716
  %v6101 = vmin.f32 %v6069, %v5717
  %v6102 = vmin.f32 %v6070, %v5718
  %v6103 = vmin.f32 %v6071, %v5719
  %v6104 = vmin.f32 %v6072, %v5720
  %v6105 = vmin.f32 %v6073, %v5721
  %v6106 = vmin.f32 %v6074, %v5722
  %v6107 = vmin.f32 %v6075, %v5723
  %v6108 = vmin.f32 %v6076, %v5724
  %v6109 = vmin.f32 %v6077, %v5725
  %v6110 = vmin.f32 %v6078, %v5726
  %v6111 = vmin.f32 %v6079, %v5727
  %v6112 = vmin.f32 %v6080, %v5728
  %v6113 = vmin.f32 %v6081, %v5729
  %v6114 = vmin.f32 %v6082, %v5730
  %v6115 = vmin.f32 %v6083, %v5731
  %v6116 = vmin.f32 %v6084, %v5732
  %v6117 = vmin.f32 %v6085, %v5733
  %v6118 = vmin.f32 %v6086, %v5734
  %v6119 = vmin.f32 %v6087, %v5735
  %v6120 = vmin.f32 %v6088, %v5736
  %v6121 = vmin.f32 %v6089, %v5737
  %v6122 = vmin.f32 %v6090, %v5738
  %v6123 = vmin.f32 %v6091, %v5739
  %v6124 = vmin.f32 %v6092, %v5740
  %v6125 = vmin.f32 %v6093, %v5741
  %v6126 = vmin.f32 %v6094, %v5742
  %v6127 = vmin.f32 %v6095, %v5743
  %v6128 = vmin.f32 %v6096, %v5744
  %v6129 = vmin.f32 %v6097, %v5745
  %v6130 = vmin.f32 %v6098, %v5746
  %v6131 = vmin.f32 %v6099, %v5747
  %v6132 = vmax.f32 %v6068, %v5716
  %v6133 = vmax.f32 %v6069, %v5717
  %v6134 = vmax.f32 %v6070, %v5718
  %v6135 = vmax.f32 %v6071, %v5719
  %v6136 = vmax.f32 %v6072, %v5720
  %v6137 = vmax.f32 %v6073, %v5721
  %v6138 = vmax.f32 %v6074, %v5722
  %v6139 = vmax.f32 %v6075, %v5723
  %v6140 = vmax.f32 %v6076, %v5724
  %v6141 = vmax.f32 %v6077, %v5725
  %v6142 = vmax.f32 %v6078, %v5726
  %v6143 = vmax.f32 %v6079, %v5727
  %v6144 = vmax.f32 %v6080, %v5728
  %v6145 = vmax.f32 %v6081, %v5729
  %v6146 = vmax.f32 %v6082, %v5730
  %v6147 = vmax.f32 %v6083, %v5731
  %v6148 = vmax.f32 %v6084, %v5732
  %v6149 = vmax.f32 %v6085, %v5733
  %v6150 = vmax.f32 %v6086, %v5734
  %v6151 = vmax.f32 %v6087, %v5735
  %v6152 = vmax.f32 %v6088, %v5736
  %v6153 = vmax.f32 %v6089, %v5737
  %v6154 = vmax.f32 %v6090, %v5738
  %v6155 = vmax.f32 %v6091, %v5739
  %v6156 = vmax.f32 %v6092, %v5740
  %v6157 = vmax.f32 %v6093, %v5741
  %v6158 = vmax.f32 %v6094, %v5742
  %v6159 = vmax.f32 %v6095, %v5743
  %v6160 = vmax.f32 %v6096, %v5744
  %v6161 = vmax.f32 %v6097, %v5745
  %v6162 = vmax.f32 %v6098, %v5746
  %v6163 = vmax.f32 %v6099, %v5747
  %v6164 = vmin.f32 %v6132, %v5940
  %v6165 = vmin.f32 %v6133, %v5941
  %v6166 = vmin.f32 %v6134, %v5942
  %v6167 = vmin.f32 %v6135, %v5943
  %v6168 = vmin.f32 %v6136, %v5944
  %v6169 = vmin.f32 %v6137, %v5945
  %v6170 = vmin.f32 %v6138, %v5946
  %v6171 = vmin.f32 %v6139, %v5947
  %v6172 = vmin.f32 %v6140, %v5948
  %v6173 = vmin.f32 %v6141, %v5949
  %v6174 = vmin.f32 %v6142, %v5950
  %v6175 = vmin.f32 %v6143, %v5951
  %v6176 = vmin.f32 %v6144, %v5952
  %v6177 = vmin.f32 %v6145, %v5953
  %v6178 = vmin.f32 %v6146, %v5954
  %v6179 = vmin.f32 %v6147, %v5955
  %v6180 = vmin.f32 %v6148, %v5956
  %v6181 = vmin.f32 %v6149, %v5957
  %v6182 = vmin.f32 %v6150, %v5958
  %v6183 = vmin.f32 %v6151, %v5959
  %v6184 = vmin.f32 %v6152, %v5960
  %v6185 = vmin.f32 %v6153, %v5961
  %v6186 = vmin.f32 %v6154, %v5962
  %v6187 = vmin.f32 %v6155, %v5963
  %v6188 = vmin.f32 %v6156, %v5964
  %v6189 = vmin.f32 %v6157, %v5965
  %v6190 = vmin.f32 %v6158, %v5966
  %v6191 = vmin.f32 %v6159, %v5967
  %v6192 = vmin.f32 %v6160, %v5968
  %v6193 = vmin.f32 %v6161, %v5969
  %v6194 = vmin.f32 %v6162, %v5970
  %v6195 = vmin.f32 %v6163, %v5971
  %v6196 = vld [vmem:[%s2739 + $0x4] sm:$0xff]
  %v6197 = vld [vmem:[%s2739 + $0xc] sm:$0xff]
  %v6198 = vld [vmem:[%s2739 + $0x1c] sm:$0xff]
  %v6199 = vld [vmem:[%s2739 + $0x24] sm:$0xff]
  %v6200 = vld [vmem:[%s2739 + $0x34] sm:$0xff]
  %v6201 = vld [vmem:[%s2739 + $0x3c] sm:$0xff]
  %v6202 = vld [vmem:[%s2739 + $0x4c] sm:$0xff]
  %v6203 = vld [vmem:[%s2739 + $0x54] sm:$0xff]
  %v6204 = vld [vmem:[%s2739 + $0x64] sm:$0xff]
  %v6205 = vld [vmem:[%s2739 + $0x6c] sm:$0xff]
  %v6206 = vld [vmem:[%s2739 + $0x7c] sm:$0xff]
  %v6207 = vld [vmem:[%s2739 + $0x84] sm:$0xff]
  %v6208 = vld [vmem:[%s2739 + $0x94] sm:$0xff]
  %v6209 = vld [vmem:[%s2739 + $0x9c] sm:$0xff]
  %v6210 = vld [vmem:[%s2739 + $0xac] sm:$0xff]
  %v6211 = vld [vmem:[%s2739 + $0xb4] sm:$0xff]
  %v6212 = vld [vmem:[%s2739 + $0xc4] sm:$0xff]
  %v6213 = vld [vmem:[%s2739 + $0xcc] sm:$0xff]
  %v6214 = vld [vmem:[%s2739 + $0xdc] sm:$0xff]
  %v6215 = vld [vmem:[%s2739 + $0xe4] sm:$0xff]
  %v6216 = vld [vmem:[%s2739 + $0xf4] sm:$0xff]
  %v6217 = vld [vmem:[%s2739 + $0xfc] sm:$0xff]
  %v6218 = vld [vmem:[%s2739 + $0x10c] sm:$0xff]
  %v6219 = vld [vmem:[%s2739 + $0x114] sm:$0xff]
  %v6220 = vld [vmem:[%s2739 + $0x124] sm:$0xff]
  %v6221 = vld [vmem:[%s2739 + $0x12c] sm:$0xff]
  %v6222 = vld [vmem:[%s2739 + $0x13c] sm:$0xff]
  %v6223 = vld [vmem:[%s2739 + $0x144] sm:$0xff]
  %v6224 = vld [vmem:[%s2739 + $0x154] sm:$0xff]
  %v6225 = vld [vmem:[%s2739 + $0x15c] sm:$0xff]
  %v6226 = vld [vmem:[%s2739 + $0x16c] sm:$0xff]
  %v6227 = vld [vmem:[%s2739 + $0x174] sm:$0xff]
  %v6228 = vmin.f32 %v5780, %v5844
  %v6229 = vmin.f32 %v5781, %v5845
  %v6230 = vmin.f32 %v5782, %v5846
  %v6231 = vmin.f32 %v5783, %v5847
  %v6232 = vmin.f32 %v5784, %v5848
  %v6233 = vmin.f32 %v5785, %v5849
  %v6234 = vmin.f32 %v5786, %v5850
  %v6235 = vmin.f32 %v5787, %v5851
  %v6236 = vmin.f32 %v5788, %v5852
  %v6237 = vmin.f32 %v5789, %v5853
  %v6238 = vmin.f32 %v5790, %v5854
  %v6239 = vmin.f32 %v5791, %v5855
  %v6240 = vmin.f32 %v5792, %v5856
  %v6241 = vmin.f32 %v5793, %v5857
  %v6242 = vmin.f32 %v5794, %v5858
  %v6243 = vmin.f32 %v5795, %v5859
  %v6244 = vmin.f32 %v5796, %v5860
  %v6245 = vmin.f32 %v5797, %v5861
  %v6246 = vmin.f32 %v5798, %v5862
  %v6247 = vmin.f32 %v5799, %v5863
  %v6248 = vmin.f32 %v5800, %v5864
  %v6249 = vmin.f32 %v5801, %v5865
  %v6250 = vmin.f32 %v5802, %v5866
  %v6251 = vmin.f32 %v5803, %v5867
  %v6252 = vmin.f32 %v5804, %v5868
  %v6253 = vmin.f32 %v5805, %v5869
  %v6254 = vmin.f32 %v5806, %v5870
  %v6255 = vmin.f32 %v5807, %v5871
  %v6256 = vmin.f32 %v5808, %v5872
  %v6257 = vmin.f32 %v5809, %v5873
  %v6258 = vmin.f32 %v5810, %v5874
  %v6259 = vmin.f32 %v5811, %v5875
  %v6260 = vmax.f32 %v5780, %v5844
  %v6261 = vmax.f32 %v5781, %v5845
  %v6262 = vmax.f32 %v5782, %v5846
  %v6263 = vmax.f32 %v5783, %v5847
  %v6264 = vmax.f32 %v5784, %v5848
  %v6265 = vmax.f32 %v5785, %v5849
  %v6266 = vmax.f32 %v5786, %v5850
  %v6267 = vmax.f32 %v5787, %v5851
  %v6268 = vmax.f32 %v5788, %v5852
  %v6269 = vmax.f32 %v5789, %v5853
  %v6270 = vmax.f32 %v5790, %v5854
  %v6271 = vmax.f32 %v5791, %v5855
  %v6272 = vmax.f32 %v5792, %v5856
  %v6273 = vmax.f32 %v5793, %v5857
  %v6274 = vmax.f32 %v5794, %v5858
  %v6275 = vmax.f32 %v5795, %v5859
  %v6276 = vmax.f32 %v5796, %v5860
  %v6277 = vmax.f32 %v5797, %v5861
  %v6278 = vmax.f32 %v5798, %v5862
  %v6279 = vmax.f32 %v5799, %v5863
  %v6280 = vmax.f32 %v5800, %v5864
  %v6281 = vmax.f32 %v5801, %v5865
  %v6282 = vmax.f32 %v5802, %v5866
  %v6283 = vmax.f32 %v5803, %v5867
  %v6284 = vmax.f32 %v5804, %v5868
  %v6285 = vmax.f32 %v5805, %v5869
  %v6286 = vmax.f32 %v5806, %v5870
  %v6287 = vmax.f32 %v5807, %v5871
  %v6288 = vmax.f32 %v5808, %v5872
  %v6289 = vmax.f32 %v5809, %v5873
  %v6290 = vmax.f32 %v5810, %v5874
  %v6291 = vmax.f32 %v5811, %v5875
  %v6292 = vmin.f32 %v5908, %v5972
  %v6293 = vmin.f32 %v5909, %v5973
  %v6294 = vmin.f32 %v5910, %v5974
  %v6295 = vmin.f32 %v5911, %v5975
  %v6296 = vmin.f32 %v5912, %v5976
  %v6297 = vmin.f32 %v5913, %v5977
  %v6298 = vmin.f32 %v5914, %v5978
  %v6299 = vmin.f32 %v5915, %v5979
  %v6300 = vmin.f32 %v5916, %v5980
  %v6301 = vmin.f32 %v5917, %v5981
  %v6302 = vmin.f32 %v5918, %v5982
  %v6303 = vmin.f32 %v5919, %v5983
  %v6304 = vmin.f32 %v5920, %v5984
  %v6305 = vmin.f32 %v5921, %v5985
  %v6306 = vmin.f32 %v5922, %v5986
  %v6307 = vmin.f32 %v5923, %v5987
  %v6308 = vmin.f32 %v5924, %v5988
  %v6309 = vmin.f32 %v5925, %v5989
  %v6310 = vmin.f32 %v5926, %v5990
  %v6311 = vmin.f32 %v5927, %v5991
  %v6312 = vmin.f32 %v5928, %v5992
  %v6313 = vmin.f32 %v5929, %v5993
  %v6314 = vmin.f32 %v5930, %v5994
  %v6315 = vmin.f32 %v5931, %v5995
  %v6316 = vmin.f32 %v5932, %v5996
  %v6317 = vmin.f32 %v5933, %v5997
  %v6318 = vmin.f32 %v5934, %v5998
  %v6319 = vmin.f32 %v5935, %v5999
  %v6320 = vmin.f32 %v5936, %v6000
  %v6321 = vmin.f32 %v5937, %v6001
  %v6322 = vmin.f32 %v5938, %v6002
  %v6323 = vmin.f32 %v5939, %v6003
  %v6324 = vmax.f32 %v5908, %v5972
  %v6325 = vmax.f32 %v5909, %v5973
  %v6326 = vmax.f32 %v5910, %v5974
  %v6327 = vmax.f32 %v5911, %v5975
  %v6328 = vmax.f32 %v5912, %v5976
  %v6329 = vmax.f32 %v5913, %v5977
  %v6330 = vmax.f32 %v5914, %v5978
  %v6331 = vmax.f32 %v5915, %v5979
  %v6332 = vmax.f32 %v5916, %v5980
  %v6333 = vmax.f32 %v5917, %v5981
  %v6334 = vmax.f32 %v5918, %v5982
  %v6335 = vmax.f32 %v5919, %v5983
  %v6336 = vmax.f32 %v5920, %v5984
  %v6337 = vmax.f32 %v5921, %v5985
  %v6338 = vmax.f32 %v5922, %v5986
  %v6339 = vmax.f32 %v5923, %v5987
  %v6340 = vmax.f32 %v5924, %v5988
  %v6341 = vmax.f32 %v5925, %v5989
  %v6342 = vmax.f32 %v5926, %v5990
  %v6343 = vmax.f32 %v5927, %v5991
  %v6344 = vmax.f32 %v5928, %v5992
  %v6345 = vmax.f32 %v5929, %v5993
  %v6346 = vmax.f32 %v5930, %v5994
  %v6347 = vmax.f32 %v5931, %v5995
  %v6348 = vmax.f32 %v5932, %v5996
  %v6349 = vmax.f32 %v5933, %v5997
  %v6350 = vmax.f32 %v5934, %v5998
  %v6351 = vmax.f32 %v5935, %v5999
  %v6352 = vmax.f32 %v5936, %v6000
  %v6353 = vmax.f32 %v5937, %v6001
  %v6354 = vmax.f32 %v5938, %v6002
  %v6355 = vmax.f32 %v5939, %v6003
  %v6356 = vmin.f32 %v6036, %v6100
  %v6357 = vmin.f32 %v6037, %v6101
  %v6358 = vmin.f32 %v6038, %v6102
  %v6359 = vmin.f32 %v6039, %v6103
  %v6360 = vmin.f32 %v6040, %v6104
  %v6361 = vmin.f32 %v6041, %v6105
  %v6362 = vmin.f32 %v6042, %v6106
  %v6363 = vmin.f32 %v6043, %v6107
  %v6364 = vmin.f32 %v6044, %v6108
  %v6365 = vmin.f32 %v6045, %v6109
  %v6366 = vmin.f32 %v6046, %v6110
  %v6367 = vmin.f32 %v6047, %v6111
  %v6368 = vmin.f32 %v6048, %v6112
  %v6369 = vmin.f32 %v6049, %v6113
  %v6370 = vmin.f32 %v6050, %v6114
  %v6371 = vmin.f32 %v6051, %v6115
  %v6372 = vmin.f32 %v6052, %v6116
  %v6373 = vmin.f32 %v6053, %v6117
  %v6374 = vmin.f32 %v6054, %v6118
  %v6375 = vmin.f32 %v6055, %v6119
  %v6376 = vmin.f32 %v6056, %v6120
  %v6377 = vmin.f32 %v6057, %v6121
  %v6378 = vmin.f32 %v6058, %v6122
  %v6379 = vmin.f32 %v6059, %v6123
  %v6380 = vmin.f32 %v6060, %v6124
  %v6381 = vmin.f32 %v6061, %v6125
  %v6382 = vmin.f32 %v6062, %v6126
  %v6383 = vmin.f32 %v6063, %v6127
  %v6384 = vmin.f32 %v6064, %v6128
  %v6385 = vmin.f32 %v6065, %v6129
  %v6386 = vmin.f32 %v6066, %v6130
  %v6387 = vmin.f32 %v6067, %v6131
  %v6388 = vmax.f32 %v6036, %v6100
  %v6389 = vmax.f32 %v6037, %v6101
  %v6390 = vmax.f32 %v6038, %v6102
  %v6391 = vmax.f32 %v6039, %v6103
  %v6392 = vmax.f32 %v6040, %v6104
  %v6393 = vmax.f32 %v6041, %v6105
  %v6394 = vmax.f32 %v6042, %v6106
  %v6395 = vmax.f32 %v6043, %v6107
  %v6396 = vmax.f32 %v6044, %v6108
  %v6397 = vmax.f32 %v6045, %v6109
  %v6398 = vmax.f32 %v6046, %v6110
  %v6399 = vmax.f32 %v6047, %v6111
  %v6400 = vmax.f32 %v6048, %v6112
  %v6401 = vmax.f32 %v6049, %v6113
  %v6402 = vmax.f32 %v6050, %v6114
  %v6403 = vmax.f32 %v6051, %v6115
  %v6404 = vmax.f32 %v6052, %v6116
  %v6405 = vmax.f32 %v6053, %v6117
  %v6406 = vmax.f32 %v6054, %v6118
  %v6407 = vmax.f32 %v6055, %v6119
  %v6408 = vmax.f32 %v6056, %v6120
  %v6409 = vmax.f32 %v6057, %v6121
  %v6410 = vmax.f32 %v6058, %v6122
  %v6411 = vmax.f32 %v6059, %v6123
  %v6412 = vmax.f32 %v6060, %v6124
  %v6413 = vmax.f32 %v6061, %v6125
  %v6414 = vmax.f32 %v6062, %v6126
  %v6415 = vmax.f32 %v6063, %v6127
  %v6416 = vmax.f32 %v6064, %v6128
  %v6417 = vmax.f32 %v6065, %v6129
  %v6418 = vmax.f32 %v6066, %v6130
  %v6419 = vmax.f32 %v6067, %v6131
  %v6420 = vmin.f32 %v6164, %v6196
  %v6421 = vmin.f32 %v6165, %v6197
  %v6422 = vmin.f32 %v6166, %v6198
  %v6423 = vmin.f32 %v6167, %v6199
  %v6424 = vmin.f32 %v6168, %v6200
  %v6425 = vmin.f32 %v6169, %v6201
  %v6426 = vmin.f32 %v6170, %v6202
  %v6427 = vmin.f32 %v6171, %v6203
  %v6428 = vmin.f32 %v6172, %v6204
  %v6429 = vmin.f32 %v6173, %v6205
  %v6430 = vmin.f32 %v6174, %v6206
  %v6431 = vmin.f32 %v6175, %v6207
  %v6432 = vmin.f32 %v6176, %v6208
  %v6433 = vmin.f32 %v6177, %v6209
  %v6434 = vmin.f32 %v6178, %v6210
  %v6435 = vmin.f32 %v6179, %v6211
  %v6436 = vmin.f32 %v6180, %v6212
  %v6437 = vmin.f32 %v6181, %v6213
  %v6438 = vmin.f32 %v6182, %v6214
  %v6439 = vmin.f32 %v6183, %v6215
  %v6440 = vmin.f32 %v6184, %v6216
  %v6441 = vmin.f32 %v6185, %v6217
  %v6442 = vmin.f32 %v6186, %v6218
  %v6443 = vmin.f32 %v6187, %v6219
  %v6444 = vmin.f32 %v6188, %v6220
  %v6445 = vmin.f32 %v6189, %v6221
  %v6446 = vmin.f32 %v6190, %v6222
  %v6447 = vmin.f32 %v6191, %v6223
  %v6448 = vmin.f32 %v6192, %v6224
  %v6449 = vmin.f32 %v6193, %v6225
  %v6450 = vmin.f32 %v6194, %v6226
  %v6451 = vmin.f32 %v6195, %v6227
  %v6452 = vmax.f32 %v6164, %v6196
  %v6453 = vmax.f32 %v6165, %v6197
  %v6454 = vmax.f32 %v6166, %v6198
  %v6455 = vmax.f32 %v6167, %v6199
  %v6456 = vmax.f32 %v6168, %v6200
  %v6457 = vmax.f32 %v6169, %v6201
  %v6458 = vmax.f32 %v6170, %v6202
  %v6459 = vmax.f32 %v6171, %v6203
  %v6460 = vmax.f32 %v6172, %v6204
  %v6461 = vmax.f32 %v6173, %v6205
  %v6462 = vmax.f32 %v6174, %v6206
  %v6463 = vmax.f32 %v6175, %v6207
  %v6464 = vmax.f32 %v6176, %v6208
  %v6465 = vmax.f32 %v6177, %v6209
  %v6466 = vmax.f32 %v6178, %v6210
  %v6467 = vmax.f32 %v6179, %v6211
  %v6468 = vmax.f32 %v6180, %v6212
  %v6469 = vmax.f32 %v6181, %v6213
  %v6470 = vmax.f32 %v6182, %v6214
  %v6471 = vmax.f32 %v6183, %v6215
  %v6472 = vmax.f32 %v6184, %v6216
  %v6473 = vmax.f32 %v6185, %v6217
  %v6474 = vmax.f32 %v6186, %v6218
  %v6475 = vmax.f32 %v6187, %v6219
  %v6476 = vmax.f32 %v6188, %v6220
  %v6477 = vmax.f32 %v6189, %v6221
  %v6478 = vmax.f32 %v6190, %v6222
  %v6479 = vmax.f32 %v6191, %v6223
  %v6480 = vmax.f32 %v6192, %v6224
  %v6481 = vmax.f32 %v6193, %v6225
  %v6482 = vmax.f32 %v6194, %v6226
  %v6483 = vmax.f32 %v6195, %v6227
  %v6484 = vmin.f32 %v6228, %v6292
  %v6485 = vmin.f32 %v6229, %v6293
  %v6486 = vmin.f32 %v6230, %v6294
  %v6487 = vmin.f32 %v6231, %v6295
  %v6488 = vmin.f32 %v6232, %v6296
  %v6489 = vmin.f32 %v6233, %v6297
  %v6490 = vmin.f32 %v6234, %v6298
  %v6491 = vmin.f32 %v6235, %v6299
  %v6492 = vmin.f32 %v6236, %v6300
  %v6493 = vmin.f32 %v6237, %v6301
  %v6494 = vmin.f32 %v6238, %v6302
  %v6495 = vmin.f32 %v6239, %v6303
  %v6496 = vmin.f32 %v6240, %v6304
  %v6497 = vmin.f32 %v6241, %v6305
  %v6498 = vmin.f32 %v6242, %v6306
  %v6499 = vmin.f32 %v6243, %v6307
  %v6500 = vmin.f32 %v6244, %v6308
  %v6501 = vmin.f32 %v6245, %v6309
  %v6502 = vmin.f32 %v6246, %v6310
  %v6503 = vmin.f32 %v6247, %v6311
  %v6504 = vmin.f32 %v6248, %v6312
  %v6505 = vmin.f32 %v6249, %v6313
  %v6506 = vmin.f32 %v6250, %v6314
  %v6507 = vmin.f32 %v6251, %v6315
  %v6508 = vmin.f32 %v6252, %v6316
  %v6509 = vmin.f32 %v6253, %v6317
  %v6510 = vmin.f32 %v6254, %v6318
  %v6511 = vmin.f32 %v6255, %v6319
  %v6512 = vmin.f32 %v6256, %v6320
  %v6513 = vmin.f32 %v6257, %v6321
  %v6514 = vmin.f32 %v6258, %v6322
  %v6515 = vmin.f32 %v6259, %v6323
  %v6516 = vmax.f32 %v6228, %v6292
  %v6517 = vmax.f32 %v6229, %v6293
  %v6518 = vmax.f32 %v6230, %v6294
  %v6519 = vmax.f32 %v6231, %v6295
  %v6520 = vmax.f32 %v6232, %v6296
  %v6521 = vmax.f32 %v6233, %v6297
  %v6522 = vmax.f32 %v6234, %v6298
  %v6523 = vmax.f32 %v6235, %v6299
  %v6524 = vmax.f32 %v6236, %v6300
  %v6525 = vmax.f32 %v6237, %v6301
  %v6526 = vmax.f32 %v6238, %v6302
  %v6527 = vmax.f32 %v6239, %v6303
  %v6528 = vmax.f32 %v6240, %v6304
  %v6529 = vmax.f32 %v6241, %v6305
  %v6530 = vmax.f32 %v6242, %v6306
  %v6531 = vmax.f32 %v6243, %v6307
  %v6532 = vmax.f32 %v6244, %v6308
  %v6533 = vmax.f32 %v6245, %v6309
  %v6534 = vmax.f32 %v6246, %v6310
  %v6535 = vmax.f32 %v6247, %v6311
  %v6536 = vmax.f32 %v6248, %v6312
  %v6537 = vmax.f32 %v6249, %v6313
  %v6538 = vmax.f32 %v6250, %v6314
  %v6539 = vmax.f32 %v6251, %v6315
  %v6540 = vmax.f32 %v6252, %v6316
  %v6541 = vmax.f32 %v6253, %v6317
  %v6542 = vmax.f32 %v6254, %v6318
  %v6543 = vmax.f32 %v6255, %v6319
  %v6544 = vmax.f32 %v6256, %v6320
  %v6545 = vmax.f32 %v6257, %v6321
  %v6546 = vmax.f32 %v6258, %v6322
  %v6547 = vmax.f32 %v6259, %v6323
  %v6548 = vmin.f32 %v6484, %v6356
  %v6549 = vmin.f32 %v6485, %v6357
  %v6550 = vmin.f32 %v6486, %v6358
  %v6551 = vmin.f32 %v6487, %v6359
  %v6552 = vmin.f32 %v6488, %v6360
  %v6553 = vmin.f32 %v6489, %v6361
  %v6554 = vmin.f32 %v6490, %v6362
  %v6555 = vmin.f32 %v6491, %v6363
  %v6556 = vmin.f32 %v6492, %v6364
  %v6557 = vmin.f32 %v6493, %v6365
  %v6558 = vmin.f32 %v6494, %v6366
  %v6559 = vmin.f32 %v6495, %v6367
  %v6560 = vmin.f32 %v6496, %v6368
  %v6561 = vmin.f32 %v6497, %v6369
  %v6562 = vmin.f32 %v6498, %v6370
  %v6563 = vmin.f32 %v6499, %v6371
  %v6564 = vmin.f32 %v6500, %v6372
  %v6565 = vmin.f32 %v6501, %v6373
  %v6566 = vmin.f32 %v6502, %v6374
  %v6567 = vmin.f32 %v6503, %v6375
  %v6568 = vmin.f32 %v6504, %v6376
  %v6569 = vmin.f32 %v6505, %v6377
  %v6570 = vmin.f32 %v6506, %v6378
  %v6571 = vmin.f32 %v6507, %v6379
  %v6572 = vmin.f32 %v6508, %v6380
  %v6573 = vmin.f32 %v6509, %v6381
  %v6574 = vmin.f32 %v6510, %v6382
  %v6575 = vmin.f32 %v6511, %v6383
  %v6576 = vmin.f32 %v6512, %v6384
  %v6577 = vmin.f32 %v6513, %v6385
  %v6578 = vmin.f32 %v6514, %v6386
  %v6579 = vmin.f32 %v6515, %v6387
  %v6580 = vmax.f32 %v6484, %v6356
  %v6581 = vmax.f32 %v6485, %v6357
  %v6582 = vmax.f32 %v6486, %v6358
  %v6583 = vmax.f32 %v6487, %v6359
  %v6584 = vmax.f32 %v6488, %v6360
  %v6585 = vmax.f32 %v6489, %v6361
  %v6586 = vmax.f32 %v6490, %v6362
  %v6587 = vmax.f32 %v6491, %v6363
  %v6588 = vmax.f32 %v6492, %v6364
  %v6589 = vmax.f32 %v6493, %v6365
  %v6590 = vmax.f32 %v6494, %v6366
  %v6591 = vmax.f32 %v6495, %v6367
  %v6592 = vmax.f32 %v6496, %v6368
  %v6593 = vmax.f32 %v6497, %v6369
  %v6594 = vmax.f32 %v6498, %v6370
  %v6595 = vmax.f32 %v6499, %v6371
  %v6596 = vmax.f32 %v6500, %v6372
  %v6597 = vmax.f32 %v6501, %v6373
  %v6598 = vmax.f32 %v6502, %v6374
  %v6599 = vmax.f32 %v6503, %v6375
  %v6600 = vmax.f32 %v6504, %v6376
  %v6601 = vmax.f32 %v6505, %v6377
  %v6602 = vmax.f32 %v6506, %v6378
  %v6603 = vmax.f32 %v6507, %v6379
  %v6604 = vmax.f32 %v6508, %v6380
  %v6605 = vmax.f32 %v6509, %v6381
  %v6606 = vmax.f32 %v6510, %v6382
  %v6607 = vmax.f32 %v6511, %v6383
  %v6608 = vmax.f32 %v6512, %v6384
  %v6609 = vmax.f32 %v6513, %v6385
  %v6610 = vmax.f32 %v6514, %v6386
  %v6611 = vmax.f32 %v6515, %v6387
  %v6612 = vmax.f32 %v6548, %v6420
  %v6613 = vmax.f32 %v6549, %v6421
  %v6614 = vmax.f32 %v6550, %v6422
  %v6615 = vmax.f32 %v6551, %v6423
  %v6616 = vmax.f32 %v6552, %v6424
  %v6617 = vmax.f32 %v6553, %v6425
  %v6618 = vmax.f32 %v6554, %v6426
  %v6619 = vmax.f32 %v6555, %v6427
  %v6620 = vmax.f32 %v6556, %v6428
  %v6621 = vmax.f32 %v6557, %v6429
  %v6622 = vmax.f32 %v6558, %v6430
  %v6623 = vmax.f32 %v6559, %v6431
  %v6624 = vmax.f32 %v6560, %v6432
  %v6625 = vmax.f32 %v6561, %v6433
  %v6626 = vmax.f32 %v6562, %v6434
  %v6627 = vmax.f32 %v6563, %v6435
  %v6628 = vmax.f32 %v6564, %v6436
  %v6629 = vmax.f32 %v6565, %v6437
  %v6630 = vmax.f32 %v6566, %v6438
  %v6631 = vmax.f32 %v6567, %v6439
  %v6632 = vmax.f32 %v6568, %v6440
  %v6633 = vmax.f32 %v6569, %v6441
  %v6634 = vmax.f32 %v6570, %v6442
  %v6635 = vmax.f32 %v6571, %v6443
  %v6636 = vmax.f32 %v6572, %v6444
  %v6637 = vmax.f32 %v6573, %v6445
  %v6638 = vmax.f32 %v6574, %v6446
  %v6639 = vmax.f32 %v6575, %v6447
  %v6640 = vmax.f32 %v6576, %v6448
  %v6641 = vmax.f32 %v6577, %v6449
  %v6642 = vmax.f32 %v6578, %v6450
  %v6643 = vmax.f32 %v6579, %v6451
  %v6644 = vmin.f32 %v6260, %v6324
  %v6645 = vmin.f32 %v6261, %v6325
  %v6646 = vmin.f32 %v6262, %v6326
  %v6647 = vmin.f32 %v6263, %v6327
  %v6648 = vmin.f32 %v6264, %v6328
  %v6649 = vmin.f32 %v6265, %v6329
  %v6650 = vmin.f32 %v6266, %v6330
  %v6651 = vmin.f32 %v6267, %v6331
  %v6652 = vmin.f32 %v6268, %v6332
  %v6653 = vmin.f32 %v6269, %v6333
  %v6654 = vmin.f32 %v6270, %v6334
  %v6655 = vmin.f32 %v6271, %v6335
  %v6656 = vmin.f32 %v6272, %v6336
  %v6657 = vmin.f32 %v6273, %v6337
  %v6658 = vmin.f32 %v6274, %v6338
  %v6659 = vmin.f32 %v6275, %v6339
  %v6660 = vmin.f32 %v6276, %v6340
  %v6661 = vmin.f32 %v6277, %v6341
  %v6662 = vmin.f32 %v6278, %v6342
  %v6663 = vmin.f32 %v6279, %v6343
  %v6664 = vmin.f32 %v6280, %v6344
  %v6665 = vmin.f32 %v6281, %v6345
  %v6666 = vmin.f32 %v6282, %v6346
  %v6667 = vmin.f32 %v6283, %v6347
  %v6668 = vmin.f32 %v6284, %v6348
  %v6669 = vmin.f32 %v6285, %v6349
  %v6670 = vmin.f32 %v6286, %v6350
  %v6671 = vmin.f32 %v6287, %v6351
  %v6672 = vmin.f32 %v6288, %v6352
  %v6673 = vmin.f32 %v6289, %v6353
  %v6674 = vmin.f32 %v6290, %v6354
  %v6675 = vmin.f32 %v6291, %v6355
  %v6676 = vmax.f32 %v6260, %v6324
  %v6677 = vmax.f32 %v6261, %v6325
  %v6678 = vmax.f32 %v6262, %v6326
  %v6679 = vmax.f32 %v6263, %v6327
  %v6680 = vmax.f32 %v6264, %v6328
  %v6681 = vmax.f32 %v6265, %v6329
  %v6682 = vmax.f32 %v6266, %v6330
  %v6683 = vmax.f32 %v6267, %v6331
  %v6684 = vmax.f32 %v6268, %v6332
  %v6685 = vmax.f32 %v6269, %v6333
  %v6686 = vmax.f32 %v6270, %v6334
  %v6687 = vmax.f32 %v6271, %v6335
  %v6688 = vmax.f32 %v6272, %v6336
  %v6689 = vmax.f32 %v6273, %v6337
  %v6690 = vmax.f32 %v6274, %v6338
  %v6691 = vmax.f32 %v6275, %v6339
  %v6692 = vmax.f32 %v6276, %v6340
  %v6693 = vmax.f32 %v6277, %v6341
  %v6694 = vmax.f32 %v6278, %v6342
  %v6695 = vmax.f32 %v6279, %v6343
  %v6696 = vmax.f32 %v6280, %v6344
  %v6697 = vmax.f32 %v6281, %v6345
  %v6698 = vmax.f32 %v6282, %v6346
  %v6699 = vmax.f32 %v6283, %v6347
  %v6700 = vmax.f32 %v6284, %v6348
  %v6701 = vmax.f32 %v6285, %v6349
  %v6702 = vmax.f32 %v6286, %v6350
  %v6703 = vmax.f32 %v6287, %v6351
  %v6704 = vmax.f32 %v6288, %v6352
  %v6705 = vmax.f32 %v6289, %v6353
  %v6706 = vmax.f32 %v6290, %v6354
  %v6707 = vmax.f32 %v6291, %v6355
  %v6708 = vmin.f32 %v6676, %v6388
  %v6709 = vmin.f32 %v6677, %v6389
  %v6710 = vmin.f32 %v6678, %v6390
  %v6711 = vmin.f32 %v6679, %v6391
  %v6712 = vmin.f32 %v6680, %v6392
  %v6713 = vmin.f32 %v6681, %v6393
  %v6714 = vmin.f32 %v6682, %v6394
  %v6715 = vmin.f32 %v6683, %v6395
  %v6716 = vmin.f32 %v6684, %v6396
  %v6717 = vmin.f32 %v6685, %v6397
  %v6718 = vmin.f32 %v6686, %v6398
  %v6719 = vmin.f32 %v6687, %v6399
  %v6720 = vmin.f32 %v6688, %v6400
  %v6721 = vmin.f32 %v6689, %v6401
  %v6722 = vmin.f32 %v6690, %v6402
  %v6723 = vmin.f32 %v6691, %v6403
  %v6724 = vmin.f32 %v6692, %v6404
  %v6725 = vmin.f32 %v6693, %v6405
  %v6726 = vmin.f32 %v6694, %v6406
  %v6727 = vmin.f32 %v6695, %v6407
  %v6728 = vmin.f32 %v6696, %v6408
  %v6729 = vmin.f32 %v6697, %v6409
  %v6730 = vmin.f32 %v6698, %v6410
  %v6731 = vmin.f32 %v6699, %v6411
  %v6732 = vmin.f32 %v6700, %v6412
  %v6733 = vmin.f32 %v6701, %v6413
  %v6734 = vmin.f32 %v6702, %v6414
  %v6735 = vmin.f32 %v6703, %v6415
  %v6736 = vmin.f32 %v6704, %v6416
  %v6737 = vmin.f32 %v6705, %v6417
  %v6738 = vmin.f32 %v6706, %v6418
  %v6739 = vmin.f32 %v6707, %v6419
  %v6740 = vmax.f32 %v6676, %v6388
  %v6741 = vmax.f32 %v6677, %v6389
  %v6742 = vmax.f32 %v6678, %v6390
  %v6743 = vmax.f32 %v6679, %v6391
  %v6744 = vmax.f32 %v6680, %v6392
  %v6745 = vmax.f32 %v6681, %v6393
  %v6746 = vmax.f32 %v6682, %v6394
  %v6747 = vmax.f32 %v6683, %v6395
  %v6748 = vmax.f32 %v6684, %v6396
  %v6749 = vmax.f32 %v6685, %v6397
  %v6750 = vmax.f32 %v6686, %v6398
  %v6751 = vmax.f32 %v6687, %v6399
  %v6752 = vmax.f32 %v6688, %v6400
  %v6753 = vmax.f32 %v6689, %v6401
  %v6754 = vmax.f32 %v6690, %v6402
  %v6755 = vmax.f32 %v6691, %v6403
  %v6756 = vmax.f32 %v6692, %v6404
  %v6757 = vmax.f32 %v6693, %v6405
  %v6758 = vmax.f32 %v6694, %v6406
  %v6759 = vmax.f32 %v6695, %v6407
  %v6760 = vmax.f32 %v6696, %v6408
  %v6761 = vmax.f32 %v6697, %v6409
  %v6762 = vmax.f32 %v6698, %v6410
  %v6763 = vmax.f32 %v6699, %v6411
  %v6764 = vmax.f32 %v6700, %v6412
  %v6765 = vmax.f32 %v6701, %v6413
  %v6766 = vmax.f32 %v6702, %v6414
  %v6767 = vmax.f32 %v6703, %v6415
  %v6768 = vmax.f32 %v6704, %v6416
  %v6769 = vmax.f32 %v6705, %v6417
  %v6770 = vmax.f32 %v6706, %v6418
  %v6771 = vmax.f32 %v6707, %v6419
  %v6772 = vmin.f32 %v6740, %v6452
  %v6773 = vmin.f32 %v6741, %v6453
  %v6774 = vmin.f32 %v6742, %v6454
  %v6775 = vmin.f32 %v6743, %v6455
  %v6776 = vmin.f32 %v6744, %v6456
  %v6777 = vmin.f32 %v6745, %v6457
  %v6778 = vmin.f32 %v6746, %v6458
  %v6779 = vmin.f32 %v6747, %v6459
  %v6780 = vmin.f32 %v6748, %v6460
  %v6781 = vmin.f32 %v6749, %v6461
  %v6782 = vmin.f32 %v6750, %v6462
  %v6783 = vmin.f32 %v6751, %v6463
  %v6784 = vmin.f32 %v6752, %v6464
  %v6785 = vmin.f32 %v6753, %v6465
  %v6786 = vmin.f32 %v6754, %v6466
  %v6787 = vmin.f32 %v6755, %v6467
  %v6788 = vmin.f32 %v6756, %v6468
  %v6789 = vmin.f32 %v6757, %v6469
  %v6790 = vmin.f32 %v6758, %v6470
  %v6791 = vmin.f32 %v6759, %v6471
  %v6792 = vmin.f32 %v6760, %v6472
  %v6793 = vmin.f32 %v6761, %v6473
  %v6794 = vmin.f32 %v6762, %v6474
  %v6795 = vmin.f32 %v6763, %v6475
  %v6796 = vmin.f32 %v6764, %v6476
  %v6797 = vmin.f32 %v6765, %v6477
  %v6798 = vmin.f32 %v6766, %v6478
  %v6799 = vmin.f32 %v6767, %v6479
  %v6800 = vmin.f32 %v6768, %v6480
  %v6801 = vmin.f32 %v6769, %v6481
  %v6802 = vmin.f32 %v6770, %v6482
  %v6803 = vmin.f32 %v6771, %v6483
  %s6804 = sadd.s32 %s8, 4
  %s6805 = smul.u32 %s6804, 24
  %s6806 = scalar_lea.vmem %s0, %s6805
  %v6807 = vld [vmem:[%s6806] sm:$0xff]
  %v6808 = vld [vmem:[%s6806 + $0x8] sm:$0xff]
  %v6809 = vld [vmem:[%s6806 + $0x18] sm:$0xff]
  %v6810 = vld [vmem:[%s6806 + $0x20] sm:$0xff]
  %v6811 = vld [vmem:[%s6806 + $0x30] sm:$0xff]
  %v6812 = vld [vmem:[%s6806 + $0x38] sm:$0xff]
  %v6813 = vld [vmem:[%s6806 + $0x48] sm:$0xff]
  %v6814 = vld [vmem:[%s6806 + $0x50] sm:$0xff]
  %v6815 = vld [vmem:[%s6806 + $0x60] sm:$0xff]
  %v6816 = vld [vmem:[%s6806 + $0x68] sm:$0xff]
  %v6817 = vld [vmem:[%s6806 + $0x78] sm:$0xff]
  %v6818 = vld [vmem:[%s6806 + $0x80] sm:$0xff]
  %v6819 = vld [vmem:[%s6806 + $0x90] sm:$0xff]
  %v6820 = vld [vmem:[%s6806 + $0x98] sm:$0xff]
  %v6821 = vld [vmem:[%s6806 + $0xa8] sm:$0xff]
  %v6822 = vld [vmem:[%s6806 + $0xb0] sm:$0xff]
  %v6823 = vld [vmem:[%s6806 + $0xc0] sm:$0xff]
  %v6824 = vld [vmem:[%s6806 + $0xc8] sm:$0xff]
  %v6825 = vld [vmem:[%s6806 + $0xd8] sm:$0xff]
  %v6826 = vld [vmem:[%s6806 + $0xe0] sm:$0xff]
  %v6827 = vld [vmem:[%s6806 + $0xf0] sm:$0xff]
  %v6828 = vld [vmem:[%s6806 + $0xf8] sm:$0xff]
  %v6829 = vld [vmem:[%s6806 + $0x108] sm:$0xff]
  %v6830 = vld [vmem:[%s6806 + $0x110] sm:$0xff]
  %v6831 = vld [vmem:[%s6806 + $0x120] sm:$0xff]
  %v6832 = vld [vmem:[%s6806 + $0x128] sm:$0xff]
  %v6833 = vld [vmem:[%s6806 + $0x138] sm:$0xff]
  %v6834 = vld [vmem:[%s6806 + $0x140] sm:$0xff]
  %v6835 = vld [vmem:[%s6806 + $0x150] sm:$0xff]
  %v6836 = vld [vmem:[%s6806 + $0x158] sm:$0xff]
  %v6837 = vld [vmem:[%s6806 + $0x168] sm:$0xff]
  %v6838 = vld [vmem:[%s6806 + $0x170] sm:$0xff]
  %v6839 = vmin.f32 %v6516, %v6580
  %v6840 = vmin.f32 %v6517, %v6581
  %v6841 = vmin.f32 %v6518, %v6582
  %v6842 = vmin.f32 %v6519, %v6583
  %v6843 = vmin.f32 %v6520, %v6584
  %v6844 = vmin.f32 %v6521, %v6585
  %v6845 = vmin.f32 %v6522, %v6586
  %v6846 = vmin.f32 %v6523, %v6587
  %v6847 = vmin.f32 %v6524, %v6588
  %v6848 = vmin.f32 %v6525, %v6589
  %v6849 = vmin.f32 %v6526, %v6590
  %v6850 = vmin.f32 %v6527, %v6591
  %v6851 = vmin.f32 %v6528, %v6592
  %v6852 = vmin.f32 %v6529, %v6593
  %v6853 = vmin.f32 %v6530, %v6594
  %v6854 = vmin.f32 %v6531, %v6595
  %v6855 = vmin.f32 %v6532, %v6596
  %v6856 = vmin.f32 %v6533, %v6597
  %v6857 = vmin.f32 %v6534, %v6598
  %v6858 = vmin.f32 %v6535, %v6599
  %v6859 = vmin.f32 %v6536, %v6600
  %v6860 = vmin.f32 %v6537, %v6601
  %v6861 = vmin.f32 %v6538, %v6602
  %v6862 = vmin.f32 %v6539, %v6603
  %v6863 = vmin.f32 %v6540, %v6604
  %v6864 = vmin.f32 %v6541, %v6605
  %v6865 = vmin.f32 %v6542, %v6606
  %v6866 = vmin.f32 %v6543, %v6607
  %v6867 = vmin.f32 %v6544, %v6608
  %v6868 = vmin.f32 %v6545, %v6609
  %v6869 = vmin.f32 %v6546, %v6610
  %v6870 = vmin.f32 %v6547, %v6611
  %v6871 = vmax.f32 %v6516, %v6580
  %v6872 = vmax.f32 %v6517, %v6581
  %v6873 = vmax.f32 %v6518, %v6582
  %v6874 = vmax.f32 %v6519, %v6583
  %v6875 = vmax.f32 %v6520, %v6584
  %v6876 = vmax.f32 %v6521, %v6585
  %v6877 = vmax.f32 %v6522, %v6586
  %v6878 = vmax.f32 %v6523, %v6587
  %v6879 = vmax.f32 %v6524, %v6588
  %v6880 = vmax.f32 %v6525, %v6589
  %v6881 = vmax.f32 %v6526, %v6590
  %v6882 = vmax.f32 %v6527, %v6591
  %v6883 = vmax.f32 %v6528, %v6592
  %v6884 = vmax.f32 %v6529, %v6593
  %v6885 = vmax.f32 %v6530, %v6594
  %v6886 = vmax.f32 %v6531, %v6595
  %v6887 = vmax.f32 %v6532, %v6596
  %v6888 = vmax.f32 %v6533, %v6597
  %v6889 = vmax.f32 %v6534, %v6598
  %v6890 = vmax.f32 %v6535, %v6599
  %v6891 = vmax.f32 %v6536, %v6600
  %v6892 = vmax.f32 %v6537, %v6601
  %v6893 = vmax.f32 %v6538, %v6602
  %v6894 = vmax.f32 %v6539, %v6603
  %v6895 = vmax.f32 %v6540, %v6604
  %v6896 = vmax.f32 %v6541, %v6605
  %v6897 = vmax.f32 %v6542, %v6606
  %v6898 = vmax.f32 %v6543, %v6607
  %v6899 = vmax.f32 %v6544, %v6608
  %v6900 = vmax.f32 %v6545, %v6609
  %v6901 = vmax.f32 %v6546, %v6610
  %v6902 = vmax.f32 %v6547, %v6611
  %v6903 = vmin.f32 %v6612, %v6644
  %v6904 = vmin.f32 %v6613, %v6645
  %v6905 = vmin.f32 %v6614, %v6646
  %v6906 = vmin.f32 %v6615, %v6647
  %v6907 = vmin.f32 %v6616, %v6648
  %v6908 = vmin.f32 %v6617, %v6649
  %v6909 = vmin.f32 %v6618, %v6650
  %v6910 = vmin.f32 %v6619, %v6651
  %v6911 = vmin.f32 %v6620, %v6652
  %v6912 = vmin.f32 %v6621, %v6653
  %v6913 = vmin.f32 %v6622, %v6654
  %v6914 = vmin.f32 %v6623, %v6655
  %v6915 = vmin.f32 %v6624, %v6656
  %v6916 = vmin.f32 %v6625, %v6657
  %v6917 = vmin.f32 %v6626, %v6658
  %v6918 = vmin.f32 %v6627, %v6659
  %v6919 = vmin.f32 %v6628, %v6660
  %v6920 = vmin.f32 %v6629, %v6661
  %v6921 = vmin.f32 %v6630, %v6662
  %v6922 = vmin.f32 %v6631, %v6663
  %v6923 = vmin.f32 %v6632, %v6664
  %v6924 = vmin.f32 %v6633, %v6665
  %v6925 = vmin.f32 %v6634, %v6666
  %v6926 = vmin.f32 %v6635, %v6667
  %v6927 = vmin.f32 %v6636, %v6668
  %v6928 = vmin.f32 %v6637, %v6669
  %v6929 = vmin.f32 %v6638, %v6670
  %v6930 = vmin.f32 %v6639, %v6671
  %v6931 = vmin.f32 %v6640, %v6672
  %v6932 = vmin.f32 %v6641, %v6673
  %v6933 = vmin.f32 %v6642, %v6674
  %v6934 = vmin.f32 %v6643, %v6675
  %v6935 = vmax.f32 %v6612, %v6644
  %v6936 = vmax.f32 %v6613, %v6645
  %v6937 = vmax.f32 %v6614, %v6646
  %v6938 = vmax.f32 %v6615, %v6647
  %v6939 = vmax.f32 %v6616, %v6648
  %v6940 = vmax.f32 %v6617, %v6649
  %v6941 = vmax.f32 %v6618, %v6650
  %v6942 = vmax.f32 %v6619, %v6651
  %v6943 = vmax.f32 %v6620, %v6652
  %v6944 = vmax.f32 %v6621, %v6653
  %v6945 = vmax.f32 %v6622, %v6654
  %v6946 = vmax.f32 %v6623, %v6655
  %v6947 = vmax.f32 %v6624, %v6656
  %v6948 = vmax.f32 %v6625, %v6657
  %v6949 = vmax.f32 %v6626, %v6658
  %v6950 = vmax.f32 %v6627, %v6659
  %v6951 = vmax.f32 %v6628, %v6660
  %v6952 = vmax.f32 %v6629, %v6661
  %v6953 = vmax.f32 %v6630, %v6662
  %v6954 = vmax.f32 %v6631, %v6663
  %v6955 = vmax.f32 %v6632, %v6664
  %v6956 = vmax.f32 %v6633, %v6665
  %v6957 = vmax.f32 %v6634, %v6666
  %v6958 = vmax.f32 %v6635, %v6667
  %v6959 = vmax.f32 %v6636, %v6668
  %v6960 = vmax.f32 %v6637, %v6669
  %v6961 = vmax.f32 %v6638, %v6670
  %v6962 = vmax.f32 %v6639, %v6671
  %v6963 = vmax.f32 %v6640, %v6672
  %v6964 = vmax.f32 %v6641, %v6673
  %v6965 = vmax.f32 %v6642, %v6674
  %v6966 = vmax.f32 %v6643, %v6675
  %v6967 = vmin.f32 %v6708, %v6772
  %v6968 = vmin.f32 %v6709, %v6773
  %v6969 = vmin.f32 %v6710, %v6774
  %v6970 = vmin.f32 %v6711, %v6775
  %v6971 = vmin.f32 %v6712, %v6776
  %v6972 = vmin.f32 %v6713, %v6777
  %v6973 = vmin.f32 %v6714, %v6778
  %v6974 = vmin.f32 %v6715, %v6779
  %v6975 = vmin.f32 %v6716, %v6780
  %v6976 = vmin.f32 %v6717, %v6781
  %v6977 = vmin.f32 %v6718, %v6782
  %v6978 = vmin.f32 %v6719, %v6783
  %v6979 = vmin.f32 %v6720, %v6784
  %v6980 = vmin.f32 %v6721, %v6785
  %v6981 = vmin.f32 %v6722, %v6786
  %v6982 = vmin.f32 %v6723, %v6787
  %v6983 = vmin.f32 %v6724, %v6788
  %v6984 = vmin.f32 %v6725, %v6789
  %v6985 = vmin.f32 %v6726, %v6790
  %v6986 = vmin.f32 %v6727, %v6791
  %v6987 = vmin.f32 %v6728, %v6792
  %v6988 = vmin.f32 %v6729, %v6793
  %v6989 = vmin.f32 %v6730, %v6794
  %v6990 = vmin.f32 %v6731, %v6795
  %v6991 = vmin.f32 %v6732, %v6796
  %v6992 = vmin.f32 %v6733, %v6797
  %v6993 = vmin.f32 %v6734, %v6798
  %v6994 = vmin.f32 %v6735, %v6799
  %v6995 = vmin.f32 %v6736, %v6800
  %v6996 = vmin.f32 %v6737, %v6801
  %v6997 = vmin.f32 %v6738, %v6802
  %v6998 = vmin.f32 %v6739, %v6803
  %v6999 = vmax.f32 %v6708, %v6772
  %v7000 = vmax.f32 %v6709, %v6773
  %v7001 = vmax.f32 %v6710, %v6774
  %v7002 = vmax.f32 %v6711, %v6775
  %v7003 = vmax.f32 %v6712, %v6776
  %v7004 = vmax.f32 %v6713, %v6777
  %v7005 = vmax.f32 %v6714, %v6778
  %v7006 = vmax.f32 %v6715, %v6779
  %v7007 = vmax.f32 %v6716, %v6780
  %v7008 = vmax.f32 %v6717, %v6781
  %v7009 = vmax.f32 %v6718, %v6782
  %v7010 = vmax.f32 %v6719, %v6783
  %v7011 = vmax.f32 %v6720, %v6784
  %v7012 = vmax.f32 %v6721, %v6785
  %v7013 = vmax.f32 %v6722, %v6786
  %v7014 = vmax.f32 %v6723, %v6787
  %v7015 = vmax.f32 %v6724, %v6788
  %v7016 = vmax.f32 %v6725, %v6789
  %v7017 = vmax.f32 %v6726, %v6790
  %v7018 = vmax.f32 %v6727, %v6791
  %v7019 = vmax.f32 %v6728, %v6792
  %v7020 = vmax.f32 %v6729, %v6793
  %v7021 = vmax.f32 %v6730, %v6794
  %v7022 = vmax.f32 %v6731, %v6795
  %v7023 = vmax.f32 %v6732, %v6796
  %v7024 = vmax.f32 %v6733, %v6797
  %v7025 = vmax.f32 %v6734, %v6798
  %v7026 = vmax.f32 %v6735, %v6799
  %v7027 = vmax.f32 %v6736, %v6800
  %v7028 = vmax.f32 %v6737, %v6801
  %v7029 = vmax.f32 %v6738, %v6802
  %v7030 = vmax.f32 %v6739, %v6803
  %v7031 = vmin.f32 %v6839, %v6903
  %v7032 = vmin.f32 %v6840, %v6904
  %v7033 = vmin.f32 %v6841, %v6905
  %v7034 = vmin.f32 %v6842, %v6906
  %v7035 = vmin.f32 %v6843, %v6907
  %v7036 = vmin.f32 %v6844, %v6908
  %v7037 = vmin.f32 %v6845, %v6909
  %v7038 = vmin.f32 %v6846, %v6910
  %v7039 = vmin.f32 %v6847, %v6911
  %v7040 = vmin.f32 %v6848, %v6912
  %v7041 = vmin.f32 %v6849, %v6913
  %v7042 = vmin.f32 %v6850, %v6914
  %v7043 = vmin.f32 %v6851, %v6915
  %v7044 = vmin.f32 %v6852, %v6916
  %v7045 = vmin.f32 %v6853, %v6917
  %v7046 = vmin.f32 %v6854, %v6918
  %v7047 = vmin.f32 %v6855, %v6919
  %v7048 = vmin.f32 %v6856, %v6920
  %v7049 = vmin.f32 %v6857, %v6921
  %v7050 = vmin.f32 %v6858, %v6922
  %v7051 = vmin.f32 %v6859, %v6923
  %v7052 = vmin.f32 %v6860, %v6924
  %v7053 = vmin.f32 %v6861, %v6925
  %v7054 = vmin.f32 %v6862, %v6926
  %v7055 = vmin.f32 %v6863, %v6927
  %v7056 = vmin.f32 %v6864, %v6928
  %v7057 = vmin.f32 %v6865, %v6929
  %v7058 = vmin.f32 %v6866, %v6930
  %v7059 = vmin.f32 %v6867, %v6931
  %v7060 = vmin.f32 %v6868, %v6932
  %v7061 = vmin.f32 %v6869, %v6933
  %v7062 = vmin.f32 %v6870, %v6934
  %v7063 = vmax.f32 %v6839, %v6903
  %v7064 = vmax.f32 %v6840, %v6904
  %v7065 = vmax.f32 %v6841, %v6905
  %v7066 = vmax.f32 %v6842, %v6906
  %v7067 = vmax.f32 %v6843, %v6907
  %v7068 = vmax.f32 %v6844, %v6908
  %v7069 = vmax.f32 %v6845, %v6909
  %v7070 = vmax.f32 %v6846, %v6910
  %v7071 = vmax.f32 %v6847, %v6911
  %v7072 = vmax.f32 %v6848, %v6912
  %v7073 = vmax.f32 %v6849, %v6913
  %v7074 = vmax.f32 %v6850, %v6914
  %v7075 = vmax.f32 %v6851, %v6915
  %v7076 = vmax.f32 %v6852, %v6916
  %v7077 = vmax.f32 %v6853, %v6917
  %v7078 = vmax.f32 %v6854, %v6918
  %v7079 = vmax.f32 %v6855, %v6919
  %v7080 = vmax.f32 %v6856, %v6920
  %v7081 = vmax.f32 %v6857, %v6921
  %v7082 = vmax.f32 %v6858, %v6922
  %v7083 = vmax.f32 %v6859, %v6923
  %v7084 = vmax.f32 %v6860, %v6924
  %v7085 = vmax.f32 %v6861, %v6925
  %v7086 = vmax.f32 %v6862, %v6926
  %v7087 = vmax.f32 %v6863, %v6927
  %v7088 = vmax.f32 %v6864, %v6928
  %v7089 = vmax.f32 %v6865, %v6929
  %v7090 = vmax.f32 %v6866, %v6930
  %v7091 = vmax.f32 %v6867, %v6931
  %v7092 = vmax.f32 %v6868, %v6932
  %v7093 = vmax.f32 %v6869, %v6933
  %v7094 = vmax.f32 %v6870, %v6934
  %v7095 = vmin.f32 %v7031, %v6967
  %v7096 = vmin.f32 %v7032, %v6968
  %v7097 = vmin.f32 %v7033, %v6969
  %v7098 = vmin.f32 %v7034, %v6970
  %v7099 = vmin.f32 %v7035, %v6971
  %v7100 = vmin.f32 %v7036, %v6972
  %v7101 = vmin.f32 %v7037, %v6973
  %v7102 = vmin.f32 %v7038, %v6974
  %v7103 = vmin.f32 %v7039, %v6975
  %v7104 = vmin.f32 %v7040, %v6976
  %v7105 = vmin.f32 %v7041, %v6977
  %v7106 = vmin.f32 %v7042, %v6978
  %v7107 = vmin.f32 %v7043, %v6979
  %v7108 = vmin.f32 %v7044, %v6980
  %v7109 = vmin.f32 %v7045, %v6981
  %v7110 = vmin.f32 %v7046, %v6982
  %v7111 = vmin.f32 %v7047, %v6983
  %v7112 = vmin.f32 %v7048, %v6984
  %v7113 = vmin.f32 %v7049, %v6985
  %v7114 = vmin.f32 %v7050, %v6986
  %v7115 = vmin.f32 %v7051, %v6987
  %v7116 = vmin.f32 %v7052, %v6988
  %v7117 = vmin.f32 %v7053, %v6989
  %v7118 = vmin.f32 %v7054, %v6990
  %v7119 = vmin.f32 %v7055, %v6991
  %v7120 = vmin.f32 %v7056, %v6992
  %v7121 = vmin.f32 %v7057, %v6993
  %v7122 = vmin.f32 %v7058, %v6994
  %v7123 = vmin.f32 %v7059, %v6995
  %v7124 = vmin.f32 %v7060, %v6996
  %v7125 = vmin.f32 %v7061, %v6997
  %v7126 = vmin.f32 %v7062, %v6998
  %v7127 = vmax.f32 %v7031, %v6967
  %v7128 = vmax.f32 %v7032, %v6968
  %v7129 = vmax.f32 %v7033, %v6969
  %v7130 = vmax.f32 %v7034, %v6970
  %v7131 = vmax.f32 %v7035, %v6971
  %v7132 = vmax.f32 %v7036, %v6972
  %v7133 = vmax.f32 %v7037, %v6973
  %v7134 = vmax.f32 %v7038, %v6974
  %v7135 = vmax.f32 %v7039, %v6975
  %v7136 = vmax.f32 %v7040, %v6976
  %v7137 = vmax.f32 %v7041, %v6977
  %v7138 = vmax.f32 %v7042, %v6978
  %v7139 = vmax.f32 %v7043, %v6979
  %v7140 = vmax.f32 %v7044, %v6980
  %v7141 = vmax.f32 %v7045, %v6981
  %v7142 = vmax.f32 %v7046, %v6982
  %v7143 = vmax.f32 %v7047, %v6983
  %v7144 = vmax.f32 %v7048, %v6984
  %v7145 = vmax.f32 %v7049, %v6985
  %v7146 = vmax.f32 %v7050, %v6986
  %v7147 = vmax.f32 %v7051, %v6987
  %v7148 = vmax.f32 %v7052, %v6988
  %v7149 = vmax.f32 %v7053, %v6989
  %v7150 = vmax.f32 %v7054, %v6990
  %v7151 = vmax.f32 %v7055, %v6991
  %v7152 = vmax.f32 %v7056, %v6992
  %v7153 = vmax.f32 %v7057, %v6993
  %v7154 = vmax.f32 %v7058, %v6994
  %v7155 = vmax.f32 %v7059, %v6995
  %v7156 = vmax.f32 %v7060, %v6996
  %v7157 = vmax.f32 %v7061, %v6997
  %v7158 = vmax.f32 %v7062, %v6998
  %v7159 = vmax.f32 %v7095, %v6807
  %v7160 = vmax.f32 %v7096, %v6808
  %v7161 = vmax.f32 %v7097, %v6809
  %v7162 = vmax.f32 %v7098, %v6810
  %v7163 = vmax.f32 %v7099, %v6811
  %v7164 = vmax.f32 %v7100, %v6812
  %v7165 = vmax.f32 %v7101, %v6813
  %v7166 = vmax.f32 %v7102, %v6814
  %v7167 = vmax.f32 %v7103, %v6815
  %v7168 = vmax.f32 %v7104, %v6816
  %v7169 = vmax.f32 %v7105, %v6817
  %v7170 = vmax.f32 %v7106, %v6818
  %v7171 = vmax.f32 %v7107, %v6819
  %v7172 = vmax.f32 %v7108, %v6820
  %v7173 = vmax.f32 %v7109, %v6821
  %v7174 = vmax.f32 %v7110, %v6822
  %v7175 = vmax.f32 %v7111, %v6823
  %v7176 = vmax.f32 %v7112, %v6824
  %v7177 = vmax.f32 %v7113, %v6825
  %v7178 = vmax.f32 %v7114, %v6826
  %v7179 = vmax.f32 %v7115, %v6827
  %v7180 = vmax.f32 %v7116, %v6828
  %v7181 = vmax.f32 %v7117, %v6829
  %v7182 = vmax.f32 %v7118, %v6830
  %v7183 = vmax.f32 %v7119, %v6831
  %v7184 = vmax.f32 %v7120, %v6832
  %v7185 = vmax.f32 %v7121, %v6833
  %v7186 = vmax.f32 %v7122, %v6834
  %v7187 = vmax.f32 %v7123, %v6835
  %v7188 = vmax.f32 %v7124, %v6836
  %v7189 = vmax.f32 %v7125, %v6837
  %v7190 = vmax.f32 %v7126, %v6838
  %v7191 = vmin.f32 %v6871, %v6935
  %v7192 = vmin.f32 %v6872, %v6936
  %v7193 = vmin.f32 %v6873, %v6937
  %v7194 = vmin.f32 %v6874, %v6938
  %v7195 = vmin.f32 %v6875, %v6939
  %v7196 = vmin.f32 %v6876, %v6940
  %v7197 = vmin.f32 %v6877, %v6941
  %v7198 = vmin.f32 %v6878, %v6942
  %v7199 = vmin.f32 %v6879, %v6943
  %v7200 = vmin.f32 %v6880, %v6944
  %v7201 = vmin.f32 %v6881, %v6945
  %v7202 = vmin.f32 %v6882, %v6946
  %v7203 = vmin.f32 %v6883, %v6947
  %v7204 = vmin.f32 %v6884, %v6948
  %v7205 = vmin.f32 %v6885, %v6949
  %v7206 = vmin.f32 %v6886, %v6950
  %v7207 = vmin.f32 %v6887, %v6951
  %v7208 = vmin.f32 %v6888, %v6952
  %v7209 = vmin.f32 %v6889, %v6953
  %v7210 = vmin.f32 %v6890, %v6954
  %v7211 = vmin.f32 %v6891, %v6955
  %v7212 = vmin.f32 %v6892, %v6956
  %v7213 = vmin.f32 %v6893, %v6957
  %v7214 = vmin.f32 %v6894, %v6958
  %v7215 = vmin.f32 %v6895, %v6959
  %v7216 = vmin.f32 %v6896, %v6960
  %v7217 = vmin.f32 %v6897, %v6961
  %v7218 = vmin.f32 %v6898, %v6962
  %v7219 = vmin.f32 %v6899, %v6963
  %v7220 = vmin.f32 %v6900, %v6964
  %v7221 = vmin.f32 %v6901, %v6965
  %v7222 = vmin.f32 %v6902, %v6966
  %v7223 = vmax.f32 %v6871, %v6935
  %v7224 = vmax.f32 %v6872, %v6936
  %v7225 = vmax.f32 %v6873, %v6937
  %v7226 = vmax.f32 %v6874, %v6938
  %v7227 = vmax.f32 %v6875, %v6939
  %v7228 = vmax.f32 %v6876, %v6940
  %v7229 = vmax.f32 %v6877, %v6941
  %v7230 = vmax.f32 %v6878, %v6942
  %v7231 = vmax.f32 %v6879, %v6943
  %v7232 = vmax.f32 %v6880, %v6944
  %v7233 = vmax.f32 %v6881, %v6945
  %v7234 = vmax.f32 %v6882, %v6946
  %v7235 = vmax.f32 %v6883, %v6947
  %v7236 = vmax.f32 %v6884, %v6948
  %v7237 = vmax.f32 %v6885, %v6949
  %v7238 = vmax.f32 %v6886, %v6950
  %v7239 = vmax.f32 %v6887, %v6951
  %v7240 = vmax.f32 %v6888, %v6952
  %v7241 = vmax.f32 %v6889, %v6953
  %v7242 = vmax.f32 %v6890, %v6954
  %v7243 = vmax.f32 %v6891, %v6955
  %v7244 = vmax.f32 %v6892, %v6956
  %v7245 = vmax.f32 %v6893, %v6957
  %v7246 = vmax.f32 %v6894, %v6958
  %v7247 = vmax.f32 %v6895, %v6959
  %v7248 = vmax.f32 %v6896, %v6960
  %v7249 = vmax.f32 %v6897, %v6961
  %v7250 = vmax.f32 %v6898, %v6962
  %v7251 = vmax.f32 %v6899, %v6963
  %v7252 = vmax.f32 %v6900, %v6964
  %v7253 = vmax.f32 %v6901, %v6965
  %v7254 = vmax.f32 %v6902, %v6966
  %v7255 = vmin.f32 %v7223, %v6999
  %v7256 = vmin.f32 %v7224, %v7000
  %v7257 = vmin.f32 %v7225, %v7001
  %v7258 = vmin.f32 %v7226, %v7002
  %v7259 = vmin.f32 %v7227, %v7003
  %v7260 = vmin.f32 %v7228, %v7004
  %v7261 = vmin.f32 %v7229, %v7005
  %v7262 = vmin.f32 %v7230, %v7006
  %v7263 = vmin.f32 %v7231, %v7007
  %v7264 = vmin.f32 %v7232, %v7008
  %v7265 = vmin.f32 %v7233, %v7009
  %v7266 = vmin.f32 %v7234, %v7010
  %v7267 = vmin.f32 %v7235, %v7011
  %v7268 = vmin.f32 %v7236, %v7012
  %v7269 = vmin.f32 %v7237, %v7013
  %v7270 = vmin.f32 %v7238, %v7014
  %v7271 = vmin.f32 %v7239, %v7015
  %v7272 = vmin.f32 %v7240, %v7016
  %v7273 = vmin.f32 %v7241, %v7017
  %v7274 = vmin.f32 %v7242, %v7018
  %v7275 = vmin.f32 %v7243, %v7019
  %v7276 = vmin.f32 %v7244, %v7020
  %v7277 = vmin.f32 %v7245, %v7021
  %v7278 = vmin.f32 %v7246, %v7022
  %v7279 = vmin.f32 %v7247, %v7023
  %v7280 = vmin.f32 %v7248, %v7024
  %v7281 = vmin.f32 %v7249, %v7025
  %v7282 = vmin.f32 %v7250, %v7026
  %v7283 = vmin.f32 %v7251, %v7027
  %v7284 = vmin.f32 %v7252, %v7028
  %v7285 = vmin.f32 %v7253, %v7029
  %v7286 = vmin.f32 %v7254, %v7030
  %v7287 = vmax.f32 %v7223, %v6999
  %v7288 = vmax.f32 %v7224, %v7000
  %v7289 = vmax.f32 %v7225, %v7001
  %v7290 = vmax.f32 %v7226, %v7002
  %v7291 = vmax.f32 %v7227, %v7003
  %v7292 = vmax.f32 %v7228, %v7004
  %v7293 = vmax.f32 %v7229, %v7005
  %v7294 = vmax.f32 %v7230, %v7006
  %v7295 = vmax.f32 %v7231, %v7007
  %v7296 = vmax.f32 %v7232, %v7008
  %v7297 = vmax.f32 %v7233, %v7009
  %v7298 = vmax.f32 %v7234, %v7010
  %v7299 = vmax.f32 %v7235, %v7011
  %v7300 = vmax.f32 %v7236, %v7012
  %v7301 = vmax.f32 %v7237, %v7013
  %v7302 = vmax.f32 %v7238, %v7014
  %v7303 = vmax.f32 %v7239, %v7015
  %v7304 = vmax.f32 %v7240, %v7016
  %v7305 = vmax.f32 %v7241, %v7017
  %v7306 = vmax.f32 %v7242, %v7018
  %v7307 = vmax.f32 %v7243, %v7019
  %v7308 = vmax.f32 %v7244, %v7020
  %v7309 = vmax.f32 %v7245, %v7021
  %v7310 = vmax.f32 %v7246, %v7022
  %v7311 = vmax.f32 %v7247, %v7023
  %v7312 = vmax.f32 %v7248, %v7024
  %v7313 = vmax.f32 %v7249, %v7025
  %v7314 = vmax.f32 %v7250, %v7026
  %v7315 = vmax.f32 %v7251, %v7027
  %v7316 = vmax.f32 %v7252, %v7028
  %v7317 = vmax.f32 %v7253, %v7029
  %v7318 = vmax.f32 %v7254, %v7030
  %v7319 = vmin.f32 %v7287, %v7159
  %v7320 = vmin.f32 %v7288, %v7160
  %v7321 = vmin.f32 %v7289, %v7161
  %v7322 = vmin.f32 %v7290, %v7162
  %v7323 = vmin.f32 %v7291, %v7163
  %v7324 = vmin.f32 %v7292, %v7164
  %v7325 = vmin.f32 %v7293, %v7165
  %v7326 = vmin.f32 %v7294, %v7166
  %v7327 = vmin.f32 %v7295, %v7167
  %v7328 = vmin.f32 %v7296, %v7168
  %v7329 = vmin.f32 %v7297, %v7169
  %v7330 = vmin.f32 %v7298, %v7170
  %v7331 = vmin.f32 %v7299, %v7171
  %v7332 = vmin.f32 %v7300, %v7172
  %v7333 = vmin.f32 %v7301, %v7173
  %v7334 = vmin.f32 %v7302, %v7174
  %v7335 = vmin.f32 %v7303, %v7175
  %v7336 = vmin.f32 %v7304, %v7176
  %v7337 = vmin.f32 %v7305, %v7177
  %v7338 = vmin.f32 %v7306, %v7178
  %v7339 = vmin.f32 %v7307, %v7179
  %v7340 = vmin.f32 %v7308, %v7180
  %v7341 = vmin.f32 %v7309, %v7181
  %v7342 = vmin.f32 %v7310, %v7182
  %v7343 = vmin.f32 %v7311, %v7183
  %v7344 = vmin.f32 %v7312, %v7184
  %v7345 = vmin.f32 %v7313, %v7185
  %v7346 = vmin.f32 %v7314, %v7186
  %v7347 = vmin.f32 %v7315, %v7187
  %v7348 = vmin.f32 %v7316, %v7188
  %v7349 = vmin.f32 %v7317, %v7189
  %v7350 = vmin.f32 %v7318, %v7190
  %v7351 = vld [vmem:[%s6806 + $0x1] sm:$0xff]
  %v7352 = vld [vmem:[%s6806 + $0x9] sm:$0xff]
  %v7353 = vld [vmem:[%s6806 + $0x19] sm:$0xff]
  %v7354 = vld [vmem:[%s6806 + $0x21] sm:$0xff]
  %v7355 = vld [vmem:[%s6806 + $0x31] sm:$0xff]
  %v7356 = vld [vmem:[%s6806 + $0x39] sm:$0xff]
  %v7357 = vld [vmem:[%s6806 + $0x49] sm:$0xff]
  %v7358 = vld [vmem:[%s6806 + $0x51] sm:$0xff]
  %v7359 = vld [vmem:[%s6806 + $0x61] sm:$0xff]
  %v7360 = vld [vmem:[%s6806 + $0x69] sm:$0xff]
  %v7361 = vld [vmem:[%s6806 + $0x79] sm:$0xff]
  %v7362 = vld [vmem:[%s6806 + $0x81] sm:$0xff]
  %v7363 = vld [vmem:[%s6806 + $0x91] sm:$0xff]
  %v7364 = vld [vmem:[%s6806 + $0x99] sm:$0xff]
  %v7365 = vld [vmem:[%s6806 + $0xa9] sm:$0xff]
  %v7366 = vld [vmem:[%s6806 + $0xb1] sm:$0xff]
  %v7367 = vld [vmem:[%s6806 + $0xc1] sm:$0xff]
  %v7368 = vld [vmem:[%s6806 + $0xc9] sm:$0xff]
  %v7369 = vld [vmem:[%s6806 + $0xd9] sm:$0xff]
  %v7370 = vld [vmem:[%s6806 + $0xe1] sm:$0xff]
  %v7371 = vld [vmem:[%s6806 + $0xf1] sm:$0xff]
  %v7372 = vld [vmem:[%s6806 + $0xf9] sm:$0xff]
  %v7373 = vld [vmem:[%s6806 + $0x109] sm:$0xff]
  %v7374 = vld [vmem:[%s6806 + $0x111] sm:$0xff]
  %v7375 = vld [vmem:[%s6806 + $0x121] sm:$0xff]
  %v7376 = vld [vmem:[%s6806 + $0x129] sm:$0xff]
  %v7377 = vld [vmem:[%s6806 + $0x139] sm:$0xff]
  %v7378 = vld [vmem:[%s6806 + $0x141] sm:$0xff]
  %v7379 = vld [vmem:[%s6806 + $0x151] sm:$0xff]
  %v7380 = vld [vmem:[%s6806 + $0x159] sm:$0xff]
  %v7381 = vld [vmem:[%s6806 + $0x169] sm:$0xff]
  %v7382 = vld [vmem:[%s6806 + $0x171] sm:$0xff]
  %v7383 = vmin.f32 %v7063, %v7127
  %v7384 = vmin.f32 %v7064, %v7128
  %v7385 = vmin.f32 %v7065, %v7129
  %v7386 = vmin.f32 %v7066, %v7130
  %v7387 = vmin.f32 %v7067, %v7131
  %v7388 = vmin.f32 %v7068, %v7132
  %v7389 = vmin.f32 %v7069, %v7133
  %v7390 = vmin.f32 %v7070, %v7134
  %v7391 = vmin.f32 %v7071, %v7135
  %v7392 = vmin.f32 %v7072, %v7136
  %v7393 = vmin.f32 %v7073, %v7137
  %v7394 = vmin.f32 %v7074, %v7138
  %v7395 = vmin.f32 %v7075, %v7139
  %v7396 = vmin.f32 %v7076, %v7140
  %v7397 = vmin.f32 %v7077, %v7141
  %v7398 = vmin.f32 %v7078, %v7142
  %v7399 = vmin.f32 %v7079, %v7143
  %v7400 = vmin.f32 %v7080, %v7144
  %v7401 = vmin.f32 %v7081, %v7145
  %v7402 = vmin.f32 %v7082, %v7146
  %v7403 = vmin.f32 %v7083, %v7147
  %v7404 = vmin.f32 %v7084, %v7148
  %v7405 = vmin.f32 %v7085, %v7149
  %v7406 = vmin.f32 %v7086, %v7150
  %v7407 = vmin.f32 %v7087, %v7151
  %v7408 = vmin.f32 %v7088, %v7152
  %v7409 = vmin.f32 %v7089, %v7153
  %v7410 = vmin.f32 %v7090, %v7154
  %v7411 = vmin.f32 %v7091, %v7155
  %v7412 = vmin.f32 %v7092, %v7156
  %v7413 = vmin.f32 %v7093, %v7157
  %v7414 = vmin.f32 %v7094, %v7158
  %v7415 = vmax.f32 %v7063, %v7127
  %v7416 = vmax.f32 %v7064, %v7128
  %v7417 = vmax.f32 %v7065, %v7129
  %v7418 = vmax.f32 %v7066, %v7130
  %v7419 = vmax.f32 %v7067, %v7131
  %v7420 = vmax.f32 %v7068, %v7132
  %v7421 = vmax.f32 %v7069, %v7133
  %v7422 = vmax.f32 %v7070, %v7134
  %v7423 = vmax.f32 %v7071, %v7135
  %v7424 = vmax.f32 %v7072, %v7136
  %v7425 = vmax.f32 %v7073, %v7137
  %v7426 = vmax.f32 %v7074, %v7138
  %v7427 = vmax.f32 %v7075, %v7139
  %v7428 = vmax.f32 %v7076, %v7140
  %v7429 = vmax.f32 %v7077, %v7141
  %v7430 = vmax.f32 %v7078, %v7142
  %v7431 = vmax.f32 %v7079, %v7143
  %v7432 = vmax.f32 %v7080, %v7144
  %v7433 = vmax.f32 %v7081, %v7145
  %v7434 = vmax.f32 %v7082, %v7146
  %v7435 = vmax.f32 %v7083, %v7147
  %v7436 = vmax.f32 %v7084, %v7148
  %v7437 = vmax.f32 %v7085, %v7149
  %v7438 = vmax.f32 %v7086, %v7150
  %v7439 = vmax.f32 %v7087, %v7151
  %v7440 = vmax.f32 %v7088, %v7152
  %v7441 = vmax.f32 %v7089, %v7153
  %v7442 = vmax.f32 %v7090, %v7154
  %v7443 = vmax.f32 %v7091, %v7155
  %v7444 = vmax.f32 %v7092, %v7156
  %v7445 = vmax.f32 %v7093, %v7157
  %v7446 = vmax.f32 %v7094, %v7158
  %v7447 = vmin.f32 %v7191, %v7255
  %v7448 = vmin.f32 %v7192, %v7256
  %v7449 = vmin.f32 %v7193, %v7257
  %v7450 = vmin.f32 %v7194, %v7258
  %v7451 = vmin.f32 %v7195, %v7259
  %v7452 = vmin.f32 %v7196, %v7260
  %v7453 = vmin.f32 %v7197, %v7261
  %v7454 = vmin.f32 %v7198, %v7262
  %v7455 = vmin.f32 %v7199, %v7263
  %v7456 = vmin.f32 %v7200, %v7264
  %v7457 = vmin.f32 %v7201, %v7265
  %v7458 = vmin.f32 %v7202, %v7266
  %v7459 = vmin.f32 %v7203, %v7267
  %v7460 = vmin.f32 %v7204, %v7268
  %v7461 = vmin.f32 %v7205, %v7269
  %v7462 = vmin.f32 %v7206, %v7270
  %v7463 = vmin.f32 %v7207, %v7271
  %v7464 = vmin.f32 %v7208, %v7272
  %v7465 = vmin.f32 %v7209, %v7273
  %v7466 = vmin.f32 %v7210, %v7274
  %v7467 = vmin.f32 %v7211, %v7275
  %v7468 = vmin.f32 %v7212, %v7276
  %v7469 = vmin.f32 %v7213, %v7277
  %v7470 = vmin.f32 %v7214, %v7278
  %v7471 = vmin.f32 %v7215, %v7279
  %v7472 = vmin.f32 %v7216, %v7280
  %v7473 = vmin.f32 %v7217, %v7281
  %v7474 = vmin.f32 %v7218, %v7282
  %v7475 = vmin.f32 %v7219, %v7283
  %v7476 = vmin.f32 %v7220, %v7284
  %v7477 = vmin.f32 %v7221, %v7285
  %v7478 = vmin.f32 %v7222, %v7286
  %v7479 = vmax.f32 %v7191, %v7255
  %v7480 = vmax.f32 %v7192, %v7256
  %v7481 = vmax.f32 %v7193, %v7257
  %v7482 = vmax.f32 %v7194, %v7258
  %v7483 = vmax.f32 %v7195, %v7259
  %v7484 = vmax.f32 %v7196, %v7260
  %v7485 = vmax.f32 %v7197, %v7261
  %v7486 = vmax.f32 %v7198, %v7262
  %v7487 = vmax.f32 %v7199, %v7263
  %v7488 = vmax.f32 %v7200, %v7264
  %v7489 = vmax.f32 %v7201, %v7265
  %v7490 = vmax.f32 %v7202, %v7266
  %v7491 = vmax.f32 %v7203, %v7267
  %v7492 = vmax.f32 %v7204, %v7268
  %v7493 = vmax.f32 %v7205, %v7269
  %v7494 = vmax.f32 %v7206, %v7270
  %v7495 = vmax.f32 %v7207, %v7271
  %v7496 = vmax.f32 %v7208, %v7272
  %v7497 = vmax.f32 %v7209, %v7273
  %v7498 = vmax.f32 %v7210, %v7274
  %v7499 = vmax.f32 %v7211, %v7275
  %v7500 = vmax.f32 %v7212, %v7276
  %v7501 = vmax.f32 %v7213, %v7277
  %v7502 = vmax.f32 %v7214, %v7278
  %v7503 = vmax.f32 %v7215, %v7279
  %v7504 = vmax.f32 %v7216, %v7280
  %v7505 = vmax.f32 %v7217, %v7281
  %v7506 = vmax.f32 %v7218, %v7282
  %v7507 = vmax.f32 %v7219, %v7283
  %v7508 = vmax.f32 %v7220, %v7284
  %v7509 = vmax.f32 %v7221, %v7285
  %v7510 = vmax.f32 %v7222, %v7286
  %v7511 = vmin.f32 %v7319, %v7351
  %v7512 = vmin.f32 %v7320, %v7352
  %v7513 = vmin.f32 %v7321, %v7353
  %v7514 = vmin.f32 %v7322, %v7354
  %v7515 = vmin.f32 %v7323, %v7355
  %v7516 = vmin.f32 %v7324, %v7356
  %v7517 = vmin.f32 %v7325, %v7357
  %v7518 = vmin.f32 %v7326, %v7358
  %v7519 = vmin.f32 %v7327, %v7359
  %v7520 = vmin.f32 %v7328, %v7360
  %v7521 = vmin.f32 %v7329, %v7361
  %v7522 = vmin.f32 %v7330, %v7362
  %v7523 = vmin.f32 %v7331, %v7363
  %v7524 = vmin.f32 %v7332, %v7364
  %v7525 = vmin.f32 %v7333, %v7365
  %v7526 = vmin.f32 %v7334, %v7366
  %v7527 = vmin.f32 %v7335, %v7367
  %v7528 = vmin.f32 %v7336, %v7368
  %v7529 = vmin.f32 %v7337, %v7369
  %v7530 = vmin.f32 %v7338, %v7370
  %v7531 = vmin.f32 %v7339, %v7371
  %v7532 = vmin.f32 %v7340, %v7372
  %v7533 = vmin.f32 %v7341, %v7373
  %v7534 = vmin.f32 %v7342, %v7374
  %v7535 = vmin.f32 %v7343, %v7375
  %v7536 = vmin.f32 %v7344, %v7376
  %v7537 = vmin.f32 %v7345, %v7377
  %v7538 = vmin.f32 %v7346, %v7378
  %v7539 = vmin.f32 %v7347, %v7379
  %v7540 = vmin.f32 %v7348, %v7380
  %v7541 = vmin.f32 %v7349, %v7381
  %v7542 = vmin.f32 %v7350, %v7382
  %v7543 = vmax.f32 %v7319, %v7351
  %v7544 = vmax.f32 %v7320, %v7352
  %v7545 = vmax.f32 %v7321, %v7353
  %v7546 = vmax.f32 %v7322, %v7354
  %v7547 = vmax.f32 %v7323, %v7355
  %v7548 = vmax.f32 %v7324, %v7356
  %v7549 = vmax.f32 %v7325, %v7357
  %v7550 = vmax.f32 %v7326, %v7358
  %v7551 = vmax.f32 %v7327, %v7359
  %v7552 = vmax.f32 %v7328, %v7360
  %v7553 = vmax.f32 %v7329, %v7361
  %v7554 = vmax.f32 %v7330, %v7362
  %v7555 = vmax.f32 %v7331, %v7363
  %v7556 = vmax.f32 %v7332, %v7364
  %v7557 = vmax.f32 %v7333, %v7365
  %v7558 = vmax.f32 %v7334, %v7366
  %v7559 = vmax.f32 %v7335, %v7367
  %v7560 = vmax.f32 %v7336, %v7368
  %v7561 = vmax.f32 %v7337, %v7369
  %v7562 = vmax.f32 %v7338, %v7370
  %v7563 = vmax.f32 %v7339, %v7371
  %v7564 = vmax.f32 %v7340, %v7372
  %v7565 = vmax.f32 %v7341, %v7373
  %v7566 = vmax.f32 %v7342, %v7374
  %v7567 = vmax.f32 %v7343, %v7375
  %v7568 = vmax.f32 %v7344, %v7376
  %v7569 = vmax.f32 %v7345, %v7377
  %v7570 = vmax.f32 %v7346, %v7378
  %v7571 = vmax.f32 %v7347, %v7379
  %v7572 = vmax.f32 %v7348, %v7380
  %v7573 = vmax.f32 %v7349, %v7381
  %v7574 = vmax.f32 %v7350, %v7382
  %v7575 = vmin.f32 %v7383, %v7447
  %v7576 = vmin.f32 %v7384, %v7448
  %v7577 = vmin.f32 %v7385, %v7449
  %v7578 = vmin.f32 %v7386, %v7450
  %v7579 = vmin.f32 %v7387, %v7451
  %v7580 = vmin.f32 %v7388, %v7452
  %v7581 = vmin.f32 %v7389, %v7453
  %v7582 = vmin.f32 %v7390, %v7454
  %v7583 = vmin.f32 %v7391, %v7455
  %v7584 = vmin.f32 %v7392, %v7456
  %v7585 = vmin.f32 %v7393, %v7457
  %v7586 = vmin.f32 %v7394, %v7458
  %v7587 = vmin.f32 %v7395, %v7459
  %v7588 = vmin.f32 %v7396, %v7460
  %v7589 = vmin.f32 %v7397, %v7461
  %v7590 = vmin.f32 %v7398, %v7462
  %v7591 = vmin.f32 %v7399, %v7463
  %v7592 = vmin.f32 %v7400, %v7464
  %v7593 = vmin.f32 %v7401, %v7465
  %v7594 = vmin.f32 %v7402, %v7466
  %v7595 = vmin.f32 %v7403, %v7467
  %v7596 = vmin.f32 %v7404, %v7468
  %v7597 = vmin.f32 %v7405, %v7469
  %v7598 = vmin.f32 %v7406, %v7470
  %v7599 = vmin.f32 %v7407, %v7471
  %v7600 = vmin.f32 %v7408, %v7472
  %v7601 = vmin.f32 %v7409, %v7473
  %v7602 = vmin.f32 %v7410, %v7474
  %v7603 = vmin.f32 %v7411, %v7475
  %v7604 = vmin.f32 %v7412, %v7476
  %v7605 = vmin.f32 %v7413, %v7477
  %v7606 = vmin.f32 %v7414, %v7478
  %v7607 = vmax.f32 %v7383, %v7447
  %v7608 = vmax.f32 %v7384, %v7448
  %v7609 = vmax.f32 %v7385, %v7449
  %v7610 = vmax.f32 %v7386, %v7450
  %v7611 = vmax.f32 %v7387, %v7451
  %v7612 = vmax.f32 %v7388, %v7452
  %v7613 = vmax.f32 %v7389, %v7453
  %v7614 = vmax.f32 %v7390, %v7454
  %v7615 = vmax.f32 %v7391, %v7455
  %v7616 = vmax.f32 %v7392, %v7456
  %v7617 = vmax.f32 %v7393, %v7457
  %v7618 = vmax.f32 %v7394, %v7458
  %v7619 = vmax.f32 %v7395, %v7459
  %v7620 = vmax.f32 %v7396, %v7460
  %v7621 = vmax.f32 %v7397, %v7461
  %v7622 = vmax.f32 %v7398, %v7462
  %v7623 = vmax.f32 %v7399, %v7463
  %v7624 = vmax.f32 %v7400, %v7464
  %v7625 = vmax.f32 %v7401, %v7465
  %v7626 = vmax.f32 %v7402, %v7466
  %v7627 = vmax.f32 %v7403, %v7467
  %v7628 = vmax.f32 %v7404, %v7468
  %v7629 = vmax.f32 %v7405, %v7469
  %v7630 = vmax.f32 %v7406, %v7470
  %v7631 = vmax.f32 %v7407, %v7471
  %v7632 = vmax.f32 %v7408, %v7472
  %v7633 = vmax.f32 %v7409, %v7473
  %v7634 = vmax.f32 %v7410, %v7474
  %v7635 = vmax.f32 %v7411, %v7475
  %v7636 = vmax.f32 %v7412, %v7476
  %v7637 = vmax.f32 %v7413, %v7477
  %v7638 = vmax.f32 %v7414, %v7478
  %v7639 = vmax.f32 %v7575, %v7511
  %v7640 = vmax.f32 %v7576, %v7512
  %v7641 = vmax.f32 %v7577, %v7513
  %v7642 = vmax.f32 %v7578, %v7514
  %v7643 = vmax.f32 %v7579, %v7515
  %v7644 = vmax.f32 %v7580, %v7516
  %v7645 = vmax.f32 %v7581, %v7517
  %v7646 = vmax.f32 %v7582, %v7518
  %v7647 = vmax.f32 %v7583, %v7519
  %v7648 = vmax.f32 %v7584, %v7520
  %v7649 = vmax.f32 %v7585, %v7521
  %v7650 = vmax.f32 %v7586, %v7522
  %v7651 = vmax.f32 %v7587, %v7523
  %v7652 = vmax.f32 %v7588, %v7524
  %v7653 = vmax.f32 %v7589, %v7525
  %v7654 = vmax.f32 %v7590, %v7526
  %v7655 = vmax.f32 %v7591, %v7527
  %v7656 = vmax.f32 %v7592, %v7528
  %v7657 = vmax.f32 %v7593, %v7529
  %v7658 = vmax.f32 %v7594, %v7530
  %v7659 = vmax.f32 %v7595, %v7531
  %v7660 = vmax.f32 %v7596, %v7532
  %v7661 = vmax.f32 %v7597, %v7533
  %v7662 = vmax.f32 %v7598, %v7534
  %v7663 = vmax.f32 %v7599, %v7535
  %v7664 = vmax.f32 %v7600, %v7536
  %v7665 = vmax.f32 %v7601, %v7537
  %v7666 = vmax.f32 %v7602, %v7538
  %v7667 = vmax.f32 %v7603, %v7539
  %v7668 = vmax.f32 %v7604, %v7540
  %v7669 = vmax.f32 %v7605, %v7541
  %v7670 = vmax.f32 %v7606, %v7542
  %v7671 = vmin.f32 %v7415, %v7479
  %v7672 = vmin.f32 %v7416, %v7480
  %v7673 = vmin.f32 %v7417, %v7481
  %v7674 = vmin.f32 %v7418, %v7482
  %v7675 = vmin.f32 %v7419, %v7483
  %v7676 = vmin.f32 %v7420, %v7484
  %v7677 = vmin.f32 %v7421, %v7485
  %v7678 = vmin.f32 %v7422, %v7486
  %v7679 = vmin.f32 %v7423, %v7487
  %v7680 = vmin.f32 %v7424, %v7488
  %v7681 = vmin.f32 %v7425, %v7489
  %v7682 = vmin.f32 %v7426, %v7490
  %v7683 = vmin.f32 %v7427, %v7491
  %v7684 = vmin.f32 %v7428, %v7492
  %v7685 = vmin.f32 %v7429, %v7493
  %v7686 = vmin.f32 %v7430, %v7494
  %v7687 = vmin.f32 %v7431, %v7495
  %v7688 = vmin.f32 %v7432, %v7496
  %v7689 = vmin.f32 %v7433, %v7497
  %v7690 = vmin.f32 %v7434, %v7498
  %v7691 = vmin.f32 %v7435, %v7499
  %v7692 = vmin.f32 %v7436, %v7500
  %v7693 = vmin.f32 %v7437, %v7501
  %v7694 = vmin.f32 %v7438, %v7502
  %v7695 = vmin.f32 %v7439, %v7503
  %v7696 = vmin.f32 %v7440, %v7504
  %v7697 = vmin.f32 %v7441, %v7505
  %v7698 = vmin.f32 %v7442, %v7506
  %v7699 = vmin.f32 %v7443, %v7507
  %v7700 = vmin.f32 %v7444, %v7508
  %v7701 = vmin.f32 %v7445, %v7509
  %v7702 = vmin.f32 %v7446, %v7510
  %v7703 = vmax.f32 %v7415, %v7479
  %v7704 = vmax.f32 %v7416, %v7480
  %v7705 = vmax.f32 %v7417, %v7481
  %v7706 = vmax.f32 %v7418, %v7482
  %v7707 = vmax.f32 %v7419, %v7483
  %v7708 = vmax.f32 %v7420, %v7484
  %v7709 = vmax.f32 %v7421, %v7485
  %v7710 = vmax.f32 %v7422, %v7486
  %v7711 = vmax.f32 %v7423, %v7487
  %v7712 = vmax.f32 %v7424, %v7488
  %v7713 = vmax.f32 %v7425, %v7489
  %v7714 = vmax.f32 %v7426, %v7490
  %v7715 = vmax.f32 %v7427, %v7491
  %v7716 = vmax.f32 %v7428, %v7492
  %v7717 = vmax.f32 %v7429, %v7493
  %v7718 = vmax.f32 %v7430, %v7494
  %v7719 = vmax.f32 %v7431, %v7495
  %v7720 = vmax.f32 %v7432, %v7496
  %v7721 = vmax.f32 %v7433, %v7497
  %v7722 = vmax.f32 %v7434, %v7498
  %v7723 = vmax.f32 %v7435, %v7499
  %v7724 = vmax.f32 %v7436, %v7500
  %v7725 = vmax.f32 %v7437, %v7501
  %v7726 = vmax.f32 %v7438, %v7502
  %v7727 = vmax.f32 %v7439, %v7503
  %v7728 = vmax.f32 %v7440, %v7504
  %v7729 = vmax.f32 %v7441, %v7505
  %v7730 = vmax.f32 %v7442, %v7506
  %v7731 = vmax.f32 %v7443, %v7507
  %v7732 = vmax.f32 %v7444, %v7508
  %v7733 = vmax.f32 %v7445, %v7509
  %v7734 = vmax.f32 %v7446, %v7510
  %v7735 = vmin.f32 %v7703, %v7543
  %v7736 = vmin.f32 %v7704, %v7544
  %v7737 = vmin.f32 %v7705, %v7545
  %v7738 = vmin.f32 %v7706, %v7546
  %v7739 = vmin.f32 %v7707, %v7547
  %v7740 = vmin.f32 %v7708, %v7548
  %v7741 = vmin.f32 %v7709, %v7549
  %v7742 = vmin.f32 %v7710, %v7550
  %v7743 = vmin.f32 %v7711, %v7551
  %v7744 = vmin.f32 %v7712, %v7552
  %v7745 = vmin.f32 %v7713, %v7553
  %v7746 = vmin.f32 %v7714, %v7554
  %v7747 = vmin.f32 %v7715, %v7555
  %v7748 = vmin.f32 %v7716, %v7556
  %v7749 = vmin.f32 %v7717, %v7557
  %v7750 = vmin.f32 %v7718, %v7558
  %v7751 = vmin.f32 %v7719, %v7559
  %v7752 = vmin.f32 %v7720, %v7560
  %v7753 = vmin.f32 %v7721, %v7561
  %v7754 = vmin.f32 %v7722, %v7562
  %v7755 = vmin.f32 %v7723, %v7563
  %v7756 = vmin.f32 %v7724, %v7564
  %v7757 = vmin.f32 %v7725, %v7565
  %v7758 = vmin.f32 %v7726, %v7566
  %v7759 = vmin.f32 %v7727, %v7567
  %v7760 = vmin.f32 %v7728, %v7568
  %v7761 = vmin.f32 %v7729, %v7569
  %v7762 = vmin.f32 %v7730, %v7570
  %v7763 = vmin.f32 %v7731, %v7571
  %v7764 = vmin.f32 %v7732, %v7572
  %v7765 = vmin.f32 %v7733, %v7573
  %v7766 = vmin.f32 %v7734, %v7574
  %v7767 = vld [vmem:[%s6806 + $0x2] sm:$0xff]
  %v7768 = vld [vmem:[%s6806 + $0xa] sm:$0xff]
  %v7769 = vld [vmem:[%s6806 + $0x1a] sm:$0xff]
  %v7770 = vld [vmem:[%s6806 + $0x22] sm:$0xff]
  %v7771 = vld [vmem:[%s6806 + $0x32] sm:$0xff]
  %v7772 = vld [vmem:[%s6806 + $0x3a] sm:$0xff]
  %v7773 = vld [vmem:[%s6806 + $0x4a] sm:$0xff]
  %v7774 = vld [vmem:[%s6806 + $0x52] sm:$0xff]
  %v7775 = vld [vmem:[%s6806 + $0x62] sm:$0xff]
  %v7776 = vld [vmem:[%s6806 + $0x6a] sm:$0xff]
  %v7777 = vld [vmem:[%s6806 + $0x7a] sm:$0xff]
  %v7778 = vld [vmem:[%s6806 + $0x82] sm:$0xff]
  %v7779 = vld [vmem:[%s6806 + $0x92] sm:$0xff]
  %v7780 = vld [vmem:[%s6806 + $0x9a] sm:$0xff]
  %v7781 = vld [vmem:[%s6806 + $0xaa] sm:$0xff]
  %v7782 = vld [vmem:[%s6806 + $0xb2] sm:$0xff]
  %v7783 = vld [vmem:[%s6806 + $0xc2] sm:$0xff]
  %v7784 = vld [vmem:[%s6806 + $0xca] sm:$0xff]
  %v7785 = vld [vmem:[%s6806 + $0xda] sm:$0xff]
  %v7786 = vld [vmem:[%s6806 + $0xe2] sm:$0xff]
  %v7787 = vld [vmem:[%s6806 + $0xf2] sm:$0xff]
  %v7788 = vld [vmem:[%s6806 + $0xfa] sm:$0xff]
  %v7789 = vld [vmem:[%s6806 + $0x10a] sm:$0xff]
  %v7790 = vld [vmem:[%s6806 + $0x112] sm:$0xff]
  %v7791 = vld [vmem:[%s6806 + $0x122] sm:$0xff]
  %v7792 = vld [vmem:[%s6806 + $0x12a] sm:$0xff]
  %v7793 = vld [vmem:[%s6806 + $0x13a] sm:$0xff]
  %v7794 = vld [vmem:[%s6806 + $0x142] sm:$0xff]
  %v7795 = vld [vmem:[%s6806 + $0x152] sm:$0xff]
  %v7796 = vld [vmem:[%s6806 + $0x15a] sm:$0xff]
  %v7797 = vld [vmem:[%s6806 + $0x16a] sm:$0xff]
  %v7798 = vld [vmem:[%s6806 + $0x172] sm:$0xff]
  %v7799 = vmin.f32 %v7607, %v7639
  %v7800 = vmin.f32 %v7608, %v7640
  %v7801 = vmin.f32 %v7609, %v7641
  %v7802 = vmin.f32 %v7610, %v7642
  %v7803 = vmin.f32 %v7611, %v7643
  %v7804 = vmin.f32 %v7612, %v7644
  %v7805 = vmin.f32 %v7613, %v7645
  %v7806 = vmin.f32 %v7614, %v7646
  %v7807 = vmin.f32 %v7615, %v7647
  %v7808 = vmin.f32 %v7616, %v7648
  %v7809 = vmin.f32 %v7617, %v7649
  %v7810 = vmin.f32 %v7618, %v7650
  %v7811 = vmin.f32 %v7619, %v7651
  %v7812 = vmin.f32 %v7620, %v7652
  %v7813 = vmin.f32 %v7621, %v7653
  %v7814 = vmin.f32 %v7622, %v7654
  %v7815 = vmin.f32 %v7623, %v7655
  %v7816 = vmin.f32 %v7624, %v7656
  %v7817 = vmin.f32 %v7625, %v7657
  %v7818 = vmin.f32 %v7626, %v7658
  %v7819 = vmin.f32 %v7627, %v7659
  %v7820 = vmin.f32 %v7628, %v7660
  %v7821 = vmin.f32 %v7629, %v7661
  %v7822 = vmin.f32 %v7630, %v7662
  %v7823 = vmin.f32 %v7631, %v7663
  %v7824 = vmin.f32 %v7632, %v7664
  %v7825 = vmin.f32 %v7633, %v7665
  %v7826 = vmin.f32 %v7634, %v7666
  %v7827 = vmin.f32 %v7635, %v7667
  %v7828 = vmin.f32 %v7636, %v7668
  %v7829 = vmin.f32 %v7637, %v7669
  %v7830 = vmin.f32 %v7638, %v7670
  %v7831 = vmax.f32 %v7607, %v7639
  %v7832 = vmax.f32 %v7608, %v7640
  %v7833 = vmax.f32 %v7609, %v7641
  %v7834 = vmax.f32 %v7610, %v7642
  %v7835 = vmax.f32 %v7611, %v7643
  %v7836 = vmax.f32 %v7612, %v7644
  %v7837 = vmax.f32 %v7613, %v7645
  %v7838 = vmax.f32 %v7614, %v7646
  %v7839 = vmax.f32 %v7615, %v7647
  %v7840 = vmax.f32 %v7616, %v7648
  %v7841 = vmax.f32 %v7617, %v7649
  %v7842 = vmax.f32 %v7618, %v7650
  %v7843 = vmax.f32 %v7619, %v7651
  %v7844 = vmax.f32 %v7620, %v7652
  %v7845 = vmax.f32 %v7621, %v7653
  %v7846 = vmax.f32 %v7622, %v7654
  %v7847 = vmax.f32 %v7623, %v7655
  %v7848 = vmax.f32 %v7624, %v7656
  %v7849 = vmax.f32 %v7625, %v7657
  %v7850 = vmax.f32 %v7626, %v7658
  %v7851 = vmax.f32 %v7627, %v7659
  %v7852 = vmax.f32 %v7628, %v7660
  %v7853 = vmax.f32 %v7629, %v7661
  %v7854 = vmax.f32 %v7630, %v7662
  %v7855 = vmax.f32 %v7631, %v7663
  %v7856 = vmax.f32 %v7632, %v7664
  %v7857 = vmax.f32 %v7633, %v7665
  %v7858 = vmax.f32 %v7634, %v7666
  %v7859 = vmax.f32 %v7635, %v7667
  %v7860 = vmax.f32 %v7636, %v7668
  %v7861 = vmax.f32 %v7637, %v7669
  %v7862 = vmax.f32 %v7638, %v7670
  %v7863 = vmin.f32 %v7671, %v7735
  %v7864 = vmin.f32 %v7672, %v7736
  %v7865 = vmin.f32 %v7673, %v7737
  %v7866 = vmin.f32 %v7674, %v7738
  %v7867 = vmin.f32 %v7675, %v7739
  %v7868 = vmin.f32 %v7676, %v7740
  %v7869 = vmin.f32 %v7677, %v7741
  %v7870 = vmin.f32 %v7678, %v7742
  %v7871 = vmin.f32 %v7679, %v7743
  %v7872 = vmin.f32 %v7680, %v7744
  %v7873 = vmin.f32 %v7681, %v7745
  %v7874 = vmin.f32 %v7682, %v7746
  %v7875 = vmin.f32 %v7683, %v7747
  %v7876 = vmin.f32 %v7684, %v7748
  %v7877 = vmin.f32 %v7685, %v7749
  %v7878 = vmin.f32 %v7686, %v7750
  %v7879 = vmin.f32 %v7687, %v7751
  %v7880 = vmin.f32 %v7688, %v7752
  %v7881 = vmin.f32 %v7689, %v7753
  %v7882 = vmin.f32 %v7690, %v7754
  %v7883 = vmin.f32 %v7691, %v7755
  %v7884 = vmin.f32 %v7692, %v7756
  %v7885 = vmin.f32 %v7693, %v7757
  %v7886 = vmin.f32 %v7694, %v7758
  %v7887 = vmin.f32 %v7695, %v7759
  %v7888 = vmin.f32 %v7696, %v7760
  %v7889 = vmin.f32 %v7697, %v7761
  %v7890 = vmin.f32 %v7698, %v7762
  %v7891 = vmin.f32 %v7699, %v7763
  %v7892 = vmin.f32 %v7700, %v7764
  %v7893 = vmin.f32 %v7701, %v7765
  %v7894 = vmin.f32 %v7702, %v7766
  %v7895 = vmax.f32 %v7671, %v7735
  %v7896 = vmax.f32 %v7672, %v7736
  %v7897 = vmax.f32 %v7673, %v7737
  %v7898 = vmax.f32 %v7674, %v7738
  %v7899 = vmax.f32 %v7675, %v7739
  %v7900 = vmax.f32 %v7676, %v7740
  %v7901 = vmax.f32 %v7677, %v7741
  %v7902 = vmax.f32 %v7678, %v7742
  %v7903 = vmax.f32 %v7679, %v7743
  %v7904 = vmax.f32 %v7680, %v7744
  %v7905 = vmax.f32 %v7681, %v7745
  %v7906 = vmax.f32 %v7682, %v7746
  %v7907 = vmax.f32 %v7683, %v7747
  %v7908 = vmax.f32 %v7684, %v7748
  %v7909 = vmax.f32 %v7685, %v7749
  %v7910 = vmax.f32 %v7686, %v7750
  %v7911 = vmax.f32 %v7687, %v7751
  %v7912 = vmax.f32 %v7688, %v7752
  %v7913 = vmax.f32 %v7689, %v7753
  %v7914 = vmax.f32 %v7690, %v7754
  %v7915 = vmax.f32 %v7691, %v7755
  %v7916 = vmax.f32 %v7692, %v7756
  %v7917 = vmax.f32 %v7693, %v7757
  %v7918 = vmax.f32 %v7694, %v7758
  %v7919 = vmax.f32 %v7695, %v7759
  %v7920 = vmax.f32 %v7696, %v7760
  %v7921 = vmax.f32 %v7697, %v7761
  %v7922 = vmax.f32 %v7698, %v7762
  %v7923 = vmax.f32 %v7699, %v7763
  %v7924 = vmax.f32 %v7700, %v7764
  %v7925 = vmax.f32 %v7701, %v7765
  %v7926 = vmax.f32 %v7702, %v7766
  %v7927 = vmin.f32 %v7799, %v7863
  %v7928 = vmin.f32 %v7800, %v7864
  %v7929 = vmin.f32 %v7801, %v7865
  %v7930 = vmin.f32 %v7802, %v7866
  %v7931 = vmin.f32 %v7803, %v7867
  %v7932 = vmin.f32 %v7804, %v7868
  %v7933 = vmin.f32 %v7805, %v7869
  %v7934 = vmin.f32 %v7806, %v7870
  %v7935 = vmin.f32 %v7807, %v7871
  %v7936 = vmin.f32 %v7808, %v7872
  %v7937 = vmin.f32 %v7809, %v7873
  %v7938 = vmin.f32 %v7810, %v7874
  %v7939 = vmin.f32 %v7811, %v7875
  %v7940 = vmin.f32 %v7812, %v7876
  %v7941 = vmin.f32 %v7813, %v7877
  %v7942 = vmin.f32 %v7814, %v7878
  %v7943 = vmin.f32 %v7815, %v7879
  %v7944 = vmin.f32 %v7816, %v7880
  %v7945 = vmin.f32 %v7817, %v7881
  %v7946 = vmin.f32 %v7818, %v7882
  %v7947 = vmin.f32 %v7819, %v7883
  %v7948 = vmin.f32 %v7820, %v7884
  %v7949 = vmin.f32 %v7821, %v7885
  %v7950 = vmin.f32 %v7822, %v7886
  %v7951 = vmin.f32 %v7823, %v7887
  %v7952 = vmin.f32 %v7824, %v7888
  %v7953 = vmin.f32 %v7825, %v7889
  %v7954 = vmin.f32 %v7826, %v7890
  %v7955 = vmin.f32 %v7827, %v7891
  %v7956 = vmin.f32 %v7828, %v7892
  %v7957 = vmin.f32 %v7829, %v7893
  %v7958 = vmin.f32 %v7830, %v7894
  %v7959 = vmax.f32 %v7799, %v7863
  %v7960 = vmax.f32 %v7800, %v7864
  %v7961 = vmax.f32 %v7801, %v7865
  %v7962 = vmax.f32 %v7802, %v7866
  %v7963 = vmax.f32 %v7803, %v7867
  %v7964 = vmax.f32 %v7804, %v7868
  %v7965 = vmax.f32 %v7805, %v7869
  %v7966 = vmax.f32 %v7806, %v7870
  %v7967 = vmax.f32 %v7807, %v7871
  %v7968 = vmax.f32 %v7808, %v7872
  %v7969 = vmax.f32 %v7809, %v7873
  %v7970 = vmax.f32 %v7810, %v7874
  %v7971 = vmax.f32 %v7811, %v7875
  %v7972 = vmax.f32 %v7812, %v7876
  %v7973 = vmax.f32 %v7813, %v7877
  %v7974 = vmax.f32 %v7814, %v7878
  %v7975 = vmax.f32 %v7815, %v7879
  %v7976 = vmax.f32 %v7816, %v7880
  %v7977 = vmax.f32 %v7817, %v7881
  %v7978 = vmax.f32 %v7818, %v7882
  %v7979 = vmax.f32 %v7819, %v7883
  %v7980 = vmax.f32 %v7820, %v7884
  %v7981 = vmax.f32 %v7821, %v7885
  %v7982 = vmax.f32 %v7822, %v7886
  %v7983 = vmax.f32 %v7823, %v7887
  %v7984 = vmax.f32 %v7824, %v7888
  %v7985 = vmax.f32 %v7825, %v7889
  %v7986 = vmax.f32 %v7826, %v7890
  %v7987 = vmax.f32 %v7827, %v7891
  %v7988 = vmax.f32 %v7828, %v7892
  %v7989 = vmax.f32 %v7829, %v7893
  %v7990 = vmax.f32 %v7830, %v7894
  %v7991 = vmax.f32 %v7927, %v7767
  %v7992 = vmax.f32 %v7928, %v7768
  %v7993 = vmax.f32 %v7929, %v7769
  %v7994 = vmax.f32 %v7930, %v7770
  %v7995 = vmax.f32 %v7931, %v7771
  %v7996 = vmax.f32 %v7932, %v7772
  %v7997 = vmax.f32 %v7933, %v7773
  %v7998 = vmax.f32 %v7934, %v7774
  %v7999 = vmax.f32 %v7935, %v7775
  %v8000 = vmax.f32 %v7936, %v7776
  %v8001 = vmax.f32 %v7937, %v7777
  %v8002 = vmax.f32 %v7938, %v7778
  %v8003 = vmax.f32 %v7939, %v7779
  %v8004 = vmax.f32 %v7940, %v7780
  %v8005 = vmax.f32 %v7941, %v7781
  %v8006 = vmax.f32 %v7942, %v7782
  %v8007 = vmax.f32 %v7943, %v7783
  %v8008 = vmax.f32 %v7944, %v7784
  %v8009 = vmax.f32 %v7945, %v7785
  %v8010 = vmax.f32 %v7946, %v7786
  %v8011 = vmax.f32 %v7947, %v7787
  %v8012 = vmax.f32 %v7948, %v7788
  %v8013 = vmax.f32 %v7949, %v7789
  %v8014 = vmax.f32 %v7950, %v7790
  %v8015 = vmax.f32 %v7951, %v7791
  %v8016 = vmax.f32 %v7952, %v7792
  %v8017 = vmax.f32 %v7953, %v7793
  %v8018 = vmax.f32 %v7954, %v7794
  %v8019 = vmax.f32 %v7955, %v7795
  %v8020 = vmax.f32 %v7956, %v7796
  %v8021 = vmax.f32 %v7957, %v7797
  %v8022 = vmax.f32 %v7958, %v7798
  %v8023 = vmin.f32 %v7831, %v7895
  %v8024 = vmin.f32 %v7832, %v7896
  %v8025 = vmin.f32 %v7833, %v7897
  %v8026 = vmin.f32 %v7834, %v7898
  %v8027 = vmin.f32 %v7835, %v7899
  %v8028 = vmin.f32 %v7836, %v7900
  %v8029 = vmin.f32 %v7837, %v7901
  %v8030 = vmin.f32 %v7838, %v7902
  %v8031 = vmin.f32 %v7839, %v7903
  %v8032 = vmin.f32 %v7840, %v7904
  %v8033 = vmin.f32 %v7841, %v7905
  %v8034 = vmin.f32 %v7842, %v7906
  %v8035 = vmin.f32 %v7843, %v7907
  %v8036 = vmin.f32 %v7844, %v7908
  %v8037 = vmin.f32 %v7845, %v7909
  %v8038 = vmin.f32 %v7846, %v7910
  %v8039 = vmin.f32 %v7847, %v7911
  %v8040 = vmin.f32 %v7848, %v7912
  %v8041 = vmin.f32 %v7849, %v7913
  %v8042 = vmin.f32 %v7850, %v7914
  %v8043 = vmin.f32 %v7851, %v7915
  %v8044 = vmin.f32 %v7852, %v7916
  %v8045 = vmin.f32 %v7853, %v7917
  %v8046 = vmin.f32 %v7854, %v7918
  %v8047 = vmin.f32 %v7855, %v7919
  %v8048 = vmin.f32 %v7856, %v7920
  %v8049 = vmin.f32 %v7857, %v7921
  %v8050 = vmin.f32 %v7858, %v7922
  %v8051 = vmin.f32 %v7859, %v7923
  %v8052 = vmin.f32 %v7860, %v7924
  %v8053 = vmin.f32 %v7861, %v7925
  %v8054 = vmin.f32 %v7862, %v7926
  %v8055 = vmax.f32 %v7831, %v7895
  %v8056 = vmax.f32 %v7832, %v7896
  %v8057 = vmax.f32 %v7833, %v7897
  %v8058 = vmax.f32 %v7834, %v7898
  %v8059 = vmax.f32 %v7835, %v7899
  %v8060 = vmax.f32 %v7836, %v7900
  %v8061 = vmax.f32 %v7837, %v7901
  %v8062 = vmax.f32 %v7838, %v7902
  %v8063 = vmax.f32 %v7839, %v7903
  %v8064 = vmax.f32 %v7840, %v7904
  %v8065 = vmax.f32 %v7841, %v7905
  %v8066 = vmax.f32 %v7842, %v7906
  %v8067 = vmax.f32 %v7843, %v7907
  %v8068 = vmax.f32 %v7844, %v7908
  %v8069 = vmax.f32 %v7845, %v7909
  %v8070 = vmax.f32 %v7846, %v7910
  %v8071 = vmax.f32 %v7847, %v7911
  %v8072 = vmax.f32 %v7848, %v7912
  %v8073 = vmax.f32 %v7849, %v7913
  %v8074 = vmax.f32 %v7850, %v7914
  %v8075 = vmax.f32 %v7851, %v7915
  %v8076 = vmax.f32 %v7852, %v7916
  %v8077 = vmax.f32 %v7853, %v7917
  %v8078 = vmax.f32 %v7854, %v7918
  %v8079 = vmax.f32 %v7855, %v7919
  %v8080 = vmax.f32 %v7856, %v7920
  %v8081 = vmax.f32 %v7857, %v7921
  %v8082 = vmax.f32 %v7858, %v7922
  %v8083 = vmax.f32 %v7859, %v7923
  %v8084 = vmax.f32 %v7860, %v7924
  %v8085 = vmax.f32 %v7861, %v7925
  %v8086 = vmax.f32 %v7862, %v7926
  %v8087 = vmin.f32 %v8055, %v7991
  %v8088 = vmin.f32 %v8056, %v7992
  %v8089 = vmin.f32 %v8057, %v7993
  %v8090 = vmin.f32 %v8058, %v7994
  %v8091 = vmin.f32 %v8059, %v7995
  %v8092 = vmin.f32 %v8060, %v7996
  %v8093 = vmin.f32 %v8061, %v7997
  %v8094 = vmin.f32 %v8062, %v7998
  %v8095 = vmin.f32 %v8063, %v7999
  %v8096 = vmin.f32 %v8064, %v8000
  %v8097 = vmin.f32 %v8065, %v8001
  %v8098 = vmin.f32 %v8066, %v8002
  %v8099 = vmin.f32 %v8067, %v8003
  %v8100 = vmin.f32 %v8068, %v8004
  %v8101 = vmin.f32 %v8069, %v8005
  %v8102 = vmin.f32 %v8070, %v8006
  %v8103 = vmin.f32 %v8071, %v8007
  %v8104 = vmin.f32 %v8072, %v8008
  %v8105 = vmin.f32 %v8073, %v8009
  %v8106 = vmin.f32 %v8074, %v8010
  %v8107 = vmin.f32 %v8075, %v8011
  %v8108 = vmin.f32 %v8076, %v8012
  %v8109 = vmin.f32 %v8077, %v8013
  %v8110 = vmin.f32 %v8078, %v8014
  %v8111 = vmin.f32 %v8079, %v8015
  %v8112 = vmin.f32 %v8080, %v8016
  %v8113 = vmin.f32 %v8081, %v8017
  %v8114 = vmin.f32 %v8082, %v8018
  %v8115 = vmin.f32 %v8083, %v8019
  %v8116 = vmin.f32 %v8084, %v8020
  %v8117 = vmin.f32 %v8085, %v8021
  %v8118 = vmin.f32 %v8086, %v8022
  %v8119 = vld [vmem:[%s6806 + $0x3] sm:$0xff]
  %v8120 = vld [vmem:[%s6806 + $0xb] sm:$0xff]
  %v8121 = vld [vmem:[%s6806 + $0x1b] sm:$0xff]
  %v8122 = vld [vmem:[%s6806 + $0x23] sm:$0xff]
  %v8123 = vld [vmem:[%s6806 + $0x33] sm:$0xff]
  %v8124 = vld [vmem:[%s6806 + $0x3b] sm:$0xff]
  %v8125 = vld [vmem:[%s6806 + $0x4b] sm:$0xff]
  %v8126 = vld [vmem:[%s6806 + $0x53] sm:$0xff]
  %v8127 = vld [vmem:[%s6806 + $0x63] sm:$0xff]
  %v8128 = vld [vmem:[%s6806 + $0x6b] sm:$0xff]
  %v8129 = vld [vmem:[%s6806 + $0x7b] sm:$0xff]
  %v8130 = vld [vmem:[%s6806 + $0x83] sm:$0xff]
  %v8131 = vld [vmem:[%s6806 + $0x93] sm:$0xff]
  %v8132 = vld [vmem:[%s6806 + $0x9b] sm:$0xff]
  %v8133 = vld [vmem:[%s6806 + $0xab] sm:$0xff]
  %v8134 = vld [vmem:[%s6806 + $0xb3] sm:$0xff]
  %v8135 = vld [vmem:[%s6806 + $0xc3] sm:$0xff]
  %v8136 = vld [vmem:[%s6806 + $0xcb] sm:$0xff]
  %v8137 = vld [vmem:[%s6806 + $0xdb] sm:$0xff]
  %v8138 = vld [vmem:[%s6806 + $0xe3] sm:$0xff]
  %v8139 = vld [vmem:[%s6806 + $0xf3] sm:$0xff]
  %v8140 = vld [vmem:[%s6806 + $0xfb] sm:$0xff]
  %v8141 = vld [vmem:[%s6806 + $0x10b] sm:$0xff]
  %v8142 = vld [vmem:[%s6806 + $0x113] sm:$0xff]
  %v8143 = vld [vmem:[%s6806 + $0x123] sm:$0xff]
  %v8144 = vld [vmem:[%s6806 + $0x12b] sm:$0xff]
  %v8145 = vld [vmem:[%s6806 + $0x13b] sm:$0xff]
  %v8146 = vld [vmem:[%s6806 + $0x143] sm:$0xff]
  %v8147 = vld [vmem:[%s6806 + $0x153] sm:$0xff]
  %v8148 = vld [vmem:[%s6806 + $0x15b] sm:$0xff]
  %v8149 = vld [vmem:[%s6806 + $0x16b] sm:$0xff]
  %v8150 = vld [vmem:[%s6806 + $0x173] sm:$0xff]
  %v8151 = vmin.f32 %v7959, %v8023
  %v8152 = vmin.f32 %v7960, %v8024
  %v8153 = vmin.f32 %v7961, %v8025
  %v8154 = vmin.f32 %v7962, %v8026
  %v8155 = vmin.f32 %v7963, %v8027
  %v8156 = vmin.f32 %v7964, %v8028
  %v8157 = vmin.f32 %v7965, %v8029
  %v8158 = vmin.f32 %v7966, %v8030
  %v8159 = vmin.f32 %v7967, %v8031
  %v8160 = vmin.f32 %v7968, %v8032
  %v8161 = vmin.f32 %v7969, %v8033
  %v8162 = vmin.f32 %v7970, %v8034
  %v8163 = vmin.f32 %v7971, %v8035
  %v8164 = vmin.f32 %v7972, %v8036
  %v8165 = vmin.f32 %v7973, %v8037
  %v8166 = vmin.f32 %v7974, %v8038
  %v8167 = vmin.f32 %v7975, %v8039
  %v8168 = vmin.f32 %v7976, %v8040
  %v8169 = vmin.f32 %v7977, %v8041
  %v8170 = vmin.f32 %v7978, %v8042
  %v8171 = vmin.f32 %v7979, %v8043
  %v8172 = vmin.f32 %v7980, %v8044
  %v8173 = vmin.f32 %v7981, %v8045
  %v8174 = vmin.f32 %v7982, %v8046
  %v8175 = vmin.f32 %v7983, %v8047
  %v8176 = vmin.f32 %v7984, %v8048
  %v8177 = vmin.f32 %v7985, %v8049
  %v8178 = vmin.f32 %v7986, %v8050
  %v8179 = vmin.f32 %v7987, %v8051
  %v8180 = vmin.f32 %v7988, %v8052
  %v8181 = vmin.f32 %v7989, %v8053
  %v8182 = vmin.f32 %v7990, %v8054
  %v8183 = vmax.f32 %v7959, %v8023
  %v8184 = vmax.f32 %v7960, %v8024
  %v8185 = vmax.f32 %v7961, %v8025
  %v8186 = vmax.f32 %v7962, %v8026
  %v8187 = vmax.f32 %v7963, %v8027
  %v8188 = vmax.f32 %v7964, %v8028
  %v8189 = vmax.f32 %v7965, %v8029
  %v8190 = vmax.f32 %v7966, %v8030
  %v8191 = vmax.f32 %v7967, %v8031
  %v8192 = vmax.f32 %v7968, %v8032
  %v8193 = vmax.f32 %v7969, %v8033
  %v8194 = vmax.f32 %v7970, %v8034
  %v8195 = vmax.f32 %v7971, %v8035
  %v8196 = vmax.f32 %v7972, %v8036
  %v8197 = vmax.f32 %v7973, %v8037
  %v8198 = vmax.f32 %v7974, %v8038
  %v8199 = vmax.f32 %v7975, %v8039
  %v8200 = vmax.f32 %v7976, %v8040
  %v8201 = vmax.f32 %v7977, %v8041
  %v8202 = vmax.f32 %v7978, %v8042
  %v8203 = vmax.f32 %v7979, %v8043
  %v8204 = vmax.f32 %v7980, %v8044
  %v8205 = vmax.f32 %v7981, %v8045
  %v8206 = vmax.f32 %v7982, %v8046
  %v8207 = vmax.f32 %v7983, %v8047
  %v8208 = vmax.f32 %v7984, %v8048
  %v8209 = vmax.f32 %v7985, %v8049
  %v8210 = vmax.f32 %v7986, %v8050
  %v8211 = vmax.f32 %v7987, %v8051
  %v8212 = vmax.f32 %v7988, %v8052
  %v8213 = vmax.f32 %v7989, %v8053
  %v8214 = vmax.f32 %v7990, %v8054
  %v8215 = vmin.f32 %v8087, %v8119
  %v8216 = vmin.f32 %v8088, %v8120
  %v8217 = vmin.f32 %v8089, %v8121
  %v8218 = vmin.f32 %v8090, %v8122
  %v8219 = vmin.f32 %v8091, %v8123
  %v8220 = vmin.f32 %v8092, %v8124
  %v8221 = vmin.f32 %v8093, %v8125
  %v8222 = vmin.f32 %v8094, %v8126
  %v8223 = vmin.f32 %v8095, %v8127
  %v8224 = vmin.f32 %v8096, %v8128
  %v8225 = vmin.f32 %v8097, %v8129
  %v8226 = vmin.f32 %v8098, %v8130
  %v8227 = vmin.f32 %v8099, %v8131
  %v8228 = vmin.f32 %v8100, %v8132
  %v8229 = vmin.f32 %v8101, %v8133
  %v8230 = vmin.f32 %v8102, %v8134
  %v8231 = vmin.f32 %v8103, %v8135
  %v8232 = vmin.f32 %v8104, %v8136
  %v8233 = vmin.f32 %v8105, %v8137
  %v8234 = vmin.f32 %v8106, %v8138
  %v8235 = vmin.f32 %v8107, %v8139
  %v8236 = vmin.f32 %v8108, %v8140
  %v8237 = vmin.f32 %v8109, %v8141
  %v8238 = vmin.f32 %v8110, %v8142
  %v8239 = vmin.f32 %v8111, %v8143
  %v8240 = vmin.f32 %v8112, %v8144
  %v8241 = vmin.f32 %v8113, %v8145
  %v8242 = vmin.f32 %v8114, %v8146
  %v8243 = vmin.f32 %v8115, %v8147
  %v8244 = vmin.f32 %v8116, %v8148
  %v8245 = vmin.f32 %v8117, %v8149
  %v8246 = vmin.f32 %v8118, %v8150
  %v8247 = vmax.f32 %v8087, %v8119
  %v8248 = vmax.f32 %v8088, %v8120
  %v8249 = vmax.f32 %v8089, %v8121
  %v8250 = vmax.f32 %v8090, %v8122
  %v8251 = vmax.f32 %v8091, %v8123
  %v8252 = vmax.f32 %v8092, %v8124
  %v8253 = vmax.f32 %v8093, %v8125
  %v8254 = vmax.f32 %v8094, %v8126
  %v8255 = vmax.f32 %v8095, %v8127
  %v8256 = vmax.f32 %v8096, %v8128
  %v8257 = vmax.f32 %v8097, %v8129
  %v8258 = vmax.f32 %v8098, %v8130
  %v8259 = vmax.f32 %v8099, %v8131
  %v8260 = vmax.f32 %v8100, %v8132
  %v8261 = vmax.f32 %v8101, %v8133
  %v8262 = vmax.f32 %v8102, %v8134
  %v8263 = vmax.f32 %v8103, %v8135
  %v8264 = vmax.f32 %v8104, %v8136
  %v8265 = vmax.f32 %v8105, %v8137
  %v8266 = vmax.f32 %v8106, %v8138
  %v8267 = vmax.f32 %v8107, %v8139
  %v8268 = vmax.f32 %v8108, %v8140
  %v8269 = vmax.f32 %v8109, %v8141
  %v8270 = vmax.f32 %v8110, %v8142
  %v8271 = vmax.f32 %v8111, %v8143
  %v8272 = vmax.f32 %v8112, %v8144
  %v8273 = vmax.f32 %v8113, %v8145
  %v8274 = vmax.f32 %v8114, %v8146
  %v8275 = vmax.f32 %v8115, %v8147
  %v8276 = vmax.f32 %v8116, %v8148
  %v8277 = vmax.f32 %v8117, %v8149
  %v8278 = vmax.f32 %v8118, %v8150
  %v8279 = vmax.f32 %v8151, %v8215
  %v8280 = vmax.f32 %v8152, %v8216
  %v8281 = vmax.f32 %v8153, %v8217
  %v8282 = vmax.f32 %v8154, %v8218
  %v8283 = vmax.f32 %v8155, %v8219
  %v8284 = vmax.f32 %v8156, %v8220
  %v8285 = vmax.f32 %v8157, %v8221
  %v8286 = vmax.f32 %v8158, %v8222
  %v8287 = vmax.f32 %v8159, %v8223
  %v8288 = vmax.f32 %v8160, %v8224
  %v8289 = vmax.f32 %v8161, %v8225
  %v8290 = vmax.f32 %v8162, %v8226
  %v8291 = vmax.f32 %v8163, %v8227
  %v8292 = vmax.f32 %v8164, %v8228
  %v8293 = vmax.f32 %v8165, %v8229
  %v8294 = vmax.f32 %v8166, %v8230
  %v8295 = vmax.f32 %v8167, %v8231
  %v8296 = vmax.f32 %v8168, %v8232
  %v8297 = vmax.f32 %v8169, %v8233
  %v8298 = vmax.f32 %v8170, %v8234
  %v8299 = vmax.f32 %v8171, %v8235
  %v8300 = vmax.f32 %v8172, %v8236
  %v8301 = vmax.f32 %v8173, %v8237
  %v8302 = vmax.f32 %v8174, %v8238
  %v8303 = vmax.f32 %v8175, %v8239
  %v8304 = vmax.f32 %v8176, %v8240
  %v8305 = vmax.f32 %v8177, %v8241
  %v8306 = vmax.f32 %v8178, %v8242
  %v8307 = vmax.f32 %v8179, %v8243
  %v8308 = vmax.f32 %v8180, %v8244
  %v8309 = vmax.f32 %v8181, %v8245
  %v8310 = vmax.f32 %v8182, %v8246
  %v8311 = vmin.f32 %v8183, %v8247
  %v8312 = vmin.f32 %v8184, %v8248
  %v8313 = vmin.f32 %v8185, %v8249
  %v8314 = vmin.f32 %v8186, %v8250
  %v8315 = vmin.f32 %v8187, %v8251
  %v8316 = vmin.f32 %v8188, %v8252
  %v8317 = vmin.f32 %v8189, %v8253
  %v8318 = vmin.f32 %v8190, %v8254
  %v8319 = vmin.f32 %v8191, %v8255
  %v8320 = vmin.f32 %v8192, %v8256
  %v8321 = vmin.f32 %v8193, %v8257
  %v8322 = vmin.f32 %v8194, %v8258
  %v8323 = vmin.f32 %v8195, %v8259
  %v8324 = vmin.f32 %v8196, %v8260
  %v8325 = vmin.f32 %v8197, %v8261
  %v8326 = vmin.f32 %v8198, %v8262
  %v8327 = vmin.f32 %v8199, %v8263
  %v8328 = vmin.f32 %v8200, %v8264
  %v8329 = vmin.f32 %v8201, %v8265
  %v8330 = vmin.f32 %v8202, %v8266
  %v8331 = vmin.f32 %v8203, %v8267
  %v8332 = vmin.f32 %v8204, %v8268
  %v8333 = vmin.f32 %v8205, %v8269
  %v8334 = vmin.f32 %v8206, %v8270
  %v8335 = vmin.f32 %v8207, %v8271
  %v8336 = vmin.f32 %v8208, %v8272
  %v8337 = vmin.f32 %v8209, %v8273
  %v8338 = vmin.f32 %v8210, %v8274
  %v8339 = vmin.f32 %v8211, %v8275
  %v8340 = vmin.f32 %v8212, %v8276
  %v8341 = vmin.f32 %v8213, %v8277
  %v8342 = vmin.f32 %v8214, %v8278
  %v8343 = vld [vmem:[%s6806 + $0x4] sm:$0xff]
  %v8344 = vld [vmem:[%s6806 + $0xc] sm:$0xff]
  %v8345 = vld [vmem:[%s6806 + $0x1c] sm:$0xff]
  %v8346 = vld [vmem:[%s6806 + $0x24] sm:$0xff]
  %v8347 = vld [vmem:[%s6806 + $0x34] sm:$0xff]
  %v8348 = vld [vmem:[%s6806 + $0x3c] sm:$0xff]
  %v8349 = vld [vmem:[%s6806 + $0x4c] sm:$0xff]
  %v8350 = vld [vmem:[%s6806 + $0x54] sm:$0xff]
  %v8351 = vld [vmem:[%s6806 + $0x64] sm:$0xff]
  %v8352 = vld [vmem:[%s6806 + $0x6c] sm:$0xff]
  %v8353 = vld [vmem:[%s6806 + $0x7c] sm:$0xff]
  %v8354 = vld [vmem:[%s6806 + $0x84] sm:$0xff]
  %v8355 = vld [vmem:[%s6806 + $0x94] sm:$0xff]
  %v8356 = vld [vmem:[%s6806 + $0x9c] sm:$0xff]
  %v8357 = vld [vmem:[%s6806 + $0xac] sm:$0xff]
  %v8358 = vld [vmem:[%s6806 + $0xb4] sm:$0xff]
  %v8359 = vld [vmem:[%s6806 + $0xc4] sm:$0xff]
  %v8360 = vld [vmem:[%s6806 + $0xcc] sm:$0xff]
  %v8361 = vld [vmem:[%s6806 + $0xdc] sm:$0xff]
  %v8362 = vld [vmem:[%s6806 + $0xe4] sm:$0xff]
  %v8363 = vld [vmem:[%s6806 + $0xf4] sm:$0xff]
  %v8364 = vld [vmem:[%s6806 + $0xfc] sm:$0xff]
  %v8365 = vld [vmem:[%s6806 + $0x10c] sm:$0xff]
  %v8366 = vld [vmem:[%s6806 + $0x114] sm:$0xff]
  %v8367 = vld [vmem:[%s6806 + $0x124] sm:$0xff]
  %v8368 = vld [vmem:[%s6806 + $0x12c] sm:$0xff]
  %v8369 = vld [vmem:[%s6806 + $0x13c] sm:$0xff]
  %v8370 = vld [vmem:[%s6806 + $0x144] sm:$0xff]
  %v8371 = vld [vmem:[%s6806 + $0x154] sm:$0xff]
  %v8372 = vld [vmem:[%s6806 + $0x15c] sm:$0xff]
  %v8373 = vld [vmem:[%s6806 + $0x16c] sm:$0xff]
  %v8374 = vld [vmem:[%s6806 + $0x174] sm:$0xff]
  %v8375 = vmin.f32 %v8279, %v8311
  %v8376 = vmin.f32 %v8280, %v8312
  %v8377 = vmin.f32 %v8281, %v8313
  %v8378 = vmin.f32 %v8282, %v8314
  %v8379 = vmin.f32 %v8283, %v8315
  %v8380 = vmin.f32 %v8284, %v8316
  %v8381 = vmin.f32 %v8285, %v8317
  %v8382 = vmin.f32 %v8286, %v8318
  %v8383 = vmin.f32 %v8287, %v8319
  %v8384 = vmin.f32 %v8288, %v8320
  %v8385 = vmin.f32 %v8289, %v8321
  %v8386 = vmin.f32 %v8290, %v8322
  %v8387 = vmin.f32 %v8291, %v8323
  %v8388 = vmin.f32 %v8292, %v8324
  %v8389 = vmin.f32 %v8293, %v8325
  %v8390 = vmin.f32 %v8294, %v8326
  %v8391 = vmin.f32 %v8295, %v8327
  %v8392 = vmin.f32 %v8296, %v8328
  %v8393 = vmin.f32 %v8297, %v8329
  %v8394 = vmin.f32 %v8298, %v8330
  %v8395 = vmin.f32 %v8299, %v8331
  %v8396 = vmin.f32 %v8300, %v8332
  %v8397 = vmin.f32 %v8301, %v8333
  %v8398 = vmin.f32 %v8302, %v8334
  %v8399 = vmin.f32 %v8303, %v8335
  %v8400 = vmin.f32 %v8304, %v8336
  %v8401 = vmin.f32 %v8305, %v8337
  %v8402 = vmin.f32 %v8306, %v8338
  %v8403 = vmin.f32 %v8307, %v8339
  %v8404 = vmin.f32 %v8308, %v8340
  %v8405 = vmin.f32 %v8309, %v8341
  %v8406 = vmin.f32 %v8310, %v8342
  %v8407 = vmax.f32 %v8279, %v8311
  %v8408 = vmax.f32 %v8280, %v8312
  %v8409 = vmax.f32 %v8281, %v8313
  %v8410 = vmax.f32 %v8282, %v8314
  %v8411 = vmax.f32 %v8283, %v8315
  %v8412 = vmax.f32 %v8284, %v8316
  %v8413 = vmax.f32 %v8285, %v8317
  %v8414 = vmax.f32 %v8286, %v8318
  %v8415 = vmax.f32 %v8287, %v8319
  %v8416 = vmax.f32 %v8288, %v8320
  %v8417 = vmax.f32 %v8289, %v8321
  %v8418 = vmax.f32 %v8290, %v8322
  %v8419 = vmax.f32 %v8291, %v8323
  %v8420 = vmax.f32 %v8292, %v8324
  %v8421 = vmax.f32 %v8293, %v8325
  %v8422 = vmax.f32 %v8294, %v8326
  %v8423 = vmax.f32 %v8295, %v8327
  %v8424 = vmax.f32 %v8296, %v8328
  %v8425 = vmax.f32 %v8297, %v8329
  %v8426 = vmax.f32 %v8298, %v8330
  %v8427 = vmax.f32 %v8299, %v8331
  %v8428 = vmax.f32 %v8300, %v8332
  %v8429 = vmax.f32 %v8301, %v8333
  %v8430 = vmax.f32 %v8302, %v8334
  %v8431 = vmax.f32 %v8303, %v8335
  %v8432 = vmax.f32 %v8304, %v8336
  %v8433 = vmax.f32 %v8305, %v8337
  %v8434 = vmax.f32 %v8306, %v8338
  %v8435 = vmax.f32 %v8307, %v8339
  %v8436 = vmax.f32 %v8308, %v8340
  %v8437 = vmax.f32 %v8309, %v8341
  %v8438 = vmax.f32 %v8310, %v8342
  %v8439 = vmax.f32 %v8375, %v8343
  %v8440 = vmax.f32 %v8376, %v8344
  %v8441 = vmax.f32 %v8377, %v8345
  %v8442 = vmax.f32 %v8378, %v8346
  %v8443 = vmax.f32 %v8379, %v8347
  %v8444 = vmax.f32 %v8380, %v8348
  %v8445 = vmax.f32 %v8381, %v8349
  %v8446 = vmax.f32 %v8382, %v8350
  %v8447 = vmax.f32 %v8383, %v8351
  %v8448 = vmax.f32 %v8384, %v8352
  %v8449 = vmax.f32 %v8385, %v8353
  %v8450 = vmax.f32 %v8386, %v8354
  %v8451 = vmax.f32 %v8387, %v8355
  %v8452 = vmax.f32 %v8388, %v8356
  %v8453 = vmax.f32 %v8389, %v8357
  %v8454 = vmax.f32 %v8390, %v8358
  %v8455 = vmax.f32 %v8391, %v8359
  %v8456 = vmax.f32 %v8392, %v8360
  %v8457 = vmax.f32 %v8393, %v8361
  %v8458 = vmax.f32 %v8394, %v8362
  %v8459 = vmax.f32 %v8395, %v8363
  %v8460 = vmax.f32 %v8396, %v8364
  %v8461 = vmax.f32 %v8397, %v8365
  %v8462 = vmax.f32 %v8398, %v8366
  %v8463 = vmax.f32 %v8399, %v8367
  %v8464 = vmax.f32 %v8400, %v8368
  %v8465 = vmax.f32 %v8401, %v8369
  %v8466 = vmax.f32 %v8402, %v8370
  %v8467 = vmax.f32 %v8403, %v8371
  %v8468 = vmax.f32 %v8404, %v8372
  %v8469 = vmax.f32 %v8405, %v8373
  %v8470 = vmax.f32 %v8406, %v8374
  %v8471 = vmin.f32 %v8407, %v8439
  %v8472 = vmin.f32 %v8408, %v8440
  %v8473 = vmin.f32 %v8409, %v8441
  %v8474 = vmin.f32 %v8410, %v8442
  %v8475 = vmin.f32 %v8411, %v8443
  %v8476 = vmin.f32 %v8412, %v8444
  %v8477 = vmin.f32 %v8413, %v8445
  %v8478 = vmin.f32 %v8414, %v8446
  %v8479 = vmin.f32 %v8415, %v8447
  %v8480 = vmin.f32 %v8416, %v8448
  %v8481 = vmin.f32 %v8417, %v8449
  %v8482 = vmin.f32 %v8418, %v8450
  %v8483 = vmin.f32 %v8419, %v8451
  %v8484 = vmin.f32 %v8420, %v8452
  %v8485 = vmin.f32 %v8421, %v8453
  %v8486 = vmin.f32 %v8422, %v8454
  %v8487 = vmin.f32 %v8423, %v8455
  %v8488 = vmin.f32 %v8424, %v8456
  %v8489 = vmin.f32 %v8425, %v8457
  %v8490 = vmin.f32 %v8426, %v8458
  %v8491 = vmin.f32 %v8427, %v8459
  %v8492 = vmin.f32 %v8428, %v8460
  %v8493 = vmin.f32 %v8429, %v8461
  %v8494 = vmin.f32 %v8430, %v8462
  %v8495 = vmin.f32 %v8431, %v8463
  %v8496 = vmin.f32 %v8432, %v8464
  %v8497 = vmin.f32 %v8433, %v8465
  %v8498 = vmin.f32 %v8434, %v8466
  %v8499 = vmin.f32 %v8435, %v8467
  %v8500 = vmin.f32 %v8436, %v8468
  %v8501 = vmin.f32 %v8437, %v8469
  %v8502 = vmin.f32 %v8438, %v8470
  %vm8503 = vcmask 64512
  %8504 = vst.msk [vmem:[%s1] sm:$0xff] %vm8503, %v8471
  %8505 = vst.msk [vmem:[%s1 + $0x8] sm:$0xff] %vm8503, %v8472
  %8506 = vst.msk [vmem:[%s1 + $0x10] sm:$0xff] %vm8503, %v8473
  %8507 = vst.msk [vmem:[%s1 + $0x18] sm:$0xff] %vm8503, %v8474
  %8508 = vst.msk [vmem:[%s1 + $0x20] sm:$0xff] %vm8503, %v8475
  %8509 = vst.msk [vmem:[%s1 + $0x28] sm:$0xff] %vm8503, %v8476
  %8510 = vst.msk [vmem:[%s1 + $0x30] sm:$0xff] %vm8503, %v8477
  %8511 = vst.msk [vmem:[%s1 + $0x38] sm:$0xff] %vm8503, %v8478
  %8512 = vst.msk [vmem:[%s1 + $0x40] sm:$0xff] %vm8503, %v8479
  %8513 = vst.msk [vmem:[%s1 + $0x48] sm:$0xff] %vm8503, %v8480
  %8514 = vst.msk [vmem:[%s1 + $0x50] sm:$0xff] %vm8503, %v8481
  %8515 = vst.msk [vmem:[%s1 + $0x58] sm:$0xff] %vm8503, %v8482
  %8516 = vst.msk [vmem:[%s1 + $0x60] sm:$0xff] %vm8503, %v8483
  %8517 = vst.msk [vmem:[%s1 + $0x68] sm:$0xff] %vm8503, %v8484
  %8518 = vst.msk [vmem:[%s1 + $0x70] sm:$0xff] %vm8503, %v8485
  %8519 = vst.msk [vmem:[%s1 + $0x78] sm:$0xff] %vm8503, %v8486
  %8520 = vst.msk [vmem:[%s1 + $0x80] sm:$0xff] %vm8503, %v8487
  %8521 = vst.msk [vmem:[%s1 + $0x88] sm:$0xff] %vm8503, %v8488
  %8522 = vst.msk [vmem:[%s1 + $0x90] sm:$0xff] %vm8503, %v8489
  %8523 = vst.msk [vmem:[%s1 + $0x98] sm:$0xff] %vm8503, %v8490
  %8524 = vst.msk [vmem:[%s1 + $0xa0] sm:$0xff] %vm8503, %v8491
  %8525 = vst.msk [vmem:[%s1 + $0xa8] sm:$0xff] %vm8503, %v8492
  %8526 = vst.msk [vmem:[%s1 + $0xb0] sm:$0xff] %vm8503, %v8493
  %8527 = vst.msk [vmem:[%s1 + $0xb8] sm:$0xff] %vm8503, %v8494
  %8528 = vst.msk [vmem:[%s1 + $0xc0] sm:$0xff] %vm8503, %v8495
  %8529 = vst.msk [vmem:[%s1 + $0xc8] sm:$0xff] %vm8503, %v8496
  %8530 = vst.msk [vmem:[%s1 + $0xd0] sm:$0xff] %vm8503, %v8497
  %8531 = vst.msk [vmem:[%s1 + $0xd8] sm:$0xff] %vm8503, %v8498
  %8532 = vst.msk [vmem:[%s1 + $0xe0] sm:$0xff] %vm8503, %v8499
  %8533 = vst.msk [vmem:[%s1 + $0xe8] sm:$0xff] %vm8503, %v8500
  %8534 = vst.msk [vmem:[%s1 + $0xf0] sm:$0xff] %vm8503, %v8501
  %8535 = vst.msk [vmem:[%s1 + $0xf8] sm:$0xff] %vm8503, %v8502
  // Predicated region
  $region6: #{learnable_median_filter.1} parent=0 // pred_check
    _
  $region7: #{learnable_median_filter.1} parent=0 // pred_check_branch
    %8537 = sbr.rel (0) target = $region9
  $region8: #{learnable_median_filter.1} parent=0 // pred_region
    _
  $region9: #{learnable_median_filter.1} parent=0 // pred_fallthru
    _
  // Predicated region
  $region10: #{learnable_median_filter.1} parent=0 // pred_check
    _
  $region11: #{learnable_median_filter.1} parent=0 // pred_check_branch
    %8539 = sbr.rel (0) target = $region13
  $region12: #{learnable_median_filter.1} parent=0 // pred_region
    _
  $region13: #{learnable_median_filter.1} parent=0 // pred_fallthru
    _

</llo_original>
